<compile_context>
chip_gen: v7x
topology: tpu7x:2x2x1
jax: 0.10.0
libtpu: 0.0.40
codegen_flags: <defaults>
</compile_context>

<pallas_src>
import functools

import jax
import jax.numpy as jnp
from jax.experimental import pallas as pl
from jax.experimental.pallas import tpu as pltpu

EPS = 1e-5
LANE = 128                       # channel dims padded to multiples of this
TILE_M = 256                     # rows (of N*H*W) per tile; use 512-1024 at
                                 # production shapes, halve on v7x
MXU_DTYPE = jnp.bfloat16         # MXU operand dtype (accumulation is f32)
VMEM_LIMIT = 32 * 1024 * 1024    # explicit scoped-VMEM cap (safe v5e..v7x)


def _round_up(x, n):
    return (x + n - 1) // n * n


def _pad_axis(x, size, axis):
    pad = size - x.shape[axis]
    if pad <= 0:
        return x
    widths = [(0, 0)] * x.ndim
    widths[axis] = (0, pad)
    return jnp.pad(x, widths)


# ----------------------------------------------------------------------------
# Kernels
# ----------------------------------------------------------------------------
def _conv1x1_stats_kernel(x_ref, w_ref, y_ref, sum_ref, sq_ref):
    """y = x @ w (bf16 operands, f32 accumulate); accumulate BN batch stats."""
    i = pl.program_id(0)

    @pl.when(i == 0)
    def _init():
        sum_ref[...] = jnp.zeros_like(sum_ref)
        sq_ref[...] = jnp.zeros_like(sq_ref)

    y = jnp.dot(x_ref[...].astype(MXU_DTYPE), w_ref[...],
                preferred_element_type=jnp.float32)
    y_ref[...] = y
    # one-pass statistics: per-channel sum and sum-of-squares (f32)
    sum_ref[...] += jnp.sum(y, axis=0, keepdims=True)
    sq_ref[...] += jnp.sum(y * y, axis=0, keepdims=True)


def _bn_relu_conv3x3_stats_kernel(y1_ref, sc_ref, bi_ref, w2_ref,
                                  y2_ref, sum_ref, sq_ref):
    """Per image: h1 = relu(bn1(y1)) (fused input read); y2 = conv3x3(h1) as
    9 shift-accumulated MXU matmuls into the VMEM-resident output block
    (zero padding handled by restricting the accumulated region); accumulate
    bn2 batch statistics."""
    n = pl.program_id(0)
    _, hh, ww, c1 = y1_ref.shape
    c2 = w2_ref.shape[2]

    @pl.when(n == 0)
    def _init():
        sum_ref[...] = jnp.zeros_like(sum_ref)
        sq_ref[...] = jnp.zeros_like(sq_ref)

    # Fold the previous layer's BN-apply + ReLU into this kernel's input read.
    y1 = y1_ref[0].reshape(hh * ww, c1)
    h1 = jnp.maximum(y1 * sc_ref[...] + bi_ref[...], 0.0).astype(MXU_DTYPE)

    y2_ref[...] = jnp.zeros_like(y2_ref)
    for k in range(9):                                   # static unroll
        oy, ox = k // 3 - 1, k % 3 - 1
        z = jnp.dot(h1, w2_ref[k],
                    preferred_element_type=jnp.float32).reshape(hh, ww, c2)
        rs0, rs1 = max(0, -oy), hh - max(0, oy)
        cs0, cs1 = max(0, -ox), ww - max(0, ox)
        y2_ref[0, rs0:rs1, cs0:cs1, :] += (
            z[rs0 + oy:rs1 + oy, cs0 + ox:cs1 + ox, :])

    y2 = y2_ref[0].reshape(hh * ww, c2)
    sum_ref[...] += jnp.sum(y2, axis=0, keepdims=True)
    sq_ref[...] += jnp.sum(y2 * y2, axis=0, keepdims=True)


def _bn_relu_conv1x1_stats_kernel(y_in_ref, sc_ref, bi_ref, w_ref,
                                  y_ref, sum_ref, sq_ref, *, true_m, tile_m):
    """h = relu(bn_prev(y_in)) (padded rows masked so they do not pollute the
    batch statistics); y = h @ w; accumulate this layer's BN batch stats."""
    i = pl.program_id(0)

    @pl.when(i == 0)
    def _init():
        sum_ref[...] = jnp.zeros_like(sum_ref)
        sq_ref[...] = jnp.zeros_like(sq_ref)

    h = jnp.maximum(y_in_ref[...] * sc_ref[...] + bi_ref[...], 0.0)
    row = i * tile_m + jax.lax.broadcasted_iota(jnp.int32, (h.shape[0], 1), 0)
    h = jnp.where(row < true_m, h, 0.0)
    y = jnp.dot(h.astype(MXU_DTYPE), w_ref[...],
                preferred_element_type=jnp.float32)
    y_ref[...] = y
    sum_ref[...] += jnp.sum(y, axis=0, keepdims=True)
    sq_ref[...] += jnp.sum(y * y, axis=0, keepdims=True)


def _bn_add_relu_kernel(y_ref, sc_ref, bi_ref, res_ref, o_ref):
    o_ref[...] = jnp.maximum(
        y_ref[...] * sc_ref[...] + bi_ref[...] + res_ref[...], 0.0)


# ----------------------------------------------------------------------------
# pallas_call wrappers (tiled over M / over images, weights kept resident)
# ----------------------------------------------------------------------------
def _conv1x1_stats(x2d, w):
    m_pad, c_in = x2d.shape
    c_out = w.shape[1]
    return pl.pallas_call(
        _conv1x1_stats_kernel,
        out_shape=(
            jax.ShapeDtypeStruct((m_pad, c_out), jnp.float32),
            jax.ShapeDtypeStruct((1, c_out), jnp.float32),
            jax.ShapeDtypeStruct((1, c_out), jnp.float32),
        ),
        grid=(m_pad // TILE_M,),
        in_specs=[
            pl.BlockSpec((TILE_M, c_in), lambda i: (i, 0)),
            pl.BlockSpec((c_in, c_out), lambda i: (0, 0)),    # resident weight
        ],
        out_specs=(
            pl.BlockSpec((TILE_M, c_out), lambda i: (i, 0)),
            pl.BlockSpec((1, c_out), lambda i: (0, 0)),       # stats accum
            pl.BlockSpec((1, c_out), lambda i: (0, 0)),
        ),
        compiler_params=pltpu.CompilerParams(
            dimension_semantics=("arbitrary",),   # accumulates across tiles
            vmem_limit_bytes=VMEM_LIMIT),
    )(x2d, w)


def _conv3x3_stats(y1_nhwc, sc, bi, w2):
    n, hh, ww, c1 = y1_nhwc.shape
    c2 = w2.shape[2]
    return pl.pallas_call(
        _bn_relu_conv3x3_stats_kernel,
        out_shape=(
            jax.ShapeDtypeStruct((n, hh, ww, c2), jnp.float32),
            jax.ShapeDtypeStruct((1, c2), jnp.float32),
            jax.ShapeDtypeStruct((1, c2), jnp.float32),
        ),
        grid=(n,),
        in_specs=[
            pl.BlockSpec((1, hh, ww, c1), lambda i: (i, 0, 0, 0)),
            pl.BlockSpec((1, c1), lambda i: (0, 0)),
            pl.BlockSpec((1, c1), lambda i: (0, 0)),
            pl.BlockSpec((9, c1, c2), lambda i: (0, 0, 0)),   # resident weight
        ],
        out_specs=(
            pl.BlockSpec((1, hh, ww, c2), lambda i: (i, 0, 0, 0)),
            pl.BlockSpec((1, c2), lambda i: (0, 0)),
            pl.BlockSpec((1, c2), lambda i: (0, 0)),
        ),
        compiler_params=pltpu.CompilerParams(
            dimension_semantics=("arbitrary",),
            vmem_limit_bytes=VMEM_LIMIT),
    )(y1_nhwc, sc, bi, w2)


def _bn_relu_conv1x1_stats(y_in, sc, bi, w, true_m):
    m_pad, c_in = y_in.shape
    c_out = w.shape[1]
    kernel = functools.partial(_bn_relu_conv1x1_stats_kernel,
                               true_m=true_m, tile_m=TILE_M)
    return pl.pallas_call(
        kernel,
        out_shape=(
            jax.ShapeDtypeStruct((m_pad, c_out), jnp.float32),
            jax.ShapeDtypeStruct((1, c_out), jnp.float32),
            jax.ShapeDtypeStruct((1, c_out), jnp.float32),
        ),
        grid=(m_pad // TILE_M,),
        in_specs=[
            pl.BlockSpec((TILE_M, c_in), lambda i: (i, 0)),
            pl.BlockSpec((1, c_in), lambda i: (0, 0)),
            pl.BlockSpec((1, c_in), lambda i: (0, 0)),
            pl.BlockSpec((c_in, c_out), lambda i: (0, 0)),
        ],
        out_specs=(
            pl.BlockSpec((TILE_M, c_out), lambda i: (i, 0)),
            pl.BlockSpec((1, c_out), lambda i: (0, 0)),
            pl.BlockSpec((1, c_out), lambda i: (0, 0)),
        ),
        compiler_params=pltpu.CompilerParams(
            dimension_semantics=("arbitrary",),
            vmem_limit_bytes=VMEM_LIMIT),
    )(y_in, sc, bi, w)


def _bn_add_relu(y, sc, bi, res):
    m_pad, c = y.shape
    return pl.pallas_call(
        _bn_add_relu_kernel,
        out_shape=jax.ShapeDtypeStruct((m_pad, c), jnp.float32),
        grid=(m_pad // TILE_M,),
        in_specs=[
            pl.BlockSpec((TILE_M, c), lambda i: (i, 0)),
            pl.BlockSpec((1, c), lambda i: (0, 0)),
            pl.BlockSpec((1, c), lambda i: (0, 0)),
            pl.BlockSpec((TILE_M, c), lambda i: (i, 0)),
        ],
        out_specs=pl.BlockSpec((TILE_M, c), lambda i: (i, 0)),
        compiler_params=pltpu.CompilerParams(
            dimension_semantics=("parallel",),    # no cross-tile state
            vmem_limit_bytes=VMEM_LIMIT),
    )(y, sc, bi, res)


# ----------------------------------------------------------------------------
# Glue (tiny per-channel math + one-time weight packing)
# ----------------------------------------------------------------------------
def _bn_affine(s, sq, gamma, beta, count):
    """Fold training-mode BN into y * scale + bias (per-channel vectors)."""
    mean = s[0] / count
    var = jnp.maximum(sq[0] / count - mean * mean, 0.0)
    scale = gamma * jax.lax.rsqrt(var + EPS)
    bias = beta - mean * scale
    return scale[None, :], bias[None, :]


def prepare_params(p):
    """One-time packing outside the hot path: HWIO matmul layout, channels
    zero-padded to LANE multiples, MXU operands cast to MXU_DTYPE, BN affine
    params zero-padded."""
    planes, inplanes = p["w1"].shape[:2]
    out_ch = p["w3"].shape[0]
    c0 = _round_up(inplanes, LANE)
    cp = _round_up(planes, LANE)
    ce = _round_up(out_ch, LANE)

    w1 = jnp.transpose(p["w1"], (2, 3, 1, 0)).reshape(inplanes, planes)
    w1 = _pad_axis(_pad_axis(w1, c0, 0), cp, 1).astype(MXU_DTYPE)
    w2 = jnp.transpose(p["w2"], (2, 3, 1, 0)).reshape(9, planes, planes)
    w2 = _pad_axis(_pad_axis(w2, cp, 1), cp, 2).astype(MXU_DTYPE)
    w3 = jnp.transpose(p["w3"], (2, 3, 1, 0)).reshape(planes, out_ch)
    w3 = _pad_axis(_pad_axis(w3, cp, 0), ce, 1).astype(MXU_DTYPE)

    return {
        "w1": w1, "w2": w2, "w3": w3,
        "g1": _pad_axis(p["g1"], cp, 0), "b1": _pad_axis(p["b1"], cp, 0),
        "g2": _pad_axis(p["g2"], cp, 0), "b2": _pad_axis(p["b2"], cp, 0),
        "g3": _pad_axis(p["g3"], ce, 0), "b3": _pad_axis(p["b3"], ce, 0),
    }


# ----------------------------------------------------------------------------
# Bottleneck forward
# ----------------------------------------------------------------------------
def bottleneck_forward(x_nchw, pk, out_ch):
    n, c_in, hh, ww = x_nchw.shape
    c0, cp = pk["w1"].shape
    ce = pk["w3"].shape[1]

    # Identity residual only (module default: stride=1, downsample=None).
    if not (c_in == out_ch and c0 == ce):
        raise ValueError("identity residual requires inplanes == planes * 4 "
                         "(downsample path not implemented)")
    # TODO(synk): stride > 1 / downsample residual projection not implemented.

    m = n * hh * ww
    m_pad = _round_up(m, TILE_M)

    # NCHW -> NHWC -> (M, C); channels / rows zero-padded.  Kept in f32 (it is
    # reused as the residual); the MXU-operand cast happens inside the kernels.
    x2d = jnp.transpose(x_nchw, (0, 2, 3, 1)).reshape(m, c_in)
    x2d = _pad_axis(_pad_axis(x2d, c0, 1), m_pad, 0)

    # conv1 (1x1): pre-BN output + bn1 batch statistics (pass 1).
    y1, s1, q1 = _conv1x1_stats(x2d, pk["w1"])
    sc1, bi1 = _bn_affine(s1, q1, pk["g1"], pk["b1"], m)

    # conv2 (3x3, pad=1) fused with bn1-apply + ReLU; bn2 statistics.
    y1_nhwc = y1[:m].reshape(n, hh, ww, cp)
    y2, s2, q2 = _conv3x3_stats(y1_nhwc, sc1, bi1, pk["w2"])
    sc2, bi2 = _bn_affine(s2, q2, pk["g2"], pk["b2"], m)

    # conv3 (1x1) fused with bn2-apply + ReLU; bn3 statistics.
    y2_flat = _pad_axis(y2.reshape(m, cp), m_pad, 0)
    y3, s3, q3 = _bn_relu_conv1x1_stats(y2_flat, sc2, bi2, pk["w3"], m)
    sc3, bi3 = _bn_affine(s3, q3, pk["g3"], pk["b3"], m)

    # bn3-apply + identity residual + ReLU.
    out2d = _bn_add_relu(y3, sc3, bi3, x2d)

    out = out2d[:m, :out_ch].reshape(n, hh, ww, out_ch)
    return jnp.transpose(out, (0, 3, 1, 2))


# ----------------------------------------------------------------------------
# Pure-JAX reference (mirrors the kernel's precision policy: MXU_DTYPE conv
# operands, f32 accumulation, f32 training-mode BatchNorm)
# ----------------------------------------------------------------------------
def bottleneck_reference(x_nchw, p):
    x = jnp.transpose(x_nchw, (0, 2, 3, 1))

    def conv(h, w_oihw, padding):
        w_hwio = jnp.transpose(w_oihw, (2, 3, 1, 0)).astype(MXU_DTYPE)
        return jax.lax.conv_general_dilated(
            h.astype(MXU_DTYPE), w_hwio, window_strides=(1, 1),
            padding=[(padding, padding), (padding, padding)],
            dimension_numbers=("NHWC", "HWIO", "NHWC"),
            preferred_element_type=jnp.float32)

    def bn(y, gamma, beta):
        mean = jnp.mean(y, axis=(0, 1, 2), keepdims=True)
        var = jnp.mean((y - mean) ** 2, axis=(0, 1, 2), keepdims=True)
        return (y - mean) * jax.lax.rsqrt(var + EPS) * gamma + beta

    h = jnp.maximum(bn(conv(x, p["w1"], 0), p["g1"], p["b1"]), 0.0)
    h = jnp.maximum(bn(conv(h, p["w2"], 1), p["g2"], p["b2"]), 0.0)
    h = bn(conv(h, p["w3"], 0), p["g3"], p["b3"])
    h = jnp.maximum(h + x, 0.0)
    return jnp.transpose(h, (0, 3, 1, 2))


# ----------------------------------------------------------------------------
if __name__ == "__main__":
    key = jax.random.PRNGKey(0)
    n, hh, ww = 2, 16, 16
    planes = 4
    inplanes = planes * 4          # identity residual (downsample=None)

    ks = jax.random.split(key, 8)
    params = {
        # conv weights in PyTorch (Cout, Cin, kh, kw) layout
        "w1": 0.1 * jax.random.normal(ks[0], (planes, inplanes, 1, 1), jnp.float32),
        "w2": 0.1 * jax.random.normal(ks[1], (planes, planes, 3, 3), jnp.float32),
        "w3": 0.1 * jax.random.normal(ks[2], (planes * 4, planes, 1, 1), jnp.float32),
        # batchnorm affine params
        "g1": 0.5 + jax.random.uniform(ks[3], (planes,), jnp.float32),
        "b1": 0.1 * jax.random.normal(ks[4], (planes,), jnp.float32),
        "g2": 0.5 + jax.random.uniform(ks[5], (planes,), jnp.float32),
        "b2": 0.1 * jax.random.normal(ks[6], (planes,), jnp.float32),
        "g3": jnp.ones((planes * 4,), jnp.float32),
        "b3": jnp.zeros((planes * 4,), jnp.float32),
    }
    x = jax.random.normal(ks[7], (n, inplanes, hh, ww), jnp.float32)

    packed = prepare_params(params)
    fwd = jax.jit(bottleneck_forward, static_argnames=("out_ch",))
    out = jax.block_until_ready(fwd(x, packed, out_ch=planes * 4))

    ref = jax.block_until_ready(bottleneck_reference(x, params))
    assert out.shape == (n, planes * 4, hh, ww), out.shape
    max_err = float(jnp.max(jnp.abs(out - ref)))
    assert bool(jnp.allclose(out, ref, atol=5e-3, rtol=5e-3)), max_err

    print("KERNEL_OK")
</pallas_src>

<mosaic_0001>
module attributes {stable_mosaic.version = 11 : i64} {
  func.func @_conv1x1_stats_kernel(%arg0: i32, %arg1: memref<256x128xf32, #tpu.memory_space<vmem>>, %arg2: memref<128x128xbf16, #tpu.memory_space<vmem>>, %arg3: memref<256x128xf32, #tpu.memory_space<vmem>>, %arg4: memref<1x128xf32, #tpu.memory_space<vmem>>, %arg5: memref<1x128xf32, #tpu.memory_space<vmem>>) attributes {dimension_semantics = [#tpu.dimension_semantics<arbitrary>], iteration_bounds = array<i64: 2>, scalar_prefetch = 0 : i64, scratch_operands = 0 : i64, tpu.core_type = #tpu.core_type<tc>, window_params = [{transform_indices = @transform_0, window_bounds = array<i64: 256, 128>}, {pipeline_mode = #tpu.pipeline_mode<synchronous>, transform_indices = @transform_1, window_bounds = array<i64: 128, 128>}, {transform_indices = @transform_2, window_bounds = array<i64: 256, 128>}, {pipeline_mode = #tpu.pipeline_mode<synchronous>, transform_indices = @transform_3, window_bounds = array<i64: 1, 128>}, {pipeline_mode = #tpu.pipeline_mode<synchronous>, transform_indices = @transform_4, window_bounds = array<i64: 1, 128>}]} {
    %c0_i32 = arith.constant 0 : i32
    %0 = arith.cmpi eq, %arg0, %c0_i32 : i32
    %1 = arith.extui %0 : i1 to i32
    %c0_i32_0 = arith.constant 0 : i32
    %2 = arith.cmpi ne, %1, %c0_i32_0 : i32
    scf.if %2 {
      %cst_16 = arith.constant 0.000000e+00 : f32
      %19 = vector.broadcast %cst_16 : f32 to vector<1x128xf32>
      %c0_17 = arith.constant 0 : index
      %c0_18 = arith.constant 0 : index
      %20 = vector.load %arg4[%c0_17, %c0_18] : memref<1x128xf32, #tpu.memory_space<vmem>>, vector<1x128xf32>
      tpu.vector_store %arg4[%c0_17, %c0_18], %19 {strides = array<i32>} : memref<1x128xf32, #tpu.memory_space<vmem>>, vector<1x128xf32>,
      %cst_19 = arith.constant 0.000000e+00 : f32
      %21 = vector.broadcast %cst_19 : f32 to vector<1x128xf32>
      %c0_20 = arith.constant 0 : index
      %c0_21 = arith.constant 0 : index
      %22 = vector.load %arg5[%c0_20, %c0_21] : memref<1x128xf32, #tpu.memory_space<vmem>>, vector<1x128xf32>
      tpu.vector_store %arg5[%c0_20, %c0_21], %21 {strides = array<i32>} : memref<1x128xf32, #tpu.memory_space<vmem>>, vector<1x128xf32>,
    } else {
    }
    %c0 = arith.constant 0 : index
    %c0_1 = arith.constant 0 : index
    %3 = vector.load %arg1[%c0, %c0_1] : memref<256x128xf32, #tpu.memory_space<vmem>>, vector<256x128xf32>
    %4 = arith.truncf %3 : vector<256x128xf32> to vector<256x128xbf16>
    %c0_2 = arith.constant 0 : index
    %c0_3 = arith.constant 0 : index
    %5 = vector.load %arg2[%c0_2, %c0_3] : memref<128x128xbf16, #tpu.memory_space<vmem>>, vector<128x128xbf16>
    %cst = arith.constant dense<0.000000e+00> : vector<256x128xf32>
    %6 = tpu.matmul %4, %5, %cst {dimension_numbers = #tpu.dot_dimension_numbers<[1], [0], [0], [1], [0, 0, 1, 1], [], []>} : vector<256x128xbf16>, vector<128x128xbf16>, vector<256x128xf32> -> vector<256x128xf32>
    %c0_4 = arith.constant 0 : index
    %c0_5 = arith.constant 0 : index
    %7 = vector.load %arg3[%c0_4, %c0_5] : memref<256x128xf32, #tpu.memory_space<vmem>>, vector<256x128xf32>
    tpu.vector_store %arg3[%c0_4, %c0_5], %6 {strides = array<i32>} : memref<256x128xf32, #tpu.memory_space<vmem>>, vector<256x128xf32>,
    %c0_6 = arith.constant 0 : index
    %c0_7 = arith.constant 0 : index
    %8 = vector.load %arg4[%c0_6, %c0_7] : memref<1x128xf32, #tpu.memory_space<vmem>>, vector<1x128xf32>
    %cst_8 = arith.constant dense<0.000000e+00> : vector<128xf32>
    %9 = vector.multi_reduction <add>, %6, %cst_8 [0] : vector<256x128xf32> to vector<128xf32>
    %10 = vector.shape_cast %9 : vector<128xf32> to vector<1x128xf32>
    %11 = arith.addf %8, %10 : vector<1x128xf32>
    %c0_9 = arith.constant 0 : index
    %c0_10 = arith.constant 0 : index
    %12 = vector.load %arg4[%c0_9, %c0_10] : memref<1x128xf32, #tpu.memory_space<vmem>>, vector<1x128xf32>
    tpu.vector_store %arg4[%c0_9, %c0_10], %11 {strides = array<i32>} : memref<1x128xf32, #tpu.memory_space<vmem>>, vector<1x128xf32>,
    %c0_11 = arith.constant 0 : index
    %c0_12 = arith.constant 0 : index
    %13 = vector.load %arg5[%c0_11, %c0_12] : memref<1x128xf32, #tpu.memory_space<vmem>>, vector<1x128xf32>
    %14 = arith.mulf %6, %6 : vector<256x128xf32>
    %cst_13 = arith.constant dense<0.000000e+00> : vector<128xf32>
    %15 = vector.multi_reduction <add>, %14, %cst_13 [0] : vector<256x128xf32> to vector<128xf32>
    %16 = vector.shape_cast %15 : vector<128xf32> to vector<1x128xf32>
    %17 = arith.addf %13, %16 : vector<1x128xf32>
    %c0_14 = arith.constant 0 : index
    %c0_15 = arith.constant 0 : index
    %18 = vector.load %arg5[%c0_14, %c0_15] : memref<1x128xf32, #tpu.memory_space<vmem>>, vector<1x128xf32>
    tpu.vector_store %arg5[%c0_14, %c0_15], %17 {strides = array<i32>} : memref<1x128xf32, #tpu.memory_space<vmem>>, vector<1x128xf32>,
    return
  }
  func.func @transform_0(%arg0: i32) -> (i32, i32) {
    %c0_i32 = arith.constant 0 : i32
    %c0_i32_0 = arith.constant 0 : i32
    return %arg0, %c0_i32 : i32, i32
  }
  func.func @transform_1(%arg0: i32) -> (i32, i32) {
    %c0_i32 = arith.constant 0 : i32
    %c0_i32_0 = arith.constant 0 : i32
    %c0_i32_1 = arith.constant 0 : i32
    return %c0_i32, %c0_i32_0 : i32, i32
  }
  func.func @transform_2(%arg0: i32) -> (i32, i32) {
    %c0_i32 = arith.constant 0 : i32
    %c0_i32_0 = arith.constant 0 : i32
    return %arg0, %c0_i32 : i32, i32
  }
  func.func @transform_3(%arg0: i32) -> (i32, i32) {
    %c0_i32 = arith.constant 0 : i32
    %c0_i32_0 = arith.constant 0 : i32
    %c0_i32_1 = arith.constant 0 : i32
    return %c0_i32, %c0_i32_0 : i32, i32
  }
  func.func @transform_4(%arg0: i32) -> (i32, i32) {
    %c0_i32 = arith.constant 0 : i32
    %c0_i32_0 = arith.constant 0 : i32
    %c0_i32_1 = arith.constant 0 : i32
    return %c0_i32, %c0_i32_0 : i32, i32
  }
}

module attributes {stable_mosaic.version = 11 : i64} {
  func.func @_bn_relu_conv1x1_stats_kernel(%arg0: i32, %arg1: memref<256x128xf32, #tpu.memory_space<vmem>>, %arg2: memref<1x128xf32, #tpu.memory_space<vmem>>, %arg3: memref<1x128xf32, #tpu.memory_space<vmem>>, %arg4: memref<128x128xbf16, #tpu.memory_space<vmem>>, %arg5: memref<256x128xf32, #tpu.memory_space<vmem>>, %arg6: memref<1x128xf32, #tpu.memory_space<vmem>>, %arg7: memref<1x128xf32, #tpu.memory_space<vmem>>) attributes {dimension_semantics = [#tpu.dimension_semantics<arbitrary>], iteration_bounds = array<i64: 2>, scalar_prefetch = 0 : i64, scratch_operands = 0 : i64, tpu.core_type = #tpu.core_type<tc>, window_params = [{transform_indices = @transform_0, window_bounds = array<i64: 256, 128>}, {pipeline_mode = #tpu.pipeline_mode<synchronous>, transform_indices = @transform_1, window_bounds = array<i64: 1, 128>}, {pipeline_mode = #tpu.pipeline_mode<synchronous>, transform_indices = @transform_2, window_bounds = array<i64: 1, 128>}, {pipeline_mode = #tpu.pipeline_mode<synchronous>, transform_indices = @transform_3, window_bounds = array<i64: 128, 128>}, {transform_indices = @transform_4, window_bounds = array<i64: 256, 128>}, {pipeline_mode = #tpu.pipeline_mode<synchronous>, transform_indices = @transform_5, window_bounds = array<i64: 1, 128>}, {pipeline_mode = #tpu.pipeline_mode<synchronous>, transform_indices = @transform_6, window_bounds = array<i64: 1, 128>}]} {
    %c0_i32 = arith.constant 0 : i32
    %0 = arith.cmpi eq, %arg0, %c0_i32 : i32
    %1 = arith.extui %0 : i1 to i32
    %c0_i32_0 = arith.constant 0 : i32
    %2 = arith.cmpi ne, %1, %c0_i32_0 : i32
    scf.if %2 {
      %cst_22 = arith.constant 0.000000e+00 : f32
      %37 = vector.broadcast %cst_22 : f32 to vector<1x128xf32>
      %c0_23 = arith.constant 0 : index
      %c0_24 = arith.constant 0 : index
      %38 = vector.load %arg6[%c0_23, %c0_24] : memref<1x128xf32, #tpu.memory_space<vmem>>, vector<1x128xf32>
      tpu.vector_store %arg6[%c0_23, %c0_24], %37 {strides = array<i32>} : memref<1x128xf32, #tpu.memory_space<vmem>>, vector<1x128xf32>,
      %cst_25 = arith.constant 0.000000e+00 : f32
      %39 = vector.broadcast %cst_25 : f32 to vector<1x128xf32>
      %c0_26 = arith.constant 0 : index
      %c0_27 = arith.constant 0 : index
      %40 = vector.load %arg7[%c0_26, %c0_27] : memref<1x128xf32, #tpu.memory_space<vmem>>, vector<1x128xf32>
      tpu.vector_store %arg7[%c0_26, %c0_27], %39 {strides = array<i32>} : memref<1x128xf32, #tpu.memory_space<vmem>>, vector<1x128xf32>,
    } else {
    }
    %c0 = arith.constant 0 : index
    %c0_1 = arith.constant 0 : index
    %3 = vector.load %arg1[%c0, %c0_1] : memref<256x128xf32, #tpu.memory_space<vmem>>, vector<256x128xf32>
    %c0_2 = arith.constant 0 : index
    %c0_3 = arith.constant 0 : index
    %4 = vector.load %arg2[%c0_2, %c0_3] : memref<1x128xf32, #tpu.memory_space<vmem>>, vector<1x128xf32>
    %5 = vector.broadcast %4 : vector<1x128xf32> to vector<256x128xf32>
    %6 = arith.mulf %3, %5 : vector<256x128xf32>
    %c0_4 = arith.constant 0 : index
    %c0_5 = arith.constant 0 : index
    %7 = vector.load %arg3[%c0_4, %c0_5] : memref<1x128xf32, #tpu.memory_space<vmem>>, vector<1x128xf32>
    %8 = vector.broadcast %7 : vector<1x128xf32> to vector<256x128xf32>
    %9 = arith.addf %6, %8 : vector<256x128xf32>
    %cst = arith.constant 0.000000e+00 : f32
    %10 = vector.broadcast %cst : f32 to vector<256x128xf32>
    %11 = arith.maximumf %9, %10 : vector<256x128xf32>
    %c256_i32 = arith.constant 256 : i32
    %12 = arith.muli %arg0, %c256_i32 : i32
    %13 = tpu.iota {dimensions = array<i32: 0>} : vector<256x1xi32>
    %14 = vector.broadcast %12 : i32 to vector<256x1xi32>
    %15 = arith.addi %14, %13 : vector<256x1xi32>
    %c512_i32 = arith.constant 512 : i32
    %16 = vector.broadcast %c512_i32 : i32 to vector<256x1xi32>
    %17 = arith.cmpi slt, %15, %16 : vector<256x1xi32>
    %cst_6 = arith.constant 0.000000e+00 : f32
    %18 = vector.shape_cast %17 : vector<256x1xi1> to vector<256x1xi1>
    %19 = vector.broadcast %18 : vector<256x1xi1> to vector<256x128xi1>
    %20 = vector.broadcast %cst_6 : f32 to vector<256x128xf32>
    %21 = arith.select %19, %11, %20 : vector<256x128xi1>, vector<256x128xf32>
    %22 = arith.truncf %21 : vector<256x128xf32> to vector<256x128xbf16>
    %c0_7 = arith.constant 0 : index
    %c0_8 = arith.constant 0 : index
    %23 = vector.load %arg4[%c0_7, %c0_8] : memref<128x128xbf16, #tpu.memory_space<vmem>>, vector<128x128xbf16>
    %cst_9 = arith.constant dense<0.000000e+00> : vector<256x128xf32>
    %24 = tpu.matmul %22, %23, %cst_9 {dimension_numbers = #tpu.dot_dimension_numbers<[1], [0], [0], [1], [0, 0, 1, 1], [], []>} : vector<256x128xbf16>, vector<128x128xbf16>, vector<256x128xf32> -> vector<256x128xf32>
    %c0_10 = arith.constant 0 : index
    %c0_11 = arith.constant 0 : index
    %25 = vector.load %arg5[%c0_10, %c0_11] : memref<256x128xf32, #tpu.memory_space<vmem>>, vector<256x128xf32>
    tpu.vector_store %arg5[%c0_10, %c0_11], %24 {strides = array<i32>} : memref<256x128xf32, #tpu.memory_space<vmem>>, vector<256x128xf32>,
    %c0_12 = arith.constant 0 : index
    %c0_13 = arith.constant 0 : index
    %26 = vector.load %arg6[%c0_12, %c0_13] : memref<1x128xf32, #tpu.memory_space<vmem>>, vector<1x128xf32>
    %cst_14 = arith.constant dense<0.000000e+00> : vector<128xf32>
    %27 = vector.multi_reduction <add>, %24, %cst_14 [0] : vector<256x128xf32> to vector<128xf32>
    %28 = vector.shape_cast %27 : vector<128xf32> to vector<1x128xf32>
    %29 = arith.addf %26, %28 : vector<1x128xf32>
    %c0_15 = arith.constant 0 : index
    %c0_16 = arith.constant 0 : index
    %30 = vector.load %arg6[%c0_15, %c0_16] : memref<1x128xf32, #tpu.memory_space<vmem>>, vector<1x128xf32>
    tpu.vector_store %arg6[%c0_15, %c0_16], %29 {strides = array<i32>} : memref<1x128xf32, #tpu.memory_space<vmem>>, vector<1x128xf32>,
    %c0_17 = arith.constant 0 : index
    %c0_18 = arith.constant 0 : index
    %31 = vector.load %arg7[%c0_17, %c0_18] : memref<1x128xf32, #tpu.memory_space<vmem>>, vector<1x128xf32>
    %32 = arith.mulf %24, %24 : vector<256x128xf32>
    %cst_19 = arith.constant dense<0.000000e+00> : vector<128xf32>
    %33 = vector.multi_reduction <add>, %32, %cst_19 [0] : vector<256x128xf32> to vector<128xf32>
    %34 = vector.shape_cast %33 : vector<128xf32> to vector<1x128xf32>
    %35 = arith.addf %31, %34 : vector<1x128xf32>
    %c0_20 = arith.constant 0 : index
    %c0_21 = arith.constant 0 : index
    %36 = vector.load %arg7[%c0_20, %c0_21] : memref<1x128xf32, #tpu.memory_space<vmem>>, vector<1x128xf32>
    tpu.vector_store %arg7[%c0_20, %c0_21], %35 {strides = array<i32>} : memref<1x128xf32, #tpu.memory_space<vmem>>, vector<1x128xf32>,
    return
  }
  func.func @transform_0(%arg0: i32) -> (i32, i32) {
    %c0_i32 = arith.constant 0 : i32
    %c0_i32_0 = arith.constant 0 : i32
    return %arg0, %c0_i32 : i32, i32
  }
  func.func @transform_1(%arg0: i32) -> (i32, i32) {
    %c0_i32 = arith.constant 0 : i32
    %c0_i32_0 = arith.constant 0 : i32
    %c0_i32_1 = arith.constant 0 : i32
    return %c0_i32, %c0_i32_0 : i32, i32
  }
  func.func @transform_2(%arg0: i32) -> (i32, i32) {
    %c0_i32 = arith.constant 0 : i32
    %c0_i32_0 = arith.constant 0 : i32
    %c0_i32_1 = arith.constant 0 : i32
    return %c0_i32, %c0_i32_0 : i32, i32
  }
  func.func @transform_3(%arg0: i32) -> (i32, i32) {
    %c0_i32 = arith.constant 0 : i32
    %c0_i32_0 = arith.constant 0 : i32
    %c0_i32_1 = arith.constant 0 : i32
    return %c0_i32, %c0_i32_0 : i32, i32
  }
  func.func @transform_4(%arg0: i32) -> (i32, i32) {
    %c0_i32 = arith.constant 0 : i32
    %c0_i32_0 = arith.constant 0 : i32
    return %arg0, %c0_i32 : i32, i32
  }
  func.func @transform_5(%arg0: i32) -> (i32, i32) {
    %c0_i32 = arith.constant 0 : i32
    %c0_i32_0 = arith.constant 0 : i32
    %c0_i32_1 = arith.constant 0 : i32
    return %c0_i32, %c0_i32_0 : i32, i32
  }
  func.func @transform_6(%arg0: i32) -> (i32, i32) {
    %c0_i32 = arith.constant 0 : i32
    %c0_i32_0 = arith.constant 0 : i32
    %c0_i32_1 = arith.constant 0 : i32
    return %c0_i32, %c0_i32_0 : i32, i32
  }
}

module attributes {stable_mosaic.version = 11 : i64} {
  func.func @_bn_relu_conv3x3_stats_kernel(%arg0: i32, %arg1: memref<1x16x16x128xf32, #tpu.memory_space<vmem>>, %arg2: memref<1x128xf32, #tpu.memory_space<vmem>>, %arg3: memref<1x128xf32, #tpu.memory_space<vmem>>, %arg4: memref<9x128x128xbf16, #tpu.memory_space<vmem>>, %arg5: memref<1x16x16x128xf32, #tpu.memory_space<vmem>>, %arg6: memref<1x128xf32, #tpu.memory_space<vmem>>, %arg7: memref<1x128xf32, #tpu.memory_space<vmem>>) attributes {dimension_semantics = [#tpu.dimension_semantics<arbitrary>], iteration_bounds = array<i64: 2>, scalar_prefetch = 0 : i64, scratch_operands = 0 : i64, tpu.core_type = #tpu.core_type<tc>, window_params = [{transform_indices = @transform_0, window_bounds = array<i64: 1, 16, 16, 128>}, {pipeline_mode = #tpu.pipeline_mode<synchronous>, transform_indices = @transform_1, window_bounds = array<i64: 1, 128>}, {pipeline_mode = #tpu.pipeline_mode<synchronous>, transform_indices = @transform_2, window_bounds = array<i64: 1, 128>}, {pipeline_mode = #tpu.pipeline_mode<synchronous>, transform_indices = @transform_3, window_bounds = array<i64: 9, 128, 128>}, {transform_indices = @transform_4, window_bounds = array<i64: 1, 16, 16, 128>}, {pipeline_mode = #tpu.pipeline_mode<synchronous>, transform_indices = @transform_5, window_bounds = array<i64: 1, 128>}, {pipeline_mode = #tpu.pipeline_mode<synchronous>, transform_indices = @transform_6, window_bounds = array<i64: 1, 128>}]} {
    %c0_i32 = arith.constant 0 : i32
    %0 = arith.cmpi eq, %arg0, %c0_i32 : i32
    %1 = arith.extui %0 : i1 to i32
    %c0_i32_0 = arith.constant 0 : i32
    %2 = arith.cmpi ne, %1, %c0_i32_0 : i32
    scf.if %2 {
      %cst_127 = arith.constant 0.000000e+00 : f32
      %129 = vector.broadcast %cst_127 : f32 to vector<1x128xf32>
      %c0_128 = arith.constant 0 : index
      %c0_129 = arith.constant 0 : index
      %130 = vector.load %arg6[%c0_128, %c0_129] : memref<1x128xf32, #tpu.memory_space<vmem>>, vector<1x128xf32>
      tpu.vector_store %arg6[%c0_128, %c0_129], %129 {strides = array<i32>} : memref<1x128xf32, #tpu.memory_space<vmem>>, vector<1x128xf32>,
      %cst_130 = arith.constant 0.000000e+00 : f32
      %131 = vector.broadcast %cst_130 : f32 to vector<1x128xf32>
      %c0_131 = arith.constant 0 : index
      %c0_132 = arith.constant 0 : index
      %132 = vector.load %arg7[%c0_131, %c0_132] : memref<1x128xf32, #tpu.memory_space<vmem>>, vector<1x128xf32>
      tpu.vector_store %arg7[%c0_131, %c0_132], %131 {strides = array<i32>} : memref<1x128xf32, #tpu.memory_space<vmem>>, vector<1x128xf32>,
    } else {
    }
    %c0 = arith.constant 0 : index
    %c0_1 = arith.constant 0 : index
    %c0_2 = arith.constant 0 : index
    %c0_3 = arith.constant 0 : index
    %3 = vector.load %arg1[%c0, %c0_1, %c0_2, %c0_3] : memref<1x16x16x128xf32, #tpu.memory_space<vmem>>, vector<1x16x16x128xf32>
    %4 = vector.shape_cast %3 : vector<1x16x16x128xf32> to vector<16x16x128xf32>
    %5 = vector.shape_cast %4 : vector<16x16x128xf32> to vector<256x128xf32>
    %c0_4 = arith.constant 0 : index
    %c0_5 = arith.constant 0 : index
    %6 = vector.load %arg2[%c0_4, %c0_5] : memref<1x128xf32, #tpu.memory_space<vmem>>, vector<1x128xf32>
    %7 = vector.broadcast %6 : vector<1x128xf32> to vector<256x128xf32>
    %8 = arith.mulf %5, %7 : vector<256x128xf32>
    %c0_6 = arith.constant 0 : index
    %c0_7 = arith.constant 0 : index
    %9 = vector.load %arg3[%c0_6, %c0_7] : memref<1x128xf32, #tpu.memory_space<vmem>>, vector<1x128xf32>
    %10 = vector.broadcast %9 : vector<1x128xf32> to vector<256x128xf32>
    %11 = arith.addf %8, %10 : vector<256x128xf32>
    %cst = arith.constant 0.000000e+00 : f32
    %12 = vector.broadcast %cst : f32 to vector<256x128xf32>
    %13 = arith.maximumf %11, %12 : vector<256x128xf32>
    %14 = arith.truncf %13 : vector<256x128xf32> to vector<256x128xbf16>
    %cst_8 = arith.constant 0.000000e+00 : f32
    %15 = vector.broadcast %cst_8 : f32 to vector<1x16x16x128xf32>
    %c0_9 = arith.constant 0 : index
    %c0_10 = arith.constant 0 : index
    %c0_11 = arith.constant 0 : index
    %c0_12 = arith.constant 0 : index
    %16 = vector.load %arg5[%c0_9, %c0_10, %c0_11, %c0_12] : memref<1x16x16x128xf32, #tpu.memory_space<vmem>>, vector<1x16x16x128xf32>
    tpu.vector_store %arg5[%c0_9, %c0_10, %c0_11, %c0_12], %15 {strides = array<i32>} : memref<1x16x16x128xf32, #tpu.memory_space<vmem>>, vector<1x16x16x128xf32>,
    %c0_13 = arith.constant 0 : index
    %c0_14 = arith.constant 0 : index
    %c0_15 = arith.constant 0 : index
    %17 = vector.load %arg4[%c0_13, %c0_14, %c0_15] : memref<9x128x128xbf16, #tpu.memory_space<vmem>>, vector<1x128x128xbf16>
    %18 = vector.shape_cast %17 : vector<1x128x128xbf16> to vector<128x128xbf16>
    %cst_16 = arith.constant dense<0.000000e+00> : vector<256x128xf32>
    %19 = tpu.matmul %14, %18, %cst_16 {dimension_numbers = #tpu.dot_dimension_numbers<[1], [0], [0], [1], [0, 0, 1, 1], [], []>} : vector<256x128xbf16>, vector<128x128xbf16>, vector<256x128xf32> -> vector<256x128xf32>
    %20 = vector.shape_cast %19 : vector<256x128xf32> to vector<16x16x128xf32>
    %c0_17 = arith.constant 0 : index
    %c1 = arith.constant 1 : index
    %c1_18 = arith.constant 1 : index
    %c0_19 = arith.constant 0 : index
    %21 = vector.load %arg5[%c0_17, %c1, %c1_18, %c0_19] : memref<1x16x16x128xf32, #tpu.memory_space<vmem>>, vector<1x15x15x128xf32>
    %22 = vector.shape_cast %21 : vector<1x15x15x128xf32> to vector<15x15x128xf32>
    %23 = vector.extract_strided_slice %20 {offsets = [0, 0, 0], sizes = [15, 15, 128], strides = [1, 1, 1]} : vector<16x16x128xf32> to vector<15x15x128xf32>
    %24 = arith.addf %22, %23 : vector<15x15x128xf32>
    %c0_20 = arith.constant 0 : index
    %c1_21 = arith.constant 1 : index
    %c1_22 = arith.constant 1 : index
    %c0_23 = arith.constant 0 : index
    %25 = vector.load %arg5[%c0_20, %c1_21, %c1_22, %c0_23] : memref<1x16x16x128xf32, #tpu.memory_space<vmem>>, vector<1x15x15x128xf32>
    %26 = vector.shape_cast %25 : vector<1x15x15x128xf32> to vector<15x15x128xf32>
    %27 = vector.shape_cast %24 : vector<15x15x128xf32> to vector<1x15x15x128xf32>
    tpu.vector_store %arg5[%c0_20, %c1_21, %c1_22, %c0_23], %27 {strides = array<i32>} : memref<1x16x16x128xf32, #tpu.memory_space<vmem>>, vector<1x15x15x128xf32>,
    %c1_24 = arith.constant 1 : index
    %c0_25 = arith.constant 0 : index
    %c0_26 = arith.constant 0 : index
    %28 = vector.load %arg4[%c1_24, %c0_25, %c0_26] : memref<9x128x128xbf16, #tpu.memory_space<vmem>>, vector<1x128x128xbf16>
    %29 = vector.shape_cast %28 : vector<1x128x128xbf16> to vector<128x128xbf16>
    %cst_27 = arith.constant dense<0.000000e+00> : vector<256x128xf32>
    %30 = tpu.matmul %14, %29, %cst_27 {dimension_numbers = #tpu.dot_dimension_numbers<[1], [0], [0], [1], [0, 0, 1, 1], [], []>} : vector<256x128xbf16>, vector<128x128xbf16>, vector<256x128xf32> -> vector<256x128xf32>
    %31 = vector.shape_cast %30 : vector<256x128xf32> to vector<16x16x128xf32>
    %c0_28 = arith.constant 0 : index
    %c1_29 = arith.constant 1 : index
    %c0_30 = arith.constant 0 : index
    %c0_31 = arith.constant 0 : index
    %32 = vector.load %arg5[%c0_28, %c1_29, %c0_30, %c0_31] : memref<1x16x16x128xf32, #tpu.memory_space<vmem>>, vector<1x15x16x128xf32>
    %33 = vector.shape_cast %32 : vector<1x15x16x128xf32> to vector<15x16x128xf32>
    %34 = vector.extract_strided_slice %31 {offsets = [0, 0, 0], sizes = [15, 16, 128], strides = [1, 1, 1]} : vector<16x16x128xf32> to vector<15x16x128xf32>
    %35 = arith.addf %33, %34 : vector<15x16x128xf32>
    %c0_32 = arith.constant 0 : index
    %c1_33 = arith.constant 1 : index
    %c0_34 = arith.constant 0 : index
    %c0_35 = arith.constant 0 : index
    %36 = vector.load %arg5[%c0_32, %c1_33, %c0_34, %c0_35] : memref<1x16x16x128xf32, #tpu.memory_space<vmem>>, vector<1x15x16x128xf32>
    %37 = vector.shape_cast %36 : vector<1x15x16x128xf32> to vector<15x16x128xf32>
    %38 = vector.shape_cast %35 : vector<15x16x128xf32> to vector<1x15x16x128xf32>
    tpu.vector_store %arg5[%c0_32, %c1_33, %c0_34, %c0_35], %38 {strides = array<i32>} : memref<1x16x16x128xf32, #tpu.memory_space<vmem>>, vector<1x15x16x128xf32>,
    %c2 = arith.constant 2 : index
    %c0_36 = arith.constant 0 : index
    %c0_37 = arith.constant 0 : index
    %39 = vector.load %arg4[%c2, %c0_36, %c0_37] : memref<9x128x128xbf16, #tpu.memory_space<vmem>>, vector<1x128x128xbf16>
    %40 = vector.shape_cast %39 : vector<1x128x128xbf16> to vector<128x128xbf16>
    %cst_38 = arith.constant dense<0.000000e+00> : vector<256x128xf32>
    %41 = tpu.matmul %14, %40, %cst_38 {dimension_numbers = #tpu.dot_dimension_numbers<[1], [0], [0], [1], [0, 0, 1, 1], [], []>} : vector<256x128xbf16>, vector<128x128xbf16>, vector<256x128xf32> -> vector<256x128xf32>
    %42 = vector.shape_cast %41 : vector<256x128xf32> to vector<16x16x128xf32>
    %c0_39 = arith.constant 0 : index
    %c1_40 = arith.constant 1 : index
    %c0_41 = arith.constant 0 : index
    %c0_42 = arith.constant 0 : index
    %43 = vector.load %arg5[%c0_39, %c1_40, %c0_41, %c0_42] : memref<1x16x16x128xf32, #tpu.memory_space<vmem>>, vector<1x15x15x128xf32>
    %44 = vector.shape_cast %43 : vector<1x15x15x128xf32> to vector<15x15x128xf32>
    %45 = vector.extract_strided_slice %42 {offsets = [0, 1, 0], sizes = [15, 15, 128], strides = [1, 1, 1]} : vector<16x16x128xf32> to vector<15x15x128xf32>
    %46 = arith.addf %44, %45 : vector<15x15x128xf32>
    %c0_43 = arith.constant 0 : index
    %c1_44 = arith.constant 1 : index
    %c0_45 = arith.constant 0 : index
    %c0_46 = arith.constant 0 : index
    %47 = vector.load %arg5[%c0_43, %c1_44, %c0_45, %c0_46] : memref<1x16x16x128xf32, #tpu.memory_space<vmem>>, vector<1x15x15x128xf32>
    %48 = vector.shape_cast %47 : vector<1x15x15x128xf32> to vector<15x15x128xf32>
    %49 = vector.shape_cast %46 : vector<15x15x128xf32> to vector<1x15x15x128xf32>
    tpu.vector_store %arg5[%c0_43, %c1_44, %c0_45, %c0_46], %49 {strides = array<i32>} : memref<1x16x16x128xf32, #tpu.memory_space<vmem>>, vector<1x15x15x128xf32>,
    %c3 = arith.constant 3 : index
    %c0_47 = arith.constant 0 : index
    %c0_48 = arith.constant 0 : index
    %50 = vector.load %arg4[%c3, %c0_47, %c0_48] : memref<9x128x128xbf16, #tpu.memory_space<vmem>>, vector<1x128x128xbf16>
    %51 = vector.shape_cast %50 : vector<1x128x128xbf16> to vector<128x128xbf16>
    %cst_49 = arith.constant dense<0.000000e+00> : vector<256x128xf32>
    %52 = tpu.matmul %14, %51, %cst_49 {dimension_numbers = #tpu.dot_dimension_numbers<[1], [0], [0], [1], [0, 0, 1, 1], [], []>} : vector<256x128xbf16>, vector<128x128xbf16>, vector<256x128xf32> -> vector<256x128xf32>
    %53 = vector.shape_cast %52 : vector<256x128xf32> to vector<16x16x128xf32>
    %c0_50 = arith.constant 0 : index
    %c0_51 = arith.constant 0 : index
    %c1_52 = arith.constant 1 : index
    %c0_53 = arith.constant 0 : index
    %54 = vector.load %arg5[%c0_50, %c0_51, %c1_52, %c0_53] : memref<1x16x16x128xf32, #tpu.memory_space<vmem>>, vector<1x16x15x128xf32>
    %55 = vector.shape_cast %54 : vector<1x16x15x128xf32> to vector<16x15x128xf32>
    %56 = vector.extract_strided_slice %53 {offsets = [0, 0, 0], sizes = [16, 15, 128], strides = [1, 1, 1]} : vector<16x16x128xf32> to vector<16x15x128xf32>
    %57 = arith.addf %55, %56 : vector<16x15x128xf32>
    %c0_54 = arith.constant 0 : index
    %c0_55 = arith.constant 0 : index
    %c1_56 = arith.constant 1 : index
    %c0_57 = arith.constant 0 : index
    %58 = vector.load %arg5[%c0_54, %c0_55, %c1_56, %c0_57] : memref<1x16x16x128xf32, #tpu.memory_space<vmem>>, vector<1x16x15x128xf32>
    %59 = vector.shape_cast %58 : vector<1x16x15x128xf32> to vector<16x15x128xf32>
    %60 = vector.shape_cast %57 : vector<16x15x128xf32> to vector<1x16x15x128xf32>
    tpu.vector_store %arg5[%c0_54, %c0_55, %c1_56, %c0_57], %60 {strides = array<i32>} : memref<1x16x16x128xf32, #tpu.memory_space<vmem>>, vector<1x16x15x128xf32>,
    %c4 = arith.constant 4 : index
    %c0_58 = arith.constant 0 : index
    %c0_59 = arith.constant 0 : index
    %61 = vector.load %arg4[%c4, %c0_58, %c0_59] : memref<9x128x128xbf16, #tpu.memory_space<vmem>>, vector<1x128x128xbf16>
    %62 = vector.shape_cast %61 : vector<1x128x128xbf16> to vector<128x128xbf16>
    %cst_60 = arith.constant dense<0.000000e+00> : vector<256x128xf32>
    %63 = tpu.matmul %14, %62, %cst_60 {dimension_numbers = #tpu.dot_dimension_numbers<[1], [0], [0], [1], [0, 0, 1, 1], [], []>} : vector<256x128xbf16>, vector<128x128xbf16>, vector<256x128xf32> -> vector<256x128xf32>
    %64 = vector.shape_cast %63 : vector<256x128xf32> to vector<16x16x128xf32>
    %c0_61 = arith.constant 0 : index
    %c0_62 = arith.constant 0 : index
    %c0_63 = arith.constant 0 : index
    %c0_64 = arith.constant 0 : index
    %65 = vector.load %arg5[%c0_61, %c0_62, %c0_63, %c0_64] : memref<1x16x16x128xf32, #tpu.memory_space<vmem>>, vector<1x16x16x128xf32>
    %66 = vector.shape_cast %65 : vector<1x16x16x128xf32> to vector<16x16x128xf32>
    %67 = arith.addf %66, %64 : vector<16x16x128xf32>
    %c0_65 = arith.constant 0 : index
    %c0_66 = arith.constant 0 : index
    %c0_67 = arith.constant 0 : index
    %c0_68 = arith.constant 0 : index
    %68 = vector.load %arg5[%c0_65, %c0_66, %c0_67, %c0_68] : memref<1x16x16x128xf32, #tpu.memory_space<vmem>>, vector<1x16x16x128xf32>
    %69 = vector.shape_cast %68 : vector<1x16x16x128xf32> to vector<16x16x128xf32>
    %70 = vector.shape_cast %67 : vector<16x16x128xf32> to vector<1x16x16x128xf32>
    tpu.vector_store %arg5[%c0_65, %c0_66, %c0_67, %c0_68], %70 {strides = array<i32>} : memref<1x16x16x128xf32, #tpu.memory_space<vmem>>, vector<1x16x16x128xf32>,
    %c5 = arith.constant 5 : index
    %c0_69 = arith.constant 0 : index
    %c0_70 = arith.constant 0 : index
    %71 = vector.load %arg4[%c5, %c0_69, %c0_70] : memref<9x128x128xbf16, #tpu.memory_space<vmem>>, vector<1x128x128xbf16>
    %72 = vector.shape_cast %71 : vector<1x128x128xbf16> to vector<128x128xbf16>
    %cst_71 = arith.constant dense<0.000000e+00> : vector<256x128xf32>
    %73 = tpu.matmul %14, %72, %cst_71 {dimension_numbers = #tpu.dot_dimension_numbers<[1], [0], [0], [1], [0, 0, 1, 1], [], []>} : vector<256x128xbf16>, vector<128x128xbf16>, vector<256x128xf32> -> vector<256x128xf32>
    %74 = vector.shape_cast %73 : vector<256x128xf32> to vector<16x16x128xf32>
    %c0_72 = arith.constant 0 : index
    %c0_73 = arith.constant 0 : index
    %c0_74 = arith.constant 0 : index
    %c0_75 = arith.constant 0 : index
    %75 = vector.load %arg5[%c0_72, %c0_73, %c0_74, %c0_75] : memref<1x16x16x128xf32, #tpu.memory_space<vmem>>, vector<1x16x15x128xf32>
    %76 = vector.shape_cast %75 : vector<1x16x15x128xf32> to vector<16x15x128xf32>
    %77 = vector.extract_strided_slice %74 {offsets = [0, 1, 0], sizes = [16, 15, 128], strides = [1, 1, 1]} : vector<16x16x128xf32> to vector<16x15x128xf32>
    %78 = arith.addf %76, %77 : vector<16x15x128xf32>
    %c0_76 = arith.constant 0 : index
    %c0_77 = arith.constant 0 : index
    %c0_78 = arith.constant 0 : index
    %c0_79 = arith.constant 0 : index
    %79 = vector.load %arg5[%c0_76, %c0_77, %c0_78, %c0_79] : memref<1x16x16x128xf32, #tpu.memory_space<vmem>>, vector<1x16x15x128xf32>
    %80 = vector.shape_cast %79 : vector<1x16x15x128xf32> to vector<16x15x128xf32>
    %81 = vector.shape_cast %78 : vector<16x15x128xf32> to vector<1x16x15x128xf32>
    tpu.vector_store %arg5[%c0_76, %c0_77, %c0_78, %c0_79], %81 {strides = array<i32>} : memref<1x16x16x128xf32, #tpu.memory_space<vmem>>, vector<1x16x15x128xf32>,
    %c6 = arith.constant 6 : index
    %c0_80 = arith.constant 0 : index
    %c0_81 = arith.constant 0 : index
    %82 = vector.load %arg4[%c6, %c0_80, %c0_81] : memref<9x128x128xbf16, #tpu.memory_space<vmem>>, vector<1x128x128xbf16>
    %83 = vector.shape_cast %82 : vector<1x128x128xbf16> to vector<128x128xbf16>
    %cst_82 = arith.constant dense<0.000000e+00> : vector<256x128xf32>
    %84 = tpu.matmul %14, %83, %cst_82 {dimension_numbers = #tpu.dot_dimension_numbers<[1], [0], [0], [1], [0, 0, 1, 1], [], []>} : vector<256x128xbf16>, vector<128x128xbf16>, vector<256x128xf32> -> vector<256x128xf32>
    %85 = vector.shape_cast %84 : vector<256x128xf32> to vector<16x16x128xf32>
    %c0_83 = arith.constant 0 : index
    %c0_84 = arith.constant 0 : index
    %c1_85 = arith.constant 1 : index
    %c0_86 = arith.constant 0 : index
    %86 = vector.load %arg5[%c0_83, %c0_84, %c1_85, %c0_86] : memref<1x16x16x128xf32, #tpu.memory_space<vmem>>, vector<1x15x15x128xf32>
    %87 = vector.shape_cast %86 : vector<1x15x15x128xf32> to vector<15x15x128xf32>
    %88 = vector.extract_strided_slice %85 {offsets = [1, 0, 0], sizes = [15, 15, 128], strides = [1, 1, 1]} : vector<16x16x128xf32> to vector<15x15x128xf32>
    %89 = arith.addf %87, %88 : vector<15x15x128xf32>
    %c0_87 = arith.constant 0 : index
    %c0_88 = arith.constant 0 : index
    %c1_89 = arith.constant 1 : index
    %c0_90 = arith.constant 0 : index
    %90 = vector.load %arg5[%c0_87, %c0_88, %c1_89, %c0_90] : memref<1x16x16x128xf32, #tpu.memory_space<vmem>>, vector<1x15x15x128xf32>
    %91 = vector.shape_cast %90 : vector<1x15x15x128xf32> to vector<15x15x128xf32>
    %92 = vector.shape_cast %89 : vector<15x15x128xf32> to vector<1x15x15x128xf32>
    tpu.vector_store %arg5[%c0_87, %c0_88, %c1_89, %c0_90], %92 {strides = array<i32>} : memref<1x16x16x128xf32, #tpu.memory_space<vmem>>, vector<1x15x15x128xf32>,
    %c7 = arith.constant 7 : index
    %c0_91 = arith.constant 0 : index
    %c0_92 = arith.constant 0 : index
    %93 = vector.load %arg4[%c7, %c0_91, %c0_92] : memref<9x128x128xbf16, #tpu.memory_space<vmem>>, vector<1x128x128xbf16>
    %94 = vector.shape_cast %93 : vector<1x128x128xbf16> to vector<128x128xbf16>
    %cst_93 = arith.constant dense<0.000000e+00> : vector<256x128xf32>
    %95 = tpu.matmul %14, %94, %cst_93 {dimension_numbers = #tpu.dot_dimension_numbers<[1], [0], [0], [1], [0, 0, 1, 1], [], []>} : vector<256x128xbf16>, vector<128x128xbf16>, vector<256x128xf32> -> vector<256x128xf32>
    %96 = vector.shape_cast %95 : vector<256x128xf32> to vector<16x16x128xf32>
    %c0_94 = arith.constant 0 : index
    %c0_95 = arith.constant 0 : index
    %c0_96 = arith.constant 0 : index
    %c0_97 = arith.constant 0 : index
    %97 = vector.load %arg5[%c0_94, %c0_95, %c0_96, %c0_97] : memref<1x16x16x128xf32, #tpu.memory_space<vmem>>, vector<1x15x16x128xf32>
    %98 = vector.shape_cast %97 : vector<1x15x16x128xf32> to vector<15x16x128xf32>
    %99 = vector.extract_strided_slice %96 {offsets = [1, 0, 0], sizes = [15, 16, 128], strides = [1, 1, 1]} : vector<16x16x128xf32> to vector<15x16x128xf32>
    %100 = arith.addf %98, %99 : vector<15x16x128xf32>
    %c0_98 = arith.constant 0 : index
    %c0_99 = arith.constant 0 : index
    %c0_100 = arith.constant 0 : index
    %c0_101 = arith.constant 0 : index
    %101 = vector.load %arg5[%c0_98, %c0_99, %c0_100, %c0_101] : memref<1x16x16x128xf32, #tpu.memory_space<vmem>>, vector<1x15x16x128xf32>
    %102 = vector.shape_cast %101 : vector<1x15x16x128xf32> to vector<15x16x128xf32>
    %103 = vector.shape_cast %100 : vector<15x16x128xf32> to vector<1x15x16x128xf32>
    tpu.vector_store %arg5[%c0_98, %c0_99, %c0_100, %c0_101], %103 {strides = array<i32>} : memref<1x16x16x128xf32, #tpu.memory_space<vmem>>, vector<1x15x16x128xf32>,
    %c8 = arith.constant 8 : index
    %c0_102 = arith.constant 0 : index
    %c0_103 = arith.constant 0 : index
    %104 = vector.load %arg4[%c8, %c0_102, %c0_103] : memref<9x128x128xbf16, #tpu.memory_space<vmem>>, vector<1x128x128xbf16>
    %105 = vector.shape_cast %104 : vector<1x128x128xbf16> to vector<128x128xbf16>
    %cst_104 = arith.constant dense<0.000000e+00> : vector<256x128xf32>
    %106 = tpu.matmul %14, %105, %cst_104 {dimension_numbers = #tpu.dot_dimension_numbers<[1], [0], [0], [1], [0, 0, 1, 1], [], []>} : vector<256x128xbf16>, vector<128x128xbf16>, vector<256x128xf32> -> vector<256x128xf32>
    %107 = vector.shape_cast %106 : vector<256x128xf32> to vector<16x16x128xf32>
    %c0_105 = arith.constant 0 : index
    %c0_106 = arith.constant 0 : index
    %c0_107 = arith.constant 0 : index
    %c0_108 = arith.constant 0 : index
    %108 = vector.load %arg5[%c0_105, %c0_106, %c0_107, %c0_108] : memref<1x16x16x128xf32, #tpu.memory_space<vmem>>, vector<1x15x15x128xf32>
    %109 = vector.shape_cast %108 : vector<1x15x15x128xf32> to vector<15x15x128xf32>
    %110 = vector.extract_strided_slice %107 {offsets = [1, 1, 0], sizes = [15, 15, 128], strides = [1, 1, 1]} : vector<16x16x128xf32> to vector<15x15x128xf32>
    %111 = arith.addf %109, %110 : vector<15x15x128xf32>
    %c0_109 = arith.constant 0 : index
    %c0_110 = arith.constant 0 : index
    %c0_111 = arith.constant 0 : index
    %c0_112 = arith.constant 0 : index
    %112 = vector.load %arg5[%c0_109, %c0_110, %c0_111, %c0_112] : memref<1x16x16x128xf32, #tpu.memory_space<vmem>>, vector<1x15x15x128xf32>
    %113 = vector.shape_cast %112 : vector<1x15x15x128xf32> to vector<15x15x128xf32>
    %114 = vector.shape_cast %111 : vector<15x15x128xf32> to vector<1x15x15x128xf32>
    tpu.vector_store %arg5[%c0_109, %c0_110, %c0_111, %c0_112], %114 {strides = array<i32>} : memref<1x16x16x128xf32, #tpu.memory_space<vmem>>, vector<1x15x15x128xf32>,
    %c0_113 = arith.constant 0 : index
    %c0_114 = arith.constant 0 : index
    %c0_115 = arith.constant 0 : index
    %c0_116 = arith.constant 0 : index
    %115 = vector.load %arg5[%c0_113, %c0_114, %c0_115, %c0_116] : memref<1x16x16x128xf32, #tpu.memory_space<vmem>>, vector<1x16x16x128xf32>
    %116 = vector.shape_cast %115 : vector<1x16x16x128xf32> to vector<16x16x128xf32>
    %117 = vector.shape_cast %116 : vector<16x16x128xf32> to vector<256x128xf32>
    %c0_117 = arith.constant 0 : index
    %c0_118 = arith.constant 0 : index
    %118 = vector.load %arg6[%c0_117, %c0_118] : memref<1x128xf32, #tpu.memory_space<vmem>>, vector<1x128xf32>
    %cst_119 = arith.constant dense<0.000000e+00> : vector<128xf32>
    %119 = vector.multi_reduction <add>, %117, %cst_119 [0] : vector<256x128xf32> to vector<128xf32>
    %120 = vector.shape_cast %119 : vector<128xf32> to vector<1x128xf32>
    %121 = arith.addf %118, %120 : vector<1x128xf32>
    %c0_120 = arith.constant 0 : index
    %c0_121 = arith.constant 0 : index
    %122 = vector.load %arg6[%c0_120, %c0_121] : memref<1x128xf32, #tpu.memory_space<vmem>>, vector<1x128xf32>
    tpu.vector_store %arg6[%c0_120, %c0_121], %121 {strides = array<i32>} : memref<1x128xf32, #tpu.memory_space<vmem>>, vector<1x128xf32>,
    %c0_122 = arith.constant 0 : index
    %c0_123 = arith.constant 0 : index
    %123 = vector.load %arg7[%c0_122, %c0_123] : memref<1x128xf32, #tpu.memory_space<vmem>>, vector<1x128xf32>
    %124 = arith.mulf %117, %117 : vector<256x128xf32>
    %cst_124 = arith.constant dense<0.000000e+00> : vector<128xf32>
    %125 = vector.multi_reduction <add>, %124, %cst_124 [0] : vector<256x128xf32> to vector<128xf32>
    %126 = vector.shape_cast %125 : vector<128xf32> to vector<1x128xf32>
    %127 = arith.addf %123, %126 : vector<1x128xf32>
    %c0_125 = arith.constant 0 : index
    %c0_126 = arith.constant 0 : index
    %128 = vector.load %arg7[%c0_125, %c0_126] : memref<1x128xf32, #tpu.memory_space<vmem>>, vector<1x128xf32>
    tpu.vector_store %arg7[%c0_125, %c0_126], %127 {strides = array<i32>} : memref<1x128xf32, #tpu.memory_space<vmem>>, vector<1x128xf32>,
    return
  }
  func.func @transform_0(%arg0: i32) -> (i32, i32, i32, i32) {
    %c0_i32 = arith.constant 0 : i32
    %c0_i32_0 = arith.constant 0 : i32
    %c0_i32_1 = arith.constant 0 : i32
    %c0_i32_2 = arith.constant 0 : i32
    return %arg0, %c0_i32, %c0_i32_0, %c0_i32_1 : i32, i32, i32, i32
  }
  func.func @transform_1(%arg0: i32) -> (i32, i32) {
    %c0_i32 = arith.constant 0 : i32
    %c0_i32_0 = arith.constant 0 : i32
    %c0_i32_1 = arith.constant 0 : i32
    return %c0_i32, %c0_i32_0 : i32, i32
  }
  func.func @transform_2(%arg0: i32) -> (i32, i32) {
    %c0_i32 = arith.constant 0 : i32
    %c0_i32_0 = arith.constant 0 : i32
    %c0_i32_1 = arith.constant 0 : i32
    return %c0_i32, %c0_i32_0 : i32, i32
  }
  func.func @transform_3(%arg0: i32) -> (i32, i32, i32) {
    %c0_i32 = arith.constant 0 : i32
    %c0_i32_0 = arith.constant 0 : i32
    %c0_i32_1 = arith.constant 0 : i32
    %c0_i32_2 = arith.constant 0 : i32
    return %c0_i32, %c0_i32_0, %c0_i32_1 : i32, i32, i32
  }
  func.func @transform_4(%arg0: i32) -> (i32, i32, i32, i32) {
    %c0_i32 = arith.constant 0 : i32
    %c0_i32_0 = arith.constant 0 : i32
    %c0_i32_1 = arith.constant 0 : i32
    %c0_i32_2 = arith.constant 0 : i32
    return %arg0, %c0_i32, %c0_i32_0, %c0_i32_1 : i32, i32, i32, i32
  }
  func.func @transform_5(%arg0: i32) -> (i32, i32) {
    %c0_i32 = arith.constant 0 : i32
    %c0_i32_0 = arith.constant 0 : i32
    %c0_i32_1 = arith.constant 0 : i32
    return %c0_i32, %c0_i32_0 : i32, i32
  }
  func.func @transform_6(%arg0: i32) -> (i32, i32) {
    %c0_i32 = arith.constant 0 : i32
    %c0_i32_0 = arith.constant 0 : i32
    %c0_i32_1 = arith.constant 0 : i32
    return %c0_i32, %c0_i32_0 : i32, i32
  }
}

module attributes {stable_mosaic.version = 11 : i64} {
  func.func @_bn_add_relu_kernel(%arg0: i32, %arg1: memref<256x128xf32, #tpu.memory_space<vmem>>, %arg2: memref<1x128xf32, #tpu.memory_space<vmem>>, %arg3: memref<1x128xf32, #tpu.memory_space<vmem>>, %arg4: memref<256x128xf32, #tpu.memory_space<vmem>>, %arg5: memref<256x128xf32, #tpu.memory_space<vmem>>) attributes {dimension_semantics = [#tpu.dimension_semantics<parallel>], iteration_bounds = array<i64: 2>, scalar_prefetch = 0 : i64, scratch_operands = 0 : i64, tpu.core_type = #tpu.core_type<tc>, window_params = [{transform_indices = @transform_0, window_bounds = array<i64: 256, 128>}, {pipeline_mode = #tpu.pipeline_mode<synchronous>, transform_indices = @transform_1, window_bounds = array<i64: 1, 128>}, {pipeline_mode = #tpu.pipeline_mode<synchronous>, transform_indices = @transform_2, window_bounds = array<i64: 1, 128>}, {transform_indices = @transform_3, window_bounds = array<i64: 256, 128>}, {transform_indices = @transform_4, window_bounds = array<i64: 256, 128>}]} {
    %c0 = arith.constant 0 : index
    %c0_0 = arith.constant 0 : index
    %0 = vector.load %arg1[%c0, %c0_0] : memref<256x128xf32, #tpu.memory_space<vmem>>, vector<256x128xf32>
    %c0_1 = arith.constant 0 : index
    %c0_2 = arith.constant 0 : index
    %1 = vector.load %arg2[%c0_1, %c0_2] : memref<1x128xf32, #tpu.memory_space<vmem>>, vector<1x128xf32>
    %2 = vector.broadcast %1 : vector<1x128xf32> to vector<256x128xf32>
    %3 = arith.mulf %0, %2 : vector<256x128xf32>
    %c0_3 = arith.constant 0 : index
    %c0_4 = arith.constant 0 : index
    %4 = vector.load %arg3[%c0_3, %c0_4] : memref<1x128xf32, #tpu.memory_space<vmem>>, vector<1x128xf32>
    %5 = vector.broadcast %4 : vector<1x128xf32> to vector<256x128xf32>
    %6 = arith.addf %3, %5 : vector<256x128xf32>
    %c0_5 = arith.constant 0 : index
    %c0_6 = arith.constant 0 : index
    %7 = vector.load %arg4[%c0_5, %c0_6] : memref<256x128xf32, #tpu.memory_space<vmem>>, vector<256x128xf32>
    %8 = arith.addf %6, %7 : vector<256x128xf32>
    %cst = arith.constant 0.000000e+00 : f32
    %9 = vector.broadcast %cst : f32 to vector<256x128xf32>
    %10 = arith.maximumf %8, %9 : vector<256x128xf32>
    %c0_7 = arith.constant 0 : index
    %c0_8 = arith.constant 0 : index
    %11 = vector.load %arg5[%c0_7, %c0_8] : memref<256x128xf32, #tpu.memory_space<vmem>>, vector<256x128xf32>
    tpu.vector_store %arg5[%c0_7, %c0_8], %10 {strides = array<i32>} : memref<256x128xf32, #tpu.memory_space<vmem>>, vector<256x128xf32>,
    return
  }
  func.func @transform_0(%arg0: i32) -> (i32, i32) {
    %c0_i32 = arith.constant 0 : i32
    %c0_i32_0 = arith.constant 0 : i32
    return %arg0, %c0_i32 : i32, i32
  }
  func.func @transform_1(%arg0: i32) -> (i32, i32) {
    %c0_i32 = arith.constant 0 : i32
    %c0_i32_0 = arith.constant 0 : i32
    %c0_i32_1 = arith.constant 0 : i32
    return %c0_i32, %c0_i32_0 : i32, i32
  }
  func.func @transform_2(%arg0: i32) -> (i32, i32) {
    %c0_i32 = arith.constant 0 : i32
    %c0_i32_0 = arith.constant 0 : i32
    %c0_i32_1 = arith.constant 0 : i32
    return %c0_i32, %c0_i32_0 : i32, i32
  }
  func.func @transform_3(%arg0: i32) -> (i32, i32) {
    %c0_i32 = arith.constant 0 : i32
    %c0_i32_0 = arith.constant 0 : i32
    return %arg0, %c0_i32 : i32, i32
  }
  func.func @transform_4(%arg0: i32) -> (i32, i32) {
    %c0_i32 = arith.constant 0 : i32
    %c0_i32_0 = arith.constant 0 : i32
    return %arg0, %c0_i32 : i32, i32
  }
}

</mosaic_0001>

<llo_original>
// kernel: bottleneck_forward.4
$region0: #{bottleneck_forward.4}
  #allocation0 [shape = 'u32[]', space=smem, size = 0x4, offset = 0x4, fixed_abs, tag = 'smem constant byte address 0x4 - core index']
  #allocation1 [shape = 'u32[144,128]{1,0:T(1,128)}', space=vmem, size = 0x12000, scoped, tag = 'internal scratch']
  %s0 = inlined_call_operand.vmem [shape: f32[512,128], index: 0, kind: input, shape index: {}]
  %s1 = inlined_call_operand.vmem [shape: bf16[128,128], index: 1, kind: input, shape index: {}]
  %s2 = inlined_call_operand.vmem [shape: f32[512,128], index: 2, kind: output, shape index: {0}]
  %s3 = inlined_call_operand.vmem [shape: f32[1,128], index: 3, kind: output, shape index: {1}]
  %s4 = inlined_call_operand.vmem [shape: f32[1,128], index: 4, kind: output, shape index: {2}]
  %5 = xla_tuple %s2, %s3, %s4
  %s6 = sld [smem:[#allocation0]]
  $region61: #{bottleneck_forward.4} parent=0
    _
  %s8 = ssub.s32 1, %s6
  %s9 = scalar_select 0, %s8, %s6
  loop: start=0, step=1, limit=4
  $region2: #{bottleneck_forward.4} parent=0 // loop_pre_header
    _
  $region3: #{bottleneck_forward.4} parent=0 // loop_header
    %s11 = sphi 0, %s15
    %p12 = scmp.ge.s32.totalorder %s11, 4
    %s21 = sphi 0, %s23
    %s24 = sphi 0, %s21
    %s25 = sphi 0, %s24
    %s41 = sphi 0, %s25
    %s45 = sphi 0, %s45
    %s47 = sphi 0, %s45
    %s48 = sphi 0, %s47
    %s62 = sphi 0, %s48
    %s68 = sphi 0, %s70
    %s71 = sphi 0, %s68
    %s72 = sphi 0, %s71
    %s88 = sphi 0, %s72
    %s92 = sphi 0, %s92
    %s94 = sphi 0, %s92
    %s95 = sphi 0, %s94
    %s109 = sphi 0, %s95
    %s113 = sphi 0, %s113
    %s115 = sphi 0, %s113
    %s116 = sphi 0, %s115
    %s130 = sphi 0, %s116
  $region4: #{bottleneck_forward.4} parent=0 // loop_header_branch
    %14 = sbr.rel (%p12) target = $region8
  $region5: #{bottleneck_forward.4} parent=0 // loop_body
    %s16 = ssub.s32 %s11, 1
    %s17 = ssub.s32 %s11, 2
    %s18 = sadd.s32 %s11, 1
    %s19 = ssub.s32 %s11, %s18
    %p20 = scmp.eq.s32.totalorder %s19, 0
    %s22 = sadd.s32 %s21, 1
    %s23 = scalar_select %p20, %s21, %s22
    %p26 = pneg %p20
    %p27 = scmp.eq.s32.totalorder %s11, 1
    %p28 = por %p26, %p27
    %p29 = scmp.ne.s32.totalorder %s21, %s24
    %p30 = scmp.eq.s32.totalorder %s11, 0
    %p31 = por %p29, %p30
    %p32 = scmp.ne.s32.totalorder %s21, %s24
    %p33 = scmp.eq.s32.totalorder %s16, 1
    %p34 = por %p32, %p33
    %p35 = scmp.ne.s32.totalorder %s24, %s25
    %p36 = scmp.eq.s32.totalorder %s16, 0
    %p37 = por %p35, %p36
    %p38 = scmp.ne.s32.totalorder %s24, %s25
    %p39 = scmp.eq.s32.totalorder %s17, 1
    %p40 = por %p38, %p39
    %p42 = scmp.ne.s32.totalorder %s25, %s41
    %p43 = scmp.eq.s32.totalorder %s17, 0
    %p44 = por %p42, %p43
    %s46 = sadd.s32 %s45, 1
    %p49 = scmp.eq.s32.totalorder %s11, 1
    %p50 = scmp.ne.s32.totalorder %s45, %s47
    %p51 = scmp.eq.s32.totalorder %s11, 0
    %p52 = por %p50, %p51
    %p53 = scmp.ne.s32.totalorder %s45, %s47
    %p54 = scmp.eq.s32.totalorder %s16, 1
    %p55 = por %p53, %p54
    %p56 = scmp.ne.s32.totalorder %s47, %s48
    %p57 = scmp.eq.s32.totalorder %s16, 0
    %p58 = por %p56, %p57
    %p59 = scmp.ne.s32.totalorder %s47, %s48
    %p60 = scmp.eq.s32.totalorder %s17, 1
    %p61 = por %p59, %p60
    %p63 = scmp.ne.s32.totalorder %s48, %s62
    %p64 = scmp.eq.s32.totalorder %s17, 0
    %p65 = por %p63, %p64
    %s66 = ssub.s32 %s11, %s18
    %p67 = scmp.eq.s32.totalorder %s66, 0
    %s69 = sadd.s32 %s68, 1
    %s70 = scalar_select %p67, %s68, %s69
    %p73 = pneg %p67
    %p74 = scmp.eq.s32.totalorder %s11, 1
    %p75 = por %p73, %p74
    %p76 = scmp.ne.s32.totalorder %s68, %s71
    %p77 = scmp.eq.s32.totalorder %s11, 0
    %p78 = por %p76, %p77
    %p79 = scmp.ne.s32.totalorder %s68, %s71
    %p80 = scmp.eq.s32.totalorder %s16, 1
    %p81 = por %p79, %p80
    %p82 = scmp.ne.s32.totalorder %s71, %s72
    %p83 = scmp.eq.s32.totalorder %s16, 0
    %p84 = por %p82, %p83
    %p85 = scmp.ne.s32.totalorder %s71, %s72
    %p86 = scmp.eq.s32.totalorder %s17, 1
    %p87 = por %p85, %p86
    %p89 = scmp.ne.s32.totalorder %s72, %s88
    %p90 = scmp.eq.s32.totalorder %s17, 0
    %p91 = por %p89, %p90
    %s93 = sadd.s32 %s92, 1
    %p96 = scmp.eq.s32.totalorder %s11, 1
    %p97 = scmp.ne.s32.totalorder %s92, %s94
    %p98 = scmp.eq.s32.totalorder %s11, 0
    %p99 = por %p97, %p98
    %p100 = scmp.ne.s32.totalorder %s92, %s94
    %p101 = scmp.eq.s32.totalorder %s16, 1
    %p102 = por %p100, %p101
    %p103 = scmp.ne.s32.totalorder %s94, %s95
    %p104 = scmp.eq.s32.totalorder %s16, 0
    %p105 = por %p103, %p104
    %p106 = scmp.ne.s32.totalorder %s94, %s95
    %p107 = scmp.eq.s32.totalorder %s17, 1
    %p108 = por %p106, %p107
    %p110 = scmp.ne.s32.totalorder %s95, %s109
    %p111 = scmp.eq.s32.totalorder %s17, 0
    %p112 = por %p110, %p111
    %s114 = sadd.s32 %s113, 1
    %p117 = scmp.eq.s32.totalorder %s11, 1
    %p118 = scmp.ne.s32.totalorder %s113, %s115
    %p119 = scmp.eq.s32.totalorder %s11, 0
    %p120 = por %p118, %p119
    %p121 = scmp.ne.s32.totalorder %s113, %s115
    %p122 = scmp.eq.s32.totalorder %s16, 1
    %p123 = por %p121, %p122
    %p124 = scmp.ne.s32.totalorder %s115, %s116
    %p125 = scmp.eq.s32.totalorder %s16, 0
    %p126 = por %p124, %p125
    %p127 = scmp.ne.s32.totalorder %s115, %s116
    %p128 = scmp.eq.s32.totalorder %s17, 1
    %p129 = por %p127, %p128
    %p131 = scmp.ne.s32.totalorder %s116, %s130
    %p132 = scmp.eq.s32.totalorder %s17, 0
    %p133 = por %p131, %p132
    %p134 = scmp.le.s32.totalorder 1, %s11
    %p135 = scmp.lt.s32.totalorder %s11, 3
    %p136 = pnand %p134, %p135
    %p137 = pneg %p136
    // Predicated region
    $region9: #{bottleneck_forward.4} parent=5 // pred_check
      _
    $region10: #{bottleneck_forward.4} parent=5 // pred_check_branch
      %139 = sbr.rel (%p136) target = $region12
    $region11: #{bottleneck_forward.4} parent=5 // pred_region
      %s140 = ssub.s32 %s11, 1
      // Predicated region
      $region13: #{bottleneck_forward.4} parent=11 // pred_check
        %p141 = pneg %p58
      $region14: #{bottleneck_forward.4} parent=11 // pred_check_branch
        %143 = sbr.rel (%p141) target = $region16
      $region15: #{bottleneck_forward.4} parent=11 // pred_region
        _
      $region16: #{bottleneck_forward.4} parent=11 // pred_fallthru
        _
    $region12: #{bottleneck_forward.4} parent=5 // pred_fallthru
      _
    %p144 = scmp.lt.s32.totalorder %s11, 2
    // Predicated region
    $region17: #{bottleneck_forward.4} parent=5 // pred_check
      %p145 = pneg %p144
    $region18: #{bottleneck_forward.4} parent=5 // pred_check_branch
      %147 = sbr.rel (%p145) target = $region20
    $region19: #{bottleneck_forward.4} parent=5 // pred_region
      // Predicated region
      $region21: #{bottleneck_forward.4} parent=19 // pred_check
        %p148 = pneg %p31
      $region22: #{bottleneck_forward.4} parent=19 // pred_check_branch
        %150 = sbr.rel (%p148) target = $region24
      $region23: #{bottleneck_forward.4} parent=19 // pred_region
        %s151 = smul.u32 32, %s11
        %p152 = scmp.lt.s32.totalorder %s151, 63
        %s153 = scalar_select %p152, %s151, 63
        %s154 = smul.addr %s153, 8
        %s155 = scalar_lea.vmem %s0, %s154
        %s156 = smul.u32 32, %s11
      $region24: #{bottleneck_forward.4} parent=19 // pred_fallthru
        _
    $region20: #{bottleneck_forward.4} parent=5 // pred_fallthru
      _
    %p157 = scmp.le.s32.totalorder 1, %s11
    %p158 = scmp.lt.s32.totalorder %s11, 3
    %p159 = pnand %p157, %p158
    %p160 = pneg %p159
    // Predicated region
    $region25: #{bottleneck_forward.4} parent=5 // pred_check
      _
    $region26: #{bottleneck_forward.4} parent=5 // pred_check_branch
      %162 = sbr.rel (%p159) target = $region28
    $region27: #{bottleneck_forward.4} parent=5 // pred_region
      %s163 = ssub.s32 %s11, 1
      %s164 = smul.u32 32, %s16
      %p165 = scmp.lt.s32.totalorder %s164, 63
      %s166 = scalar_select %p165, %s164, 63
      %s167 = smul.addr %s166, 8
      %s168 = scalar_lea.vmem %s0, %s167
      %p169 = pneg %p37
      %p170 = pneg %p34
      %p171 = pneg %p58
      %p172 = pneg %p55
      %p173 = pneg %p84
      %p174 = pneg %p81
      %s175 = smul.u32 32, %s16
      %p176 = scmp.lt.s32.totalorder %s175, 63
      %s177 = scalar_select %p176, %s175, 63
      %s178 = smul.addr %s177, 8
      %s179 = scalar_lea.vmem %s2, %s178
      %p180 = pneg %p105
      %p181 = pneg %p102
      %p182 = pneg %p126
      %p183 = pneg %p123
      %s184 = smul.u32 32, %s16
      %p185 = scmp.lt.s32.totalorder %s184, 63
      %s186 = scalar_select %p185, %s184, 63
      %s187 = smul.addr %s186, 8
      %s188 = scalar_lea.vmem %s0, %s187
      %s189 = smul.u32 32, %s16
      %s190 = smul.u32 32, %s16
      %p191 = scmp.lt.s32.totalorder %s190, 63
      %s192 = scalar_select %p191, %s190, 63
      %s193 = smul.addr %s192, 8
      %s194 = scalar_lea.vmem %s2, %s193
      %s195 = smul.u32 32, %s16
      %p197 = scmp.eq.s32.totalorder %s16, 0
      // Predicated region
      $region29: #{bottleneck_forward.4} parent=27 // pred_check
        %p198 = pneg %p197
      $region30: #{bottleneck_forward.4} parent=27 // pred_check_branch
        %200 = sbr.rel (%p198) target = $region32
      $region31: #{bottleneck_forward.4} parent=27 // pred_region
        %201 = vst [vmem:[%s3] sm:$0x1] 0.0
        %202 = vst [vmem:[%s4] sm:$0x1] 0.0
      $region32: #{bottleneck_forward.4} parent=27 // pred_fallthru
        _
      %v203 = vld [vmem:[%s188] sm:$0xff]
      %v204 = vld [vmem:[%s188 + $0x8] sm:$0xff]
      %v205 = vld [vmem:[%s188 + $0x10] sm:$0xff]
      %v206 = vld [vmem:[%s188 + $0x18] sm:$0xff]
      %v207 = vld [vmem:[%s188 + $0x20] sm:$0xff]
      %v208 = vld [vmem:[%s188 + $0x28] sm:$0xff]
      %v209 = vld [vmem:[%s188 + $0x30] sm:$0xff]
      %v210 = vld [vmem:[%s188 + $0x38] sm:$0xff]
      %v211 = vld [vmem:[%s188 + $0x40] sm:$0xff]
      %v212 = vld [vmem:[%s188 + $0x48] sm:$0xff]
      %v213 = vld [vmem:[%s188 + $0x50] sm:$0xff]
      %v214 = vld [vmem:[%s188 + $0x58] sm:$0xff]
      %v215 = vld [vmem:[%s188 + $0x60] sm:$0xff]
      %v216 = vld [vmem:[%s188 + $0x68] sm:$0xff]
      %v217 = vld [vmem:[%s188 + $0x70] sm:$0xff]
      %v218 = vld [vmem:[%s188 + $0x78] sm:$0xff]
      %v219 = vld [vmem:[%s188 + $0x80] sm:$0xff]
      %v220 = vld [vmem:[%s188 + $0x88] sm:$0xff]
      %v221 = vld [vmem:[%s188 + $0x90] sm:$0xff]
      %v222 = vld [vmem:[%s188 + $0x98] sm:$0xff]
      %v223 = vld [vmem:[%s188 + $0xa0] sm:$0xff]
      %v224 = vld [vmem:[%s188 + $0xa8] sm:$0xff]
      %v225 = vld [vmem:[%s188 + $0xb0] sm:$0xff]
      %v226 = vld [vmem:[%s188 + $0xb8] sm:$0xff]
      %v227 = vld [vmem:[%s188 + $0xc0] sm:$0xff]
      %v228 = vld [vmem:[%s188 + $0xc8] sm:$0xff]
      %v229 = vld [vmem:[%s188 + $0xd0] sm:$0xff]
      %v230 = vld [vmem:[%s188 + $0xd8] sm:$0xff]
      %v231 = vld [vmem:[%s188 + $0xe0] sm:$0xff]
      %v232 = vld [vmem:[%s188 + $0xe8] sm:$0xff]
      %v233 = vld [vmem:[%s188 + $0xf0] sm:$0xff]
      %v234 = vld [vmem:[%s188 + $0xf8] sm:$0xff]
      %v235 = vpack.c.bf16 %v204, %v203
      %v236 = vpack.c.bf16 %v206, %v205
      %v237 = vpack.c.bf16 %v208, %v207
      %v238 = vpack.c.bf16 %v210, %v209
      %v239 = vpack.c.bf16 %v212, %v211
      %v240 = vpack.c.bf16 %v214, %v213
      %v241 = vpack.c.bf16 %v216, %v215
      %v242 = vpack.c.bf16 %v218, %v217
      %v243 = vpack.c.bf16 %v220, %v219
      %v244 = vpack.c.bf16 %v222, %v221
      %v245 = vpack.c.bf16 %v224, %v223
      %v246 = vpack.c.bf16 %v226, %v225
      %v247 = vpack.c.bf16 %v228, %v227
      %v248 = vpack.c.bf16 %v230, %v229
      %v249 = vpack.c.bf16 %v232, %v231
      %v250 = vpack.c.bf16 %v234, %v233
      %v251 = vld [vmem:[%s1] sm:$0xf]
      %v252 = vld [vmem:[%s1 + $0x4] sm:$0xf]
      %v253 = vld [vmem:[%s1 + $0x8] sm:$0xf]
      %v254 = vld [vmem:[%s1 + $0xc] sm:$0xf]
      %v255 = vld [vmem:[%s1 + $0x10] sm:$0xf]
      %v256 = vld [vmem:[%s1 + $0x14] sm:$0xf]
      %v257 = vld [vmem:[%s1 + $0x18] sm:$0xf]
      %v258 = vld [vmem:[%s1 + $0x1c] sm:$0xf]
      %v259 = vld [vmem:[%s1 + $0x20] sm:$0xf]
      %v260 = vld [vmem:[%s1 + $0x24] sm:$0xf]
      %v261 = vld [vmem:[%s1 + $0x28] sm:$0xf]
      %v262 = vld [vmem:[%s1 + $0x2c] sm:$0xf]
      %v263 = vld [vmem:[%s1 + $0x30] sm:$0xf]
      %v264 = vld [vmem:[%s1 + $0x34] sm:$0xf]
      %v265 = vld [vmem:[%s1 + $0x38] sm:$0xf]
      %v266 = vld [vmem:[%s1 + $0x3c] sm:$0xf]
      %v283 = vunpack.c.l.b16 %v251
      %v284 = vunpack.c.l.b16 %v252
      %v285 = vunpack.c.l.b16 %v253
      %v286 = vunpack.c.l.b16 %v254
      %v287 = vunpack.c.l.b16 %v255
      %v288 = vunpack.c.l.b16 %v256
      %v289 = vunpack.c.l.b16 %v257
      %v290 = vunpack.c.l.b16 %v258
      %v291 = vunpack.c.l.b16 %v259
      %v292 = vunpack.c.l.b16 %v260
      %v293 = vunpack.c.l.b16 %v261
      %v294 = vunpack.c.l.b16 %v262
      %v295 = vunpack.c.l.b16 %v263
      %v296 = vunpack.c.l.b16 %v264
      %v297 = vunpack.c.l.b16 %v265
      %v298 = vunpack.c.l.b16 %v266
      %v299 = vpack.c.b16 %v284, %v283
      %v300 = vpack.c.b16 %v286, %v285
      %v301 = vpack.c.b16 %v288, %v287
      %v302 = vpack.c.b16 %v290, %v289
      %v303 = vpack.c.b16 %v292, %v291
      %v304 = vpack.c.b16 %v294, %v293
      %v305 = vpack.c.b16 %v296, %v295
      %v306 = vpack.c.b16 %v298, %v297
      %315 = vmatprep.subr.bf16.mxu0 0
      %316 = vmatpush1.bf16.msra.mxu0 %v299
      %317 = vmatprep.subr.bf16.mxu0 0
      %318 = vmatpush1.bf16.msra.mxu0 %v300
      %319 = vmatprep.subr.bf16.mxu0 0
      %320 = vmatpush1.bf16.msra.mxu0 %v301
      %321 = vmatprep.subr.bf16.mxu0 0
      %322 = vmatpush1.bf16.msra.mxu0 %v302
      %323 = vmatprep.subr.bf16.mxu0 0
      %324 = vmatpush1.bf16.msra.mxu0 %v303
      %325 = vmatprep.subr.bf16.mxu0 0
      %326 = vmatpush1.bf16.msra.mxu0 %v304
      %327 = vmatprep.subr.bf16.mxu0 0
      %328 = vmatpush1.bf16.msra.mxu0 %v305
      %329 = vmatprep.subr.bf16.mxu0 0
      %330 = vmatpush1.bf16.msra.mxu0 %v306
      %331 = vmatprep.subr.bf16.mxu0 0
      %332 = vmatpush1.bf16.msra.mxu0 0
      %333 = vmatprep.subr.bf16.mxu0 0
      %334 = vmatpush1.bf16.msra.mxu0 0
      %335 = vmatprep.subr.bf16.mxu0 0
      %336 = vmatpush1.bf16.msra.mxu0 0
      %337 = vmatprep.subr.bf16.mxu0 0
      %338 = vmatpush1.bf16.msra.mxu0 0
      %339 = vmatprep.subr.bf16.mxu0 0
      %340 = vmatpush1.bf16.msra.mxu0 0
      %341 = vmatprep.subr.bf16.mxu0 0
      %342 = vmatpush1.bf16.msra.mxu0 0
      %343 = vmatprep.subr.bf16.mxu0 0
      %344 = vmatpush1.bf16.msra.mxu0 0
      %345 = vmatprep.subr.bf16.mxu0 0
      %346 = vmatpush1.bf16.msra.mxu0 0
      %347 = vmatprep.mubr.bf16.mxu0 0
      %348 = vmatmul.mubr.bf16.gmra.mrb[0].mxu0 %v235
      %v349 = vpop.f32.mrb[0].mxu0
      %v350 = vadd.f32 0.0, %v349
      %v351 = vpop.f32.mrb[0].mxu0
      %v352 = vpop.f32.mrb[0].mxu0
      %v353 = vadd.f32 0.0, %v352
      %v354 = vpop.f32.mrb[0].mxu0
      %355 = vmatprep.mubr.bf16.mxu0 0
      %356 = vmatmul.mubr.bf16.gmra.mrb[0].mxu0 %v236
      %v357 = vpop.f32.mrb[0].mxu0
      %v358 = vadd.f32 0.0, %v357
      %v359 = vpop.f32.mrb[0].mxu0
      %v360 = vpop.f32.mrb[0].mxu0
      %v361 = vadd.f32 0.0, %v360
      %v362 = vpop.f32.mrb[0].mxu0
      %363 = vmatprep.mubr.bf16.mxu0 0
      %364 = vmatmul.mubr.bf16.gmra.mrb[0].mxu0 %v237
      %v365 = vpop.f32.mrb[0].mxu0
      %v366 = vadd.f32 0.0, %v365
      %v367 = vpop.f32.mrb[0].mxu0
      %v368 = vpop.f32.mrb[0].mxu0
      %v369 = vadd.f32 0.0, %v368
      %v370 = vpop.f32.mrb[0].mxu0
      %371 = vmatprep.mubr.bf16.mxu0 0
      %372 = vmatmul.mubr.bf16.gmra.mrb[0].mxu0 %v238
      %v373 = vpop.f32.mrb[0].mxu0
      %v374 = vadd.f32 0.0, %v373
      %v375 = vpop.f32.mrb[0].mxu0
      %v376 = vpop.f32.mrb[0].mxu0
      %v377 = vadd.f32 0.0, %v376
      %v378 = vpop.f32.mrb[0].mxu0
      %379 = vmatprep.mubr.bf16.mxu0 0
      %380 = vmatmul.mubr.bf16.gmra.mrb[0].mxu0 %v239
      %v381 = vpop.f32.mrb[0].mxu0
      %v382 = vadd.f32 0.0, %v381
      %v383 = vpop.f32.mrb[0].mxu0
      %v384 = vpop.f32.mrb[0].mxu0
      %v385 = vadd.f32 0.0, %v384
      %v386 = vpop.f32.mrb[0].mxu0
      %387 = vmatprep.mubr.bf16.mxu0 0
      %388 = vmatmul.mubr.bf16.gmra.mrb[0].mxu0 %v240
      %v389 = vpop.f32.mrb[0].mxu0
      %v390 = vadd.f32 0.0, %v389
      %v391 = vpop.f32.mrb[0].mxu0
      %v392 = vpop.f32.mrb[0].mxu0
      %v393 = vadd.f32 0.0, %v392
      %v394 = vpop.f32.mrb[0].mxu0
      %395 = vmatprep.mubr.bf16.mxu0 0
      %396 = vmatmul.mubr.bf16.gmra.mrb[0].mxu0 %v241
      %v397 = vpop.f32.mrb[0].mxu0
      %v398 = vadd.f32 0.0, %v397
      %v399 = vpop.f32.mrb[0].mxu0
      %v400 = vpop.f32.mrb[0].mxu0
      %v401 = vadd.f32 0.0, %v400
      %v402 = vpop.f32.mrb[0].mxu0
      %403 = vmatprep.mubr.bf16.mxu0 0
      %404 = vmatmul.mubr.bf16.gmra.mrb[0].mxu0 %v242
      %v405 = vpop.f32.mrb[0].mxu0
      %v406 = vadd.f32 0.0, %v405
      %v407 = vpop.f32.mrb[0].mxu0
      %v408 = vpop.f32.mrb[0].mxu0
      %v409 = vadd.f32 0.0, %v408
      %v410 = vpop.f32.mrb[0].mxu0
      %411 = vmatprep.mubr.bf16.mxu0 0
      %412 = vmatmul.mubr.bf16.gmra.mrb[0].mxu0 %v243
      %v413 = vpop.f32.mrb[0].mxu0
      %v414 = vadd.f32 0.0, %v413
      %v415 = vpop.f32.mrb[0].mxu0
      %v416 = vpop.f32.mrb[0].mxu0
      %v417 = vadd.f32 0.0, %v416
      %v418 = vpop.f32.mrb[0].mxu0
      %419 = vmatprep.mubr.bf16.mxu0 0
      %420 = vmatmul.mubr.bf16.gmra.mrb[0].mxu0 %v244
      %v421 = vpop.f32.mrb[0].mxu0
      %v422 = vadd.f32 0.0, %v421
      %v423 = vpop.f32.mrb[0].mxu0
      %v424 = vpop.f32.mrb[0].mxu0
      %v425 = vadd.f32 0.0, %v424
      %v426 = vpop.f32.mrb[0].mxu0
      %427 = vmatprep.mubr.bf16.mxu0 0
      %428 = vmatmul.mubr.bf16.gmra.mrb[0].mxu0 %v245
      %v429 = vpop.f32.mrb[0].mxu0
      %v430 = vadd.f32 0.0, %v429
      %v431 = vpop.f32.mrb[0].mxu0
      %v432 = vpop.f32.mrb[0].mxu0
      %v433 = vadd.f32 0.0, %v432
      %v434 = vpop.f32.mrb[0].mxu0
      %435 = vmatprep.mubr.bf16.mxu0 0
      %436 = vmatmul.mubr.bf16.gmra.mrb[0].mxu0 %v246
      %v437 = vpop.f32.mrb[0].mxu0
      %v438 = vadd.f32 0.0, %v437
      %v439 = vpop.f32.mrb[0].mxu0
      %v440 = vpop.f32.mrb[0].mxu0
      %v441 = vadd.f32 0.0, %v440
      %v442 = vpop.f32.mrb[0].mxu0
      %443 = vmatprep.mubr.bf16.mxu0 0
      %444 = vmatmul.mubr.bf16.gmra.mrb[0].mxu0 %v247
      %v445 = vpop.f32.mrb[0].mxu0
      %v446 = vadd.f32 0.0, %v445
      %v447 = vpop.f32.mrb[0].mxu0
      %v448 = vpop.f32.mrb[0].mxu0
      %v449 = vadd.f32 0.0, %v448
      %v450 = vpop.f32.mrb[0].mxu0
      %451 = vmatprep.mubr.bf16.mxu0 0
      %452 = vmatmul.mubr.bf16.gmra.mrb[0].mxu0 %v248
      %v453 = vpop.f32.mrb[0].mxu0
      %v454 = vadd.f32 0.0, %v453
      %v455 = vpop.f32.mrb[0].mxu0
      %v456 = vpop.f32.mrb[0].mxu0
      %v457 = vadd.f32 0.0, %v456
      %v458 = vpop.f32.mrb[0].mxu0
      %459 = vmatprep.mubr.bf16.mxu0 0
      %460 = vmatmul.mubr.bf16.gmra.mrb[0].mxu0 %v249
      %v461 = vpop.f32.mrb[0].mxu0
      %v462 = vadd.f32 0.0, %v461
      %v463 = vpop.f32.mrb[0].mxu0
      %v464 = vpop.f32.mrb[0].mxu0
      %v465 = vadd.f32 0.0, %v464
      %v466 = vpop.f32.mrb[0].mxu0
      %467 = vmatprep.mubr.bf16.mxu0 0
      %468 = vmatmul.mubr.bf16.gmra.mrb[0].mxu0 %v250
      %v469 = vpop.f32.mrb[0].mxu0
      %v470 = vadd.f32 0.0, %v469
      %v471 = vpop.f32.mrb[0].mxu0
      %v472 = vpop.f32.mrb[0].mxu0
      %v473 = vadd.f32 0.0, %v472
      %v474 = vpop.f32.mrb[0].mxu0
      %475 = vdwg.mxu0
      %476 = vst [vmem:[%s194] sm:$0xff] %v350
      %477 = vst [vmem:[%s194 + $0x8] sm:$0xff] %v353
      %478 = vst [vmem:[%s194 + $0x10] sm:$0xff] %v358
      %479 = vst [vmem:[%s194 + $0x18] sm:$0xff] %v361
      %480 = vst [vmem:[%s194 + $0x20] sm:$0xff] %v366
      %481 = vst [vmem:[%s194 + $0x28] sm:$0xff] %v369
      %482 = vst [vmem:[%s194 + $0x30] sm:$0xff] %v374
      %483 = vst [vmem:[%s194 + $0x38] sm:$0xff] %v377
      %484 = vst [vmem:[%s194 + $0x40] sm:$0xff] %v382
      %485 = vst [vmem:[%s194 + $0x48] sm:$0xff] %v385
      %486 = vst [vmem:[%s194 + $0x50] sm:$0xff] %v390
      %487 = vst [vmem:[%s194 + $0x58] sm:$0xff] %v393
      %488 = vst [vmem:[%s194 + $0x60] sm:$0xff] %v398
      %489 = vst [vmem:[%s194 + $0x68] sm:$0xff] %v401
      %490 = vst [vmem:[%s194 + $0x70] sm:$0xff] %v406
      %491 = vst [vmem:[%s194 + $0x78] sm:$0xff] %v409
      %492 = vst [vmem:[%s194 + $0x80] sm:$0xff] %v414
      %493 = vst [vmem:[%s194 + $0x88] sm:$0xff] %v417
      %494 = vst [vmem:[%s194 + $0x90] sm:$0xff] %v422
      %495 = vst [vmem:[%s194 + $0x98] sm:$0xff] %v425
      %496 = vst [vmem:[%s194 + $0xa0] sm:$0xff] %v430
      %497 = vst [vmem:[%s194 + $0xa8] sm:$0xff] %v433
      %498 = vst [vmem:[%s194 + $0xb0] sm:$0xff] %v438
      %499 = vst [vmem:[%s194 + $0xb8] sm:$0xff] %v441
      %500 = vst [vmem:[%s194 + $0xc0] sm:$0xff] %v446
      %501 = vst [vmem:[%s194 + $0xc8] sm:$0xff] %v449
      %502 = vst [vmem:[%s194 + $0xd0] sm:$0xff] %v454
      %503 = vst [vmem:[%s194 + $0xd8] sm:$0xff] %v457
      %504 = vst [vmem:[%s194 + $0xe0] sm:$0xff] %v462
      %505 = vst [vmem:[%s194 + $0xe8] sm:$0xff] %v465
      %506 = vst [vmem:[%s194 + $0xf0] sm:$0xff] %v470
      %507 = vst [vmem:[%s194 + $0xf8] sm:$0xff] %v473
      %v508 = vld [vmem:[%s3] sm:$0x1]
      %v509 = vadd.f32 %v350, %v353
      %v510 = vadd.f32 %v509, %v358
      %v511 = vadd.f32 %v510, %v361
      %v512 = vadd.f32 %v511, %v366
      %v513 = vadd.f32 %v512, %v369
      %v514 = vadd.f32 %v513, %v374
      %v515 = vadd.f32 %v514, %v377
      %v516 = vadd.f32 %v515, %v382
      %v517 = vadd.f32 %v516, %v385
      %v518 = vadd.f32 %v517, %v390
      %v519 = vadd.f32 %v518, %v393
      %v520 = vadd.f32 %v519, %v398
      %v521 = vadd.f32 %v520, %v401
      %v522 = vadd.f32 %v521, %v406
      %v523 = vadd.f32 %v522, %v409
      %v524 = vadd.f32 %v523, %v414
      %v525 = vadd.f32 %v524, %v417
      %v526 = vadd.f32 %v525, %v422
      %v527 = vadd.f32 %v526, %v425
      %v528 = vadd.f32 %v527, %v430
      %v529 = vadd.f32 %v528, %v433
      %v530 = vadd.f32 %v529, %v438
      %v531 = vadd.f32 %v530, %v441
      %v532 = vadd.f32 %v531, %v446
      %v533 = vadd.f32 %v532, %v449
      %v534 = vadd.f32 %v533, %v454
      %v535 = vadd.f32 %v534, %v457
      %v536 = vadd.f32 %v535, %v462
      %v537 = vadd.f32 %v536, %v465
      %v538 = vadd.f32 %v537, %v470
      %v539 = vadd.f32 %v538, %v473
      %v540 = vrot.slane %v539, 4
      %v541 = vadd.f32 %v539, %v540
      %v542 = vrot.slane %v541, 2
      %v543 = vadd.f32 %v541, %v542
      %v544 = vrot.slane %v543, 1
      %v545 = vadd.f32 %v543, %v544
      %v546 = vadd.f32 %v508, %v545
      %547 = vst [vmem:[%s3] sm:$0x1] %v546
      %v548 = vld [vmem:[%s4] sm:$0x1]
      %v549 = vmul.f32 %v350, %v350
      %v550 = vmul.f32 %v353, %v353
      %v551 = vmul.f32 %v358, %v358
      %v552 = vmul.f32 %v361, %v361
      %v553 = vmul.f32 %v366, %v366
      %v554 = vmul.f32 %v369, %v369
      %v555 = vmul.f32 %v374, %v374
      %v556 = vmul.f32 %v377, %v377
      %v557 = vmul.f32 %v382, %v382
      %v558 = vmul.f32 %v385, %v385
      %v559 = vmul.f32 %v390, %v390
      %v560 = vmul.f32 %v393, %v393
      %v561 = vmul.f32 %v398, %v398
      %v562 = vmul.f32 %v401, %v401
      %v563 = vmul.f32 %v406, %v406
      %v564 = vmul.f32 %v409, %v409
      %v565 = vmul.f32 %v414, %v414
      %v566 = vmul.f32 %v417, %v417
      %v567 = vmul.f32 %v422, %v422
      %v568 = vmul.f32 %v425, %v425
      %v569 = vmul.f32 %v430, %v430
      %v570 = vmul.f32 %v433, %v433
      %v571 = vmul.f32 %v438, %v438
      %v572 = vmul.f32 %v441, %v441
      %v573 = vmul.f32 %v446, %v446
      %v574 = vmul.f32 %v449, %v449
      %v575 = vmul.f32 %v454, %v454
      %v576 = vmul.f32 %v457, %v457
      %v577 = vmul.f32 %v462, %v462
      %v578 = vmul.f32 %v465, %v465
      %v579 = vmul.f32 %v470, %v470
      %v580 = vmul.f32 %v473, %v473
      %v581 = vadd.f32 %v549, %v550
      %v582 = vadd.f32 %v581, %v551
      %v583 = vadd.f32 %v582, %v552
      %v584 = vadd.f32 %v583, %v553
      %v585 = vadd.f32 %v584, %v554
      %v586 = vadd.f32 %v585, %v555
      %v587 = vadd.f32 %v586, %v556
      %v588 = vadd.f32 %v587, %v557
      %v589 = vadd.f32 %v588, %v558
      %v590 = vadd.f32 %v589, %v559
      %v591 = vadd.f32 %v590, %v560
      %v592 = vadd.f32 %v591, %v561
      %v593 = vadd.f32 %v592, %v562
      %v594 = vadd.f32 %v593, %v563
      %v595 = vadd.f32 %v594, %v564
      %v596 = vadd.f32 %v595, %v565
      %v597 = vadd.f32 %v596, %v566
      %v598 = vadd.f32 %v597, %v567
      %v599 = vadd.f32 %v598, %v568
      %v600 = vadd.f32 %v599, %v569
      %v601 = vadd.f32 %v600, %v570
      %v602 = vadd.f32 %v601, %v571
      %v603 = vadd.f32 %v602, %v572
      %v604 = vadd.f32 %v603, %v573
      %v605 = vadd.f32 %v604, %v574
      %v606 = vadd.f32 %v605, %v575
      %v607 = vadd.f32 %v606, %v576
      %v608 = vadd.f32 %v607, %v577
      %v609 = vadd.f32 %v608, %v578
      %v610 = vadd.f32 %v609, %v579
      %v611 = vadd.f32 %v610, %v580
      %v612 = vrot.slane %v611, 4
      %v613 = vadd.f32 %v611, %v612
      %v614 = vrot.slane %v613, 2
      %v615 = vadd.f32 %v613, %v614
      %v616 = vrot.slane %v615, 1
      %v617 = vadd.f32 %v615, %v616
      %v618 = vadd.f32 %v548, %v617
      %619 = vst [vmem:[%s4] sm:$0x1] %v618
      %s620 = smul.u32 32, %s16
      %p621 = scmp.lt.s32.totalorder %s620, 63
      %s622 = scalar_select %p621, %s620, 63
      %s623 = smul.addr %s622, 8
      %s624 = scalar_lea.vmem %s2, %s623
      // Predicated region
      $region33: #{bottleneck_forward.4} parent=27 // pred_check
        %p625 = pneg %p81
      $region34: #{bottleneck_forward.4} parent=27 // pred_check_branch
        %627 = sbr.rel (%p625) target = $region36
      $region35: #{bottleneck_forward.4} parent=27 // pred_region
        %s628 = smul.u32 32, %s16
      $region36: #{bottleneck_forward.4} parent=27 // pred_fallthru
        _
      // Predicated region
      $region37: #{bottleneck_forward.4} parent=27 // pred_check
        %p629 = pneg %p102
      $region38: #{bottleneck_forward.4} parent=27 // pred_check_branch
        %631 = sbr.rel (%p629) target = $region40
      $region39: #{bottleneck_forward.4} parent=27 // pred_region
        _
      $region40: #{bottleneck_forward.4} parent=27 // pred_fallthru
        _
      // Predicated region
      $region41: #{bottleneck_forward.4} parent=27 // pred_check
        %p632 = pneg %p123
      $region42: #{bottleneck_forward.4} parent=27 // pred_check_branch
        %634 = sbr.rel (%p632) target = $region44
      $region43: #{bottleneck_forward.4} parent=27 // pred_region
        _
      $region44: #{bottleneck_forward.4} parent=27 // pred_fallthru
        _
      // Predicated region
      $region45: #{bottleneck_forward.4} parent=27 // pred_check
        %p635 = pneg %p102
      $region46: #{bottleneck_forward.4} parent=27 // pred_check_branch
        %637 = sbr.rel (%p635) target = $region48
      $region47: #{bottleneck_forward.4} parent=27 // pred_region
        _
      $region48: #{bottleneck_forward.4} parent=27 // pred_fallthru
        _
      // Predicated region
      $region49: #{bottleneck_forward.4} parent=27 // pred_check
        %p638 = pneg %p123
      $region50: #{bottleneck_forward.4} parent=27 // pred_check_branch
        %640 = sbr.rel (%p638) target = $region52
      $region51: #{bottleneck_forward.4} parent=27 // pred_region
        _
      $region52: #{bottleneck_forward.4} parent=27 // pred_fallthru
        _
    $region28: #{bottleneck_forward.4} parent=5 // pred_fallthru
      _
    %p641 = scmp.le.s32.totalorder 2, %s11
    // Predicated region
    $region53: #{bottleneck_forward.4} parent=5 // pred_check
      %p642 = pneg %p641
    $region54: #{bottleneck_forward.4} parent=5 // pred_check_branch
      %644 = sbr.rel (%p642) target = $region56
    $region55: #{bottleneck_forward.4} parent=5 // pred_region
      %s645 = ssub.s32 %s11, 2
      // Predicated region
      $region57: #{bottleneck_forward.4} parent=55 // pred_check
        %p646 = pneg %p87
      $region58: #{bottleneck_forward.4} parent=55 // pred_check_branch
        %648 = sbr.rel (%p646) target = $region60
      $region59: #{bottleneck_forward.4} parent=55 // pred_region
        %s649 = smul.u32 32, %s17
        %p650 = scmp.lt.s32.totalorder %s649, 63
        %s651 = scalar_select %p650, %s649, 63
        %s652 = smul.addr %s651, 8
        %s653 = scalar_lea.vmem %s2, %s652
      $region60: #{bottleneck_forward.4} parent=55 // pred_fallthru
        _
    $region56: #{bottleneck_forward.4} parent=5 // pred_fallthru
      _
  $region6: #{bottleneck_forward.4} parent=0 // loop_footer
    %s15 = sadd.s32 1, %s11
  $region7: #{bottleneck_forward.4} parent=0 // loop_footer_branch
    %10 = sbr.rel target = $region3
  $region8: #{bottleneck_forward.4} parent=0 // loop_exit
    _

// kernel: bottleneck_forward.6
$region0: #{bottleneck_forward.6}
  #allocation0 [shape = 'u32[]', space=smem, size = 0x4, offset = 0x4, fixed_abs, tag = 'smem constant byte address 0x4 - core index']
  #allocation1 [shape = 'u32[144,128]{1,0:T(1,128)}', space=vmem, size = 0x12000, scoped, tag = 'internal scratch']
  %s0 = inlined_call_operand.vmem [shape: f32[512,128], index: 0, kind: input, shape index: {}]
  %s1 = inlined_call_operand.vmem [shape: f32[1,128], index: 1, kind: input, shape index: {}]
  %s2 = inlined_call_operand.vmem [shape: f32[1,128], index: 2, kind: input, shape index: {}]
  %s3 = inlined_call_operand.vmem [shape: bf16[128,128], index: 3, kind: input, shape index: {}]
  %s4 = inlined_call_operand.vmem [shape: f32[512,128], index: 4, kind: output, shape index: {0}]
  %s5 = inlined_call_operand.vmem [shape: f32[1,128], index: 5, kind: output, shape index: {1}]
  %s6 = inlined_call_operand.vmem [shape: f32[1,128], index: 6, kind: output, shape index: {2}]
  %7 = xla_tuple %s4, %s5, %s6
  %s8 = sld [smem:[#allocation0]]
  $region69: #{bottleneck_forward.6} parent=0
    _
  %s10 = ssub.s32 1, %s8
  %s11 = scalar_select 0, %s10, %s8
  loop: start=0, step=1, limit=4
  $region2: #{bottleneck_forward.6} parent=0 // loop_pre_header
    _
  $region3: #{bottleneck_forward.6} parent=0 // loop_header
    %s13 = sphi 0, %s17
    %p14 = scmp.ge.s32.totalorder %s13, 4
    %s23 = sphi 0, %s25
    %s26 = sphi 0, %s23
    %s27 = sphi 0, %s26
    %s43 = sphi 0, %s27
    %s47 = sphi 0, %s47
    %s49 = sphi 0, %s47
    %s50 = sphi 0, %s49
    %s64 = sphi 0, %s50
    %s68 = sphi 0, %s68
    %s70 = sphi 0, %s68
    %s71 = sphi 0, %s70
    %s85 = sphi 0, %s71
    %s89 = sphi 0, %s89
    %s91 = sphi 0, %s89
    %s92 = sphi 0, %s91
    %s106 = sphi 0, %s92
    %s112 = sphi 0, %s114
    %s115 = sphi 0, %s112
    %s116 = sphi 0, %s115
    %s132 = sphi 0, %s116
    %s136 = sphi 0, %s136
    %s138 = sphi 0, %s136
    %s139 = sphi 0, %s138
    %s153 = sphi 0, %s139
    %s157 = sphi 0, %s157
    %s159 = sphi 0, %s157
    %s160 = sphi 0, %s159
    %s174 = sphi 0, %s160
  $region4: #{bottleneck_forward.6} parent=0 // loop_header_branch
    %16 = sbr.rel (%p14) target = $region8
  $region5: #{bottleneck_forward.6} parent=0 // loop_body
    %s18 = ssub.s32 %s13, 1
    %s19 = ssub.s32 %s13, 2
    %s20 = sadd.s32 %s13, 1
    %s21 = ssub.s32 %s13, %s20
    %p22 = scmp.eq.s32.totalorder %s21, 0
    %s24 = sadd.s32 %s23, 1
    %s25 = scalar_select %p22, %s23, %s24
    %p28 = pneg %p22
    %p29 = scmp.eq.s32.totalorder %s13, 1
    %p30 = por %p28, %p29
    %p31 = scmp.ne.s32.totalorder %s23, %s26
    %p32 = scmp.eq.s32.totalorder %s13, 0
    %p33 = por %p31, %p32
    %p34 = scmp.ne.s32.totalorder %s23, %s26
    %p35 = scmp.eq.s32.totalorder %s18, 1
    %p36 = por %p34, %p35
    %p37 = scmp.ne.s32.totalorder %s26, %s27
    %p38 = scmp.eq.s32.totalorder %s18, 0
    %p39 = por %p37, %p38
    %p40 = scmp.ne.s32.totalorder %s26, %s27
    %p41 = scmp.eq.s32.totalorder %s19, 1
    %p42 = por %p40, %p41
    %p44 = scmp.ne.s32.totalorder %s27, %s43
    %p45 = scmp.eq.s32.totalorder %s19, 0
    %p46 = por %p44, %p45
    %s48 = sadd.s32 %s47, 1
    %p51 = scmp.eq.s32.totalorder %s13, 1
    %p52 = scmp.ne.s32.totalorder %s47, %s49
    %p53 = scmp.eq.s32.totalorder %s13, 0
    %p54 = por %p52, %p53
    %p55 = scmp.ne.s32.totalorder %s47, %s49
    %p56 = scmp.eq.s32.totalorder %s18, 1
    %p57 = por %p55, %p56
    %p58 = scmp.ne.s32.totalorder %s49, %s50
    %p59 = scmp.eq.s32.totalorder %s18, 0
    %p60 = por %p58, %p59
    %p61 = scmp.ne.s32.totalorder %s49, %s50
    %p62 = scmp.eq.s32.totalorder %s19, 1
    %p63 = por %p61, %p62
    %p65 = scmp.ne.s32.totalorder %s50, %s64
    %p66 = scmp.eq.s32.totalorder %s19, 0
    %p67 = por %p65, %p66
    %s69 = sadd.s32 %s68, 1
    %p72 = scmp.eq.s32.totalorder %s13, 1
    %p73 = scmp.ne.s32.totalorder %s68, %s70
    %p74 = scmp.eq.s32.totalorder %s13, 0
    %p75 = por %p73, %p74
    %p76 = scmp.ne.s32.totalorder %s68, %s70
    %p77 = scmp.eq.s32.totalorder %s18, 1
    %p78 = por %p76, %p77
    %p79 = scmp.ne.s32.totalorder %s70, %s71
    %p80 = scmp.eq.s32.totalorder %s18, 0
    %p81 = por %p79, %p80
    %p82 = scmp.ne.s32.totalorder %s70, %s71
    %p83 = scmp.eq.s32.totalorder %s19, 1
    %p84 = por %p82, %p83
    %p86 = scmp.ne.s32.totalorder %s71, %s85
    %p87 = scmp.eq.s32.totalorder %s19, 0
    %p88 = por %p86, %p87
    %s90 = sadd.s32 %s89, 1
    %p93 = scmp.eq.s32.totalorder %s13, 1
    %p94 = scmp.ne.s32.totalorder %s89, %s91
    %p95 = scmp.eq.s32.totalorder %s13, 0
    %p96 = por %p94, %p95
    %p97 = scmp.ne.s32.totalorder %s89, %s91
    %p98 = scmp.eq.s32.totalorder %s18, 1
    %p99 = por %p97, %p98
    %p100 = scmp.ne.s32.totalorder %s91, %s92
    %p101 = scmp.eq.s32.totalorder %s18, 0
    %p102 = por %p100, %p101
    %p103 = scmp.ne.s32.totalorder %s91, %s92
    %p104 = scmp.eq.s32.totalorder %s19, 1
    %p105 = por %p103, %p104
    %p107 = scmp.ne.s32.totalorder %s92, %s106
    %p108 = scmp.eq.s32.totalorder %s19, 0
    %p109 = por %p107, %p108
    %s110 = ssub.s32 %s13, %s20
    %p111 = scmp.eq.s32.totalorder %s110, 0
    %s113 = sadd.s32 %s112, 1
    %s114 = scalar_select %p111, %s112, %s113
    %p117 = pneg %p111
    %p118 = scmp.eq.s32.totalorder %s13, 1
    %p119 = por %p117, %p118
    %p120 = scmp.ne.s32.totalorder %s112, %s115
    %p121 = scmp.eq.s32.totalorder %s13, 0
    %p122 = por %p120, %p121
    %p123 = scmp.ne.s32.totalorder %s112, %s115
    %p124 = scmp.eq.s32.totalorder %s18, 1
    %p125 = por %p123, %p124
    %p126 = scmp.ne.s32.totalorder %s115, %s116
    %p127 = scmp.eq.s32.totalorder %s18, 0
    %p128 = por %p126, %p127
    %p129 = scmp.ne.s32.totalorder %s115, %s116
    %p130 = scmp.eq.s32.totalorder %s19, 1
    %p131 = por %p129, %p130
    %p133 = scmp.ne.s32.totalorder %s116, %s132
    %p134 = scmp.eq.s32.totalorder %s19, 0
    %p135 = por %p133, %p134
    %s137 = sadd.s32 %s136, 1
    %p140 = scmp.eq.s32.totalorder %s13, 1
    %p141 = scmp.ne.s32.totalorder %s136, %s138
    %p142 = scmp.eq.s32.totalorder %s13, 0
    %p143 = por %p141, %p142
    %p144 = scmp.ne.s32.totalorder %s136, %s138
    %p145 = scmp.eq.s32.totalorder %s18, 1
    %p146 = por %p144, %p145
    %p147 = scmp.ne.s32.totalorder %s138, %s139
    %p148 = scmp.eq.s32.totalorder %s18, 0
    %p149 = por %p147, %p148
    %p150 = scmp.ne.s32.totalorder %s138, %s139
    %p151 = scmp.eq.s32.totalorder %s19, 1
    %p152 = por %p150, %p151
    %p154 = scmp.ne.s32.totalorder %s139, %s153
    %p155 = scmp.eq.s32.totalorder %s19, 0
    %p156 = por %p154, %p155
    %s158 = sadd.s32 %s157, 1
    %p161 = scmp.eq.s32.totalorder %s13, 1
    %p162 = scmp.ne.s32.totalorder %s157, %s159
    %p163 = scmp.eq.s32.totalorder %s13, 0
    %p164 = por %p162, %p163
    %p165 = scmp.ne.s32.totalorder %s157, %s159
    %p166 = scmp.eq.s32.totalorder %s18, 1
    %p167 = por %p165, %p166
    %p168 = scmp.ne.s32.totalorder %s159, %s160
    %p169 = scmp.eq.s32.totalorder %s18, 0
    %p170 = por %p168, %p169
    %p171 = scmp.ne.s32.totalorder %s159, %s160
    %p172 = scmp.eq.s32.totalorder %s19, 1
    %p173 = por %p171, %p172
    %p175 = scmp.ne.s32.totalorder %s160, %s174
    %p176 = scmp.eq.s32.totalorder %s19, 0
    %p177 = por %p175, %p176
    %p178 = scmp.le.s32.totalorder 1, %s13
    %p179 = scmp.lt.s32.totalorder %s13, 3
    %p180 = pnand %p178, %p179
    %p181 = pneg %p180
    // Predicated region
    $region9: #{bottleneck_forward.6} parent=5 // pred_check
      _
    $region10: #{bottleneck_forward.6} parent=5 // pred_check_branch
      %183 = sbr.rel (%p180) target = $region12
    $region11: #{bottleneck_forward.6} parent=5 // pred_region
      %s184 = ssub.s32 %s13, 1
      // Predicated region
      $region13: #{bottleneck_forward.6} parent=11 // pred_check
        %p185 = pneg %p60
      $region14: #{bottleneck_forward.6} parent=11 // pred_check_branch
        %187 = sbr.rel (%p185) target = $region16
      $region15: #{bottleneck_forward.6} parent=11 // pred_region
        _
      $region16: #{bottleneck_forward.6} parent=11 // pred_fallthru
        _
      // Predicated region
      $region17: #{bottleneck_forward.6} parent=11 // pred_check
        %p188 = pneg %p81
      $region18: #{bottleneck_forward.6} parent=11 // pred_check_branch
        %190 = sbr.rel (%p188) target = $region20
      $region19: #{bottleneck_forward.6} parent=11 // pred_region
        _
      $region20: #{bottleneck_forward.6} parent=11 // pred_fallthru
        _
      // Predicated region
      $region21: #{bottleneck_forward.6} parent=11 // pred_check
        %p191 = pneg %p102
      $region22: #{bottleneck_forward.6} parent=11 // pred_check_branch
        %193 = sbr.rel (%p191) target = $region24
      $region23: #{bottleneck_forward.6} parent=11 // pred_region
        _
      $region24: #{bottleneck_forward.6} parent=11 // pred_fallthru
        _
    $region12: #{bottleneck_forward.6} parent=5 // pred_fallthru
      _
    %p194 = scmp.lt.s32.totalorder %s13, 2
    // Predicated region
    $region25: #{bottleneck_forward.6} parent=5 // pred_check
      %p195 = pneg %p194
    $region26: #{bottleneck_forward.6} parent=5 // pred_check_branch
      %197 = sbr.rel (%p195) target = $region28
    $region27: #{bottleneck_forward.6} parent=5 // pred_region
      // Predicated region
      $region29: #{bottleneck_forward.6} parent=27 // pred_check
        %p198 = pneg %p33
      $region30: #{bottleneck_forward.6} parent=27 // pred_check_branch
        %200 = sbr.rel (%p198) target = $region32
      $region31: #{bottleneck_forward.6} parent=27 // pred_region
        %s201 = smul.u32 32, %s13
        %p202 = scmp.lt.s32.totalorder %s201, 63
        %s203 = scalar_select %p202, %s201, 63
        %s204 = smul.addr %s203, 8
        %s205 = scalar_lea.vmem %s0, %s204
        %s206 = smul.u32 32, %s13
      $region32: #{bottleneck_forward.6} parent=27 // pred_fallthru
        _
    $region28: #{bottleneck_forward.6} parent=5 // pred_fallthru
      _
    %p207 = scmp.le.s32.totalorder 1, %s13
    %p208 = scmp.lt.s32.totalorder %s13, 3
    %p209 = pnand %p207, %p208
    %p210 = pneg %p209
    // Predicated region
    $region33: #{bottleneck_forward.6} parent=5 // pred_check
      _
    $region34: #{bottleneck_forward.6} parent=5 // pred_check_branch
      %212 = sbr.rel (%p209) target = $region36
    $region35: #{bottleneck_forward.6} parent=5 // pred_region
      %s213 = ssub.s32 %s13, 1
      %s214 = smul.u32 32, %s18
      %p215 = scmp.lt.s32.totalorder %s214, 63
      %s216 = scalar_select %p215, %s214, 63
      %s217 = smul.addr %s216, 8
      %s218 = scalar_lea.vmem %s0, %s217
      %p219 = pneg %p39
      %p220 = pneg %p36
      %p221 = pneg %p60
      %p222 = pneg %p57
      %p223 = pneg %p81
      %p224 = pneg %p78
      %p225 = pneg %p102
      %p226 = pneg %p99
      %p227 = pneg %p128
      %p228 = pneg %p125
      %s229 = smul.u32 32, %s18
      %p230 = scmp.lt.s32.totalorder %s229, 63
      %s231 = scalar_select %p230, %s229, 63
      %s232 = smul.addr %s231, 8
      %s233 = scalar_lea.vmem %s4, %s232
      %p234 = pneg %p149
      %p235 = pneg %p146
      %p236 = pneg %p170
      %p237 = pneg %p167
      %s238 = smul.u32 32, %s18
      %p239 = scmp.lt.s32.totalorder %s238, 63
      %s240 = scalar_select %p239, %s238, 63
      %s241 = smul.addr %s240, 8
      %s242 = scalar_lea.vmem %s0, %s241
      %s243 = smul.u32 32, %s18
      %s244 = smul.u32 32, %s18
      %p245 = scmp.lt.s32.totalorder %s244, 63
      %s246 = scalar_select %p245, %s244, 63
      %s247 = smul.addr %s246, 8
      %s248 = scalar_lea.vmem %s4, %s247
      %s249 = smul.u32 32, %s18
      %p251 = scmp.eq.s32.totalorder %s18, 0
      // Predicated region
      $region37: #{bottleneck_forward.6} parent=35 // pred_check
        %p252 = pneg %p251
      $region38: #{bottleneck_forward.6} parent=35 // pred_check_branch
        %254 = sbr.rel (%p252) target = $region40
      $region39: #{bottleneck_forward.6} parent=35 // pred_region
        %255 = vst [vmem:[%s5] sm:$0x1] 0.0
        %256 = vst [vmem:[%s6] sm:$0x1] 0.0
      $region40: #{bottleneck_forward.6} parent=35 // pred_fallthru
        _
      %v257 = vld [vmem:[%s242] sm:$0xff]
      %v258 = vld [vmem:[%s242 + $0x8] sm:$0xff]
      %v259 = vld [vmem:[%s242 + $0x10] sm:$0xff]
      %v260 = vld [vmem:[%s242 + $0x18] sm:$0xff]
      %v261 = vld [vmem:[%s242 + $0x20] sm:$0xff]
      %v262 = vld [vmem:[%s242 + $0x28] sm:$0xff]
      %v263 = vld [vmem:[%s242 + $0x30] sm:$0xff]
      %v264 = vld [vmem:[%s242 + $0x38] sm:$0xff]
      %v265 = vld [vmem:[%s242 + $0x40] sm:$0xff]
      %v266 = vld [vmem:[%s242 + $0x48] sm:$0xff]
      %v267 = vld [vmem:[%s242 + $0x50] sm:$0xff]
      %v268 = vld [vmem:[%s242 + $0x58] sm:$0xff]
      %v269 = vld [vmem:[%s242 + $0x60] sm:$0xff]
      %v270 = vld [vmem:[%s242 + $0x68] sm:$0xff]
      %v271 = vld [vmem:[%s242 + $0x70] sm:$0xff]
      %v272 = vld [vmem:[%s242 + $0x78] sm:$0xff]
      %v273 = vld [vmem:[%s242 + $0x80] sm:$0xff]
      %v274 = vld [vmem:[%s242 + $0x88] sm:$0xff]
      %v275 = vld [vmem:[%s242 + $0x90] sm:$0xff]
      %v276 = vld [vmem:[%s242 + $0x98] sm:$0xff]
      %v277 = vld [vmem:[%s242 + $0xa0] sm:$0xff]
      %v278 = vld [vmem:[%s242 + $0xa8] sm:$0xff]
      %v279 = vld [vmem:[%s242 + $0xb0] sm:$0xff]
      %v280 = vld [vmem:[%s242 + $0xb8] sm:$0xff]
      %v281 = vld [vmem:[%s242 + $0xc0] sm:$0xff]
      %v282 = vld [vmem:[%s242 + $0xc8] sm:$0xff]
      %v283 = vld [vmem:[%s242 + $0xd0] sm:$0xff]
      %v284 = vld [vmem:[%s242 + $0xd8] sm:$0xff]
      %v285 = vld [vmem:[%s242 + $0xe0] sm:$0xff]
      %v286 = vld [vmem:[%s242 + $0xe8] sm:$0xff]
      %v287 = vld [vmem:[%s242 + $0xf0] sm:$0xff]
      %v288 = vld [vmem:[%s242 + $0xf8] sm:$0xff]
      %v289 = vld [vmem:[%s1] sm:$0x1]
      %v291 = vlaneseq
      %v292 = vshrl.u32 %v291, 7
      %v293 = vsub.s32 0, %v292
      %v294 = vrot.slane %v289, %v293
      %v296 = vmul.f32 %v257, %v294
      %v297 = vmul.f32 %v258, %v294
      %v298 = vmul.f32 %v259, %v294
      %v299 = vmul.f32 %v260, %v294
      %v300 = vmul.f32 %v261, %v294
      %v301 = vmul.f32 %v262, %v294
      %v302 = vmul.f32 %v263, %v294
      %v303 = vmul.f32 %v264, %v294
      %v304 = vmul.f32 %v265, %v294
      %v305 = vmul.f32 %v266, %v294
      %v306 = vmul.f32 %v267, %v294
      %v307 = vmul.f32 %v268, %v294
      %v308 = vmul.f32 %v269, %v294
      %v309 = vmul.f32 %v270, %v294
      %v310 = vmul.f32 %v271, %v294
      %v311 = vmul.f32 %v272, %v294
      %v312 = vmul.f32 %v273, %v294
      %v313 = vmul.f32 %v274, %v294
      %v314 = vmul.f32 %v275, %v294
      %v315 = vmul.f32 %v276, %v294
      %v316 = vmul.f32 %v277, %v294
      %v317 = vmul.f32 %v278, %v294
      %v318 = vmul.f32 %v279, %v294
      %v319 = vmul.f32 %v280, %v294
      %v320 = vmul.f32 %v281, %v294
      %v321 = vmul.f32 %v282, %v294
      %v322 = vmul.f32 %v283, %v294
      %v323 = vmul.f32 %v284, %v294
      %v324 = vmul.f32 %v285, %v294
      %v325 = vmul.f32 %v286, %v294
      %v326 = vmul.f32 %v287, %v294
      %v327 = vmul.f32 %v288, %v294
      %v328 = vld [vmem:[%s2] sm:$0x1]
      %v330 = vlaneseq
      %v331 = vshrl.u32 %v330, 7
      %v332 = vsub.s32 0, %v331
      %v333 = vrot.slane %v328, %v332
      %v335 = vadd.f32 %v296, %v333
      %v336 = vadd.f32 %v297, %v333
      %v337 = vadd.f32 %v298, %v333
      %v338 = vadd.f32 %v299, %v333
      %v339 = vadd.f32 %v300, %v333
      %v340 = vadd.f32 %v301, %v333
      %v341 = vadd.f32 %v302, %v333
      %v342 = vadd.f32 %v303, %v333
      %v343 = vadd.f32 %v304, %v333
      %v344 = vadd.f32 %v305, %v333
      %v345 = vadd.f32 %v306, %v333
      %v346 = vadd.f32 %v307, %v333
      %v347 = vadd.f32 %v308, %v333
      %v348 = vadd.f32 %v309, %v333
      %v349 = vadd.f32 %v310, %v333
      %v350 = vadd.f32 %v311, %v333
      %v351 = vadd.f32 %v312, %v333
      %v352 = vadd.f32 %v313, %v333
      %v353 = vadd.f32 %v314, %v333
      %v354 = vadd.f32 %v315, %v333
      %v355 = vadd.f32 %v316, %v333
      %v356 = vadd.f32 %v317, %v333
      %v357 = vadd.f32 %v318, %v333
      %v358 = vadd.f32 %v319, %v333
      %v359 = vadd.f32 %v320, %v333
      %v360 = vadd.f32 %v321, %v333
      %v361 = vadd.f32 %v322, %v333
      %v362 = vadd.f32 %v323, %v333
      %v363 = vadd.f32 %v324, %v333
      %v364 = vadd.f32 %v325, %v333
      %v365 = vadd.f32 %v326, %v333
      %v366 = vadd.f32 %v327, %v333
      %v367 = vmax.f32 %v335, 0.0
      %v368 = vmax.f32 %v336, 0.0
      %v369 = vmax.f32 %v337, 0.0
      %v370 = vmax.f32 %v338, 0.0
      %v371 = vmax.f32 %v339, 0.0
      %v372 = vmax.f32 %v340, 0.0
      %v373 = vmax.f32 %v341, 0.0
      %v374 = vmax.f32 %v342, 0.0
      %v375 = vmax.f32 %v343, 0.0
      %v376 = vmax.f32 %v344, 0.0
      %v377 = vmax.f32 %v345, 0.0
      %v378 = vmax.f32 %v346, 0.0
      %v379 = vmax.f32 %v347, 0.0
      %v380 = vmax.f32 %v348, 0.0
      %v381 = vmax.f32 %v349, 0.0
      %v382 = vmax.f32 %v350, 0.0
      %v383 = vmax.f32 %v351, 0.0
      %v384 = vmax.f32 %v352, 0.0
      %v385 = vmax.f32 %v353, 0.0
      %v386 = vmax.f32 %v354, 0.0
      %v387 = vmax.f32 %v355, 0.0
      %v388 = vmax.f32 %v356, 0.0
      %v389 = vmax.f32 %v357, 0.0
      %v390 = vmax.f32 %v358, 0.0
      %v391 = vmax.f32 %v359, 0.0
      %v392 = vmax.f32 %v360, 0.0
      %v393 = vmax.f32 %v361, 0.0
      %v394 = vmax.f32 %v362, 0.0
      %v395 = vmax.f32 %v363, 0.0
      %v396 = vmax.f32 %v364, 0.0
      %v397 = vmax.f32 %v365, 0.0
      %v398 = vmax.f32 %v366, 0.0
      %s399 = smul.u32 %s18, 256
      %v400 = vlaneseq
      %v401 = vshrl.u32 %v400, 7
      %v402 = vadd.s32 %v401, 8
      %v403 = vadd.s32 %v401, 16
      %v404 = vadd.s32 %v401, 24
      %v405 = vadd.s32 %v401, 32
      %v406 = vadd.s32 %v401, 40
      %v407 = vadd.s32 %v401, 48
      %v408 = vadd.s32 %v401, 56
      %v409 = vadd.s32 %v401, 64
      %v410 = vadd.s32 %v401, 72
      %v411 = vadd.s32 %v401, 80
      %v412 = vadd.s32 %v401, 88
      %v413 = vadd.s32 %v401, 96
      %v414 = vadd.s32 %v401, 104
      %v415 = vadd.s32 %v401, 112
      %v416 = vadd.s32 %v401, 120
      %v417 = vadd.s32 %v401, 128
      %v418 = vadd.s32 %v401, 136
      %v419 = vadd.s32 %v401, 144
      %v420 = vadd.s32 %v401, 152
      %v421 = vadd.s32 %v401, 160
      %v422 = vadd.s32 %v401, 168
      %v423 = vadd.s32 %v401, 176
      %v424 = vadd.s32 %v401, 184
      %v425 = vadd.s32 %v401, 192
      %v426 = vadd.s32 %v401, 200
      %v427 = vadd.s32 %v401, 208
      %v428 = vadd.s32 %v401, 216
      %v429 = vadd.s32 %v401, 224
      %v430 = vadd.s32 %v401, 232
      %v431 = vadd.s32 %v401, 240
      %v432 = vadd.s32 %v401, 248
      %v433 = vstv %s399
      %v434 = vadd.s32 %v433, %v401
      %v435 = vadd.s32 %v433, %v402
      %v436 = vadd.s32 %v433, %v403
      %v437 = vadd.s32 %v433, %v404
      %v438 = vadd.s32 %v433, %v405
      %v439 = vadd.s32 %v433, %v406
      %v440 = vadd.s32 %v433, %v407
      %v441 = vadd.s32 %v433, %v408
      %v442 = vadd.s32 %v433, %v409
      %v443 = vadd.s32 %v433, %v410
      %v444 = vadd.s32 %v433, %v411
      %v445 = vadd.s32 %v433, %v412
      %v446 = vadd.s32 %v433, %v413
      %v447 = vadd.s32 %v433, %v414
      %v448 = vadd.s32 %v433, %v415
      %v449 = vadd.s32 %v433, %v416
      %v450 = vadd.s32 %v433, %v417
      %v451 = vadd.s32 %v433, %v418
      %v452 = vadd.s32 %v433, %v419
      %v453 = vadd.s32 %v433, %v420
      %v454 = vadd.s32 %v433, %v421
      %v455 = vadd.s32 %v433, %v422
      %v456 = vadd.s32 %v433, %v423
      %v457 = vadd.s32 %v433, %v424
      %v458 = vadd.s32 %v433, %v425
      %v459 = vadd.s32 %v433, %v426
      %v460 = vadd.s32 %v433, %v427
      %v461 = vadd.s32 %v433, %v428
      %v462 = vadd.s32 %v433, %v429
      %v463 = vadd.s32 %v433, %v430
      %v464 = vadd.s32 %v433, %v431
      %v465 = vadd.s32 %v433, %v432
      %vm466 = vcmp.lt.s32.totalorder %v434, 512
      %vm467 = vcmp.lt.s32.totalorder %v435, 512
      %vm468 = vcmp.lt.s32.totalorder %v436, 512
      %vm469 = vcmp.lt.s32.totalorder %v437, 512
      %vm470 = vcmp.lt.s32.totalorder %v438, 512
      %vm471 = vcmp.lt.s32.totalorder %v439, 512
      %vm472 = vcmp.lt.s32.totalorder %v440, 512
      %vm473 = vcmp.lt.s32.totalorder %v441, 512
      %vm474 = vcmp.lt.s32.totalorder %v442, 512
      %vm475 = vcmp.lt.s32.totalorder %v443, 512
      %vm476 = vcmp.lt.s32.totalorder %v444, 512
      %vm477 = vcmp.lt.s32.totalorder %v445, 512
      %vm478 = vcmp.lt.s32.totalorder %v446, 512
      %vm479 = vcmp.lt.s32.totalorder %v447, 512
      %vm480 = vcmp.lt.s32.totalorder %v448, 512
      %vm481 = vcmp.lt.s32.totalorder %v449, 512
      %vm482 = vcmp.lt.s32.totalorder %v450, 512
      %vm483 = vcmp.lt.s32.totalorder %v451, 512
      %vm484 = vcmp.lt.s32.totalorder %v452, 512
      %vm485 = vcmp.lt.s32.totalorder %v453, 512
      %vm486 = vcmp.lt.s32.totalorder %v454, 512
      %vm487 = vcmp.lt.s32.totalorder %v455, 512
      %vm488 = vcmp.lt.s32.totalorder %v456, 512
      %vm489 = vcmp.lt.s32.totalorder %v457, 512
      %vm490 = vcmp.lt.s32.totalorder %v458, 512
      %vm491 = vcmp.lt.s32.totalorder %v459, 512
      %vm492 = vcmp.lt.s32.totalorder %v460, 512
      %vm493 = vcmp.lt.s32.totalorder %v461, 512
      %vm494 = vcmp.lt.s32.totalorder %v462, 512
      %vm495 = vcmp.lt.s32.totalorder %v463, 512
      %vm496 = vcmp.lt.s32.totalorder %v464, 512
      %vm497 = vcmp.lt.s32.totalorder %v465, 512
      %v498 = vsel %vm466, 1, 0
      %v499 = vsel %vm467, 1, 0
      %v500 = vsel %vm468, 1, 0
      %v501 = vsel %vm469, 1, 0
      %v502 = vsel %vm470, 1, 0
      %v503 = vsel %vm471, 1, 0
      %v504 = vsel %vm472, 1, 0
      %v505 = vsel %vm473, 1, 0
      %v506 = vsel %vm474, 1, 0
      %v507 = vsel %vm475, 1, 0
      %v508 = vsel %vm476, 1, 0
      %v509 = vsel %vm477, 1, 0
      %v510 = vsel %vm478, 1, 0
      %v511 = vsel %vm479, 1, 0
      %v512 = vsel %vm480, 1, 0
      %v513 = vsel %vm481, 1, 0
      %v514 = vsel %vm482, 1, 0
      %v515 = vsel %vm483, 1, 0
      %v516 = vsel %vm484, 1, 0
      %v517 = vsel %vm485, 1, 0
      %v518 = vsel %vm486, 1, 0
      %v519 = vsel %vm487, 1, 0
      %v520 = vsel %vm488, 1, 0
      %v521 = vsel %vm489, 1, 0
      %v522 = vsel %vm490, 1, 0
      %v523 = vsel %vm491, 1, 0
      %v524 = vsel %vm492, 1, 0
      %v525 = vsel %vm493, 1, 0
      %v526 = vsel %vm494, 1, 0
      %v527 = vsel %vm495, 1, 0
      %v528 = vsel %vm496, 1, 0
      %v529 = vsel %vm497, 1, 0
      %vm530 = vcmp.eq.s32.totalorder %v498, 1
      %vm531 = vcmp.eq.s32.totalorder %v499, 1
      %vm532 = vcmp.eq.s32.totalorder %v500, 1
      %vm533 = vcmp.eq.s32.totalorder %v501, 1
      %vm534 = vcmp.eq.s32.totalorder %v502, 1
      %vm535 = vcmp.eq.s32.totalorder %v503, 1
      %vm536 = vcmp.eq.s32.totalorder %v504, 1
      %vm537 = vcmp.eq.s32.totalorder %v505, 1
      %vm538 = vcmp.eq.s32.totalorder %v506, 1
      %vm539 = vcmp.eq.s32.totalorder %v507, 1
      %vm540 = vcmp.eq.s32.totalorder %v508, 1
      %vm541 = vcmp.eq.s32.totalorder %v509, 1
      %vm542 = vcmp.eq.s32.totalorder %v510, 1
      %vm543 = vcmp.eq.s32.totalorder %v511, 1
      %vm544 = vcmp.eq.s32.totalorder %v512, 1
      %vm545 = vcmp.eq.s32.totalorder %v513, 1
      %vm546 = vcmp.eq.s32.totalorder %v514, 1
      %vm547 = vcmp.eq.s32.totalorder %v515, 1
      %vm548 = vcmp.eq.s32.totalorder %v516, 1
      %vm549 = vcmp.eq.s32.totalorder %v517, 1
      %vm550 = vcmp.eq.s32.totalorder %v518, 1
      %vm551 = vcmp.eq.s32.totalorder %v519, 1
      %vm552 = vcmp.eq.s32.totalorder %v520, 1
      %vm553 = vcmp.eq.s32.totalorder %v521, 1
      %vm554 = vcmp.eq.s32.totalorder %v522, 1
      %vm555 = vcmp.eq.s32.totalorder %v523, 1
      %vm556 = vcmp.eq.s32.totalorder %v524, 1
      %vm557 = vcmp.eq.s32.totalorder %v525, 1
      %vm558 = vcmp.eq.s32.totalorder %v526, 1
      %vm559 = vcmp.eq.s32.totalorder %v527, 1
      %vm560 = vcmp.eq.s32.totalorder %v528, 1
      %vm561 = vcmp.eq.s32.totalorder %v529, 1
      %v562 = vsel %vm530, %v367, 0.0
      %v563 = vsel %vm531, %v368, 0.0
      %v564 = vsel %vm532, %v369, 0.0
      %v565 = vsel %vm533, %v370, 0.0
      %v566 = vsel %vm534, %v371, 0.0
      %v567 = vsel %vm535, %v372, 0.0
      %v568 = vsel %vm536, %v373, 0.0
      %v569 = vsel %vm537, %v374, 0.0
      %v570 = vsel %vm538, %v375, 0.0
      %v571 = vsel %vm539, %v376, 0.0
      %v572 = vsel %vm540, %v377, 0.0
      %v573 = vsel %vm541, %v378, 0.0
      %v574 = vsel %vm542, %v379, 0.0
      %v575 = vsel %vm543, %v380, 0.0
      %v576 = vsel %vm544, %v381, 0.0
      %v577 = vsel %vm545, %v382, 0.0
      %v578 = vsel %vm546, %v383, 0.0
      %v579 = vsel %vm547, %v384, 0.0
      %v580 = vsel %vm548, %v385, 0.0
      %v581 = vsel %vm549, %v386, 0.0
      %v582 = vsel %vm550, %v387, 0.0
      %v583 = vsel %vm551, %v388, 0.0
      %v584 = vsel %vm552, %v389, 0.0
      %v585 = vsel %vm553, %v390, 0.0
      %v586 = vsel %vm554, %v391, 0.0
      %v587 = vsel %vm555, %v392, 0.0
      %v588 = vsel %vm556, %v393, 0.0
      %v589 = vsel %vm557, %v394, 0.0
      %v590 = vsel %vm558, %v395, 0.0
      %v591 = vsel %vm559, %v396, 0.0
      %v592 = vsel %vm560, %v397, 0.0
      %v593 = vsel %vm561, %v398, 0.0
      %v594 = vpack.c.bf16 %v563, %v562
      %v595 = vpack.c.bf16 %v565, %v564
      %v596 = vpack.c.bf16 %v567, %v566
      %v597 = vpack.c.bf16 %v569, %v568
      %v598 = vpack.c.bf16 %v571, %v570
      %v599 = vpack.c.bf16 %v573, %v572
      %v600 = vpack.c.bf16 %v575, %v574
      %v601 = vpack.c.bf16 %v577, %v576
      %v602 = vpack.c.bf16 %v579, %v578
      %v603 = vpack.c.bf16 %v581, %v580
      %v604 = vpack.c.bf16 %v583, %v582
      %v605 = vpack.c.bf16 %v585, %v584
      %v606 = vpack.c.bf16 %v587, %v586
      %v607 = vpack.c.bf16 %v589, %v588
      %v608 = vpack.c.bf16 %v591, %v590
      %v609 = vpack.c.bf16 %v593, %v592
      %v610 = vld [vmem:[%s3] sm:$0xf]
      %v611 = vld [vmem:[%s3 + $0x4] sm:$0xf]
      %v612 = vld [vmem:[%s3 + $0x8] sm:$0xf]
      %v613 = vld [vmem:[%s3 + $0xc] sm:$0xf]
      %v614 = vld [vmem:[%s3 + $0x10] sm:$0xf]
      %v615 = vld [vmem:[%s3 + $0x14] sm:$0xf]
      %v616 = vld [vmem:[%s3 + $0x18] sm:$0xf]
      %v617 = vld [vmem:[%s3 + $0x1c] sm:$0xf]
      %v618 = vld [vmem:[%s3 + $0x20] sm:$0xf]
      %v619 = vld [vmem:[%s3 + $0x24] sm:$0xf]
      %v620 = vld [vmem:[%s3 + $0x28] sm:$0xf]
      %v621 = vld [vmem:[%s3 + $0x2c] sm:$0xf]
      %v622 = vld [vmem:[%s3 + $0x30] sm:$0xf]
      %v623 = vld [vmem:[%s3 + $0x34] sm:$0xf]
      %v624 = vld [vmem:[%s3 + $0x38] sm:$0xf]
      %v625 = vld [vmem:[%s3 + $0x3c] sm:$0xf]
      %v642 = vunpack.c.l.b16 %v610
      %v643 = vunpack.c.l.b16 %v611
      %v644 = vunpack.c.l.b16 %v612
      %v645 = vunpack.c.l.b16 %v613
      %v646 = vunpack.c.l.b16 %v614
      %v647 = vunpack.c.l.b16 %v615
      %v648 = vunpack.c.l.b16 %v616
      %v649 = vunpack.c.l.b16 %v617
      %v650 = vunpack.c.l.b16 %v618
      %v651 = vunpack.c.l.b16 %v619
      %v652 = vunpack.c.l.b16 %v620
      %v653 = vunpack.c.l.b16 %v621
      %v654 = vunpack.c.l.b16 %v622
      %v655 = vunpack.c.l.b16 %v623
      %v656 = vunpack.c.l.b16 %v624
      %v657 = vunpack.c.l.b16 %v625
      %v658 = vpack.c.b16 %v643, %v642
      %v659 = vpack.c.b16 %v645, %v644
      %v660 = vpack.c.b16 %v647, %v646
      %v661 = vpack.c.b16 %v649, %v648
      %v662 = vpack.c.b16 %v651, %v650
      %v663 = vpack.c.b16 %v653, %v652
      %v664 = vpack.c.b16 %v655, %v654
      %v665 = vpack.c.b16 %v657, %v656
      %674 = vmatprep.subr.bf16.mxu0 0
      %675 = vmatpush1.bf16.msra.mxu0 %v658
      %676 = vmatprep.subr.bf16.mxu0 0
      %677 = vmatpush1.bf16.msra.mxu0 %v659
      %678 = vmatprep.subr.bf16.mxu0 0
      %679 = vmatpush1.bf16.msra.mxu0 %v660
      %680 = vmatprep.subr.bf16.mxu0 0
      %681 = vmatpush1.bf16.msra.mxu0 %v661
      %682 = vmatprep.subr.bf16.mxu0 0
      %683 = vmatpush1.bf16.msra.mxu0 %v662
      %684 = vmatprep.subr.bf16.mxu0 0
      %685 = vmatpush1.bf16.msra.mxu0 %v663
      %686 = vmatprep.subr.bf16.mxu0 0
      %687 = vmatpush1.bf16.msra.mxu0 %v664
      %688 = vmatprep.subr.bf16.mxu0 0
      %689 = vmatpush1.bf16.msra.mxu0 %v665
      %690 = vmatprep.subr.bf16.mxu0 0
      %691 = vmatpush1.bf16.msra.mxu0 0
      %692 = vmatprep.subr.bf16.mxu0 0
      %693 = vmatpush1.bf16.msra.mxu0 0
      %694 = vmatprep.subr.bf16.mxu0 0
      %695 = vmatpush1.bf16.msra.mxu0 0
      %696 = vmatprep.subr.bf16.mxu0 0
      %697 = vmatpush1.bf16.msra.mxu0 0
      %698 = vmatprep.subr.bf16.mxu0 0
      %699 = vmatpush1.bf16.msra.mxu0 0
      %700 = vmatprep.subr.bf16.mxu0 0
      %701 = vmatpush1.bf16.msra.mxu0 0
      %702 = vmatprep.subr.bf16.mxu0 0
      %703 = vmatpush1.bf16.msra.mxu0 0
      %704 = vmatprep.subr.bf16.mxu0 0
      %705 = vmatpush1.bf16.msra.mxu0 0
      %706 = vmatprep.mubr.bf16.mxu0 0
      %707 = vmatmul.mubr.bf16.gmra.mrb[0].mxu0 %v594
      %v708 = vpop.f32.mrb[0].mxu0
      %v709 = vadd.f32 0.0, %v708
      %v710 = vpop.f32.mrb[0].mxu0
      %v711 = vpop.f32.mrb[0].mxu0
      %v712 = vadd.f32 0.0, %v711
      %v713 = vpop.f32.mrb[0].mxu0
      %714 = vmatprep.mubr.bf16.mxu0 0
      %715 = vmatmul.mubr.bf16.gmra.mrb[0].mxu0 %v595
      %v716 = vpop.f32.mrb[0].mxu0
      %v717 = vadd.f32 0.0, %v716
      %v718 = vpop.f32.mrb[0].mxu0
      %v719 = vpop.f32.mrb[0].mxu0
      %v720 = vadd.f32 0.0, %v719
      %v721 = vpop.f32.mrb[0].mxu0
      %722 = vmatprep.mubr.bf16.mxu0 0
      %723 = vmatmul.mubr.bf16.gmra.mrb[0].mxu0 %v596
      %v724 = vpop.f32.mrb[0].mxu0
      %v725 = vadd.f32 0.0, %v724
      %v726 = vpop.f32.mrb[0].mxu0
      %v727 = vpop.f32.mrb[0].mxu0
      %v728 = vadd.f32 0.0, %v727
      %v729 = vpop.f32.mrb[0].mxu0
      %730 = vmatprep.mubr.bf16.mxu0 0
      %731 = vmatmul.mubr.bf16.gmra.mrb[0].mxu0 %v597
      %v732 = vpop.f32.mrb[0].mxu0
      %v733 = vadd.f32 0.0, %v732
      %v734 = vpop.f32.mrb[0].mxu0
      %v735 = vpop.f32.mrb[0].mxu0
      %v736 = vadd.f32 0.0, %v735
      %v737 = vpop.f32.mrb[0].mxu0
      %738 = vmatprep.mubr.bf16.mxu0 0
      %739 = vmatmul.mubr.bf16.gmra.mrb[0].mxu0 %v598
      %v740 = vpop.f32.mrb[0].mxu0
      %v741 = vadd.f32 0.0, %v740
      %v742 = vpop.f32.mrb[0].mxu0
      %v743 = vpop.f32.mrb[0].mxu0
      %v744 = vadd.f32 0.0, %v743
      %v745 = vpop.f32.mrb[0].mxu0
      %746 = vmatprep.mubr.bf16.mxu0 0
      %747 = vmatmul.mubr.bf16.gmra.mrb[0].mxu0 %v599
      %v748 = vpop.f32.mrb[0].mxu0
      %v749 = vadd.f32 0.0, %v748
      %v750 = vpop.f32.mrb[0].mxu0
      %v751 = vpop.f32.mrb[0].mxu0
      %v752 = vadd.f32 0.0, %v751
      %v753 = vpop.f32.mrb[0].mxu0
      %754 = vmatprep.mubr.bf16.mxu0 0
      %755 = vmatmul.mubr.bf16.gmra.mrb[0].mxu0 %v600
      %v756 = vpop.f32.mrb[0].mxu0
      %v757 = vadd.f32 0.0, %v756
      %v758 = vpop.f32.mrb[0].mxu0
      %v759 = vpop.f32.mrb[0].mxu0
      %v760 = vadd.f32 0.0, %v759
      %v761 = vpop.f32.mrb[0].mxu0
      %762 = vmatprep.mubr.bf16.mxu0 0
      %763 = vmatmul.mubr.bf16.gmra.mrb[0].mxu0 %v601
      %v764 = vpop.f32.mrb[0].mxu0
      %v765 = vadd.f32 0.0, %v764
      %v766 = vpop.f32.mrb[0].mxu0
      %v767 = vpop.f32.mrb[0].mxu0
      %v768 = vadd.f32 0.0, %v767
      %v769 = vpop.f32.mrb[0].mxu0
      %770 = vmatprep.mubr.bf16.mxu0 0
      %771 = vmatmul.mubr.bf16.gmra.mrb[0].mxu0 %v602
      %v772 = vpop.f32.mrb[0].mxu0
      %v773 = vadd.f32 0.0, %v772
      %v774 = vpop.f32.mrb[0].mxu0
      %v775 = vpop.f32.mrb[0].mxu0
      %v776 = vadd.f32 0.0, %v775
      %v777 = vpop.f32.mrb[0].mxu0
      %778 = vmatprep.mubr.bf16.mxu0 0
      %779 = vmatmul.mubr.bf16.gmra.mrb[0].mxu0 %v603
      %v780 = vpop.f32.mrb[0].mxu0
      %v781 = vadd.f32 0.0, %v780
      %v782 = vpop.f32.mrb[0].mxu0
      %v783 = vpop.f32.mrb[0].mxu0
      %v784 = vadd.f32 0.0, %v783
      %v785 = vpop.f32.mrb[0].mxu0
      %786 = vmatprep.mubr.bf16.mxu0 0
      %787 = vmatmul.mubr.bf16.gmra.mrb[0].mxu0 %v604
      %v788 = vpop.f32.mrb[0].mxu0
      %v789 = vadd.f32 0.0, %v788
      %v790 = vpop.f32.mrb[0].mxu0
      %v791 = vpop.f32.mrb[0].mxu0
      %v792 = vadd.f32 0.0, %v791
      %v793 = vpop.f32.mrb[0].mxu0
      %794 = vmatprep.mubr.bf16.mxu0 0
      %795 = vmatmul.mubr.bf16.gmra.mrb[0].mxu0 %v605
      %v796 = vpop.f32.mrb[0].mxu0
      %v797 = vadd.f32 0.0, %v796
      %v798 = vpop.f32.mrb[0].mxu0
      %v799 = vpop.f32.mrb[0].mxu0
      %v800 = vadd.f32 0.0, %v799
      %v801 = vpop.f32.mrb[0].mxu0
      %802 = vmatprep.mubr.bf16.mxu0 0
      %803 = vmatmul.mubr.bf16.gmra.mrb[0].mxu0 %v606
      %v804 = vpop.f32.mrb[0].mxu0
      %v805 = vadd.f32 0.0, %v804
      %v806 = vpop.f32.mrb[0].mxu0
      %v807 = vpop.f32.mrb[0].mxu0
      %v808 = vadd.f32 0.0, %v807
      %v809 = vpop.f32.mrb[0].mxu0
      %810 = vmatprep.mubr.bf16.mxu0 0
      %811 = vmatmul.mubr.bf16.gmra.mrb[0].mxu0 %v607
      %v812 = vpop.f32.mrb[0].mxu0
      %v813 = vadd.f32 0.0, %v812
      %v814 = vpop.f32.mrb[0].mxu0
      %v815 = vpop.f32.mrb[0].mxu0
      %v816 = vadd.f32 0.0, %v815
      %v817 = vpop.f32.mrb[0].mxu0
      %818 = vmatprep.mubr.bf16.mxu0 0
      %819 = vmatmul.mubr.bf16.gmra.mrb[0].mxu0 %v608
      %v820 = vpop.f32.mrb[0].mxu0
      %v821 = vadd.f32 0.0, %v820
      %v822 = vpop.f32.mrb[0].mxu0
      %v823 = vpop.f32.mrb[0].mxu0
      %v824 = vadd.f32 0.0, %v823
      %v825 = vpop.f32.mrb[0].mxu0
      %826 = vmatprep.mubr.bf16.mxu0 0
      %827 = vmatmul.mubr.bf16.gmra.mrb[0].mxu0 %v609
      %v828 = vpop.f32.mrb[0].mxu0
      %v829 = vadd.f32 0.0, %v828
      %v830 = vpop.f32.mrb[0].mxu0
      %v831 = vpop.f32.mrb[0].mxu0
      %v832 = vadd.f32 0.0, %v831
      %v833 = vpop.f32.mrb[0].mxu0
      %834 = vdwg.mxu0
      %835 = vst [vmem:[%s248] sm:$0xff] %v709
      %836 = vst [vmem:[%s248 + $0x8] sm:$0xff] %v712
      %837 = vst [vmem:[%s248 + $0x10] sm:$0xff] %v717
      %838 = vst [vmem:[%s248 + $0x18] sm:$0xff] %v720
      %839 = vst [vmem:[%s248 + $0x20] sm:$0xff] %v725
      %840 = vst [vmem:[%s248 + $0x28] sm:$0xff] %v728
      %841 = vst [vmem:[%s248 + $0x30] sm:$0xff] %v733
      %842 = vst [vmem:[%s248 + $0x38] sm:$0xff] %v736
      %843 = vst [vmem:[%s248 + $0x40] sm:$0xff] %v741
      %844 = vst [vmem:[%s248 + $0x48] sm:$0xff] %v744
      %845 = vst [vmem:[%s248 + $0x50] sm:$0xff] %v749
      %846 = vst [vmem:[%s248 + $0x58] sm:$0xff] %v752
      %847 = vst [vmem:[%s248 + $0x60] sm:$0xff] %v757
      %848 = vst [vmem:[%s248 + $0x68] sm:$0xff] %v760
      %849 = vst [vmem:[%s248 + $0x70] sm:$0xff] %v765
      %850 = vst [vmem:[%s248 + $0x78] sm:$0xff] %v768
      %851 = vst [vmem:[%s248 + $0x80] sm:$0xff] %v773
      %852 = vst [vmem:[%s248 + $0x88] sm:$0xff] %v776
      %853 = vst [vmem:[%s248 + $0x90] sm:$0xff] %v781
      %854 = vst [vmem:[%s248 + $0x98] sm:$0xff] %v784
      %855 = vst [vmem:[%s248 + $0xa0] sm:$0xff] %v789
      %856 = vst [vmem:[%s248 + $0xa8] sm:$0xff] %v792
      %857 = vst [vmem:[%s248 + $0xb0] sm:$0xff] %v797
      %858 = vst [vmem:[%s248 + $0xb8] sm:$0xff] %v800
      %859 = vst [vmem:[%s248 + $0xc0] sm:$0xff] %v805
      %860 = vst [vmem:[%s248 + $0xc8] sm:$0xff] %v808
      %861 = vst [vmem:[%s248 + $0xd0] sm:$0xff] %v813
      %862 = vst [vmem:[%s248 + $0xd8] sm:$0xff] %v816
      %863 = vst [vmem:[%s248 + $0xe0] sm:$0xff] %v821
      %864 = vst [vmem:[%s248 + $0xe8] sm:$0xff] %v824
      %865 = vst [vmem:[%s248 + $0xf0] sm:$0xff] %v829
      %866 = vst [vmem:[%s248 + $0xf8] sm:$0xff] %v832
      %v867 = vld [vmem:[%s5] sm:$0x1]
      %v868 = vadd.f32 %v709, %v712
      %v869 = vadd.f32 %v868, %v717
      %v870 = vadd.f32 %v869, %v720
      %v871 = vadd.f32 %v870, %v725
      %v872 = vadd.f32 %v871, %v728
      %v873 = vadd.f32 %v872, %v733
      %v874 = vadd.f32 %v873, %v736
      %v875 = vadd.f32 %v874, %v741
      %v876 = vadd.f32 %v875, %v744
      %v877 = vadd.f32 %v876, %v749
      %v878 = vadd.f32 %v877, %v752
      %v879 = vadd.f32 %v878, %v757
      %v880 = vadd.f32 %v879, %v760
      %v881 = vadd.f32 %v880, %v765
      %v882 = vadd.f32 %v881, %v768
      %v883 = vadd.f32 %v882, %v773
      %v884 = vadd.f32 %v883, %v776
      %v885 = vadd.f32 %v884, %v781
      %v886 = vadd.f32 %v885, %v784
      %v887 = vadd.f32 %v886, %v789
      %v888 = vadd.f32 %v887, %v792
      %v889 = vadd.f32 %v888, %v797
      %v890 = vadd.f32 %v889, %v800
      %v891 = vadd.f32 %v890, %v805
      %v892 = vadd.f32 %v891, %v808
      %v893 = vadd.f32 %v892, %v813
      %v894 = vadd.f32 %v893, %v816
      %v895 = vadd.f32 %v894, %v821
      %v896 = vadd.f32 %v895, %v824
      %v897 = vadd.f32 %v896, %v829
      %v898 = vadd.f32 %v897, %v832
      %v899 = vrot.slane %v898, 4
      %v900 = vadd.f32 %v898, %v899
      %v901 = vrot.slane %v900, 2
      %v902 = vadd.f32 %v900, %v901
      %v903 = vrot.slane %v902, 1
      %v904 = vadd.f32 %v902, %v903
      %v905 = vadd.f32 %v867, %v904
      %906 = vst [vmem:[%s5] sm:$0x1] %v905
      %v907 = vld [vmem:[%s6] sm:$0x1]
      %v908 = vmul.f32 %v709, %v709
      %v909 = vmul.f32 %v712, %v712
      %v910 = vmul.f32 %v717, %v717
      %v911 = vmul.f32 %v720, %v720
      %v912 = vmul.f32 %v725, %v725
      %v913 = vmul.f32 %v728, %v728
      %v914 = vmul.f32 %v733, %v733
      %v915 = vmul.f32 %v736, %v736
      %v916 = vmul.f32 %v741, %v741
      %v917 = vmul.f32 %v744, %v744
      %v918 = vmul.f32 %v749, %v749
      %v919 = vmul.f32 %v752, %v752
      %v920 = vmul.f32 %v757, %v757
      %v921 = vmul.f32 %v760, %v760
      %v922 = vmul.f32 %v765, %v765
      %v923 = vmul.f32 %v768, %v768
      %v924 = vmul.f32 %v773, %v773
      %v925 = vmul.f32 %v776, %v776
      %v926 = vmul.f32 %v781, %v781
      %v927 = vmul.f32 %v784, %v784
      %v928 = vmul.f32 %v789, %v789
      %v929 = vmul.f32 %v792, %v792
      %v930 = vmul.f32 %v797, %v797
      %v931 = vmul.f32 %v800, %v800
      %v932 = vmul.f32 %v805, %v805
      %v933 = vmul.f32 %v808, %v808
      %v934 = vmul.f32 %v813, %v813
      %v935 = vmul.f32 %v816, %v816
      %v936 = vmul.f32 %v821, %v821
      %v937 = vmul.f32 %v824, %v824
      %v938 = vmul.f32 %v829, %v829
      %v939 = vmul.f32 %v832, %v832
      %v940 = vadd.f32 %v908, %v909
      %v941 = vadd.f32 %v940, %v910
      %v942 = vadd.f32 %v941, %v911
      %v943 = vadd.f32 %v942, %v912
      %v944 = vadd.f32 %v943, %v913
      %v945 = vadd.f32 %v944, %v914
      %v946 = vadd.f32 %v945, %v915
      %v947 = vadd.f32 %v946, %v916
      %v948 = vadd.f32 %v947, %v917
      %v949 = vadd.f32 %v948, %v918
      %v950 = vadd.f32 %v949, %v919
      %v951 = vadd.f32 %v950, %v920
      %v952 = vadd.f32 %v951, %v921
      %v953 = vadd.f32 %v952, %v922
      %v954 = vadd.f32 %v953, %v923
      %v955 = vadd.f32 %v954, %v924
      %v956 = vadd.f32 %v955, %v925
      %v957 = vadd.f32 %v956, %v926
      %v958 = vadd.f32 %v957, %v927
      %v959 = vadd.f32 %v958, %v928
      %v960 = vadd.f32 %v959, %v929
      %v961 = vadd.f32 %v960, %v930
      %v962 = vadd.f32 %v961, %v931
      %v963 = vadd.f32 %v962, %v932
      %v964 = vadd.f32 %v963, %v933
      %v965 = vadd.f32 %v964, %v934
      %v966 = vadd.f32 %v965, %v935
      %v967 = vadd.f32 %v966, %v936
      %v968 = vadd.f32 %v967, %v937
      %v969 = vadd.f32 %v968, %v938
      %v970 = vadd.f32 %v969, %v939
      %v971 = vrot.slane %v970, 4
      %v972 = vadd.f32 %v970, %v971
      %v973 = vrot.slane %v972, 2
      %v974 = vadd.f32 %v972, %v973
      %v975 = vrot.slane %v974, 1
      %v976 = vadd.f32 %v974, %v975
      %v977 = vadd.f32 %v907, %v976
      %978 = vst [vmem:[%s6] sm:$0x1] %v977
      %s979 = smul.u32 32, %s18
      %p980 = scmp.lt.s32.totalorder %s979, 63
      %s981 = scalar_select %p980, %s979, 63
      %s982 = smul.addr %s981, 8
      %s983 = scalar_lea.vmem %s4, %s982
      // Predicated region
      $region41: #{bottleneck_forward.6} parent=35 // pred_check
        %p984 = pneg %p125
      $region42: #{bottleneck_forward.6} parent=35 // pred_check_branch
        %986 = sbr.rel (%p984) target = $region44
      $region43: #{bottleneck_forward.6} parent=35 // pred_region
        %s987 = smul.u32 32, %s18
      $region44: #{bottleneck_forward.6} parent=35 // pred_fallthru
        _
      // Predicated region
      $region45: #{bottleneck_forward.6} parent=35 // pred_check
        %p988 = pneg %p146
      $region46: #{bottleneck_forward.6} parent=35 // pred_check_branch
        %990 = sbr.rel (%p988) target = $region48
      $region47: #{bottleneck_forward.6} parent=35 // pred_region
        _
      $region48: #{bottleneck_forward.6} parent=35 // pred_fallthru
        _
      // Predicated region
      $region49: #{bottleneck_forward.6} parent=35 // pred_check
        %p991 = pneg %p167
      $region50: #{bottleneck_forward.6} parent=35 // pred_check_branch
        %993 = sbr.rel (%p991) target = $region52
      $region51: #{bottleneck_forward.6} parent=35 // pred_region
        _
      $region52: #{bottleneck_forward.6} parent=35 // pred_fallthru
        _
      // Predicated region
      $region53: #{bottleneck_forward.6} parent=35 // pred_check
        %p994 = pneg %p146
      $region54: #{bottleneck_forward.6} parent=35 // pred_check_branch
        %996 = sbr.rel (%p994) target = $region56
      $region55: #{bottleneck_forward.6} parent=35 // pred_region
        _
      $region56: #{bottleneck_forward.6} parent=35 // pred_fallthru
        _
      // Predicated region
      $region57: #{bottleneck_forward.6} parent=35 // pred_check
        %p997 = pneg %p167
      $region58: #{bottleneck_forward.6} parent=35 // pred_check_branch
        %999 = sbr.rel (%p997) target = $region60
      $region59: #{bottleneck_forward.6} parent=35 // pred_region
        _
      $region60: #{bottleneck_forward.6} parent=35 // pred_fallthru
        _
    $region36: #{bottleneck_forward.6} parent=5 // pred_fallthru
      _
    %p1000 = scmp.le.s32.totalorder 2, %s13
    // Predicated region
    $region61: #{bottleneck_forward.6} parent=5 // pred_check
      %p1001 = pneg %p1000
    $region62: #{bottleneck_forward.6} parent=5 // pred_check_branch
      %1003 = sbr.rel (%p1001) target = $region64
    $region63: #{bottleneck_forward.6} parent=5 // pred_region
      %s1004 = ssub.s32 %s13, 2
      // Predicated region
      $region65: #{bottleneck_forward.6} parent=63 // pred_check
        %p1005 = pneg %p131
      $region66: #{bottleneck_forward.6} parent=63 // pred_check_branch
        %1007 = sbr.rel (%p1005) target = $region68
      $region67: #{bottleneck_forward.6} parent=63 // pred_region
        %s1008 = smul.u32 32, %s19
        %p1009 = scmp.lt.s32.totalorder %s1008, 63
        %s1010 = scalar_select %p1009, %s1008, 63
        %s1011 = smul.addr %s1010, 8
        %s1012 = scalar_lea.vmem %s4, %s1011
      $region68: #{bottleneck_forward.6} parent=63 // pred_fallthru
        _
    $region64: #{bottleneck_forward.6} parent=5 // pred_fallthru
      _
  $region6: #{bottleneck_forward.6} parent=0 // loop_footer
    %s17 = sadd.s32 1, %s13
  $region7: #{bottleneck_forward.6} parent=0 // loop_footer_branch
    %12 = sbr.rel target = $region3
  $region8: #{bottleneck_forward.6} parent=0 // loop_exit
    _

// kernel: bottleneck_forward.7
$region0: #{bottleneck_forward.7}
  #allocation0 [shape = 'u32[]', space=smem, size = 0x4, offset = 0x4, fixed_abs, tag = 'smem constant byte address 0x4 - core index']
  #allocation1 [shape = 'u32[144,128]{1,0:T(1,128)}', space=vmem, size = 0x12000, scoped, tag = 'internal scratch']
  %s0 = inlined_call_operand.vmem [shape: f32[512,128], index: 0, kind: input, shape index: {}]
  %s1 = inlined_call_operand.vmem [shape: f32[1,128], index: 1, kind: input, shape index: {}]
  %s2 = inlined_call_operand.vmem [shape: f32[1,128], index: 2, kind: input, shape index: {}]
  %s3 = inlined_call_operand.vmem [shape: f32[512,128], index: 3, kind: input, shape index: {}]
  %s4 = inlined_call_operand.vmem [shape: f32[512,128], index: 4, kind: output, shape index: {}]
  %s5 = sld [smem:[#allocation0]]
  $region49: #{bottleneck_forward.7} parent=0
    _
  %s7 = ssub.s32 1, %s5
  %s8 = scalar_select 0, %s7, %s5
  loop: start=0, step=1, limit=4
  $region2: #{bottleneck_forward.7} parent=0 // loop_pre_header
    _
  $region3: #{bottleneck_forward.7} parent=0 // loop_header
    %s10 = sphi 0, %s14
    %p11 = scmp.ge.s32.totalorder %s10, 4
    %s20 = sphi 0, %s22
    %s23 = sphi 0, %s20
    %s24 = sphi 0, %s23
    %s40 = sphi 0, %s24
    %s44 = sphi 0, %s44
    %s46 = sphi 0, %s44
    %s47 = sphi 0, %s46
    %s61 = sphi 0, %s47
    %s65 = sphi 0, %s65
    %s67 = sphi 0, %s65
    %s68 = sphi 0, %s67
    %s82 = sphi 0, %s68
    %s88 = sphi 0, %s90
    %s91 = sphi 0, %s88
    %s92 = sphi 0, %s91
    %s108 = sphi 0, %s92
    %s114 = sphi 0, %s116
    %s117 = sphi 0, %s114
    %s118 = sphi 0, %s117
    %s134 = sphi 0, %s118
  $region4: #{bottleneck_forward.7} parent=0 // loop_header_branch
    %13 = sbr.rel (%p11) target = $region8
  $region5: #{bottleneck_forward.7} parent=0 // loop_body
    %s15 = ssub.s32 %s10, 1
    %s16 = ssub.s32 %s10, 2
    %s17 = sadd.s32 %s10, 1
    %s18 = ssub.s32 %s10, %s17
    %p19 = scmp.eq.s32.totalorder %s18, 0
    %s21 = sadd.s32 %s20, 1
    %s22 = scalar_select %p19, %s20, %s21
    %p25 = pneg %p19
    %p26 = scmp.eq.s32.totalorder %s10, 1
    %p27 = por %p25, %p26
    %p28 = scmp.ne.s32.totalorder %s20, %s23
    %p29 = scmp.eq.s32.totalorder %s10, 0
    %p30 = por %p28, %p29
    %p31 = scmp.ne.s32.totalorder %s20, %s23
    %p32 = scmp.eq.s32.totalorder %s15, 1
    %p33 = por %p31, %p32
    %p34 = scmp.ne.s32.totalorder %s23, %s24
    %p35 = scmp.eq.s32.totalorder %s15, 0
    %p36 = por %p34, %p35
    %p37 = scmp.ne.s32.totalorder %s23, %s24
    %p38 = scmp.eq.s32.totalorder %s16, 1
    %p39 = por %p37, %p38
    %p41 = scmp.ne.s32.totalorder %s24, %s40
    %p42 = scmp.eq.s32.totalorder %s16, 0
    %p43 = por %p41, %p42
    %s45 = sadd.s32 %s44, 1
    %p48 = scmp.eq.s32.totalorder %s10, 1
    %p49 = scmp.ne.s32.totalorder %s44, %s46
    %p50 = scmp.eq.s32.totalorder %s10, 0
    %p51 = por %p49, %p50
    %p52 = scmp.ne.s32.totalorder %s44, %s46
    %p53 = scmp.eq.s32.totalorder %s15, 1
    %p54 = por %p52, %p53
    %p55 = scmp.ne.s32.totalorder %s46, %s47
    %p56 = scmp.eq.s32.totalorder %s15, 0
    %p57 = por %p55, %p56
    %p58 = scmp.ne.s32.totalorder %s46, %s47
    %p59 = scmp.eq.s32.totalorder %s16, 1
    %p60 = por %p58, %p59
    %p62 = scmp.ne.s32.totalorder %s47, %s61
    %p63 = scmp.eq.s32.totalorder %s16, 0
    %p64 = por %p62, %p63
    %s66 = sadd.s32 %s65, 1
    %p69 = scmp.eq.s32.totalorder %s10, 1
    %p70 = scmp.ne.s32.totalorder %s65, %s67
    %p71 = scmp.eq.s32.totalorder %s10, 0
    %p72 = por %p70, %p71
    %p73 = scmp.ne.s32.totalorder %s65, %s67
    %p74 = scmp.eq.s32.totalorder %s15, 1
    %p75 = por %p73, %p74
    %p76 = scmp.ne.s32.totalorder %s67, %s68
    %p77 = scmp.eq.s32.totalorder %s15, 0
    %p78 = por %p76, %p77
    %p79 = scmp.ne.s32.totalorder %s67, %s68
    %p80 = scmp.eq.s32.totalorder %s16, 1
    %p81 = por %p79, %p80
    %p83 = scmp.ne.s32.totalorder %s68, %s82
    %p84 = scmp.eq.s32.totalorder %s16, 0
    %p85 = por %p83, %p84
    %s86 = ssub.s32 %s10, %s17
    %p87 = scmp.eq.s32.totalorder %s86, 0
    %s89 = sadd.s32 %s88, 1
    %s90 = scalar_select %p87, %s88, %s89
    %p93 = pneg %p87
    %p94 = scmp.eq.s32.totalorder %s10, 1
    %p95 = por %p93, %p94
    %p96 = scmp.ne.s32.totalorder %s88, %s91
    %p97 = scmp.eq.s32.totalorder %s10, 0
    %p98 = por %p96, %p97
    %p99 = scmp.ne.s32.totalorder %s88, %s91
    %p100 = scmp.eq.s32.totalorder %s15, 1
    %p101 = por %p99, %p100
    %p102 = scmp.ne.s32.totalorder %s91, %s92
    %p103 = scmp.eq.s32.totalorder %s15, 0
    %p104 = por %p102, %p103
    %p105 = scmp.ne.s32.totalorder %s91, %s92
    %p106 = scmp.eq.s32.totalorder %s16, 1
    %p107 = por %p105, %p106
    %p109 = scmp.ne.s32.totalorder %s92, %s108
    %p110 = scmp.eq.s32.totalorder %s16, 0
    %p111 = por %p109, %p110
    %s112 = ssub.s32 %s10, %s17
    %p113 = scmp.eq.s32.totalorder %s112, 0
    %s115 = sadd.s32 %s114, 1
    %s116 = scalar_select %p113, %s114, %s115
    %p119 = pneg %p113
    %p120 = scmp.eq.s32.totalorder %s10, 1
    %p121 = por %p119, %p120
    %p122 = scmp.ne.s32.totalorder %s114, %s117
    %p123 = scmp.eq.s32.totalorder %s10, 0
    %p124 = por %p122, %p123
    %p125 = scmp.ne.s32.totalorder %s114, %s117
    %p126 = scmp.eq.s32.totalorder %s15, 1
    %p127 = por %p125, %p126
    %p128 = scmp.ne.s32.totalorder %s117, %s118
    %p129 = scmp.eq.s32.totalorder %s15, 0
    %p130 = por %p128, %p129
    %p131 = scmp.ne.s32.totalorder %s117, %s118
    %p132 = scmp.eq.s32.totalorder %s16, 1
    %p133 = por %p131, %p132
    %p135 = scmp.ne.s32.totalorder %s118, %s134
    %p136 = scmp.eq.s32.totalorder %s16, 0
    %p137 = por %p135, %p136
    %p138 = scmp.le.s32.totalorder 1, %s10
    %p139 = scmp.lt.s32.totalorder %s10, 3
    %p140 = pnand %p138, %p139
    %p141 = pneg %p140
    // Predicated region
    $region9: #{bottleneck_forward.7} parent=5 // pred_check
      _
    $region10: #{bottleneck_forward.7} parent=5 // pred_check_branch
      %143 = sbr.rel (%p140) target = $region12
    $region11: #{bottleneck_forward.7} parent=5 // pred_region
      %s144 = ssub.s32 %s10, 1
      // Predicated region
      $region13: #{bottleneck_forward.7} parent=11 // pred_check
        %p145 = pneg %p57
      $region14: #{bottleneck_forward.7} parent=11 // pred_check_branch
        %147 = sbr.rel (%p145) target = $region16
      $region15: #{bottleneck_forward.7} parent=11 // pred_region
        _
      $region16: #{bottleneck_forward.7} parent=11 // pred_fallthru
        _
      // Predicated region
      $region17: #{bottleneck_forward.7} parent=11 // pred_check
        %p148 = pneg %p78
      $region18: #{bottleneck_forward.7} parent=11 // pred_check_branch
        %150 = sbr.rel (%p148) target = $region20
      $region19: #{bottleneck_forward.7} parent=11 // pred_region
        _
      $region20: #{bottleneck_forward.7} parent=11 // pred_fallthru
        _
    $region12: #{bottleneck_forward.7} parent=5 // pred_fallthru
      _
    %p151 = scmp.lt.s32.totalorder %s10, 2
    // Predicated region
    $region21: #{bottleneck_forward.7} parent=5 // pred_check
      %p152 = pneg %p151
    $region22: #{bottleneck_forward.7} parent=5 // pred_check_branch
      %154 = sbr.rel (%p152) target = $region24
    $region23: #{bottleneck_forward.7} parent=5 // pred_region
      // Predicated region
      $region25: #{bottleneck_forward.7} parent=23 // pred_check
        %p155 = pneg %p30
      $region26: #{bottleneck_forward.7} parent=23 // pred_check_branch
        %157 = sbr.rel (%p155) target = $region28
      $region27: #{bottleneck_forward.7} parent=23 // pred_region
        %s158 = smul.u32 32, %s10
        %p159 = scmp.lt.s32.totalorder %s158, 63
        %s160 = scalar_select %p159, %s158, 63
        %s161 = smul.addr %s160, 8
        %s162 = scalar_lea.vmem %s0, %s161
        %s163 = smul.u32 32, %s10
      $region28: #{bottleneck_forward.7} parent=23 // pred_fallthru
        _
      // Predicated region
      $region29: #{bottleneck_forward.7} parent=23 // pred_check
        %p164 = pneg %p98
      $region30: #{bottleneck_forward.7} parent=23 // pred_check_branch
        %166 = sbr.rel (%p164) target = $region32
      $region31: #{bottleneck_forward.7} parent=23 // pred_region
        %s167 = smul.u32 32, %s10
        %p168 = scmp.lt.s32.totalorder %s167, 63
        %s169 = scalar_select %p168, %s167, 63
        %s170 = smul.addr %s169, 8
        %s171 = scalar_lea.vmem %s3, %s170
        %s172 = smul.u32 32, %s10
      $region32: #{bottleneck_forward.7} parent=23 // pred_fallthru
        _
    $region24: #{bottleneck_forward.7} parent=5 // pred_fallthru
      _
    %p173 = scmp.le.s32.totalorder 1, %s10
    %p174 = scmp.lt.s32.totalorder %s10, 3
    %p175 = pnand %p173, %p174
    %p176 = pneg %p175
    // Predicated region
    $region33: #{bottleneck_forward.7} parent=5 // pred_check
      _
    $region34: #{bottleneck_forward.7} parent=5 // pred_check_branch
      %178 = sbr.rel (%p175) target = $region36
    $region35: #{bottleneck_forward.7} parent=5 // pred_region
      %s179 = ssub.s32 %s10, 1
      %s180 = smul.u32 32, %s15
      %p181 = scmp.lt.s32.totalorder %s180, 63
      %s182 = scalar_select %p181, %s180, 63
      %s183 = smul.addr %s182, 8
      %s184 = scalar_lea.vmem %s0, %s183
      %p185 = pneg %p36
      %p186 = pneg %p33
      %p187 = pneg %p57
      %p188 = pneg %p54
      %p189 = pneg %p78
      %p190 = pneg %p75
      %s191 = smul.u32 32, %s15
      %p192 = scmp.lt.s32.totalorder %s191, 63
      %s193 = scalar_select %p192, %s191, 63
      %s194 = smul.addr %s193, 8
      %s195 = scalar_lea.vmem %s3, %s194
      %p196 = pneg %p104
      %p197 = pneg %p101
      %p198 = pneg %p130
      %p199 = pneg %p127
      %s200 = smul.u32 32, %s15
      %p201 = scmp.lt.s32.totalorder %s200, 63
      %s202 = scalar_select %p201, %s200, 63
      %s203 = smul.addr %s202, 8
      %s204 = scalar_lea.vmem %s4, %s203
      %s205 = smul.u32 32, %s15
      %p206 = scmp.lt.s32.totalorder %s205, 63
      %s207 = scalar_select %p206, %s205, 63
      %s208 = smul.addr %s207, 8
      %s209 = scalar_lea.vmem %s0, %s208
      %s210 = smul.u32 32, %s15
      %s211 = smul.u32 32, %s15
      %p212 = scmp.lt.s32.totalorder %s211, 63
      %s213 = scalar_select %p212, %s211, 63
      %s214 = smul.addr %s213, 8
      %s215 = scalar_lea.vmem %s3, %s214
      %s216 = smul.u32 32, %s15
      %s217 = smul.u32 32, %s15
      %p218 = scmp.lt.s32.totalorder %s217, 63
      %s219 = scalar_select %p218, %s217, 63
      %s220 = smul.addr %s219, 8
      %s221 = scalar_lea.vmem %s4, %s220
      %s222 = smul.u32 32, %s15
      %v223 = vld [vmem:[%s209] sm:$0xff]
      %v224 = vld [vmem:[%s209 + $0x8] sm:$0xff]
      %v225 = vld [vmem:[%s209 + $0x10] sm:$0xff]
      %v226 = vld [vmem:[%s209 + $0x18] sm:$0xff]
      %v227 = vld [vmem:[%s209 + $0x20] sm:$0xff]
      %v228 = vld [vmem:[%s209 + $0x28] sm:$0xff]
      %v229 = vld [vmem:[%s209 + $0x30] sm:$0xff]
      %v230 = vld [vmem:[%s209 + $0x38] sm:$0xff]
      %v231 = vld [vmem:[%s209 + $0x40] sm:$0xff]
      %v232 = vld [vmem:[%s209 + $0x48] sm:$0xff]
      %v233 = vld [vmem:[%s209 + $0x50] sm:$0xff]
      %v234 = vld [vmem:[%s209 + $0x58] sm:$0xff]
      %v235 = vld [vmem:[%s209 + $0x60] sm:$0xff]
      %v236 = vld [vmem:[%s209 + $0x68] sm:$0xff]
      %v237 = vld [vmem:[%s209 + $0x70] sm:$0xff]
      %v238 = vld [vmem:[%s209 + $0x78] sm:$0xff]
      %v239 = vld [vmem:[%s209 + $0x80] sm:$0xff]
      %v240 = vld [vmem:[%s209 + $0x88] sm:$0xff]
      %v241 = vld [vmem:[%s209 + $0x90] sm:$0xff]
      %v242 = vld [vmem:[%s209 + $0x98] sm:$0xff]
      %v243 = vld [vmem:[%s209 + $0xa0] sm:$0xff]
      %v244 = vld [vmem:[%s209 + $0xa8] sm:$0xff]
      %v245 = vld [vmem:[%s209 + $0xb0] sm:$0xff]
      %v246 = vld [vmem:[%s209 + $0xb8] sm:$0xff]
      %v247 = vld [vmem:[%s209 + $0xc0] sm:$0xff]
      %v248 = vld [vmem:[%s209 + $0xc8] sm:$0xff]
      %v249 = vld [vmem:[%s209 + $0xd0] sm:$0xff]
      %v250 = vld [vmem:[%s209 + $0xd8] sm:$0xff]
      %v251 = vld [vmem:[%s209 + $0xe0] sm:$0xff]
      %v252 = vld [vmem:[%s209 + $0xe8] sm:$0xff]
      %v253 = vld [vmem:[%s209 + $0xf0] sm:$0xff]
      %v254 = vld [vmem:[%s209 + $0xf8] sm:$0xff]
      %v255 = vld [vmem:[%s1] sm:$0x1]
      %v257 = vlaneseq
      %v258 = vshrl.u32 %v257, 7
      %v259 = vsub.s32 0, %v258
      %v260 = vrot.slane %v255, %v259
      %v262 = vmul.f32 %v223, %v260
      %v263 = vmul.f32 %v224, %v260
      %v264 = vmul.f32 %v225, %v260
      %v265 = vmul.f32 %v226, %v260
      %v266 = vmul.f32 %v227, %v260
      %v267 = vmul.f32 %v228, %v260
      %v268 = vmul.f32 %v229, %v260
      %v269 = vmul.f32 %v230, %v260
      %v270 = vmul.f32 %v231, %v260
      %v271 = vmul.f32 %v232, %v260
      %v272 = vmul.f32 %v233, %v260
      %v273 = vmul.f32 %v234, %v260
      %v274 = vmul.f32 %v235, %v260
      %v275 = vmul.f32 %v236, %v260
      %v276 = vmul.f32 %v237, %v260
      %v277 = vmul.f32 %v238, %v260
      %v278 = vmul.f32 %v239, %v260
      %v279 = vmul.f32 %v240, %v260
      %v280 = vmul.f32 %v241, %v260
      %v281 = vmul.f32 %v242, %v260
      %v282 = vmul.f32 %v243, %v260
      %v283 = vmul.f32 %v244, %v260
      %v284 = vmul.f32 %v245, %v260
      %v285 = vmul.f32 %v246, %v260
      %v286 = vmul.f32 %v247, %v260
      %v287 = vmul.f32 %v248, %v260
      %v288 = vmul.f32 %v249, %v260
      %v289 = vmul.f32 %v250, %v260
      %v290 = vmul.f32 %v251, %v260
      %v291 = vmul.f32 %v252, %v260
      %v292 = vmul.f32 %v253, %v260
      %v293 = vmul.f32 %v254, %v260
      %v294 = vld [vmem:[%s2] sm:$0x1]
      %v296 = vlaneseq
      %v297 = vshrl.u32 %v296, 7
      %v298 = vsub.s32 0, %v297
      %v299 = vrot.slane %v294, %v298
      %v301 = vadd.f32 %v262, %v299
      %v302 = vadd.f32 %v263, %v299
      %v303 = vadd.f32 %v264, %v299
      %v304 = vadd.f32 %v265, %v299
      %v305 = vadd.f32 %v266, %v299
      %v306 = vadd.f32 %v267, %v299
      %v307 = vadd.f32 %v268, %v299
      %v308 = vadd.f32 %v269, %v299
      %v309 = vadd.f32 %v270, %v299
      %v310 = vadd.f32 %v271, %v299
      %v311 = vadd.f32 %v272, %v299
      %v312 = vadd.f32 %v273, %v299
      %v313 = vadd.f32 %v274, %v299
      %v314 = vadd.f32 %v275, %v299
      %v315 = vadd.f32 %v276, %v299
      %v316 = vadd.f32 %v277, %v299
      %v317 = vadd.f32 %v278, %v299
      %v318 = vadd.f32 %v279, %v299
      %v319 = vadd.f32 %v280, %v299
      %v320 = vadd.f32 %v281, %v299
      %v321 = vadd.f32 %v282, %v299
      %v322 = vadd.f32 %v283, %v299
      %v323 = vadd.f32 %v284, %v299
      %v324 = vadd.f32 %v285, %v299
      %v325 = vadd.f32 %v286, %v299
      %v326 = vadd.f32 %v287, %v299
      %v327 = vadd.f32 %v288, %v299
      %v328 = vadd.f32 %v289, %v299
      %v329 = vadd.f32 %v290, %v299
      %v330 = vadd.f32 %v291, %v299
      %v331 = vadd.f32 %v292, %v299
      %v332 = vadd.f32 %v293, %v299
      %v333 = vld [vmem:[%s215] sm:$0xff]
      %v334 = vld [vmem:[%s215 + $0x8] sm:$0xff]
      %v335 = vld [vmem:[%s215 + $0x10] sm:$0xff]
      %v336 = vld [vmem:[%s215 + $0x18] sm:$0xff]
      %v337 = vld [vmem:[%s215 + $0x20] sm:$0xff]
      %v338 = vld [vmem:[%s215 + $0x28] sm:$0xff]
      %v339 = vld [vmem:[%s215 + $0x30] sm:$0xff]
      %v340 = vld [vmem:[%s215 + $0x38] sm:$0xff]
      %v341 = vld [vmem:[%s215 + $0x40] sm:$0xff]
      %v342 = vld [vmem:[%s215 + $0x48] sm:$0xff]
      %v343 = vld [vmem:[%s215 + $0x50] sm:$0xff]
      %v344 = vld [vmem:[%s215 + $0x58] sm:$0xff]
      %v345 = vld [vmem:[%s215 + $0x60] sm:$0xff]
      %v346 = vld [vmem:[%s215 + $0x68] sm:$0xff]
      %v347 = vld [vmem:[%s215 + $0x70] sm:$0xff]
      %v348 = vld [vmem:[%s215 + $0x78] sm:$0xff]
      %v349 = vld [vmem:[%s215 + $0x80] sm:$0xff]
      %v350 = vld [vmem:[%s215 + $0x88] sm:$0xff]
      %v351 = vld [vmem:[%s215 + $0x90] sm:$0xff]
      %v352 = vld [vmem:[%s215 + $0x98] sm:$0xff]
      %v353 = vld [vmem:[%s215 + $0xa0] sm:$0xff]
      %v354 = vld [vmem:[%s215 + $0xa8] sm:$0xff]
      %v355 = vld [vmem:[%s215 + $0xb0] sm:$0xff]
      %v356 = vld [vmem:[%s215 + $0xb8] sm:$0xff]
      %v357 = vld [vmem:[%s215 + $0xc0] sm:$0xff]
      %v358 = vld [vmem:[%s215 + $0xc8] sm:$0xff]
      %v359 = vld [vmem:[%s215 + $0xd0] sm:$0xff]
      %v360 = vld [vmem:[%s215 + $0xd8] sm:$0xff]
      %v361 = vld [vmem:[%s215 + $0xe0] sm:$0xff]
      %v362 = vld [vmem:[%s215 + $0xe8] sm:$0xff]
      %v363 = vld [vmem:[%s215 + $0xf0] sm:$0xff]
      %v364 = vld [vmem:[%s215 + $0xf8] sm:$0xff]
      %v365 = vadd.f32 %v301, %v333
      %v366 = vadd.f32 %v302, %v334
      %v367 = vadd.f32 %v303, %v335
      %v368 = vadd.f32 %v304, %v336
      %v369 = vadd.f32 %v305, %v337
      %v370 = vadd.f32 %v306, %v338
      %v371 = vadd.f32 %v307, %v339
      %v372 = vadd.f32 %v308, %v340
      %v373 = vadd.f32 %v309, %v341
      %v374 = vadd.f32 %v310, %v342
      %v375 = vadd.f32 %v311, %v343
      %v376 = vadd.f32 %v312, %v344
      %v377 = vadd.f32 %v313, %v345
      %v378 = vadd.f32 %v314, %v346
      %v379 = vadd.f32 %v315, %v347
      %v380 = vadd.f32 %v316, %v348
      %v381 = vadd.f32 %v317, %v349
      %v382 = vadd.f32 %v318, %v350
      %v383 = vadd.f32 %v319, %v351
      %v384 = vadd.f32 %v320, %v352
      %v385 = vadd.f32 %v321, %v353
      %v386 = vadd.f32 %v322, %v354
      %v387 = vadd.f32 %v323, %v355
      %v388 = vadd.f32 %v324, %v356
      %v389 = vadd.f32 %v325, %v357
      %v390 = vadd.f32 %v326, %v358
      %v391 = vadd.f32 %v327, %v359
      %v392 = vadd.f32 %v328, %v360
      %v393 = vadd.f32 %v329, %v361
      %v394 = vadd.f32 %v330, %v362
      %v395 = vadd.f32 %v331, %v363
      %v396 = vadd.f32 %v332, %v364
      %v397 = vmax.f32 %v365, 0.0
      %v398 = vmax.f32 %v366, 0.0
      %v399 = vmax.f32 %v367, 0.0
      %v400 = vmax.f32 %v368, 0.0
      %v401 = vmax.f32 %v369, 0.0
      %v402 = vmax.f32 %v370, 0.0
      %v403 = vmax.f32 %v371, 0.0
      %v404 = vmax.f32 %v372, 0.0
      %v405 = vmax.f32 %v373, 0.0
      %v406 = vmax.f32 %v374, 0.0
      %v407 = vmax.f32 %v375, 0.0
      %v408 = vmax.f32 %v376, 0.0
      %v409 = vmax.f32 %v377, 0.0
      %v410 = vmax.f32 %v378, 0.0
      %v411 = vmax.f32 %v379, 0.0
      %v412 = vmax.f32 %v380, 0.0
      %v413 = vmax.f32 %v381, 0.0
      %v414 = vmax.f32 %v382, 0.0
      %v415 = vmax.f32 %v383, 0.0
      %v416 = vmax.f32 %v384, 0.0
      %v417 = vmax.f32 %v385, 0.0
      %v418 = vmax.f32 %v386, 0.0
      %v419 = vmax.f32 %v387, 0.0
      %v420 = vmax.f32 %v388, 0.0
      %v421 = vmax.f32 %v389, 0.0
      %v422 = vmax.f32 %v390, 0.0
      %v423 = vmax.f32 %v391, 0.0
      %v424 = vmax.f32 %v392, 0.0
      %v425 = vmax.f32 %v393, 0.0
      %v426 = vmax.f32 %v394, 0.0
      %v427 = vmax.f32 %v395, 0.0
      %v428 = vmax.f32 %v396, 0.0
      %429 = vst [vmem:[%s221] sm:$0xff] %v397
      %430 = vst [vmem:[%s221 + $0x8] sm:$0xff] %v398
      %431 = vst [vmem:[%s221 + $0x10] sm:$0xff] %v399
      %432 = vst [vmem:[%s221 + $0x18] sm:$0xff] %v400
      %433 = vst [vmem:[%s221 + $0x20] sm:$0xff] %v401
      %434 = vst [vmem:[%s221 + $0x28] sm:$0xff] %v402
      %435 = vst [vmem:[%s221 + $0x30] sm:$0xff] %v403
      %436 = vst [vmem:[%s221 + $0x38] sm:$0xff] %v404
      %437 = vst [vmem:[%s221 + $0x40] sm:$0xff] %v405
      %438 = vst [vmem:[%s221 + $0x48] sm:$0xff] %v406
      %439 = vst [vmem:[%s221 + $0x50] sm:$0xff] %v407
      %440 = vst [vmem:[%s221 + $0x58] sm:$0xff] %v408
      %441 = vst [vmem:[%s221 + $0x60] sm:$0xff] %v409
      %442 = vst [vmem:[%s221 + $0x68] sm:$0xff] %v410
      %443 = vst [vmem:[%s221 + $0x70] sm:$0xff] %v411
      %444 = vst [vmem:[%s221 + $0x78] sm:$0xff] %v412
      %445 = vst [vmem:[%s221 + $0x80] sm:$0xff] %v413
      %446 = vst [vmem:[%s221 + $0x88] sm:$0xff] %v414
      %447 = vst [vmem:[%s221 + $0x90] sm:$0xff] %v415
      %448 = vst [vmem:[%s221 + $0x98] sm:$0xff] %v416
      %449 = vst [vmem:[%s221 + $0xa0] sm:$0xff] %v417
      %450 = vst [vmem:[%s221 + $0xa8] sm:$0xff] %v418
      %451 = vst [vmem:[%s221 + $0xb0] sm:$0xff] %v419
      %452 = vst [vmem:[%s221 + $0xb8] sm:$0xff] %v420
      %453 = vst [vmem:[%s221 + $0xc0] sm:$0xff] %v421
      %454 = vst [vmem:[%s221 + $0xc8] sm:$0xff] %v422
      %455 = vst [vmem:[%s221 + $0xd0] sm:$0xff] %v423
      %456 = vst [vmem:[%s221 + $0xd8] sm:$0xff] %v424
      %457 = vst [vmem:[%s221 + $0xe0] sm:$0xff] %v425
      %458 = vst [vmem:[%s221 + $0xe8] sm:$0xff] %v426
      %459 = vst [vmem:[%s221 + $0xf0] sm:$0xff] %v427
      %460 = vst [vmem:[%s221 + $0xf8] sm:$0xff] %v428
      %s461 = smul.u32 32, %s15
      %p462 = scmp.lt.s32.totalorder %s461, 63
      %s463 = scalar_select %p462, %s461, 63
      %s464 = smul.addr %s463, 8
      %s465 = scalar_lea.vmem %s4, %s464
      // Predicated region
      $region37: #{bottleneck_forward.7} parent=35 // pred_check
        %p466 = pneg %p127
      $region38: #{bottleneck_forward.7} parent=35 // pred_check_branch
        %468 = sbr.rel (%p466) target = $region40
      $region39: #{bottleneck_forward.7} parent=35 // pred_region
        %s469 = smul.u32 32, %s15
      $region40: #{bottleneck_forward.7} parent=35 // pred_fallthru
        _
    $region36: #{bottleneck_forward.7} parent=5 // pred_fallthru
      _
    %p470 = scmp.le.s32.totalorder 2, %s10
    // Predicated region
    $region41: #{bottleneck_forward.7} parent=5 // pred_check
      %p471 = pneg %p470
    $region42: #{bottleneck_forward.7} parent=5 // pred_check_branch
      %473 = sbr.rel (%p471) target = $region44
    $region43: #{bottleneck_forward.7} parent=5 // pred_region
      %s474 = ssub.s32 %s10, 2
      // Predicated region
      $region45: #{bottleneck_forward.7} parent=43 // pred_check
        %p475 = pneg %p133
      $region46: #{bottleneck_forward.7} parent=43 // pred_check_branch
        %477 = sbr.rel (%p475) target = $region48
      $region47: #{bottleneck_forward.7} parent=43 // pred_region
        %s478 = smul.u32 32, %s16
        %p479 = scmp.lt.s32.totalorder %s478, 63
        %s480 = scalar_select %p479, %s478, 63
        %s481 = smul.addr %s480, 8
        %s482 = scalar_lea.vmem %s4, %s481
      $region48: #{bottleneck_forward.7} parent=43 // pred_fallthru
        _
    $region44: #{bottleneck_forward.7} parent=5 // pred_fallthru
      _
  $region6: #{bottleneck_forward.7} parent=0 // loop_footer
    %s14 = sadd.s32 1, %s10
  $region7: #{bottleneck_forward.7} parent=0 // loop_footer_branch
    %9 = sbr.rel target = $region3
  $region8: #{bottleneck_forward.7} parent=0 // loop_exit
    _

// kernel: bottleneck_forward.5
$region0: #{bottleneck_forward.5}
  #allocation0 [shape = 'u32[]', space=smem, size = 0x4, offset = 0x4, fixed_abs, tag = 'smem constant byte address 0x4 - core index']
  #allocation1 [shape = 'u32[144,128]{1,0:T(1,128)}', space=vmem, size = 0x12000, scoped, tag = 'internal scratch']
  %s0 = inlined_call_operand.vmem [shape: f32[2,16,16,128], index: 0, kind: input, shape index: {}]
  %s1 = inlined_call_operand.vmem [shape: f32[1,128], index: 1, kind: input, shape index: {}]
  %s2 = inlined_call_operand.vmem [shape: f32[1,128], index: 2, kind: input, shape index: {}]
  %s3 = inlined_call_operand.vmem [shape: bf16[9,128,128], index: 3, kind: input, shape index: {}]
  %s4 = inlined_call_operand.vmem [shape: f32[2,16,16,128], index: 4, kind: output, shape index: {0}]
  %s5 = inlined_call_operand.vmem [shape: f32[1,128], index: 5, kind: output, shape index: {1}]
  %s6 = inlined_call_operand.vmem [shape: f32[1,128], index: 6, kind: output, shape index: {2}]
  %7 = xla_tuple %s4, %s5, %s6
  %s8 = sld [smem:[#allocation0]]
  $region69: #{bottleneck_forward.5} parent=0
    _
  %s10 = ssub.s32 1, %s8
  %s11 = scalar_select 0, %s10, %s8
  loop: start=0, step=1, limit=4
  $region2: #{bottleneck_forward.5} parent=0 // loop_pre_header
    _
  $region3: #{bottleneck_forward.5} parent=0 // loop_header
    %s13 = sphi 0, %s17
    %p14 = scmp.ge.s32.totalorder %s13, 4
    %s23 = sphi 0, %s25
    %s26 = sphi 0, %s23
    %s27 = sphi 0, %s26
    %s43 = sphi 0, %s27
    %s47 = sphi 0, %s47
    %s49 = sphi 0, %s47
    %s50 = sphi 0, %s49
    %s64 = sphi 0, %s50
    %s68 = sphi 0, %s68
    %s70 = sphi 0, %s68
    %s71 = sphi 0, %s70
    %s85 = sphi 0, %s71
    %s89 = sphi 0, %s89
    %s91 = sphi 0, %s89
    %s92 = sphi 0, %s91
    %s106 = sphi 0, %s92
    %s112 = sphi 0, %s114
    %s115 = sphi 0, %s112
    %s116 = sphi 0, %s115
    %s132 = sphi 0, %s116
    %s136 = sphi 0, %s136
    %s138 = sphi 0, %s136
    %s139 = sphi 0, %s138
    %s153 = sphi 0, %s139
    %s157 = sphi 0, %s157
    %s159 = sphi 0, %s157
    %s160 = sphi 0, %s159
    %s174 = sphi 0, %s160
  $region4: #{bottleneck_forward.5} parent=0 // loop_header_branch
    %16 = sbr.rel (%p14) target = $region8
  $region5: #{bottleneck_forward.5} parent=0 // loop_body
    %s18 = ssub.s32 %s13, 1
    %s19 = ssub.s32 %s13, 2
    %s20 = sadd.s32 %s13, 1
    %s21 = ssub.s32 %s13, %s20
    %p22 = scmp.eq.s32.totalorder %s21, 0
    %s24 = sadd.s32 %s23, 1
    %s25 = scalar_select %p22, %s23, %s24
    %p28 = pneg %p22
    %p29 = scmp.eq.s32.totalorder %s13, 1
    %p30 = por %p28, %p29
    %p31 = scmp.ne.s32.totalorder %s23, %s26
    %p32 = scmp.eq.s32.totalorder %s13, 0
    %p33 = por %p31, %p32
    %p34 = scmp.ne.s32.totalorder %s23, %s26
    %p35 = scmp.eq.s32.totalorder %s18, 1
    %p36 = por %p34, %p35
    %p37 = scmp.ne.s32.totalorder %s26, %s27
    %p38 = scmp.eq.s32.totalorder %s18, 0
    %p39 = por %p37, %p38
    %p40 = scmp.ne.s32.totalorder %s26, %s27
    %p41 = scmp.eq.s32.totalorder %s19, 1
    %p42 = por %p40, %p41
    %p44 = scmp.ne.s32.totalorder %s27, %s43
    %p45 = scmp.eq.s32.totalorder %s19, 0
    %p46 = por %p44, %p45
    %s48 = sadd.s32 %s47, 1
    %p51 = scmp.eq.s32.totalorder %s13, 1
    %p52 = scmp.ne.s32.totalorder %s47, %s49
    %p53 = scmp.eq.s32.totalorder %s13, 0
    %p54 = por %p52, %p53
    %p55 = scmp.ne.s32.totalorder %s47, %s49
    %p56 = scmp.eq.s32.totalorder %s18, 1
    %p57 = por %p55, %p56
    %p58 = scmp.ne.s32.totalorder %s49, %s50
    %p59 = scmp.eq.s32.totalorder %s18, 0
    %p60 = por %p58, %p59
    %p61 = scmp.ne.s32.totalorder %s49, %s50
    %p62 = scmp.eq.s32.totalorder %s19, 1
    %p63 = por %p61, %p62
    %p65 = scmp.ne.s32.totalorder %s50, %s64
    %p66 = scmp.eq.s32.totalorder %s19, 0
    %p67 = por %p65, %p66
    %s69 = sadd.s32 %s68, 1
    %p72 = scmp.eq.s32.totalorder %s13, 1
    %p73 = scmp.ne.s32.totalorder %s68, %s70
    %p74 = scmp.eq.s32.totalorder %s13, 0
    %p75 = por %p73, %p74
    %p76 = scmp.ne.s32.totalorder %s68, %s70
    %p77 = scmp.eq.s32.totalorder %s18, 1
    %p78 = por %p76, %p77
    %p79 = scmp.ne.s32.totalorder %s70, %s71
    %p80 = scmp.eq.s32.totalorder %s18, 0
    %p81 = por %p79, %p80
    %p82 = scmp.ne.s32.totalorder %s70, %s71
    %p83 = scmp.eq.s32.totalorder %s19, 1
    %p84 = por %p82, %p83
    %p86 = scmp.ne.s32.totalorder %s71, %s85
    %p87 = scmp.eq.s32.totalorder %s19, 0
    %p88 = por %p86, %p87
    %s90 = sadd.s32 %s89, 1
    %p93 = scmp.eq.s32.totalorder %s13, 1
    %p94 = scmp.ne.s32.totalorder %s89, %s91
    %p95 = scmp.eq.s32.totalorder %s13, 0
    %p96 = por %p94, %p95
    %p97 = scmp.ne.s32.totalorder %s89, %s91
    %p98 = scmp.eq.s32.totalorder %s18, 1
    %p99 = por %p97, %p98
    %p100 = scmp.ne.s32.totalorder %s91, %s92
    %p101 = scmp.eq.s32.totalorder %s18, 0
    %p102 = por %p100, %p101
    %p103 = scmp.ne.s32.totalorder %s91, %s92
    %p104 = scmp.eq.s32.totalorder %s19, 1
    %p105 = por %p103, %p104
    %p107 = scmp.ne.s32.totalorder %s92, %s106
    %p108 = scmp.eq.s32.totalorder %s19, 0
    %p109 = por %p107, %p108
    %s110 = ssub.s32 %s13, %s20
    %p111 = scmp.eq.s32.totalorder %s110, 0
    %s113 = sadd.s32 %s112, 1
    %s114 = scalar_select %p111, %s112, %s113
    %p117 = pneg %p111
    %p118 = scmp.eq.s32.totalorder %s13, 1
    %p119 = por %p117, %p118
    %p120 = scmp.ne.s32.totalorder %s112, %s115
    %p121 = scmp.eq.s32.totalorder %s13, 0
    %p122 = por %p120, %p121
    %p123 = scmp.ne.s32.totalorder %s112, %s115
    %p124 = scmp.eq.s32.totalorder %s18, 1
    %p125 = por %p123, %p124
    %p126 = scmp.ne.s32.totalorder %s115, %s116
    %p127 = scmp.eq.s32.totalorder %s18, 0
    %p128 = por %p126, %p127
    %p129 = scmp.ne.s32.totalorder %s115, %s116
    %p130 = scmp.eq.s32.totalorder %s19, 1
    %p131 = por %p129, %p130
    %p133 = scmp.ne.s32.totalorder %s116, %s132
    %p134 = scmp.eq.s32.totalorder %s19, 0
    %p135 = por %p133, %p134
    %s137 = sadd.s32 %s136, 1
    %p140 = scmp.eq.s32.totalorder %s13, 1
    %p141 = scmp.ne.s32.totalorder %s136, %s138
    %p142 = scmp.eq.s32.totalorder %s13, 0
    %p143 = por %p141, %p142
    %p144 = scmp.ne.s32.totalorder %s136, %s138
    %p145 = scmp.eq.s32.totalorder %s18, 1
    %p146 = por %p144, %p145
    %p147 = scmp.ne.s32.totalorder %s138, %s139
    %p148 = scmp.eq.s32.totalorder %s18, 0
    %p149 = por %p147, %p148
    %p150 = scmp.ne.s32.totalorder %s138, %s139
    %p151 = scmp.eq.s32.totalorder %s19, 1
    %p152 = por %p150, %p151
    %p154 = scmp.ne.s32.totalorder %s139, %s153
    %p155 = scmp.eq.s32.totalorder %s19, 0
    %p156 = por %p154, %p155
    %s158 = sadd.s32 %s157, 1
    %p161 = scmp.eq.s32.totalorder %s13, 1
    %p162 = scmp.ne.s32.totalorder %s157, %s159
    %p163 = scmp.eq.s32.totalorder %s13, 0
    %p164 = por %p162, %p163
    %p165 = scmp.ne.s32.totalorder %s157, %s159
    %p166 = scmp.eq.s32.totalorder %s18, 1
    %p167 = por %p165, %p166
    %p168 = scmp.ne.s32.totalorder %s159, %s160
    %p169 = scmp.eq.s32.totalorder %s18, 0
    %p170 = por %p168, %p169
    %p171 = scmp.ne.s32.totalorder %s159, %s160
    %p172 = scmp.eq.s32.totalorder %s19, 1
    %p173 = por %p171, %p172
    %p175 = scmp.ne.s32.totalorder %s160, %s174
    %p176 = scmp.eq.s32.totalorder %s19, 0
    %p177 = por %p175, %p176
    %p178 = scmp.le.s32.totalorder 1, %s13
    %p179 = scmp.lt.s32.totalorder %s13, 3
    %p180 = pnand %p178, %p179
    %p181 = pneg %p180
    // Predicated region
    $region9: #{bottleneck_forward.5} parent=5 // pred_check
      _
    $region10: #{bottleneck_forward.5} parent=5 // pred_check_branch
      %183 = sbr.rel (%p180) target = $region12
    $region11: #{bottleneck_forward.5} parent=5 // pred_region
      %s184 = ssub.s32 %s13, 1
      // Predicated region
      $region13: #{bottleneck_forward.5} parent=11 // pred_check
        %p185 = pneg %p60
      $region14: #{bottleneck_forward.5} parent=11 // pred_check_branch
        %187 = sbr.rel (%p185) target = $region16
      $region15: #{bottleneck_forward.5} parent=11 // pred_region
        _
      $region16: #{bottleneck_forward.5} parent=11 // pred_fallthru
        _
      // Predicated region
      $region17: #{bottleneck_forward.5} parent=11 // pred_check
        %p188 = pneg %p81
      $region18: #{bottleneck_forward.5} parent=11 // pred_check_branch
        %190 = sbr.rel (%p188) target = $region20
      $region19: #{bottleneck_forward.5} parent=11 // pred_region
        _
      $region20: #{bottleneck_forward.5} parent=11 // pred_fallthru
        _
      // Predicated region
      $region21: #{bottleneck_forward.5} parent=11 // pred_check
        %p191 = pneg %p102
      $region22: #{bottleneck_forward.5} parent=11 // pred_check_branch
        %193 = sbr.rel (%p191) target = $region24
      $region23: #{bottleneck_forward.5} parent=11 // pred_region
        _
      $region24: #{bottleneck_forward.5} parent=11 // pred_fallthru
        _
    $region12: #{bottleneck_forward.5} parent=5 // pred_fallthru
      _
    %p194 = scmp.lt.s32.totalorder %s13, 2
    // Predicated region
    $region25: #{bottleneck_forward.5} parent=5 // pred_check
      %p195 = pneg %p194
    $region26: #{bottleneck_forward.5} parent=5 // pred_check_branch
      %197 = sbr.rel (%p195) target = $region28
    $region27: #{bottleneck_forward.5} parent=5 // pred_region
      // Predicated region
      $region29: #{bottleneck_forward.5} parent=27 // pred_check
        %p198 = pneg %p33
      $region30: #{bottleneck_forward.5} parent=27 // pred_check_branch
        %200 = sbr.rel (%p198) target = $region32
      $region31: #{bottleneck_forward.5} parent=27 // pred_region
        %p201 = scmp.lt.s32.totalorder %s13, 1
        %s202 = scalar_select %p201, %s13, 1
        %s203 = smul.addr %s202, 32
        %s204 = smul.addr %s203, 8
        %s205 = scalar_lea.vmem %s0, %s204
      $region32: #{bottleneck_forward.5} parent=27 // pred_fallthru
        _
    $region28: #{bottleneck_forward.5} parent=5 // pred_fallthru
      _
    %p206 = scmp.le.s32.totalorder 1, %s13
    %p207 = scmp.lt.s32.totalorder %s13, 3
    %p208 = pnand %p206, %p207
    %p209 = pneg %p208
    // Predicated region
    $region33: #{bottleneck_forward.5} parent=5 // pred_check
      _
    $region34: #{bottleneck_forward.5} parent=5 // pred_check_branch
      %211 = sbr.rel (%p208) target = $region36
    $region35: #{bottleneck_forward.5} parent=5 // pred_region
      %s212 = ssub.s32 %s13, 1
      %p213 = scmp.lt.s32.totalorder %s18, 1
      %s214 = scalar_select %p213, %s18, 1
      %s215 = smul.addr %s214, 32
      %s216 = smul.addr %s215, 8
      %s217 = scalar_lea.vmem %s0, %s216
      %p218 = pneg %p39
      %p219 = pneg %p36
      %p220 = pneg %p60
      %p221 = pneg %p57
      %p222 = pneg %p81
      %p223 = pneg %p78
      %p224 = pneg %p102
      %p225 = pneg %p99
      %p226 = pneg %p128
      %p227 = pneg %p125
      %p228 = scmp.lt.s32.totalorder %s18, 1
      %s229 = scalar_select %p228, %s18, 1
      %s230 = smul.addr %s229, 32
      %s231 = smul.addr %s230, 8
      %s232 = scalar_lea.vmem %s4, %s231
      %p233 = pneg %p149
      %p234 = pneg %p146
      %p235 = pneg %p170
      %p236 = pneg %p167
      %p237 = scmp.lt.s32.totalorder %s18, 1
      %s238 = scalar_select %p237, %s18, 1
      %s239 = smul.addr %s238, 32
      %s240 = smul.addr %s239, 8
      %s241 = scalar_lea.vmem %s0, %s240
      %p242 = scmp.lt.s32.totalorder %s18, 1
      %s243 = scalar_select %p242, %s18, 1
      %s244 = smul.addr %s243, 32
      %s245 = smul.addr %s244, 8
      %s246 = scalar_lea.vmem %s4, %s245
      %p248 = scmp.eq.s32.totalorder %s18, 0
      // Predicated region
      $region37: #{bottleneck_forward.5} parent=35 // pred_check
        %p249 = pneg %p248
      $region38: #{bottleneck_forward.5} parent=35 // pred_check_branch
        %251 = sbr.rel (%p249) target = $region40
      $region39: #{bottleneck_forward.5} parent=35 // pred_region
        %252 = vst [vmem:[%s5] sm:$0x1] 0.0
        %253 = vst [vmem:[%s6] sm:$0x1] 0.0
      $region40: #{bottleneck_forward.5} parent=35 // pred_fallthru
        _
      %v254 = vld [vmem:[%s241] sm:$0xff]
      %v255 = vld [vmem:[%s241 + $0x8] sm:$0xff]
      %v256 = vld [vmem:[%s241 + $0x10] sm:$0xff]
      %v257 = vld [vmem:[%s241 + $0x18] sm:$0xff]
      %v258 = vld [vmem:[%s241 + $0x20] sm:$0xff]
      %v259 = vld [vmem:[%s241 + $0x28] sm:$0xff]
      %v260 = vld [vmem:[%s241 + $0x30] sm:$0xff]
      %v261 = vld [vmem:[%s241 + $0x38] sm:$0xff]
      %v262 = vld [vmem:[%s241 + $0x40] sm:$0xff]
      %v263 = vld [vmem:[%s241 + $0x48] sm:$0xff]
      %v264 = vld [vmem:[%s241 + $0x50] sm:$0xff]
      %v265 = vld [vmem:[%s241 + $0x58] sm:$0xff]
      %v266 = vld [vmem:[%s241 + $0x60] sm:$0xff]
      %v267 = vld [vmem:[%s241 + $0x68] sm:$0xff]
      %v268 = vld [vmem:[%s241 + $0x70] sm:$0xff]
      %v269 = vld [vmem:[%s241 + $0x78] sm:$0xff]
      %v270 = vld [vmem:[%s241 + $0x80] sm:$0xff]
      %v271 = vld [vmem:[%s241 + $0x88] sm:$0xff]
      %v272 = vld [vmem:[%s241 + $0x90] sm:$0xff]
      %v273 = vld [vmem:[%s241 + $0x98] sm:$0xff]
      %v274 = vld [vmem:[%s241 + $0xa0] sm:$0xff]
      %v275 = vld [vmem:[%s241 + $0xa8] sm:$0xff]
      %v276 = vld [vmem:[%s241 + $0xb0] sm:$0xff]
      %v277 = vld [vmem:[%s241 + $0xb8] sm:$0xff]
      %v278 = vld [vmem:[%s241 + $0xc0] sm:$0xff]
      %v279 = vld [vmem:[%s241 + $0xc8] sm:$0xff]
      %v280 = vld [vmem:[%s241 + $0xd0] sm:$0xff]
      %v281 = vld [vmem:[%s241 + $0xd8] sm:$0xff]
      %v282 = vld [vmem:[%s241 + $0xe0] sm:$0xff]
      %v283 = vld [vmem:[%s241 + $0xe8] sm:$0xff]
      %v284 = vld [vmem:[%s241 + $0xf0] sm:$0xff]
      %v285 = vld [vmem:[%s241 + $0xf8] sm:$0xff]
      %v286 = vld [vmem:[%s1] sm:$0x1]
      %v288 = vlaneseq
      %v289 = vshrl.u32 %v288, 7
      %v290 = vsub.s32 0, %v289
      %v291 = vrot.slane %v286, %v290
      %v293 = vmul.f32 %v254, %v291
      %v294 = vmul.f32 %v255, %v291
      %v295 = vmul.f32 %v256, %v291
      %v296 = vmul.f32 %v257, %v291
      %v297 = vmul.f32 %v258, %v291
      %v298 = vmul.f32 %v259, %v291
      %v299 = vmul.f32 %v260, %v291
      %v300 = vmul.f32 %v261, %v291
      %v301 = vmul.f32 %v262, %v291
      %v302 = vmul.f32 %v263, %v291
      %v303 = vmul.f32 %v264, %v291
      %v304 = vmul.f32 %v265, %v291
      %v305 = vmul.f32 %v266, %v291
      %v306 = vmul.f32 %v267, %v291
      %v307 = vmul.f32 %v268, %v291
      %v308 = vmul.f32 %v269, %v291
      %v309 = vmul.f32 %v270, %v291
      %v310 = vmul.f32 %v271, %v291
      %v311 = vmul.f32 %v272, %v291
      %v312 = vmul.f32 %v273, %v291
      %v313 = vmul.f32 %v274, %v291
      %v314 = vmul.f32 %v275, %v291
      %v315 = vmul.f32 %v276, %v291
      %v316 = vmul.f32 %v277, %v291
      %v317 = vmul.f32 %v278, %v291
      %v318 = vmul.f32 %v279, %v291
      %v319 = vmul.f32 %v280, %v291
      %v320 = vmul.f32 %v281, %v291
      %v321 = vmul.f32 %v282, %v291
      %v322 = vmul.f32 %v283, %v291
      %v323 = vmul.f32 %v284, %v291
      %v324 = vmul.f32 %v285, %v291
      %v325 = vld [vmem:[%s2] sm:$0x1]
      %v327 = vlaneseq
      %v328 = vshrl.u32 %v327, 7
      %v329 = vsub.s32 0, %v328
      %v330 = vrot.slane %v325, %v329
      %v332 = vadd.f32 %v293, %v330
      %v333 = vadd.f32 %v294, %v330
      %v334 = vadd.f32 %v295, %v330
      %v335 = vadd.f32 %v296, %v330
      %v336 = vadd.f32 %v297, %v330
      %v337 = vadd.f32 %v298, %v330
      %v338 = vadd.f32 %v299, %v330
      %v339 = vadd.f32 %v300, %v330
      %v340 = vadd.f32 %v301, %v330
      %v341 = vadd.f32 %v302, %v330
      %v342 = vadd.f32 %v303, %v330
      %v343 = vadd.f32 %v304, %v330
      %v344 = vadd.f32 %v305, %v330
      %v345 = vadd.f32 %v306, %v330
      %v346 = vadd.f32 %v307, %v330
      %v347 = vadd.f32 %v308, %v330
      %v348 = vadd.f32 %v309, %v330
      %v349 = vadd.f32 %v310, %v330
      %v350 = vadd.f32 %v311, %v330
      %v351 = vadd.f32 %v312, %v330
      %v352 = vadd.f32 %v313, %v330
      %v353 = vadd.f32 %v314, %v330
      %v354 = vadd.f32 %v315, %v330
      %v355 = vadd.f32 %v316, %v330
      %v356 = vadd.f32 %v317, %v330
      %v357 = vadd.f32 %v318, %v330
      %v358 = vadd.f32 %v319, %v330
      %v359 = vadd.f32 %v320, %v330
      %v360 = vadd.f32 %v321, %v330
      %v361 = vadd.f32 %v322, %v330
      %v362 = vadd.f32 %v323, %v330
      %v363 = vadd.f32 %v324, %v330
      %v364 = vmax.f32 %v332, 0.0
      %v365 = vmax.f32 %v333, 0.0
      %v366 = vmax.f32 %v334, 0.0
      %v367 = vmax.f32 %v335, 0.0
      %v368 = vmax.f32 %v336, 0.0
      %v369 = vmax.f32 %v337, 0.0
      %v370 = vmax.f32 %v338, 0.0
      %v371 = vmax.f32 %v339, 0.0
      %v372 = vmax.f32 %v340, 0.0
      %v373 = vmax.f32 %v341, 0.0
      %v374 = vmax.f32 %v342, 0.0
      %v375 = vmax.f32 %v343, 0.0
      %v376 = vmax.f32 %v344, 0.0
      %v377 = vmax.f32 %v345, 0.0
      %v378 = vmax.f32 %v346, 0.0
      %v379 = vmax.f32 %v347, 0.0
      %v380 = vmax.f32 %v348, 0.0
      %v381 = vmax.f32 %v349, 0.0
      %v382 = vmax.f32 %v350, 0.0
      %v383 = vmax.f32 %v351, 0.0
      %v384 = vmax.f32 %v352, 0.0
      %v385 = vmax.f32 %v353, 0.0
      %v386 = vmax.f32 %v354, 0.0
      %v387 = vmax.f32 %v355, 0.0
      %v388 = vmax.f32 %v356, 0.0
      %v389 = vmax.f32 %v357, 0.0
      %v390 = vmax.f32 %v358, 0.0
      %v391 = vmax.f32 %v359, 0.0
      %v392 = vmax.f32 %v360, 0.0
      %v393 = vmax.f32 %v361, 0.0
      %v394 = vmax.f32 %v362, 0.0
      %v395 = vmax.f32 %v363, 0.0
      %v396 = vpack.c.bf16 %v365, %v364
      %v397 = vpack.c.bf16 %v367, %v366
      %v398 = vpack.c.bf16 %v369, %v368
      %v399 = vpack.c.bf16 %v371, %v370
      %v400 = vpack.c.bf16 %v373, %v372
      %v401 = vpack.c.bf16 %v375, %v374
      %v402 = vpack.c.bf16 %v377, %v376
      %v403 = vpack.c.bf16 %v379, %v378
      %v404 = vpack.c.bf16 %v381, %v380
      %v405 = vpack.c.bf16 %v383, %v382
      %v406 = vpack.c.bf16 %v385, %v384
      %v407 = vpack.c.bf16 %v387, %v386
      %v408 = vpack.c.bf16 %v389, %v388
      %v409 = vpack.c.bf16 %v391, %v390
      %v410 = vpack.c.bf16 %v393, %v392
      %v411 = vpack.c.bf16 %v395, %v394
      %412 = vst [vmem:[%s246] sm:$0xff] 0.0
      %413 = vst [vmem:[%s246 + $0x8] sm:$0xff] 0.0
      %414 = vst [vmem:[%s246 + $0x10] sm:$0xff] 0.0
      %415 = vst [vmem:[%s246 + $0x18] sm:$0xff] 0.0
      %416 = vst [vmem:[%s246 + $0x20] sm:$0xff] 0.0
      %417 = vst [vmem:[%s246 + $0x28] sm:$0xff] 0.0
      %418 = vst [vmem:[%s246 + $0x30] sm:$0xff] 0.0
      %419 = vst [vmem:[%s246 + $0x38] sm:$0xff] 0.0
      %420 = vst [vmem:[%s246 + $0x40] sm:$0xff] 0.0
      %421 = vst [vmem:[%s246 + $0x48] sm:$0xff] 0.0
      %422 = vst [vmem:[%s246 + $0x50] sm:$0xff] 0.0
      %423 = vst [vmem:[%s246 + $0x58] sm:$0xff] 0.0
      %424 = vst [vmem:[%s246 + $0x60] sm:$0xff] 0.0
      %425 = vst [vmem:[%s246 + $0x68] sm:$0xff] 0.0
      %426 = vst [vmem:[%s246 + $0x70] sm:$0xff] 0.0
      %427 = vst [vmem:[%s246 + $0x78] sm:$0xff] 0.0
      %428 = vst [vmem:[%s246 + $0x80] sm:$0xff] 0.0
      %429 = vst [vmem:[%s246 + $0x88] sm:$0xff] 0.0
      %430 = vst [vmem:[%s246 + $0x90] sm:$0xff] 0.0
      %431 = vst [vmem:[%s246 + $0x98] sm:$0xff] 0.0
      %432 = vst [vmem:[%s246 + $0xa0] sm:$0xff] 0.0
      %433 = vst [vmem:[%s246 + $0xa8] sm:$0xff] 0.0
      %434 = vst [vmem:[%s246 + $0xb0] sm:$0xff] 0.0
      %435 = vst [vmem:[%s246 + $0xb8] sm:$0xff] 0.0
      %436 = vst [vmem:[%s246 + $0xc0] sm:$0xff] 0.0
      %437 = vst [vmem:[%s246 + $0xc8] sm:$0xff] 0.0
      %438 = vst [vmem:[%s246 + $0xd0] sm:$0xff] 0.0
      %439 = vst [vmem:[%s246 + $0xd8] sm:$0xff] 0.0
      %440 = vst [vmem:[%s246 + $0xe0] sm:$0xff] 0.0
      %441 = vst [vmem:[%s246 + $0xe8] sm:$0xff] 0.0
      %442 = vst [vmem:[%s246 + $0xf0] sm:$0xff] 0.0
      %443 = vst [vmem:[%s246 + $0xf8] sm:$0xff] 0.0
      %v444 = vld [vmem:[%s3] sm:$0xf]
      %v445 = vld [vmem:[%s3 + $0x4] sm:$0xf]
      %v446 = vld [vmem:[%s3 + $0x8] sm:$0xf]
      %v447 = vld [vmem:[%s3 + $0xc] sm:$0xf]
      %v448 = vld [vmem:[%s3 + $0x10] sm:$0xf]
      %v449 = vld [vmem:[%s3 + $0x14] sm:$0xf]
      %v450 = vld [vmem:[%s3 + $0x18] sm:$0xf]
      %v451 = vld [vmem:[%s3 + $0x1c] sm:$0xf]
      %v452 = vld [vmem:[%s3 + $0x20] sm:$0xf]
      %v453 = vld [vmem:[%s3 + $0x24] sm:$0xf]
      %v454 = vld [vmem:[%s3 + $0x28] sm:$0xf]
      %v455 = vld [vmem:[%s3 + $0x2c] sm:$0xf]
      %v456 = vld [vmem:[%s3 + $0x30] sm:$0xf]
      %v457 = vld [vmem:[%s3 + $0x34] sm:$0xf]
      %v458 = vld [vmem:[%s3 + $0x38] sm:$0xf]
      %v459 = vld [vmem:[%s3 + $0x3c] sm:$0xf]
      %v476 = vunpack.c.l.b16 %v444
      %v477 = vunpack.c.l.b16 %v445
      %v478 = vunpack.c.l.b16 %v446
      %v479 = vunpack.c.l.b16 %v447
      %v480 = vunpack.c.l.b16 %v448
      %v481 = vunpack.c.l.b16 %v449
      %v482 = vunpack.c.l.b16 %v450
      %v483 = vunpack.c.l.b16 %v451
      %v484 = vunpack.c.l.b16 %v452
      %v485 = vunpack.c.l.b16 %v453
      %v486 = vunpack.c.l.b16 %v454
      %v487 = vunpack.c.l.b16 %v455
      %v488 = vunpack.c.l.b16 %v456
      %v489 = vunpack.c.l.b16 %v457
      %v490 = vunpack.c.l.b16 %v458
      %v491 = vunpack.c.l.b16 %v459
      %v492 = vpack.c.b16 %v477, %v476
      %v493 = vpack.c.b16 %v479, %v478
      %v494 = vpack.c.b16 %v481, %v480
      %v495 = vpack.c.b16 %v483, %v482
      %v496 = vpack.c.b16 %v485, %v484
      %v497 = vpack.c.b16 %v487, %v486
      %v498 = vpack.c.b16 %v489, %v488
      %v499 = vpack.c.b16 %v491, %v490
      %508 = vmatprep.subr.bf16.mxu0 0
      %509 = vmatpush1.bf16.msra.mxu0 %v492
      %510 = vmatprep.subr.bf16.mxu0 0
      %511 = vmatpush1.bf16.msra.mxu0 %v493
      %512 = vmatprep.subr.bf16.mxu0 0
      %513 = vmatpush1.bf16.msra.mxu0 %v494
      %514 = vmatprep.subr.bf16.mxu0 0
      %515 = vmatpush1.bf16.msra.mxu0 %v495
      %516 = vmatprep.subr.bf16.mxu0 0
      %517 = vmatpush1.bf16.msra.mxu0 %v496
      %518 = vmatprep.subr.bf16.mxu0 0
      %519 = vmatpush1.bf16.msra.mxu0 %v497
      %520 = vmatprep.subr.bf16.mxu0 0
      %521 = vmatpush1.bf16.msra.mxu0 %v498
      %522 = vmatprep.subr.bf16.mxu0 0
      %523 = vmatpush1.bf16.msra.mxu0 %v499
      %524 = vmatprep.subr.bf16.mxu0 0
      %525 = vmatpush1.bf16.msra.mxu0 0
      %526 = vmatprep.subr.bf16.mxu0 0
      %527 = vmatpush1.bf16.msra.mxu0 0
      %528 = vmatprep.subr.bf16.mxu0 0
      %529 = vmatpush1.bf16.msra.mxu0 0
      %530 = vmatprep.subr.bf16.mxu0 0
      %531 = vmatpush1.bf16.msra.mxu0 0
      %532 = vmatprep.subr.bf16.mxu0 0
      %533 = vmatpush1.bf16.msra.mxu0 0
      %534 = vmatprep.subr.bf16.mxu0 0
      %535 = vmatpush1.bf16.msra.mxu0 0
      %536 = vmatprep.subr.bf16.mxu0 0
      %537 = vmatpush1.bf16.msra.mxu0 0
      %538 = vmatprep.subr.bf16.mxu0 0
      %539 = vmatpush1.bf16.msra.mxu0 0
      %540 = vmatprep.mubr.bf16.mxu0 0
      %541 = vmatmul.mubr.bf16.gmra.mrb[0].mxu0 %v396
      %v542 = vpop.f32.mrb[0].mxu0
      %v543 = vadd.f32 0.0, %v542
      %v544 = vpop.f32.mrb[0].mxu0
      %v545 = vpop.f32.mrb[0].mxu0
      %v546 = vadd.f32 0.0, %v545
      %v547 = vpop.f32.mrb[0].mxu0
      %548 = vmatprep.mubr.bf16.mxu0 0
      %549 = vmatmul.mubr.bf16.gmra.mrb[0].mxu0 %v397
      %v550 = vpop.f32.mrb[0].mxu0
      %v551 = vadd.f32 0.0, %v550
      %v552 = vpop.f32.mrb[0].mxu0
      %v553 = vpop.f32.mrb[0].mxu0
      %v554 = vadd.f32 0.0, %v553
      %v555 = vpop.f32.mrb[0].mxu0
      %556 = vmatprep.mubr.bf16.mxu0 0
      %557 = vmatmul.mubr.bf16.gmra.mrb[0].mxu0 %v398
      %v558 = vpop.f32.mrb[0].mxu0
      %v559 = vadd.f32 0.0, %v558
      %v560 = vpop.f32.mrb[0].mxu0
      %v561 = vpop.f32.mrb[0].mxu0
      %v562 = vadd.f32 0.0, %v561
      %v563 = vpop.f32.mrb[0].mxu0
      %564 = vmatprep.mubr.bf16.mxu0 0
      %565 = vmatmul.mubr.bf16.gmra.mrb[0].mxu0 %v399
      %v566 = vpop.f32.mrb[0].mxu0
      %v567 = vadd.f32 0.0, %v566
      %v568 = vpop.f32.mrb[0].mxu0
      %v569 = vpop.f32.mrb[0].mxu0
      %v570 = vadd.f32 0.0, %v569
      %v571 = vpop.f32.mrb[0].mxu0
      %572 = vmatprep.mubr.bf16.mxu0 0
      %573 = vmatmul.mubr.bf16.gmra.mrb[0].mxu0 %v400
      %v574 = vpop.f32.mrb[0].mxu0
      %v575 = vadd.f32 0.0, %v574
      %v576 = vpop.f32.mrb[0].mxu0
      %v577 = vpop.f32.mrb[0].mxu0
      %v578 = vadd.f32 0.0, %v577
      %v579 = vpop.f32.mrb[0].mxu0
      %580 = vmatprep.mubr.bf16.mxu0 0
      %581 = vmatmul.mubr.bf16.gmra.mrb[0].mxu0 %v401
      %v582 = vpop.f32.mrb[0].mxu0
      %v583 = vadd.f32 0.0, %v582
      %v584 = vpop.f32.mrb[0].mxu0
      %v585 = vpop.f32.mrb[0].mxu0
      %v586 = vadd.f32 0.0, %v585
      %v587 = vpop.f32.mrb[0].mxu0
      %588 = vmatprep.mubr.bf16.mxu0 0
      %589 = vmatmul.mubr.bf16.gmra.mrb[0].mxu0 %v402
      %v590 = vpop.f32.mrb[0].mxu0
      %v591 = vadd.f32 0.0, %v590
      %v592 = vpop.f32.mrb[0].mxu0
      %v593 = vpop.f32.mrb[0].mxu0
      %v594 = vadd.f32 0.0, %v593
      %v595 = vpop.f32.mrb[0].mxu0
      %596 = vmatprep.mubr.bf16.mxu0 0
      %597 = vmatmul.mubr.bf16.gmra.mrb[0].mxu0 %v403
      %v598 = vpop.f32.mrb[0].mxu0
      %v599 = vadd.f32 0.0, %v598
      %v600 = vpop.f32.mrb[0].mxu0
      %v601 = vpop.f32.mrb[0].mxu0
      %v602 = vadd.f32 0.0, %v601
      %v603 = vpop.f32.mrb[0].mxu0
      %604 = vmatprep.mubr.bf16.mxu0 0
      %605 = vmatmul.mubr.bf16.gmra.mrb[0].mxu0 %v404
      %v606 = vpop.f32.mrb[0].mxu0
      %v607 = vadd.f32 0.0, %v606
      %v608 = vpop.f32.mrb[0].mxu0
      %v609 = vpop.f32.mrb[0].mxu0
      %v610 = vadd.f32 0.0, %v609
      %v611 = vpop.f32.mrb[0].mxu0
      %612 = vmatprep.mubr.bf16.mxu0 0
      %613 = vmatmul.mubr.bf16.gmra.mrb[0].mxu0 %v405
      %v614 = vpop.f32.mrb[0].mxu0
      %v615 = vadd.f32 0.0, %v614
      %v616 = vpop.f32.mrb[0].mxu0
      %v617 = vpop.f32.mrb[0].mxu0
      %v618 = vadd.f32 0.0, %v617
      %v619 = vpop.f32.mrb[0].mxu0
      %620 = vmatprep.mubr.bf16.mxu0 0
      %621 = vmatmul.mubr.bf16.gmra.mrb[0].mxu0 %v406
      %v622 = vpop.f32.mrb[0].mxu0
      %v623 = vadd.f32 0.0, %v622
      %v624 = vpop.f32.mrb[0].mxu0
      %v625 = vpop.f32.mrb[0].mxu0
      %v626 = vadd.f32 0.0, %v625
      %v627 = vpop.f32.mrb[0].mxu0
      %628 = vmatprep.mubr.bf16.mxu0 0
      %629 = vmatmul.mubr.bf16.gmra.mrb[0].mxu0 %v407
      %v630 = vpop.f32.mrb[0].mxu0
      %v631 = vadd.f32 0.0, %v630
      %v632 = vpop.f32.mrb[0].mxu0
      %v633 = vpop.f32.mrb[0].mxu0
      %v634 = vadd.f32 0.0, %v633
      %v635 = vpop.f32.mrb[0].mxu0
      %636 = vmatprep.mubr.bf16.mxu0 0
      %637 = vmatmul.mubr.bf16.gmra.mrb[0].mxu0 %v408
      %v638 = vpop.f32.mrb[0].mxu0
      %v639 = vadd.f32 0.0, %v638
      %v640 = vpop.f32.mrb[0].mxu0
      %v641 = vpop.f32.mrb[0].mxu0
      %v642 = vadd.f32 0.0, %v641
      %v643 = vpop.f32.mrb[0].mxu0
      %644 = vmatprep.mubr.bf16.mxu0 0
      %645 = vmatmul.mubr.bf16.gmra.mrb[0].mxu0 %v409
      %v646 = vpop.f32.mrb[0].mxu0
      %v647 = vadd.f32 0.0, %v646
      %v648 = vpop.f32.mrb[0].mxu0
      %v649 = vpop.f32.mrb[0].mxu0
      %v650 = vadd.f32 0.0, %v649
      %v651 = vpop.f32.mrb[0].mxu0
      %652 = vmatprep.mubr.bf16.mxu0 0
      %653 = vmatmul.mubr.bf16.gmra.mrb[0].mxu0 %v410
      %v654 = vpop.f32.mrb[0].mxu0
      %v655 = vadd.f32 0.0, %v654
      %v656 = vpop.f32.mrb[0].mxu0
      %v657 = vpop.f32.mrb[0].mxu0
      %v658 = vadd.f32 0.0, %v657
      %v659 = vpop.f32.mrb[0].mxu0
      %660 = vmatprep.mubr.bf16.mxu0 0
      %661 = vmatmul.mubr.bf16.gmra.mrb[0].mxu0 %v411
      %v662 = vpop.f32.mrb[0].mxu0
      %v663 = vpop.f32.mrb[0].mxu0
      %v664 = vpop.f32.mrb[0].mxu0
      %v665 = vpop.f32.mrb[0].mxu0
      %666 = vdwg.mxu0
      %s667 = scalar_lea.vmem %s246, 16
      %v668 = vld [vmem:[%s667 + $0x1] sm:$0xff]
      %v669 = vld [vmem:[%s667 + $0x9] sm:$0x7f]
      %v670 = vld [vmem:[%s667 + $0x11] sm:$0xff]
      %v671 = vld [vmem:[%s667 + $0x19] sm:$0x7f]
      %v672 = vld [vmem:[%s667 + $0x21] sm:$0xff]
      %v673 = vld [vmem:[%s667 + $0x29] sm:$0x7f]
      %v674 = vld [vmem:[%s667 + $0x31] sm:$0xff]
      %v675 = vld [vmem:[%s667 + $0x39] sm:$0x7f]
      %v676 = vld [vmem:[%s667 + $0x41] sm:$0xff]
      %v677 = vld [vmem:[%s667 + $0x49] sm:$0x7f]
      %v678 = vld [vmem:[%s667 + $0x51] sm:$0xff]
      %v679 = vld [vmem:[%s667 + $0x59] sm:$0x7f]
      %v680 = vld [vmem:[%s667 + $0x61] sm:$0xff]
      %v681 = vld [vmem:[%s667 + $0x69] sm:$0x7f]
      %v682 = vld [vmem:[%s667 + $0x71] sm:$0xff]
      %v683 = vld [vmem:[%s667 + $0x79] sm:$0x7f]
      %v684 = vld [vmem:[%s667 + $0x81] sm:$0xff]
      %v685 = vld [vmem:[%s667 + $0x89] sm:$0x7f]
      %v686 = vld [vmem:[%s667 + $0x91] sm:$0xff]
      %v687 = vld [vmem:[%s667 + $0x99] sm:$0x7f]
      %v688 = vld [vmem:[%s667 + $0xa1] sm:$0xff]
      %v689 = vld [vmem:[%s667 + $0xa9] sm:$0x7f]
      %v690 = vld [vmem:[%s667 + $0xb1] sm:$0xff]
      %v691 = vld [vmem:[%s667 + $0xb9] sm:$0x7f]
      %v692 = vld [vmem:[%s667 + $0xc1] sm:$0xff]
      %v693 = vld [vmem:[%s667 + $0xc9] sm:$0x7f]
      %v694 = vld [vmem:[%s667 + $0xd1] sm:$0xff]
      %v695 = vld [vmem:[%s667 + $0xd9] sm:$0x7f]
      %v696 = vld [vmem:[%s667 + $0xe1] sm:$0xff]
      %v697 = vld [vmem:[%s667 + $0xe9] sm:$0x7f]
      %v698 = vadd.f32 %v668, %v543
      %v699 = vadd.f32 %v669, %v546
      %v700 = vadd.f32 %v670, %v551
      %v701 = vadd.f32 %v671, %v554
      %v702 = vadd.f32 %v672, %v559
      %v703 = vadd.f32 %v673, %v562
      %v704 = vadd.f32 %v674, %v567
      %v705 = vadd.f32 %v675, %v570
      %v706 = vadd.f32 %v676, %v575
      %v707 = vadd.f32 %v677, %v578
      %v708 = vadd.f32 %v678, %v583
      %v709 = vadd.f32 %v679, %v586
      %v710 = vadd.f32 %v680, %v591
      %v711 = vadd.f32 %v681, %v594
      %v712 = vadd.f32 %v682, %v599
      %v713 = vadd.f32 %v683, %v602
      %v714 = vadd.f32 %v684, %v607
      %v715 = vadd.f32 %v685, %v610
      %v716 = vadd.f32 %v686, %v615
      %v717 = vadd.f32 %v687, %v618
      %v718 = vadd.f32 %v688, %v623
      %v719 = vadd.f32 %v689, %v626
      %v720 = vadd.f32 %v690, %v631
      %v721 = vadd.f32 %v691, %v634
      %v722 = vadd.f32 %v692, %v639
      %v723 = vadd.f32 %v693, %v642
      %v724 = vadd.f32 %v694, %v647
      %v725 = vadd.f32 %v695, %v650
      %v726 = vadd.f32 %v696, %v655
      %v727 = vadd.f32 %v697, %v658
      %728 = vst [vmem:[%s667 + $0x1] sm:$0xff] %v698
      %729 = vst [vmem:[%s667 + $0x9] sm:$0x7f] %v699
      %730 = vst [vmem:[%s667 + $0x11] sm:$0xff] %v700
      %731 = vst [vmem:[%s667 + $0x19] sm:$0x7f] %v701
      %732 = vst [vmem:[%s667 + $0x21] sm:$0xff] %v702
      %733 = vst [vmem:[%s667 + $0x29] sm:$0x7f] %v703
      %734 = vst [vmem:[%s667 + $0x31] sm:$0xff] %v704
      %735 = vst [vmem:[%s667 + $0x39] sm:$0x7f] %v705
      %736 = vst [vmem:[%s667 + $0x41] sm:$0xff] %v706
      %737 = vst [vmem:[%s667 + $0x49] sm:$0x7f] %v707
      %738 = vst [vmem:[%s667 + $0x51] sm:$0xff] %v708
      %739 = vst [vmem:[%s667 + $0x59] sm:$0x7f] %v709
      %740 = vst [vmem:[%s667 + $0x61] sm:$0xff] %v710
      %741 = vst [vmem:[%s667 + $0x69] sm:$0x7f] %v711
      %742 = vst [vmem:[%s667 + $0x71] sm:$0xff] %v712
      %743 = vst [vmem:[%s667 + $0x79] sm:$0x7f] %v713
      %744 = vst [vmem:[%s667 + $0x81] sm:$0xff] %v714
      %745 = vst [vmem:[%s667 + $0x89] sm:$0x7f] %v715
      %746 = vst [vmem:[%s667 + $0x91] sm:$0xff] %v716
      %747 = vst [vmem:[%s667 + $0x99] sm:$0x7f] %v717
      %748 = vst [vmem:[%s667 + $0xa1] sm:$0xff] %v718
      %749 = vst [vmem:[%s667 + $0xa9] sm:$0x7f] %v719
      %750 = vst [vmem:[%s667 + $0xb1] sm:$0xff] %v720
      %751 = vst [vmem:[%s667 + $0xb9] sm:$0x7f] %v721
      %752 = vst [vmem:[%s667 + $0xc1] sm:$0xff] %v722
      %753 = vst [vmem:[%s667 + $0xc9] sm:$0x7f] %v723
      %754 = vst [vmem:[%s667 + $0xd1] sm:$0xff] %v724
      %755 = vst [vmem:[%s667 + $0xd9] sm:$0x7f] %v725
      %756 = vst [vmem:[%s667 + $0xe1] sm:$0xff] %v726
      %757 = vst [vmem:[%s667 + $0xe9] sm:$0x7f] %v727
      %s758 = scalar_lea.vmem %s3, 64
      %v759 = vld [vmem:[%s758] sm:$0xf]
      %v760 = vld [vmem:[%s758 + $0x4] sm:$0xf]
      %v761 = vld [vmem:[%s758 + $0x8] sm:$0xf]
      %v762 = vld [vmem:[%s758 + $0xc] sm:$0xf]
      %v763 = vld [vmem:[%s758 + $0x10] sm:$0xf]
      %v764 = vld [vmem:[%s758 + $0x14] sm:$0xf]
      %v765 = vld [vmem:[%s758 + $0x18] sm:$0xf]
      %v766 = vld [vmem:[%s758 + $0x1c] sm:$0xf]
      %v767 = vld [vmem:[%s758 + $0x20] sm:$0xf]
      %v768 = vld [vmem:[%s758 + $0x24] sm:$0xf]
      %v769 = vld [vmem:[%s758 + $0x28] sm:$0xf]
      %v770 = vld [vmem:[%s758 + $0x2c] sm:$0xf]
      %v771 = vld [vmem:[%s758 + $0x30] sm:$0xf]
      %v772 = vld [vmem:[%s758 + $0x34] sm:$0xf]
      %v773 = vld [vmem:[%s758 + $0x38] sm:$0xf]
      %v774 = vld [vmem:[%s758 + $0x3c] sm:$0xf]
      %v791 = vunpack.c.l.b16 %v759
      %v792 = vunpack.c.l.b16 %v760
      %v793 = vunpack.c.l.b16 %v761
      %v794 = vunpack.c.l.b16 %v762
      %v795 = vunpack.c.l.b16 %v763
      %v796 = vunpack.c.l.b16 %v764
      %v797 = vunpack.c.l.b16 %v765
      %v798 = vunpack.c.l.b16 %v766
      %v799 = vunpack.c.l.b16 %v767
      %v800 = vunpack.c.l.b16 %v768
      %v801 = vunpack.c.l.b16 %v769
      %v802 = vunpack.c.l.b16 %v770
      %v803 = vunpack.c.l.b16 %v771
      %v804 = vunpack.c.l.b16 %v772
      %v805 = vunpack.c.l.b16 %v773
      %v806 = vunpack.c.l.b16 %v774
      %v807 = vpack.c.b16 %v792, %v791
      %v808 = vpack.c.b16 %v794, %v793
      %v809 = vpack.c.b16 %v796, %v795
      %v810 = vpack.c.b16 %v798, %v797
      %v811 = vpack.c.b16 %v800, %v799
      %v812 = vpack.c.b16 %v802, %v801
      %v813 = vpack.c.b16 %v804, %v803
      %v814 = vpack.c.b16 %v806, %v805
      %823 = vmatprep.subr.bf16.mxu0 0
      %824 = vmatpush1.bf16.msra.mxu0 %v807
      %825 = vmatprep.subr.bf16.mxu0 0
      %826 = vmatpush1.bf16.msra.mxu0 %v808
      %827 = vmatprep.subr.bf16.mxu0 0
      %828 = vmatpush1.bf16.msra.mxu0 %v809
      %829 = vmatprep.subr.bf16.mxu0 0
      %830 = vmatpush1.bf16.msra.mxu0 %v810
      %831 = vmatprep.subr.bf16.mxu0 0
      %832 = vmatpush1.bf16.msra.mxu0 %v811
      %833 = vmatprep.subr.bf16.mxu0 0
      %834 = vmatpush1.bf16.msra.mxu0 %v812
      %835 = vmatprep.subr.bf16.mxu0 0
      %836 = vmatpush1.bf16.msra.mxu0 %v813
      %837 = vmatprep.subr.bf16.mxu0 0
      %838 = vmatpush1.bf16.msra.mxu0 %v814
      %839 = vmatprep.subr.bf16.mxu0 0
      %840 = vmatpush1.bf16.msra.mxu0 0
      %841 = vmatprep.subr.bf16.mxu0 0
      %842 = vmatpush1.bf16.msra.mxu0 0
      %843 = vmatprep.subr.bf16.mxu0 0
      %844 = vmatpush1.bf16.msra.mxu0 0
      %845 = vmatprep.subr.bf16.mxu0 0
      %846 = vmatpush1.bf16.msra.mxu0 0
      %847 = vmatprep.subr.bf16.mxu0 0
      %848 = vmatpush1.bf16.msra.mxu0 0
      %849 = vmatprep.subr.bf16.mxu0 0
      %850 = vmatpush1.bf16.msra.mxu0 0
      %851 = vmatprep.subr.bf16.mxu0 0
      %852 = vmatpush1.bf16.msra.mxu0 0
      %853 = vmatprep.subr.bf16.mxu0 0
      %854 = vmatpush1.bf16.msra.mxu0 0
      %855 = vmatprep.mubr.bf16.mxu0 0
      %856 = vmatmul.mubr.bf16.gmra.mrb[0].mxu0 %v396
      %v857 = vpop.f32.mrb[0].mxu0
      %v858 = vadd.f32 0.0, %v857
      %v859 = vpop.f32.mrb[0].mxu0
      %v860 = vpop.f32.mrb[0].mxu0
      %v861 = vadd.f32 0.0, %v860
      %v862 = vpop.f32.mrb[0].mxu0
      %863 = vmatprep.mubr.bf16.mxu0 0
      %864 = vmatmul.mubr.bf16.gmra.mrb[0].mxu0 %v397
      %v865 = vpop.f32.mrb[0].mxu0
      %v866 = vadd.f32 0.0, %v865
      %v867 = vpop.f32.mrb[0].mxu0
      %v868 = vpop.f32.mrb[0].mxu0
      %v869 = vadd.f32 0.0, %v868
      %v870 = vpop.f32.mrb[0].mxu0
      %871 = vmatprep.mubr.bf16.mxu0 0
      %872 = vmatmul.mubr.bf16.gmra.mrb[0].mxu0 %v398
      %v873 = vpop.f32.mrb[0].mxu0
      %v874 = vadd.f32 0.0, %v873
      %v875 = vpop.f32.mrb[0].mxu0
      %v876 = vpop.f32.mrb[0].mxu0
      %v877 = vadd.f32 0.0, %v876
      %v878 = vpop.f32.mrb[0].mxu0
      %879 = vmatprep.mubr.bf16.mxu0 0
      %880 = vmatmul.mubr.bf16.gmra.mrb[0].mxu0 %v399
      %v881 = vpop.f32.mrb[0].mxu0
      %v882 = vadd.f32 0.0, %v881
      %v883 = vpop.f32.mrb[0].mxu0
      %v884 = vpop.f32.mrb[0].mxu0
      %v885 = vadd.f32 0.0, %v884
      %v886 = vpop.f32.mrb[0].mxu0
      %887 = vmatprep.mubr.bf16.mxu0 0
      %888 = vmatmul.mubr.bf16.gmra.mrb[0].mxu0 %v400
      %v889 = vpop.f32.mrb[0].mxu0
      %v890 = vadd.f32 0.0, %v889
      %v891 = vpop.f32.mrb[0].mxu0
      %v892 = vpop.f32.mrb[0].mxu0
      %v893 = vadd.f32 0.0, %v892
      %v894 = vpop.f32.mrb[0].mxu0
      %895 = vmatprep.mubr.bf16.mxu0 0
      %896 = vmatmul.mubr.bf16.gmra.mrb[0].mxu0 %v401
      %v897 = vpop.f32.mrb[0].mxu0
      %v898 = vadd.f32 0.0, %v897
      %v899 = vpop.f32.mrb[0].mxu0
      %v900 = vpop.f32.mrb[0].mxu0
      %v901 = vadd.f32 0.0, %v900
      %v902 = vpop.f32.mrb[0].mxu0
      %903 = vmatprep.mubr.bf16.mxu0 0
      %904 = vmatmul.mubr.bf16.gmra.mrb[0].mxu0 %v402
      %v905 = vpop.f32.mrb[0].mxu0
      %v906 = vadd.f32 0.0, %v905
      %v907 = vpop.f32.mrb[0].mxu0
      %v908 = vpop.f32.mrb[0].mxu0
      %v909 = vadd.f32 0.0, %v908
      %v910 = vpop.f32.mrb[0].mxu0
      %911 = vmatprep.mubr.bf16.mxu0 0
      %912 = vmatmul.mubr.bf16.gmra.mrb[0].mxu0 %v403
      %v913 = vpop.f32.mrb[0].mxu0
      %v914 = vadd.f32 0.0, %v913
      %v915 = vpop.f32.mrb[0].mxu0
      %v916 = vpop.f32.mrb[0].mxu0
      %v917 = vadd.f32 0.0, %v916
      %v918 = vpop.f32.mrb[0].mxu0
      %919 = vmatprep.mubr.bf16.mxu0 0
      %920 = vmatmul.mubr.bf16.gmra.mrb[0].mxu0 %v404
      %v921 = vpop.f32.mrb[0].mxu0
      %v922 = vadd.f32 0.0, %v921
      %v923 = vpop.f32.mrb[0].mxu0
      %v924 = vpop.f32.mrb[0].mxu0
      %v925 = vadd.f32 0.0, %v924
      %v926 = vpop.f32.mrb[0].mxu0
      %927 = vmatprep.mubr.bf16.mxu0 0
      %928 = vmatmul.mubr.bf16.gmra.mrb[0].mxu0 %v405
      %v929 = vpop.f32.mrb[0].mxu0
      %v930 = vadd.f32 0.0, %v929
      %v931 = vpop.f32.mrb[0].mxu0
      %v932 = vpop.f32.mrb[0].mxu0
      %v933 = vadd.f32 0.0, %v932
      %v934 = vpop.f32.mrb[0].mxu0
      %935 = vmatprep.mubr.bf16.mxu0 0
      %936 = vmatmul.mubr.bf16.gmra.mrb[0].mxu0 %v406
      %v937 = vpop.f32.mrb[0].mxu0
      %v938 = vadd.f32 0.0, %v937
      %v939 = vpop.f32.mrb[0].mxu0
      %v940 = vpop.f32.mrb[0].mxu0
      %v941 = vadd.f32 0.0, %v940
      %v942 = vpop.f32.mrb[0].mxu0
      %943 = vmatprep.mubr.bf16.mxu0 0
      %944 = vmatmul.mubr.bf16.gmra.mrb[0].mxu0 %v407
      %v945 = vpop.f32.mrb[0].mxu0
      %v946 = vadd.f32 0.0, %v945
      %v947 = vpop.f32.mrb[0].mxu0
      %v948 = vpop.f32.mrb[0].mxu0
      %v949 = vadd.f32 0.0, %v948
      %v950 = vpop.f32.mrb[0].mxu0
      %951 = vmatprep.mubr.bf16.mxu0 0
      %952 = vmatmul.mubr.bf16.gmra.mrb[0].mxu0 %v408
      %v953 = vpop.f32.mrb[0].mxu0
      %v954 = vadd.f32 0.0, %v953
      %v955 = vpop.f32.mrb[0].mxu0
      %v956 = vpop.f32.mrb[0].mxu0
      %v957 = vadd.f32 0.0, %v956
      %v958 = vpop.f32.mrb[0].mxu0
      %959 = vmatprep.mubr.bf16.mxu0 0
      %960 = vmatmul.mubr.bf16.gmra.mrb[0].mxu0 %v409
      %v961 = vpop.f32.mrb[0].mxu0
      %v962 = vadd.f32 0.0, %v961
      %v963 = vpop.f32.mrb[0].mxu0
      %v964 = vpop.f32.mrb[0].mxu0
      %v965 = vadd.f32 0.0, %v964
      %v966 = vpop.f32.mrb[0].mxu0
      %967 = vmatprep.mubr.bf16.mxu0 0
      %968 = vmatmul.mubr.bf16.gmra.mrb[0].mxu0 %v410
      %v969 = vpop.f32.mrb[0].mxu0
      %v970 = vadd.f32 0.0, %v969
      %v971 = vpop.f32.mrb[0].mxu0
      %v972 = vpop.f32.mrb[0].mxu0
      %v973 = vadd.f32 0.0, %v972
      %v974 = vpop.f32.mrb[0].mxu0
      %975 = vmatprep.mubr.bf16.mxu0 0
      %976 = vmatmul.mubr.bf16.gmra.mrb[0].mxu0 %v411
      %v977 = vpop.f32.mrb[0].mxu0
      %v978 = vpop.f32.mrb[0].mxu0
      %v979 = vpop.f32.mrb[0].mxu0
      %v980 = vpop.f32.mrb[0].mxu0
      %981 = vdwg.mxu0
      %v982 = vld [vmem:[%s667] sm:$0xff]
      %v983 = vld [vmem:[%s667 + $0x8] sm:$0xff]
      %v984 = vld [vmem:[%s667 + $0x10] sm:$0xff]
      %v985 = vld [vmem:[%s667 + $0x18] sm:$0xff]
      %v986 = vld [vmem:[%s667 + $0x20] sm:$0xff]
      %v987 = vld [vmem:[%s667 + $0x28] sm:$0xff]
      %v988 = vld [vmem:[%s667 + $0x30] sm:$0xff]
      %v989 = vld [vmem:[%s667 + $0x38] sm:$0xff]
      %v990 = vld [vmem:[%s667 + $0x40] sm:$0xff]
      %v991 = vld [vmem:[%s667 + $0x48] sm:$0xff]
      %v992 = vld [vmem:[%s667 + $0x50] sm:$0xff]
      %v993 = vld [vmem:[%s667 + $0x58] sm:$0xff]
      %v994 = vld [vmem:[%s667 + $0x60] sm:$0xff]
      %v995 = vld [vmem:[%s667 + $0x68] sm:$0xff]
      %v996 = vld [vmem:[%s667 + $0x70] sm:$0xff]
      %v997 = vld [vmem:[%s667 + $0x78] sm:$0xff]
      %v998 = vld [vmem:[%s667 + $0x80] sm:$0xff]
      %v999 = vld [vmem:[%s667 + $0x88] sm:$0xff]
      %v1000 = vld [vmem:[%s667 + $0x90] sm:$0xff]
      %v1001 = vld [vmem:[%s667 + $0x98] sm:$0xff]
      %v1002 = vld [vmem:[%s667 + $0xa0] sm:$0xff]
      %v1003 = vld [vmem:[%s667 + $0xa8] sm:$0xff]
      %v1004 = vld [vmem:[%s667 + $0xb0] sm:$0xff]
      %v1005 = vld [vmem:[%s667 + $0xb8] sm:$0xff]
      %v1006 = vld [vmem:[%s667 + $0xc0] sm:$0xff]
      %v1007 = vld [vmem:[%s667 + $0xc8] sm:$0xff]
      %v1008 = vld [vmem:[%s667 + $0xd0] sm:$0xff]
      %v1009 = vld [vmem:[%s667 + $0xd8] sm:$0xff]
      %v1010 = vld [vmem:[%s667 + $0xe0] sm:$0xff]
      %v1011 = vld [vmem:[%s667 + $0xe8] sm:$0xff]
      %v1012 = vadd.f32 %v982, %v858
      %v1013 = vadd.f32 %v983, %v861
      %v1014 = vadd.f32 %v984, %v866
      %v1015 = vadd.f32 %v985, %v869
      %v1016 = vadd.f32 %v986, %v874
      %v1017 = vadd.f32 %v987, %v877
      %v1018 = vadd.f32 %v988, %v882
      %v1019 = vadd.f32 %v989, %v885
      %v1020 = vadd.f32 %v990, %v890
      %v1021 = vadd.f32 %v991, %v893
      %v1022 = vadd.f32 %v992, %v898
      %v1023 = vadd.f32 %v993, %v901
      %v1024 = vadd.f32 %v994, %v906
      %v1025 = vadd.f32 %v995, %v909
      %v1026 = vadd.f32 %v996, %v914
      %v1027 = vadd.f32 %v997, %v917
      %v1028 = vadd.f32 %v998, %v922
      %v1029 = vadd.f32 %v999, %v925
      %v1030 = vadd.f32 %v1000, %v930
      %v1031 = vadd.f32 %v1001, %v933
      %v1032 = vadd.f32 %v1002, %v938
      %v1033 = vadd.f32 %v1003, %v941
      %v1034 = vadd.f32 %v1004, %v946
      %v1035 = vadd.f32 %v1005, %v949
      %v1036 = vadd.f32 %v1006, %v954
      %v1037 = vadd.f32 %v1007, %v957
      %v1038 = vadd.f32 %v1008, %v962
      %v1039 = vadd.f32 %v1009, %v965
      %v1040 = vadd.f32 %v1010, %v970
      %v1041 = vadd.f32 %v1011, %v973
      %1042 = vst [vmem:[%s667] sm:$0xff] %v1012
      %1043 = vst [vmem:[%s667 + $0x8] sm:$0xff] %v1013
      %1044 = vst [vmem:[%s667 + $0x10] sm:$0xff] %v1014
      %1045 = vst [vmem:[%s667 + $0x18] sm:$0xff] %v1015
      %1046 = vst [vmem:[%s667 + $0x20] sm:$0xff] %v1016
      %1047 = vst [vmem:[%s667 + $0x28] sm:$0xff] %v1017
      %1048 = vst [vmem:[%s667 + $0x30] sm:$0xff] %v1018
      %1049 = vst [vmem:[%s667 + $0x38] sm:$0xff] %v1019
      %1050 = vst [vmem:[%s667 + $0x40] sm:$0xff] %v1020
      %1051 = vst [vmem:[%s667 + $0x48] sm:$0xff] %v1021
      %1052 = vst [vmem:[%s667 + $0x50] sm:$0xff] %v1022
      %1053 = vst [vmem:[%s667 + $0x58] sm:$0xff] %v1023
      %1054 = vst [vmem:[%s667 + $0x60] sm:$0xff] %v1024
      %1055 = vst [vmem:[%s667 + $0x68] sm:$0xff] %v1025
      %1056 = vst [vmem:[%s667 + $0x70] sm:$0xff] %v1026
      %1057 = vst [vmem:[%s667 + $0x78] sm:$0xff] %v1027
      %1058 = vst [vmem:[%s667 + $0x80] sm:$0xff] %v1028
      %1059 = vst [vmem:[%s667 + $0x88] sm:$0xff] %v1029
      %1060 = vst [vmem:[%s667 + $0x90] sm:$0xff] %v1030
      %1061 = vst [vmem:[%s667 + $0x98] sm:$0xff] %v1031
      %1062 = vst [vmem:[%s667 + $0xa0] sm:$0xff] %v1032
      %1063 = vst [vmem:[%s667 + $0xa8] sm:$0xff] %v1033
      %1064 = vst [vmem:[%s667 + $0xb0] sm:$0xff] %v1034
      %1065 = vst [vmem:[%s667 + $0xb8] sm:$0xff] %v1035
      %1066 = vst [vmem:[%s667 + $0xc0] sm:$0xff] %v1036
      %1067 = vst [vmem:[%s667 + $0xc8] sm:$0xff] %v1037
      %1068 = vst [vmem:[%s667 + $0xd0] sm:$0xff] %v1038
      %1069 = vst [vmem:[%s667 + $0xd8] sm:$0xff] %v1039
      %1070 = vst [vmem:[%s667 + $0xe0] sm:$0xff] %v1040
      %1071 = vst [vmem:[%s667 + $0xe8] sm:$0xff] %v1041
      %s1072 = scalar_lea.vmem %s3, 128
      %v1073 = vld [vmem:[%s1072] sm:$0xf]
      %v1074 = vld [vmem:[%s1072 + $0x4] sm:$0xf]
      %v1075 = vld [vmem:[%s1072 + $0x8] sm:$0xf]
      %v1076 = vld [vmem:[%s1072 + $0xc] sm:$0xf]
      %v1077 = vld [vmem:[%s1072 + $0x10] sm:$0xf]
      %v1078 = vld [vmem:[%s1072 + $0x14] sm:$0xf]
      %v1079 = vld [vmem:[%s1072 + $0x18] sm:$0xf]
      %v1080 = vld [vmem:[%s1072 + $0x1c] sm:$0xf]
      %v1081 = vld [vmem:[%s1072 + $0x20] sm:$0xf]
      %v1082 = vld [vmem:[%s1072 + $0x24] sm:$0xf]
      %v1083 = vld [vmem:[%s1072 + $0x28] sm:$0xf]
      %v1084 = vld [vmem:[%s1072 + $0x2c] sm:$0xf]
      %v1085 = vld [vmem:[%s1072 + $0x30] sm:$0xf]
      %v1086 = vld [vmem:[%s1072 + $0x34] sm:$0xf]
      %v1087 = vld [vmem:[%s1072 + $0x38] sm:$0xf]
      %v1088 = vld [vmem:[%s1072 + $0x3c] sm:$0xf]
      %v1105 = vunpack.c.l.b16 %v1073
      %v1106 = vunpack.c.l.b16 %v1074
      %v1107 = vunpack.c.l.b16 %v1075
      %v1108 = vunpack.c.l.b16 %v1076
      %v1109 = vunpack.c.l.b16 %v1077
      %v1110 = vunpack.c.l.b16 %v1078
      %v1111 = vunpack.c.l.b16 %v1079
      %v1112 = vunpack.c.l.b16 %v1080
      %v1113 = vunpack.c.l.b16 %v1081
      %v1114 = vunpack.c.l.b16 %v1082
      %v1115 = vunpack.c.l.b16 %v1083
      %v1116 = vunpack.c.l.b16 %v1084
      %v1117 = vunpack.c.l.b16 %v1085
      %v1118 = vunpack.c.l.b16 %v1086
      %v1119 = vunpack.c.l.b16 %v1087
      %v1120 = vunpack.c.l.b16 %v1088
      %v1121 = vpack.c.b16 %v1106, %v1105
      %v1122 = vpack.c.b16 %v1108, %v1107
      %v1123 = vpack.c.b16 %v1110, %v1109
      %v1124 = vpack.c.b16 %v1112, %v1111
      %v1125 = vpack.c.b16 %v1114, %v1113
      %v1126 = vpack.c.b16 %v1116, %v1115
      %v1127 = vpack.c.b16 %v1118, %v1117
      %v1128 = vpack.c.b16 %v1120, %v1119
      %1137 = vmatprep.subr.bf16.mxu0 0
      %1138 = vmatpush1.bf16.msra.mxu0 %v1121
      %1139 = vmatprep.subr.bf16.mxu0 0
      %1140 = vmatpush1.bf16.msra.mxu0 %v1122
      %1141 = vmatprep.subr.bf16.mxu0 0
      %1142 = vmatpush1.bf16.msra.mxu0 %v1123
      %1143 = vmatprep.subr.bf16.mxu0 0
      %1144 = vmatpush1.bf16.msra.mxu0 %v1124
      %1145 = vmatprep.subr.bf16.mxu0 0
      %1146 = vmatpush1.bf16.msra.mxu0 %v1125
      %1147 = vmatprep.subr.bf16.mxu0 0
      %1148 = vmatpush1.bf16.msra.mxu0 %v1126
      %1149 = vmatprep.subr.bf16.mxu0 0
      %1150 = vmatpush1.bf16.msra.mxu0 %v1127
      %1151 = vmatprep.subr.bf16.mxu0 0
      %1152 = vmatpush1.bf16.msra.mxu0 %v1128
      %1153 = vmatprep.subr.bf16.mxu0 0
      %1154 = vmatpush1.bf16.msra.mxu0 0
      %1155 = vmatprep.subr.bf16.mxu0 0
      %1156 = vmatpush1.bf16.msra.mxu0 0
      %1157 = vmatprep.subr.bf16.mxu0 0
      %1158 = vmatpush1.bf16.msra.mxu0 0
      %1159 = vmatprep.subr.bf16.mxu0 0
      %1160 = vmatpush1.bf16.msra.mxu0 0
      %1161 = vmatprep.subr.bf16.mxu0 0
      %1162 = vmatpush1.bf16.msra.mxu0 0
      %1163 = vmatprep.subr.bf16.mxu0 0
      %1164 = vmatpush1.bf16.msra.mxu0 0
      %1165 = vmatprep.subr.bf16.mxu0 0
      %1166 = vmatpush1.bf16.msra.mxu0 0
      %1167 = vmatprep.subr.bf16.mxu0 0
      %1168 = vmatpush1.bf16.msra.mxu0 0
      %1169 = vmatprep.mubr.bf16.mxu0 0
      %1170 = vmatmul.mubr.bf16.gmra.mrb[0].mxu0 %v396
      %v1171 = vpop.f32.mrb[0].mxu0
      %v1172 = vadd.f32 0.0, %v1171
      %v1173 = vpop.f32.mrb[0].mxu0
      %v1174 = vpop.f32.mrb[0].mxu0
      %v1175 = vadd.f32 0.0, %v1174
      %v1176 = vpop.f32.mrb[0].mxu0
      %1177 = vmatprep.mubr.bf16.mxu0 0
      %1178 = vmatmul.mubr.bf16.gmra.mrb[0].mxu0 %v397
      %v1179 = vpop.f32.mrb[0].mxu0
      %v1180 = vadd.f32 0.0, %v1179
      %v1181 = vpop.f32.mrb[0].mxu0
      %v1182 = vpop.f32.mrb[0].mxu0
      %v1183 = vadd.f32 0.0, %v1182
      %v1184 = vpop.f32.mrb[0].mxu0
      %1185 = vmatprep.mubr.bf16.mxu0 0
      %1186 = vmatmul.mubr.bf16.gmra.mrb[0].mxu0 %v398
      %v1187 = vpop.f32.mrb[0].mxu0
      %v1188 = vadd.f32 0.0, %v1187
      %v1189 = vpop.f32.mrb[0].mxu0
      %v1190 = vpop.f32.mrb[0].mxu0
      %v1191 = vadd.f32 0.0, %v1190
      %v1192 = vpop.f32.mrb[0].mxu0
      %1193 = vmatprep.mubr.bf16.mxu0 0
      %1194 = vmatmul.mubr.bf16.gmra.mrb[0].mxu0 %v399
      %v1195 = vpop.f32.mrb[0].mxu0
      %v1196 = vadd.f32 0.0, %v1195
      %v1197 = vpop.f32.mrb[0].mxu0
      %v1198 = vpop.f32.mrb[0].mxu0
      %v1199 = vadd.f32 0.0, %v1198
      %v1200 = vpop.f32.mrb[0].mxu0
      %1201 = vmatprep.mubr.bf16.mxu0 0
      %1202 = vmatmul.mubr.bf16.gmra.mrb[0].mxu0 %v400
      %v1203 = vpop.f32.mrb[0].mxu0
      %v1204 = vadd.f32 0.0, %v1203
      %v1205 = vpop.f32.mrb[0].mxu0
      %v1206 = vpop.f32.mrb[0].mxu0
      %v1207 = vadd.f32 0.0, %v1206
      %v1208 = vpop.f32.mrb[0].mxu0
      %1209 = vmatprep.mubr.bf16.mxu0 0
      %1210 = vmatmul.mubr.bf16.gmra.mrb[0].mxu0 %v401
      %v1211 = vpop.f32.mrb[0].mxu0
      %v1212 = vadd.f32 0.0, %v1211
      %v1213 = vpop.f32.mrb[0].mxu0
      %v1214 = vpop.f32.mrb[0].mxu0
      %v1215 = vadd.f32 0.0, %v1214
      %v1216 = vpop.f32.mrb[0].mxu0
      %1217 = vmatprep.mubr.bf16.mxu0 0
      %1218 = vmatmul.mubr.bf16.gmra.mrb[0].mxu0 %v402
      %v1219 = vpop.f32.mrb[0].mxu0
      %v1220 = vadd.f32 0.0, %v1219
      %v1221 = vpop.f32.mrb[0].mxu0
      %v1222 = vpop.f32.mrb[0].mxu0
      %v1223 = vadd.f32 0.0, %v1222
      %v1224 = vpop.f32.mrb[0].mxu0
      %1225 = vmatprep.mubr.bf16.mxu0 0
      %1226 = vmatmul.mubr.bf16.gmra.mrb[0].mxu0 %v403
      %v1227 = vpop.f32.mrb[0].mxu0
      %v1228 = vadd.f32 0.0, %v1227
      %v1229 = vpop.f32.mrb[0].mxu0
      %v1230 = vpop.f32.mrb[0].mxu0
      %v1231 = vadd.f32 0.0, %v1230
      %v1232 = vpop.f32.mrb[0].mxu0
      %1233 = vmatprep.mubr.bf16.mxu0 0
      %1234 = vmatmul.mubr.bf16.gmra.mrb[0].mxu0 %v404
      %v1235 = vpop.f32.mrb[0].mxu0
      %v1236 = vadd.f32 0.0, %v1235
      %v1237 = vpop.f32.mrb[0].mxu0
      %v1238 = vpop.f32.mrb[0].mxu0
      %v1239 = vadd.f32 0.0, %v1238
      %v1240 = vpop.f32.mrb[0].mxu0
      %1241 = vmatprep.mubr.bf16.mxu0 0
      %1242 = vmatmul.mubr.bf16.gmra.mrb[0].mxu0 %v405
      %v1243 = vpop.f32.mrb[0].mxu0
      %v1244 = vadd.f32 0.0, %v1243
      %v1245 = vpop.f32.mrb[0].mxu0
      %v1246 = vpop.f32.mrb[0].mxu0
      %v1247 = vadd.f32 0.0, %v1246
      %v1248 = vpop.f32.mrb[0].mxu0
      %1249 = vmatprep.mubr.bf16.mxu0 0
      %1250 = vmatmul.mubr.bf16.gmra.mrb[0].mxu0 %v406
      %v1251 = vpop.f32.mrb[0].mxu0
      %v1252 = vadd.f32 0.0, %v1251
      %v1253 = vpop.f32.mrb[0].mxu0
      %v1254 = vpop.f32.mrb[0].mxu0
      %v1255 = vadd.f32 0.0, %v1254
      %v1256 = vpop.f32.mrb[0].mxu0
      %1257 = vmatprep.mubr.bf16.mxu0 0
      %1258 = vmatmul.mubr.bf16.gmra.mrb[0].mxu0 %v407
      %v1259 = vpop.f32.mrb[0].mxu0
      %v1260 = vadd.f32 0.0, %v1259
      %v1261 = vpop.f32.mrb[0].mxu0
      %v1262 = vpop.f32.mrb[0].mxu0
      %v1263 = vadd.f32 0.0, %v1262
      %v1264 = vpop.f32.mrb[0].mxu0
      %1265 = vmatprep.mubr.bf16.mxu0 0
      %1266 = vmatmul.mubr.bf16.gmra.mrb[0].mxu0 %v408
      %v1267 = vpop.f32.mrb[0].mxu0
      %v1268 = vadd.f32 0.0, %v1267
      %v1269 = vpop.f32.mrb[0].mxu0
      %v1270 = vpop.f32.mrb[0].mxu0
      %v1271 = vadd.f32 0.0, %v1270
      %v1272 = vpop.f32.mrb[0].mxu0
      %1273 = vmatprep.mubr.bf16.mxu0 0
      %1274 = vmatmul.mubr.bf16.gmra.mrb[0].mxu0 %v409
      %v1275 = vpop.f32.mrb[0].mxu0
      %v1276 = vadd.f32 0.0, %v1275
      %v1277 = vpop.f32.mrb[0].mxu0
      %v1278 = vpop.f32.mrb[0].mxu0
      %v1279 = vadd.f32 0.0, %v1278
      %v1280 = vpop.f32.mrb[0].mxu0
      %1281 = vmatprep.mubr.bf16.mxu0 0
      %1282 = vmatmul.mubr.bf16.gmra.mrb[0].mxu0 %v410
      %v1283 = vpop.f32.mrb[0].mxu0
      %v1284 = vadd.f32 0.0, %v1283
      %v1285 = vpop.f32.mrb[0].mxu0
      %v1286 = vpop.f32.mrb[0].mxu0
      %v1287 = vadd.f32 0.0, %v1286
      %v1288 = vpop.f32.mrb[0].mxu0
      %1289 = vmatprep.mubr.bf16.mxu0 0
      %1290 = vmatmul.mubr.bf16.gmra.mrb[0].mxu0 %v411
      %v1291 = vpop.f32.mrb[0].mxu0
      %v1292 = vpop.f32.mrb[0].mxu0
      %v1293 = vpop.f32.mrb[0].mxu0
      %v1294 = vpop.f32.mrb[0].mxu0
      %1295 = vdwg.mxu0
      %v1296 = vld [vmem:[%s667] sm:$0xff]
      %v1297 = vld [vmem:[%s667 + $0x8] sm:$0x7f]
      %v1298 = vld [vmem:[%s667 + $0x10] sm:$0xff]
      %v1299 = vld [vmem:[%s667 + $0x18] sm:$0x7f]
      %v1300 = vld [vmem:[%s667 + $0x20] sm:$0xff]
      %v1301 = vld [vmem:[%s667 + $0x28] sm:$0x7f]
      %v1302 = vld [vmem:[%s667 + $0x30] sm:$0xff]
      %v1303 = vld [vmem:[%s667 + $0x38] sm:$0x7f]
      %v1304 = vld [vmem:[%s667 + $0x40] sm:$0xff]
      %v1305 = vld [vmem:[%s667 + $0x48] sm:$0x7f]
      %v1306 = vld [vmem:[%s667 + $0x50] sm:$0xff]
      %v1307 = vld [vmem:[%s667 + $0x58] sm:$0x7f]
      %v1308 = vld [vmem:[%s667 + $0x60] sm:$0xff]
      %v1309 = vld [vmem:[%s667 + $0x68] sm:$0x7f]
      %v1310 = vld [vmem:[%s667 + $0x70] sm:$0xff]
      %v1311 = vld [vmem:[%s667 + $0x78] sm:$0x7f]
      %v1312 = vld [vmem:[%s667 + $0x80] sm:$0xff]
      %v1313 = vld [vmem:[%s667 + $0x88] sm:$0x7f]
      %v1314 = vld [vmem:[%s667 + $0x90] sm:$0xff]
      %v1315 = vld [vmem:[%s667 + $0x98] sm:$0x7f]
      %v1316 = vld [vmem:[%s667 + $0xa0] sm:$0xff]
      %v1317 = vld [vmem:[%s667 + $0xa8] sm:$0x7f]
      %v1318 = vld [vmem:[%s667 + $0xb0] sm:$0xff]
      %v1319 = vld [vmem:[%s667 + $0xb8] sm:$0x7f]
      %v1320 = vld [vmem:[%s667 + $0xc0] sm:$0xff]
      %v1321 = vld [vmem:[%s667 + $0xc8] sm:$0x7f]
      %v1322 = vld [vmem:[%s667 + $0xd0] sm:$0xff]
      %v1323 = vld [vmem:[%s667 + $0xd8] sm:$0x7f]
      %v1324 = vld [vmem:[%s667 + $0xe0] sm:$0xff]
      %v1325 = vld [vmem:[%s667 + $0xe8] sm:$0x7f]
      %vm1356 = vcmask 1046528
      %v1357 = vrot.slane %v1172, 1
      %v1358 = vrot.slane %v1175, 1
      %v1359 = vsel %vm1356, %v1357, %v1358
      %v1360 = vrot.slane %v1180, 1
      %v1361 = vrot.slane %v1183, 1
      %v1362 = vsel %vm1356, %v1360, %v1361
      %v1363 = vrot.slane %v1188, 1
      %v1364 = vrot.slane %v1191, 1
      %v1365 = vsel %vm1356, %v1363, %v1364
      %v1366 = vrot.slane %v1196, 1
      %v1367 = vrot.slane %v1199, 1
      %v1368 = vsel %vm1356, %v1366, %v1367
      %v1369 = vrot.slane %v1204, 1
      %v1370 = vrot.slane %v1207, 1
      %v1371 = vsel %vm1356, %v1369, %v1370
      %v1372 = vrot.slane %v1212, 1
      %v1373 = vrot.slane %v1215, 1
      %v1374 = vsel %vm1356, %v1372, %v1373
      %v1375 = vrot.slane %v1220, 1
      %v1376 = vrot.slane %v1223, 1
      %v1377 = vsel %vm1356, %v1375, %v1376
      %v1378 = vrot.slane %v1228, 1
      %v1379 = vrot.slane %v1231, 1
      %v1380 = vsel %vm1356, %v1378, %v1379
      %v1381 = vrot.slane %v1236, 1
      %v1382 = vrot.slane %v1239, 1
      %v1383 = vsel %vm1356, %v1381, %v1382
      %v1384 = vrot.slane %v1244, 1
      %v1385 = vrot.slane %v1247, 1
      %v1386 = vsel %vm1356, %v1384, %v1385
      %v1387 = vrot.slane %v1252, 1
      %v1388 = vrot.slane %v1255, 1
      %v1389 = vsel %vm1356, %v1387, %v1388
      %v1390 = vrot.slane %v1260, 1
      %v1391 = vrot.slane %v1263, 1
      %v1392 = vsel %vm1356, %v1390, %v1391
      %v1393 = vrot.slane %v1268, 1
      %v1394 = vrot.slane %v1271, 1
      %v1395 = vsel %vm1356, %v1393, %v1394
      %v1396 = vrot.slane %v1276, 1
      %v1397 = vrot.slane %v1279, 1
      %v1398 = vsel %vm1356, %v1396, %v1397
      %v1399 = vrot.slane %v1284, 1
      %v1400 = vrot.slane %v1287, 1
      %v1401 = vsel %vm1356, %v1399, %v1400
      %v1432 = vadd.f32 %v1296, %v1359
      %v1433 = vadd.f32 %v1297, %v1358
      %v1434 = vadd.f32 %v1298, %v1362
      %v1435 = vadd.f32 %v1299, %v1361
      %v1436 = vadd.f32 %v1300, %v1365
      %v1437 = vadd.f32 %v1301, %v1364
      %v1438 = vadd.f32 %v1302, %v1368
      %v1439 = vadd.f32 %v1303, %v1367
      %v1440 = vadd.f32 %v1304, %v1371
      %v1441 = vadd.f32 %v1305, %v1370
      %v1442 = vadd.f32 %v1306, %v1374
      %v1443 = vadd.f32 %v1307, %v1373
      %v1444 = vadd.f32 %v1308, %v1377
      %v1445 = vadd.f32 %v1309, %v1376
      %v1446 = vadd.f32 %v1310, %v1380
      %v1447 = vadd.f32 %v1311, %v1379
      %v1448 = vadd.f32 %v1312, %v1383
      %v1449 = vadd.f32 %v1313, %v1382
      %v1450 = vadd.f32 %v1314, %v1386
      %v1451 = vadd.f32 %v1315, %v1385
      %v1452 = vadd.f32 %v1316, %v1389
      %v1453 = vadd.f32 %v1317, %v1388
      %v1454 = vadd.f32 %v1318, %v1392
      %v1455 = vadd.f32 %v1319, %v1391
      %v1456 = vadd.f32 %v1320, %v1395
      %v1457 = vadd.f32 %v1321, %v1394
      %v1458 = vadd.f32 %v1322, %v1398
      %v1459 = vadd.f32 %v1323, %v1397
      %v1460 = vadd.f32 %v1324, %v1401
      %v1461 = vadd.f32 %v1325, %v1400
      %1462 = vst [vmem:[%s667] sm:$0xff] %v1432
      %1463 = vst [vmem:[%s667 + $0x8] sm:$0x7f] %v1433
      %1464 = vst [vmem:[%s667 + $0x10] sm:$0xff] %v1434
      %1465 = vst [vmem:[%s667 + $0x18] sm:$0x7f] %v1435
      %1466 = vst [vmem:[%s667 + $0x20] sm:$0xff] %v1436
      %1467 = vst [vmem:[%s667 + $0x28] sm:$0x7f] %v1437
      %1468 = vst [vmem:[%s667 + $0x30] sm:$0xff] %v1438
      %1469 = vst [vmem:[%s667 + $0x38] sm:$0x7f] %v1439
      %1470 = vst [vmem:[%s667 + $0x40] sm:$0xff] %v1440
      %1471 = vst [vmem:[%s667 + $0x48] sm:$0x7f] %v1441
      %1472 = vst [vmem:[%s667 + $0x50] sm:$0xff] %v1442
      %1473 = vst [vmem:[%s667 + $0x58] sm:$0x7f] %v1443
      %1474 = vst [vmem:[%s667 + $0x60] sm:$0xff] %v1444
      %1475 = vst [vmem:[%s667 + $0x68] sm:$0x7f] %v1445
      %1476 = vst [vmem:[%s667 + $0x70] sm:$0xff] %v1446
      %1477 = vst [vmem:[%s667 + $0x78] sm:$0x7f] %v1447
      %1478 = vst [vmem:[%s667 + $0x80] sm:$0xff] %v1448
      %1479 = vst [vmem:[%s667 + $0x88] sm:$0x7f] %v1449
      %1480 = vst [vmem:[%s667 + $0x90] sm:$0xff] %v1450
      %1481 = vst [vmem:[%s667 + $0x98] sm:$0x7f] %v1451
      %1482 = vst [vmem:[%s667 + $0xa0] sm:$0xff] %v1452
      %1483 = vst [vmem:[%s667 + $0xa8] sm:$0x7f] %v1453
      %1484 = vst [vmem:[%s667 + $0xb0] sm:$0xff] %v1454
      %1485 = vst [vmem:[%s667 + $0xb8] sm:$0x7f] %v1455
      %1486 = vst [vmem:[%s667 + $0xc0] sm:$0xff] %v1456
      %1487 = vst [vmem:[%s667 + $0xc8] sm:$0x7f] %v1457
      %1488 = vst [vmem:[%s667 + $0xd0] sm:$0xff] %v1458
      %1489 = vst [vmem:[%s667 + $0xd8] sm:$0x7f] %v1459
      %1490 = vst [vmem:[%s667 + $0xe0] sm:$0xff] %v1460
      %1491 = vst [vmem:[%s667 + $0xe8] sm:$0x7f] %v1461
      %s1492 = scalar_lea.vmem %s3, 192
      %v1493 = vld [vmem:[%s1492] sm:$0xf]
      %v1494 = vld [vmem:[%s1492 + $0x4] sm:$0xf]
      %v1495 = vld [vmem:[%s1492 + $0x8] sm:$0xf]
      %v1496 = vld [vmem:[%s1492 + $0xc] sm:$0xf]
      %v1497 = vld [vmem:[%s1492 + $0x10] sm:$0xf]
      %v1498 = vld [vmem:[%s1492 + $0x14] sm:$0xf]
      %v1499 = vld [vmem:[%s1492 + $0x18] sm:$0xf]
      %v1500 = vld [vmem:[%s1492 + $0x1c] sm:$0xf]
      %v1501 = vld [vmem:[%s1492 + $0x20] sm:$0xf]
      %v1502 = vld [vmem:[%s1492 + $0x24] sm:$0xf]
      %v1503 = vld [vmem:[%s1492 + $0x28] sm:$0xf]
      %v1504 = vld [vmem:[%s1492 + $0x2c] sm:$0xf]
      %v1505 = vld [vmem:[%s1492 + $0x30] sm:$0xf]
      %v1506 = vld [vmem:[%s1492 + $0x34] sm:$0xf]
      %v1507 = vld [vmem:[%s1492 + $0x38] sm:$0xf]
      %v1508 = vld [vmem:[%s1492 + $0x3c] sm:$0xf]
      %v1525 = vunpack.c.l.b16 %v1493
      %v1526 = vunpack.c.l.b16 %v1494
      %v1527 = vunpack.c.l.b16 %v1495
      %v1528 = vunpack.c.l.b16 %v1496
      %v1529 = vunpack.c.l.b16 %v1497
      %v1530 = vunpack.c.l.b16 %v1498
      %v1531 = vunpack.c.l.b16 %v1499
      %v1532 = vunpack.c.l.b16 %v1500
      %v1533 = vunpack.c.l.b16 %v1501
      %v1534 = vunpack.c.l.b16 %v1502
      %v1535 = vunpack.c.l.b16 %v1503
      %v1536 = vunpack.c.l.b16 %v1504
      %v1537 = vunpack.c.l.b16 %v1505
      %v1538 = vunpack.c.l.b16 %v1506
      %v1539 = vunpack.c.l.b16 %v1507
      %v1540 = vunpack.c.l.b16 %v1508
      %v1541 = vpack.c.b16 %v1526, %v1525
      %v1542 = vpack.c.b16 %v1528, %v1527
      %v1543 = vpack.c.b16 %v1530, %v1529
      %v1544 = vpack.c.b16 %v1532, %v1531
      %v1545 = vpack.c.b16 %v1534, %v1533
      %v1546 = vpack.c.b16 %v1536, %v1535
      %v1547 = vpack.c.b16 %v1538, %v1537
      %v1548 = vpack.c.b16 %v1540, %v1539
      %1557 = vmatprep.subr.bf16.mxu0 0
      %1558 = vmatpush1.bf16.msra.mxu0 %v1541
      %1559 = vmatprep.subr.bf16.mxu0 0
      %1560 = vmatpush1.bf16.msra.mxu0 %v1542
      %1561 = vmatprep.subr.bf16.mxu0 0
      %1562 = vmatpush1.bf16.msra.mxu0 %v1543
      %1563 = vmatprep.subr.bf16.mxu0 0
      %1564 = vmatpush1.bf16.msra.mxu0 %v1544
      %1565 = vmatprep.subr.bf16.mxu0 0
      %1566 = vmatpush1.bf16.msra.mxu0 %v1545
      %1567 = vmatprep.subr.bf16.mxu0 0
      %1568 = vmatpush1.bf16.msra.mxu0 %v1546
      %1569 = vmatprep.subr.bf16.mxu0 0
      %1570 = vmatpush1.bf16.msra.mxu0 %v1547
      %1571 = vmatprep.subr.bf16.mxu0 0
      %1572 = vmatpush1.bf16.msra.mxu0 %v1548
      %1573 = vmatprep.subr.bf16.mxu0 0
      %1574 = vmatpush1.bf16.msra.mxu0 0
      %1575 = vmatprep.subr.bf16.mxu0 0
      %1576 = vmatpush1.bf16.msra.mxu0 0
      %1577 = vmatprep.subr.bf16.mxu0 0
      %1578 = vmatpush1.bf16.msra.mxu0 0
      %1579 = vmatprep.subr.bf16.mxu0 0
      %1580 = vmatpush1.bf16.msra.mxu0 0
      %1581 = vmatprep.subr.bf16.mxu0 0
      %1582 = vmatpush1.bf16.msra.mxu0 0
      %1583 = vmatprep.subr.bf16.mxu0 0
      %1584 = vmatpush1.bf16.msra.mxu0 0
      %1585 = vmatprep.subr.bf16.mxu0 0
      %1586 = vmatpush1.bf16.msra.mxu0 0
      %1587 = vmatprep.subr.bf16.mxu0 0
      %1588 = vmatpush1.bf16.msra.mxu0 0
      %1589 = vmatprep.mubr.bf16.mxu0 0
      %1590 = vmatmul.mubr.bf16.gmra.mrb[0].mxu0 %v396
      %v1591 = vpop.f32.mrb[0].mxu0
      %v1592 = vadd.f32 0.0, %v1591
      %v1593 = vpop.f32.mrb[0].mxu0
      %v1594 = vpop.f32.mrb[0].mxu0
      %v1595 = vadd.f32 0.0, %v1594
      %v1596 = vpop.f32.mrb[0].mxu0
      %1597 = vmatprep.mubr.bf16.mxu0 0
      %1598 = vmatmul.mubr.bf16.gmra.mrb[0].mxu0 %v397
      %v1599 = vpop.f32.mrb[0].mxu0
      %v1600 = vadd.f32 0.0, %v1599
      %v1601 = vpop.f32.mrb[0].mxu0
      %v1602 = vpop.f32.mrb[0].mxu0
      %v1603 = vadd.f32 0.0, %v1602
      %v1604 = vpop.f32.mrb[0].mxu0
      %1605 = vmatprep.mubr.bf16.mxu0 0
      %1606 = vmatmul.mubr.bf16.gmra.mrb[0].mxu0 %v398
      %v1607 = vpop.f32.mrb[0].mxu0
      %v1608 = vadd.f32 0.0, %v1607
      %v1609 = vpop.f32.mrb[0].mxu0
      %v1610 = vpop.f32.mrb[0].mxu0
      %v1611 = vadd.f32 0.0, %v1610
      %v1612 = vpop.f32.mrb[0].mxu0
      %1613 = vmatprep.mubr.bf16.mxu0 0
      %1614 = vmatmul.mubr.bf16.gmra.mrb[0].mxu0 %v399
      %v1615 = vpop.f32.mrb[0].mxu0
      %v1616 = vadd.f32 0.0, %v1615
      %v1617 = vpop.f32.mrb[0].mxu0
      %v1618 = vpop.f32.mrb[0].mxu0
      %v1619 = vadd.f32 0.0, %v1618
      %v1620 = vpop.f32.mrb[0].mxu0
      %1621 = vmatprep.mubr.bf16.mxu0 0
      %1622 = vmatmul.mubr.bf16.gmra.mrb[0].mxu0 %v400
      %v1623 = vpop.f32.mrb[0].mxu0
      %v1624 = vadd.f32 0.0, %v1623
      %v1625 = vpop.f32.mrb[0].mxu0
      %v1626 = vpop.f32.mrb[0].mxu0
      %v1627 = vadd.f32 0.0, %v1626
      %v1628 = vpop.f32.mrb[0].mxu0
      %1629 = vmatprep.mubr.bf16.mxu0 0
      %1630 = vmatmul.mubr.bf16.gmra.mrb[0].mxu0 %v401
      %v1631 = vpop.f32.mrb[0].mxu0
      %v1632 = vadd.f32 0.0, %v1631
      %v1633 = vpop.f32.mrb[0].mxu0
      %v1634 = vpop.f32.mrb[0].mxu0
      %v1635 = vadd.f32 0.0, %v1634
      %v1636 = vpop.f32.mrb[0].mxu0
      %1637 = vmatprep.mubr.bf16.mxu0 0
      %1638 = vmatmul.mubr.bf16.gmra.mrb[0].mxu0 %v402
      %v1639 = vpop.f32.mrb[0].mxu0
      %v1640 = vadd.f32 0.0, %v1639
      %v1641 = vpop.f32.mrb[0].mxu0
      %v1642 = vpop.f32.mrb[0].mxu0
      %v1643 = vadd.f32 0.0, %v1642
      %v1644 = vpop.f32.mrb[0].mxu0
      %1645 = vmatprep.mubr.bf16.mxu0 0
      %1646 = vmatmul.mubr.bf16.gmra.mrb[0].mxu0 %v403
      %v1647 = vpop.f32.mrb[0].mxu0
      %v1648 = vadd.f32 0.0, %v1647
      %v1649 = vpop.f32.mrb[0].mxu0
      %v1650 = vpop.f32.mrb[0].mxu0
      %v1651 = vadd.f32 0.0, %v1650
      %v1652 = vpop.f32.mrb[0].mxu0
      %1653 = vmatprep.mubr.bf16.mxu0 0
      %1654 = vmatmul.mubr.bf16.gmra.mrb[0].mxu0 %v404
      %v1655 = vpop.f32.mrb[0].mxu0
      %v1656 = vadd.f32 0.0, %v1655
      %v1657 = vpop.f32.mrb[0].mxu0
      %v1658 = vpop.f32.mrb[0].mxu0
      %v1659 = vadd.f32 0.0, %v1658
      %v1660 = vpop.f32.mrb[0].mxu0
      %1661 = vmatprep.mubr.bf16.mxu0 0
      %1662 = vmatmul.mubr.bf16.gmra.mrb[0].mxu0 %v405
      %v1663 = vpop.f32.mrb[0].mxu0
      %v1664 = vadd.f32 0.0, %v1663
      %v1665 = vpop.f32.mrb[0].mxu0
      %v1666 = vpop.f32.mrb[0].mxu0
      %v1667 = vadd.f32 0.0, %v1666
      %v1668 = vpop.f32.mrb[0].mxu0
      %1669 = vmatprep.mubr.bf16.mxu0 0
      %1670 = vmatmul.mubr.bf16.gmra.mrb[0].mxu0 %v406
      %v1671 = vpop.f32.mrb[0].mxu0
      %v1672 = vadd.f32 0.0, %v1671
      %v1673 = vpop.f32.mrb[0].mxu0
      %v1674 = vpop.f32.mrb[0].mxu0
      %v1675 = vadd.f32 0.0, %v1674
      %v1676 = vpop.f32.mrb[0].mxu0
      %1677 = vmatprep.mubr.bf16.mxu0 0
      %1678 = vmatmul.mubr.bf16.gmra.mrb[0].mxu0 %v407
      %v1679 = vpop.f32.mrb[0].mxu0
      %v1680 = vadd.f32 0.0, %v1679
      %v1681 = vpop.f32.mrb[0].mxu0
      %v1682 = vpop.f32.mrb[0].mxu0
      %v1683 = vadd.f32 0.0, %v1682
      %v1684 = vpop.f32.mrb[0].mxu0
      %1685 = vmatprep.mubr.bf16.mxu0 0
      %1686 = vmatmul.mubr.bf16.gmra.mrb[0].mxu0 %v408
      %v1687 = vpop.f32.mrb[0].mxu0
      %v1688 = vadd.f32 0.0, %v1687
      %v1689 = vpop.f32.mrb[0].mxu0
      %v1690 = vpop.f32.mrb[0].mxu0
      %v1691 = vadd.f32 0.0, %v1690
      %v1692 = vpop.f32.mrb[0].mxu0
      %1693 = vmatprep.mubr.bf16.mxu0 0
      %1694 = vmatmul.mubr.bf16.gmra.mrb[0].mxu0 %v409
      %v1695 = vpop.f32.mrb[0].mxu0
      %v1696 = vadd.f32 0.0, %v1695
      %v1697 = vpop.f32.mrb[0].mxu0
      %v1698 = vpop.f32.mrb[0].mxu0
      %v1699 = vadd.f32 0.0, %v1698
      %v1700 = vpop.f32.mrb[0].mxu0
      %1701 = vmatprep.mubr.bf16.mxu0 0
      %1702 = vmatmul.mubr.bf16.gmra.mrb[0].mxu0 %v410
      %v1703 = vpop.f32.mrb[0].mxu0
      %v1704 = vadd.f32 0.0, %v1703
      %v1705 = vpop.f32.mrb[0].mxu0
      %v1706 = vpop.f32.mrb[0].mxu0
      %v1707 = vadd.f32 0.0, %v1706
      %v1708 = vpop.f32.mrb[0].mxu0
      %1709 = vmatprep.mubr.bf16.mxu0 0
      %1710 = vmatmul.mubr.bf16.gmra.mrb[0].mxu0 %v411
      %v1711 = vpop.f32.mrb[0].mxu0
      %v1712 = vadd.f32 0.0, %v1711
      %v1713 = vpop.f32.mrb[0].mxu0
      %v1714 = vpop.f32.mrb[0].mxu0
      %v1715 = vadd.f32 0.0, %v1714
      %v1716 = vpop.f32.mrb[0].mxu0
      %1717 = vdwg.mxu0
      %v1718 = vld [vmem:[%s246 + $0x1] sm:$0xff]
      %v1719 = vld [vmem:[%s246 + $0x9] sm:$0x7f]
      %v1720 = vld [vmem:[%s246 + $0x11] sm:$0xff]
      %v1721 = vld [vmem:[%s246 + $0x19] sm:$0x7f]
      %v1722 = vld [vmem:[%s246 + $0x21] sm:$0xff]
      %v1723 = vld [vmem:[%s246 + $0x29] sm:$0x7f]
      %v1724 = vld [vmem:[%s246 + $0x31] sm:$0xff]
      %v1725 = vld [vmem:[%s246 + $0x39] sm:$0x7f]
      %v1726 = vld [vmem:[%s246 + $0x41] sm:$0xff]
      %v1727 = vld [vmem:[%s246 + $0x49] sm:$0x7f]
      %v1728 = vld [vmem:[%s246 + $0x51] sm:$0xff]
      %v1729 = vld [vmem:[%s246 + $0x59] sm:$0x7f]
      %v1730 = vld [vmem:[%s246 + $0x61] sm:$0xff]
      %v1731 = vld [vmem:[%s246 + $0x69] sm:$0x7f]
      %v1732 = vld [vmem:[%s246 + $0x71] sm:$0xff]
      %v1733 = vld [vmem:[%s246 + $0x79] sm:$0x7f]
      %v1734 = vld [vmem:[%s246 + $0x81] sm:$0xff]
      %v1735 = vld [vmem:[%s246 + $0x89] sm:$0x7f]
      %v1736 = vld [vmem:[%s246 + $0x91] sm:$0xff]
      %v1737 = vld [vmem:[%s246 + $0x99] sm:$0x7f]
      %v1738 = vld [vmem:[%s246 + $0xa1] sm:$0xff]
      %v1739 = vld [vmem:[%s246 + $0xa9] sm:$0x7f]
      %v1740 = vld [vmem:[%s246 + $0xb1] sm:$0xff]
      %v1741 = vld [vmem:[%s246 + $0xb9] sm:$0x7f]
      %v1742 = vld [vmem:[%s246 + $0xc1] sm:$0xff]
      %v1743 = vld [vmem:[%s246 + $0xc9] sm:$0x7f]
      %v1744 = vld [vmem:[%s246 + $0xd1] sm:$0xff]
      %v1745 = vld [vmem:[%s246 + $0xd9] sm:$0x7f]
      %v1746 = vld [vmem:[%s246 + $0xe1] sm:$0xff]
      %v1747 = vld [vmem:[%s246 + $0xe9] sm:$0x7f]
      %v1748 = vld [vmem:[%s246 + $0xf1] sm:$0xff]
      %v1749 = vld [vmem:[%s246 + $0xf9] sm:$0x7f]
      %v1750 = vadd.f32 %v1718, %v1592
      %v1751 = vadd.f32 %v1719, %v1595
      %v1752 = vadd.f32 %v1720, %v1600
      %v1753 = vadd.f32 %v1721, %v1603
      %v1754 = vadd.f32 %v1722, %v1608
      %v1755 = vadd.f32 %v1723, %v1611
      %v1756 = vadd.f32 %v1724, %v1616
      %v1757 = vadd.f32 %v1725, %v1619
      %v1758 = vadd.f32 %v1726, %v1624
      %v1759 = vadd.f32 %v1727, %v1627
      %v1760 = vadd.f32 %v1728, %v1632
      %v1761 = vadd.f32 %v1729, %v1635
      %v1762 = vadd.f32 %v1730, %v1640
      %v1763 = vadd.f32 %v1731, %v1643
      %v1764 = vadd.f32 %v1732, %v1648
      %v1765 = vadd.f32 %v1733, %v1651
      %v1766 = vadd.f32 %v1734, %v1656
      %v1767 = vadd.f32 %v1735, %v1659
      %v1768 = vadd.f32 %v1736, %v1664
      %v1769 = vadd.f32 %v1737, %v1667
      %v1770 = vadd.f32 %v1738, %v1672
      %v1771 = vadd.f32 %v1739, %v1675
      %v1772 = vadd.f32 %v1740, %v1680
      %v1773 = vadd.f32 %v1741, %v1683
      %v1774 = vadd.f32 %v1742, %v1688
      %v1775 = vadd.f32 %v1743, %v1691
      %v1776 = vadd.f32 %v1744, %v1696
      %v1777 = vadd.f32 %v1745, %v1699
      %v1778 = vadd.f32 %v1746, %v1704
      %v1779 = vadd.f32 %v1747, %v1707
      %v1780 = vadd.f32 %v1748, %v1712
      %v1781 = vadd.f32 %v1749, %v1715
      %1782 = vst [vmem:[%s246 + $0x1] sm:$0xff] %v1750
      %1783 = vst [vmem:[%s246 + $0x9] sm:$0x7f] %v1751
      %1784 = vst [vmem:[%s246 + $0x11] sm:$0xff] %v1752
      %1785 = vst [vmem:[%s246 + $0x19] sm:$0x7f] %v1753
      %1786 = vst [vmem:[%s246 + $0x21] sm:$0xff] %v1754
      %1787 = vst [vmem:[%s246 + $0x29] sm:$0x7f] %v1755
      %1788 = vst [vmem:[%s246 + $0x31] sm:$0xff] %v1756
      %1789 = vst [vmem:[%s246 + $0x39] sm:$0x7f] %v1757
      %1790 = vst [vmem:[%s246 + $0x41] sm:$0xff] %v1758
      %1791 = vst [vmem:[%s246 + $0x49] sm:$0x7f] %v1759
      %1792 = vst [vmem:[%s246 + $0x51] sm:$0xff] %v1760
      %1793 = vst [vmem:[%s246 + $0x59] sm:$0x7f] %v1761
      %1794 = vst [vmem:[%s246 + $0x61] sm:$0xff] %v1762
      %1795 = vst [vmem:[%s246 + $0x69] sm:$0x7f] %v1763
      %1796 = vst [vmem:[%s246 + $0x71] sm:$0xff] %v1764
      %1797 = vst [vmem:[%s246 + $0x79] sm:$0x7f] %v1765
      %1798 = vst [vmem:[%s246 + $0x81] sm:$0xff] %v1766
      %1799 = vst [vmem:[%s246 + $0x89] sm:$0x7f] %v1767
      %1800 = vst [vmem:[%s246 + $0x91] sm:$0xff] %v1768
      %1801 = vst [vmem:[%s246 + $0x99] sm:$0x7f] %v1769
      %1802 = vst [vmem:[%s246 + $0xa1] sm:$0xff] %v1770
      %1803 = vst [vmem:[%s246 + $0xa9] sm:$0x7f] %v1771
      %1804 = vst [vmem:[%s246 + $0xb1] sm:$0xff] %v1772
      %1805 = vst [vmem:[%s246 + $0xb9] sm:$0x7f] %v1773
      %1806 = vst [vmem:[%s246 + $0xc1] sm:$0xff] %v1774
      %1807 = vst [vmem:[%s246 + $0xc9] sm:$0x7f] %v1775
      %1808 = vst [vmem:[%s246 + $0xd1] sm:$0xff] %v1776
      %1809 = vst [vmem:[%s246 + $0xd9] sm:$0x7f] %v1777
      %1810 = vst [vmem:[%s246 + $0xe1] sm:$0xff] %v1778
      %1811 = vst [vmem:[%s246 + $0xe9] sm:$0x7f] %v1779
      %1812 = vst [vmem:[%s246 + $0xf1] sm:$0xff] %v1780
      %1813 = vst [vmem:[%s246 + $0xf9] sm:$0x7f] %v1781
      %s1814 = scalar_lea.vmem %s3, 256
      %v1815 = vld [vmem:[%s1814] sm:$0xf]
      %v1816 = vld [vmem:[%s1814 + $0x4] sm:$0xf]
      %v1817 = vld [vmem:[%s1814 + $0x8] sm:$0xf]
      %v1818 = vld [vmem:[%s1814 + $0xc] sm:$0xf]
      %v1819 = vld [vmem:[%s1814 + $0x10] sm:$0xf]
      %v1820 = vld [vmem:[%s1814 + $0x14] sm:$0xf]
      %v1821 = vld [vmem:[%s1814 + $0x18] sm:$0xf]
      %v1822 = vld [vmem:[%s1814 + $0x1c] sm:$0xf]
      %v1823 = vld [vmem:[%s1814 + $0x20] sm:$0xf]
      %v1824 = vld [vmem:[%s1814 + $0x24] sm:$0xf]
      %v1825 = vld [vmem:[%s1814 + $0x28] sm:$0xf]
      %v1826 = vld [vmem:[%s1814 + $0x2c] sm:$0xf]
      %v1827 = vld [vmem:[%s1814 + $0x30] sm:$0xf]
      %v1828 = vld [vmem:[%s1814 + $0x34] sm:$0xf]
      %v1829 = vld [vmem:[%s1814 + $0x38] sm:$0xf]
      %v1830 = vld [vmem:[%s1814 + $0x3c] sm:$0xf]
      %v1847 = vunpack.c.l.b16 %v1815
      %v1848 = vunpack.c.l.b16 %v1816
      %v1849 = vunpack.c.l.b16 %v1817
      %v1850 = vunpack.c.l.b16 %v1818
      %v1851 = vunpack.c.l.b16 %v1819
      %v1852 = vunpack.c.l.b16 %v1820
      %v1853 = vunpack.c.l.b16 %v1821
      %v1854 = vunpack.c.l.b16 %v1822
      %v1855 = vunpack.c.l.b16 %v1823
      %v1856 = vunpack.c.l.b16 %v1824
      %v1857 = vunpack.c.l.b16 %v1825
      %v1858 = vunpack.c.l.b16 %v1826
      %v1859 = vunpack.c.l.b16 %v1827
      %v1860 = vunpack.c.l.b16 %v1828
      %v1861 = vunpack.c.l.b16 %v1829
      %v1862 = vunpack.c.l.b16 %v1830
      %v1863 = vpack.c.b16 %v1848, %v1847
      %v1864 = vpack.c.b16 %v1850, %v1849
      %v1865 = vpack.c.b16 %v1852, %v1851
      %v1866 = vpack.c.b16 %v1854, %v1853
      %v1867 = vpack.c.b16 %v1856, %v1855
      %v1868 = vpack.c.b16 %v1858, %v1857
      %v1869 = vpack.c.b16 %v1860, %v1859
      %v1870 = vpack.c.b16 %v1862, %v1861
      %1879 = vmatprep.subr.bf16.mxu0 0
      %1880 = vmatpush1.bf16.msra.mxu0 %v1863
      %1881 = vmatprep.subr.bf16.mxu0 0
      %1882 = vmatpush1.bf16.msra.mxu0 %v1864
      %1883 = vmatprep.subr.bf16.mxu0 0
      %1884 = vmatpush1.bf16.msra.mxu0 %v1865
      %1885 = vmatprep.subr.bf16.mxu0 0
      %1886 = vmatpush1.bf16.msra.mxu0 %v1866
      %1887 = vmatprep.subr.bf16.mxu0 0
      %1888 = vmatpush1.bf16.msra.mxu0 %v1867
      %1889 = vmatprep.subr.bf16.mxu0 0
      %1890 = vmatpush1.bf16.msra.mxu0 %v1868
      %1891 = vmatprep.subr.bf16.mxu0 0
      %1892 = vmatpush1.bf16.msra.mxu0 %v1869
      %1893 = vmatprep.subr.bf16.mxu0 0
      %1894 = vmatpush1.bf16.msra.mxu0 %v1870
      %1895 = vmatprep.subr.bf16.mxu0 0
      %1896 = vmatpush1.bf16.msra.mxu0 0
      %1897 = vmatprep.subr.bf16.mxu0 0
      %1898 = vmatpush1.bf16.msra.mxu0 0
      %1899 = vmatprep.subr.bf16.mxu0 0
      %1900 = vmatpush1.bf16.msra.mxu0 0
      %1901 = vmatprep.subr.bf16.mxu0 0
      %1902 = vmatpush1.bf16.msra.mxu0 0
      %1903 = vmatprep.subr.bf16.mxu0 0
      %1904 = vmatpush1.bf16.msra.mxu0 0
      %1905 = vmatprep.subr.bf16.mxu0 0
      %1906 = vmatpush1.bf16.msra.mxu0 0
      %1907 = vmatprep.subr.bf16.mxu0 0
      %1908 = vmatpush1.bf16.msra.mxu0 0
      %1909 = vmatprep.subr.bf16.mxu0 0
      %1910 = vmatpush1.bf16.msra.mxu0 0
      %1911 = vmatprep.mubr.bf16.mxu0 0
      %1912 = vmatmul.mubr.bf16.gmra.mrb[0].mxu0 %v396
      %v1913 = vpop.f32.mrb[0].mxu0
      %v1914 = vadd.f32 0.0, %v1913
      %v1915 = vpop.f32.mrb[0].mxu0
      %v1916 = vpop.f32.mrb[0].mxu0
      %v1917 = vadd.f32 0.0, %v1916
      %v1918 = vpop.f32.mrb[0].mxu0
      %1919 = vmatprep.mubr.bf16.mxu0 0
      %1920 = vmatmul.mubr.bf16.gmra.mrb[0].mxu0 %v397
      %v1921 = vpop.f32.mrb[0].mxu0
      %v1922 = vadd.f32 0.0, %v1921
      %v1923 = vpop.f32.mrb[0].mxu0
      %v1924 = vpop.f32.mrb[0].mxu0
      %v1925 = vadd.f32 0.0, %v1924
      %v1926 = vpop.f32.mrb[0].mxu0
      %1927 = vmatprep.mubr.bf16.mxu0 0
      %1928 = vmatmul.mubr.bf16.gmra.mrb[0].mxu0 %v398
      %v1929 = vpop.f32.mrb[0].mxu0
      %v1930 = vadd.f32 0.0, %v1929
      %v1931 = vpop.f32.mrb[0].mxu0
      %v1932 = vpop.f32.mrb[0].mxu0
      %v1933 = vadd.f32 0.0, %v1932
      %v1934 = vpop.f32.mrb[0].mxu0
      %1935 = vmatprep.mubr.bf16.mxu0 0
      %1936 = vmatmul.mubr.bf16.gmra.mrb[0].mxu0 %v399
      %v1937 = vpop.f32.mrb[0].mxu0
      %v1938 = vadd.f32 0.0, %v1937
      %v1939 = vpop.f32.mrb[0].mxu0
      %v1940 = vpop.f32.mrb[0].mxu0
      %v1941 = vadd.f32 0.0, %v1940
      %v1942 = vpop.f32.mrb[0].mxu0
      %1943 = vmatprep.mubr.bf16.mxu0 0
      %1944 = vmatmul.mubr.bf16.gmra.mrb[0].mxu0 %v400
      %v1945 = vpop.f32.mrb[0].mxu0
      %v1946 = vadd.f32 0.0, %v1945
      %v1947 = vpop.f32.mrb[0].mxu0
      %v1948 = vpop.f32.mrb[0].mxu0
      %v1949 = vadd.f32 0.0, %v1948
      %v1950 = vpop.f32.mrb[0].mxu0
      %1951 = vmatprep.mubr.bf16.mxu0 0
      %1952 = vmatmul.mubr.bf16.gmra.mrb[0].mxu0 %v401
      %v1953 = vpop.f32.mrb[0].mxu0
      %v1954 = vadd.f32 0.0, %v1953
      %v1955 = vpop.f32.mrb[0].mxu0
      %v1956 = vpop.f32.mrb[0].mxu0
      %v1957 = vadd.f32 0.0, %v1956
      %v1958 = vpop.f32.mrb[0].mxu0
      %1959 = vmatprep.mubr.bf16.mxu0 0
      %1960 = vmatmul.mubr.bf16.gmra.mrb[0].mxu0 %v402
      %v1961 = vpop.f32.mrb[0].mxu0
      %v1962 = vadd.f32 0.0, %v1961
      %v1963 = vpop.f32.mrb[0].mxu0
      %v1964 = vpop.f32.mrb[0].mxu0
      %v1965 = vadd.f32 0.0, %v1964
      %v1966 = vpop.f32.mrb[0].mxu0
      %1967 = vmatprep.mubr.bf16.mxu0 0
      %1968 = vmatmul.mubr.bf16.gmra.mrb[0].mxu0 %v403
      %v1969 = vpop.f32.mrb[0].mxu0
      %v1970 = vadd.f32 0.0, %v1969
      %v1971 = vpop.f32.mrb[0].mxu0
      %v1972 = vpop.f32.mrb[0].mxu0
      %v1973 = vadd.f32 0.0, %v1972
      %v1974 = vpop.f32.mrb[0].mxu0
      %1975 = vmatprep.mubr.bf16.mxu0 0
      %1976 = vmatmul.mubr.bf16.gmra.mrb[0].mxu0 %v404
      %v1977 = vpop.f32.mrb[0].mxu0
      %v1978 = vadd.f32 0.0, %v1977
      %v1979 = vpop.f32.mrb[0].mxu0
      %v1980 = vpop.f32.mrb[0].mxu0
      %v1981 = vadd.f32 0.0, %v1980
      %v1982 = vpop.f32.mrb[0].mxu0
      %1983 = vmatprep.mubr.bf16.mxu0 0
      %1984 = vmatmul.mubr.bf16.gmra.mrb[0].mxu0 %v405
      %v1985 = vpop.f32.mrb[0].mxu0
      %v1986 = vadd.f32 0.0, %v1985
      %v1987 = vpop.f32.mrb[0].mxu0
      %v1988 = vpop.f32.mrb[0].mxu0
      %v1989 = vadd.f32 0.0, %v1988
      %v1990 = vpop.f32.mrb[0].mxu0
      %1991 = vmatprep.mubr.bf16.mxu0 0
      %1992 = vmatmul.mubr.bf16.gmra.mrb[0].mxu0 %v406
      %v1993 = vpop.f32.mrb[0].mxu0
      %v1994 = vadd.f32 0.0, %v1993
      %v1995 = vpop.f32.mrb[0].mxu0
      %v1996 = vpop.f32.mrb[0].mxu0
      %v1997 = vadd.f32 0.0, %v1996
      %v1998 = vpop.f32.mrb[0].mxu0
      %1999 = vmatprep.mubr.bf16.mxu0 0
      %2000 = vmatmul.mubr.bf16.gmra.mrb[0].mxu0 %v407
      %v2001 = vpop.f32.mrb[0].mxu0
      %v2002 = vadd.f32 0.0, %v2001
      %v2003 = vpop.f32.mrb[0].mxu0
      %v2004 = vpop.f32.mrb[0].mxu0
      %v2005 = vadd.f32 0.0, %v2004
      %v2006 = vpop.f32.mrb[0].mxu0
      %2007 = vmatprep.mubr.bf16.mxu0 0
      %2008 = vmatmul.mubr.bf16.gmra.mrb[0].mxu0 %v408
      %v2009 = vpop.f32.mrb[0].mxu0
      %v2010 = vadd.f32 0.0, %v2009
      %v2011 = vpop.f32.mrb[0].mxu0
      %v2012 = vpop.f32.mrb[0].mxu0
      %v2013 = vadd.f32 0.0, %v2012
      %v2014 = vpop.f32.mrb[0].mxu0
      %2015 = vmatprep.mubr.bf16.mxu0 0
      %2016 = vmatmul.mubr.bf16.gmra.mrb[0].mxu0 %v409
      %v2017 = vpop.f32.mrb[0].mxu0
      %v2018 = vadd.f32 0.0, %v2017
      %v2019 = vpop.f32.mrb[0].mxu0
      %v2020 = vpop.f32.mrb[0].mxu0
      %v2021 = vadd.f32 0.0, %v2020
      %v2022 = vpop.f32.mrb[0].mxu0
      %2023 = vmatprep.mubr.bf16.mxu0 0
      %2024 = vmatmul.mubr.bf16.gmra.mrb[0].mxu0 %v410
      %v2025 = vpop.f32.mrb[0].mxu0
      %v2026 = vadd.f32 0.0, %v2025
      %v2027 = vpop.f32.mrb[0].mxu0
      %v2028 = vpop.f32.mrb[0].mxu0
      %v2029 = vadd.f32 0.0, %v2028
      %v2030 = vpop.f32.mrb[0].mxu0
      %2031 = vmatprep.mubr.bf16.mxu0 0
      %2032 = vmatmul.mubr.bf16.gmra.mrb[0].mxu0 %v411
      %v2033 = vpop.f32.mrb[0].mxu0
      %v2034 = vadd.f32 0.0, %v2033
      %v2035 = vpop.f32.mrb[0].mxu0
      %v2036 = vpop.f32.mrb[0].mxu0
      %v2037 = vadd.f32 0.0, %v2036
      %v2038 = vpop.f32.mrb[0].mxu0
      %2039 = vdwg.mxu0
      %v2040 = vld [vmem:[%s246] sm:$0xff]
      %v2041 = vld [vmem:[%s246 + $0x8] sm:$0xff]
      %v2042 = vld [vmem:[%s246 + $0x10] sm:$0xff]
      %v2043 = vld [vmem:[%s246 + $0x18] sm:$0xff]
      %v2044 = vld [vmem:[%s246 + $0x20] sm:$0xff]
      %v2045 = vld [vmem:[%s246 + $0x28] sm:$0xff]
      %v2046 = vld [vmem:[%s246 + $0x30] sm:$0xff]
      %v2047 = vld [vmem:[%s246 + $0x38] sm:$0xff]
      %v2048 = vld [vmem:[%s246 + $0x40] sm:$0xff]
      %v2049 = vld [vmem:[%s246 + $0x48] sm:$0xff]
      %v2050 = vld [vmem:[%s246 + $0x50] sm:$0xff]
      %v2051 = vld [vmem:[%s246 + $0x58] sm:$0xff]
      %v2052 = vld [vmem:[%s246 + $0x60] sm:$0xff]
      %v2053 = vld [vmem:[%s246 + $0x68] sm:$0xff]
      %v2054 = vld [vmem:[%s246 + $0x70] sm:$0xff]
      %v2055 = vld [vmem:[%s246 + $0x78] sm:$0xff]
      %v2056 = vld [vmem:[%s246 + $0x80] sm:$0xff]
      %v2057 = vld [vmem:[%s246 + $0x88] sm:$0xff]
      %v2058 = vld [vmem:[%s246 + $0x90] sm:$0xff]
      %v2059 = vld [vmem:[%s246 + $0x98] sm:$0xff]
      %v2060 = vld [vmem:[%s246 + $0xa0] sm:$0xff]
      %v2061 = vld [vmem:[%s246 + $0xa8] sm:$0xff]
      %v2062 = vld [vmem:[%s246 + $0xb0] sm:$0xff]
      %v2063 = vld [vmem:[%s246 + $0xb8] sm:$0xff]
      %v2064 = vld [vmem:[%s246 + $0xc0] sm:$0xff]
      %v2065 = vld [vmem:[%s246 + $0xc8] sm:$0xff]
      %v2066 = vld [vmem:[%s246 + $0xd0] sm:$0xff]
      %v2067 = vld [vmem:[%s246 + $0xd8] sm:$0xff]
      %v2068 = vld [vmem:[%s246 + $0xe0] sm:$0xff]
      %v2069 = vld [vmem:[%s246 + $0xe8] sm:$0xff]
      %v2070 = vld [vmem:[%s246 + $0xf0] sm:$0xff]
      %v2071 = vld [vmem:[%s246 + $0xf8] sm:$0xff]
      %v2072 = vadd.f32 %v2040, %v1914
      %v2073 = vadd.f32 %v2041, %v1917
      %v2074 = vadd.f32 %v2042, %v1922
      %v2075 = vadd.f32 %v2043, %v1925
      %v2076 = vadd.f32 %v2044, %v1930
      %v2077 = vadd.f32 %v2045, %v1933
      %v2078 = vadd.f32 %v2046, %v1938
      %v2079 = vadd.f32 %v2047, %v1941
      %v2080 = vadd.f32 %v2048, %v1946
      %v2081 = vadd.f32 %v2049, %v1949
      %v2082 = vadd.f32 %v2050, %v1954
      %v2083 = vadd.f32 %v2051, %v1957
      %v2084 = vadd.f32 %v2052, %v1962
      %v2085 = vadd.f32 %v2053, %v1965
      %v2086 = vadd.f32 %v2054, %v1970
      %v2087 = vadd.f32 %v2055, %v1973
      %v2088 = vadd.f32 %v2056, %v1978
      %v2089 = vadd.f32 %v2057, %v1981
      %v2090 = vadd.f32 %v2058, %v1986
      %v2091 = vadd.f32 %v2059, %v1989
      %v2092 = vadd.f32 %v2060, %v1994
      %v2093 = vadd.f32 %v2061, %v1997
      %v2094 = vadd.f32 %v2062, %v2002
      %v2095 = vadd.f32 %v2063, %v2005
      %v2096 = vadd.f32 %v2064, %v2010
      %v2097 = vadd.f32 %v2065, %v2013
      %v2098 = vadd.f32 %v2066, %v2018
      %v2099 = vadd.f32 %v2067, %v2021
      %v2100 = vadd.f32 %v2068, %v2026
      %v2101 = vadd.f32 %v2069, %v2029
      %v2102 = vadd.f32 %v2070, %v2034
      %v2103 = vadd.f32 %v2071, %v2037
      %2104 = vst [vmem:[%s246] sm:$0xff] %v2072
      %2105 = vst [vmem:[%s246 + $0x8] sm:$0xff] %v2073
      %2106 = vst [vmem:[%s246 + $0x10] sm:$0xff] %v2074
      %2107 = vst [vmem:[%s246 + $0x18] sm:$0xff] %v2075
      %2108 = vst [vmem:[%s246 + $0x20] sm:$0xff] %v2076
      %2109 = vst [vmem:[%s246 + $0x28] sm:$0xff] %v2077
      %2110 = vst [vmem:[%s246 + $0x30] sm:$0xff] %v2078
      %2111 = vst [vmem:[%s246 + $0x38] sm:$0xff] %v2079
      %2112 = vst [vmem:[%s246 + $0x40] sm:$0xff] %v2080
      %2113 = vst [vmem:[%s246 + $0x48] sm:$0xff] %v2081
      %2114 = vst [vmem:[%s246 + $0x50] sm:$0xff] %v2082
      %2115 = vst [vmem:[%s246 + $0x58] sm:$0xff] %v2083
      %2116 = vst [vmem:[%s246 + $0x60] sm:$0xff] %v2084
      %2117 = vst [vmem:[%s246 + $0x68] sm:$0xff] %v2085
      %2118 = vst [vmem:[%s246 + $0x70] sm:$0xff] %v2086
      %2119 = vst [vmem:[%s246 + $0x78] sm:$0xff] %v2087
      %2120 = vst [vmem:[%s246 + $0x80] sm:$0xff] %v2088
      %2121 = vst [vmem:[%s246 + $0x88] sm:$0xff] %v2089
      %2122 = vst [vmem:[%s246 + $0x90] sm:$0xff] %v2090
      %2123 = vst [vmem:[%s246 + $0x98] sm:$0xff] %v2091
      %2124 = vst [vmem:[%s246 + $0xa0] sm:$0xff] %v2092
      %2125 = vst [vmem:[%s246 + $0xa8] sm:$0xff] %v2093
      %2126 = vst [vmem:[%s246 + $0xb0] sm:$0xff] %v2094
      %2127 = vst [vmem:[%s246 + $0xb8] sm:$0xff] %v2095
      %2128 = vst [vmem:[%s246 + $0xc0] sm:$0xff] %v2096
      %2129 = vst [vmem:[%s246 + $0xc8] sm:$0xff] %v2097
      %2130 = vst [vmem:[%s246 + $0xd0] sm:$0xff] %v2098
      %2131 = vst [vmem:[%s246 + $0xd8] sm:$0xff] %v2099
      %2132 = vst [vmem:[%s246 + $0xe0] sm:$0xff] %v2100
      %2133 = vst [vmem:[%s246 + $0xe8] sm:$0xff] %v2101
      %2134 = vst [vmem:[%s246 + $0xf0] sm:$0xff] %v2102
      %2135 = vst [vmem:[%s246 + $0xf8] sm:$0xff] %v2103
      %s2136 = scalar_lea.vmem %s3, 320
      %v2137 = vld [vmem:[%s2136] sm:$0xf]
      %v2138 = vld [vmem:[%s2136 + $0x4] sm:$0xf]
      %v2139 = vld [vmem:[%s2136 + $0x8] sm:$0xf]
      %v2140 = vld [vmem:[%s2136 + $0xc] sm:$0xf]
      %v2141 = vld [vmem:[%s2136 + $0x10] sm:$0xf]
      %v2142 = vld [vmem:[%s2136 + $0x14] sm:$0xf]
      %v2143 = vld [vmem:[%s2136 + $0x18] sm:$0xf]
      %v2144 = vld [vmem:[%s2136 + $0x1c] sm:$0xf]
      %v2145 = vld [vmem:[%s2136 + $0x20] sm:$0xf]
      %v2146 = vld [vmem:[%s2136 + $0x24] sm:$0xf]
      %v2147 = vld [vmem:[%s2136 + $0x28] sm:$0xf]
      %v2148 = vld [vmem:[%s2136 + $0x2c] sm:$0xf]
      %v2149 = vld [vmem:[%s2136 + $0x30] sm:$0xf]
      %v2150 = vld [vmem:[%s2136 + $0x34] sm:$0xf]
      %v2151 = vld [vmem:[%s2136 + $0x38] sm:$0xf]
      %v2152 = vld [vmem:[%s2136 + $0x3c] sm:$0xf]
      %v2169 = vunpack.c.l.b16 %v2137
      %v2170 = vunpack.c.l.b16 %v2138
      %v2171 = vunpack.c.l.b16 %v2139
      %v2172 = vunpack.c.l.b16 %v2140
      %v2173 = vunpack.c.l.b16 %v2141
      %v2174 = vunpack.c.l.b16 %v2142
      %v2175 = vunpack.c.l.b16 %v2143
      %v2176 = vunpack.c.l.b16 %v2144
      %v2177 = vunpack.c.l.b16 %v2145
      %v2178 = vunpack.c.l.b16 %v2146
      %v2179 = vunpack.c.l.b16 %v2147
      %v2180 = vunpack.c.l.b16 %v2148
      %v2181 = vunpack.c.l.b16 %v2149
      %v2182 = vunpack.c.l.b16 %v2150
      %v2183 = vunpack.c.l.b16 %v2151
      %v2184 = vunpack.c.l.b16 %v2152
      %v2185 = vpack.c.b16 %v2170, %v2169
      %v2186 = vpack.c.b16 %v2172, %v2171
      %v2187 = vpack.c.b16 %v2174, %v2173
      %v2188 = vpack.c.b16 %v2176, %v2175
      %v2189 = vpack.c.b16 %v2178, %v2177
      %v2190 = vpack.c.b16 %v2180, %v2179
      %v2191 = vpack.c.b16 %v2182, %v2181
      %v2192 = vpack.c.b16 %v2184, %v2183
      %2201 = vmatprep.subr.bf16.mxu0 0
      %2202 = vmatpush1.bf16.msra.mxu0 %v2185
      %2203 = vmatprep.subr.bf16.mxu0 0
      %2204 = vmatpush1.bf16.msra.mxu0 %v2186
      %2205 = vmatprep.subr.bf16.mxu0 0
      %2206 = vmatpush1.bf16.msra.mxu0 %v2187
      %2207 = vmatprep.subr.bf16.mxu0 0
      %2208 = vmatpush1.bf16.msra.mxu0 %v2188
      %2209 = vmatprep.subr.bf16.mxu0 0
      %2210 = vmatpush1.bf16.msra.mxu0 %v2189
      %2211 = vmatprep.subr.bf16.mxu0 0
      %2212 = vmatpush1.bf16.msra.mxu0 %v2190
      %2213 = vmatprep.subr.bf16.mxu0 0
      %2214 = vmatpush1.bf16.msra.mxu0 %v2191
      %2215 = vmatprep.subr.bf16.mxu0 0
      %2216 = vmatpush1.bf16.msra.mxu0 %v2192
      %2217 = vmatprep.subr.bf16.mxu0 0
      %2218 = vmatpush1.bf16.msra.mxu0 0
      %2219 = vmatprep.subr.bf16.mxu0 0
      %2220 = vmatpush1.bf16.msra.mxu0 0
      %2221 = vmatprep.subr.bf16.mxu0 0
      %2222 = vmatpush1.bf16.msra.mxu0 0
      %2223 = vmatprep.subr.bf16.mxu0 0
      %2224 = vmatpush1.bf16.msra.mxu0 0
      %2225 = vmatprep.subr.bf16.mxu0 0
      %2226 = vmatpush1.bf16.msra.mxu0 0
      %2227 = vmatprep.subr.bf16.mxu0 0
      %2228 = vmatpush1.bf16.msra.mxu0 0
      %2229 = vmatprep.subr.bf16.mxu0 0
      %2230 = vmatpush1.bf16.msra.mxu0 0
      %2231 = vmatprep.subr.bf16.mxu0 0
      %2232 = vmatpush1.bf16.msra.mxu0 0
      %2233 = vmatprep.mubr.bf16.mxu0 0
      %2234 = vmatmul.mubr.bf16.gmra.mrb[0].mxu0 %v396
      %v2235 = vpop.f32.mrb[0].mxu0
      %v2236 = vadd.f32 0.0, %v2235
      %v2237 = vpop.f32.mrb[0].mxu0
      %v2238 = vpop.f32.mrb[0].mxu0
      %v2239 = vadd.f32 0.0, %v2238
      %v2240 = vpop.f32.mrb[0].mxu0
      %2241 = vmatprep.mubr.bf16.mxu0 0
      %2242 = vmatmul.mubr.bf16.gmra.mrb[0].mxu0 %v397
      %v2243 = vpop.f32.mrb[0].mxu0
      %v2244 = vadd.f32 0.0, %v2243
      %v2245 = vpop.f32.mrb[0].mxu0
      %v2246 = vpop.f32.mrb[0].mxu0
      %v2247 = vadd.f32 0.0, %v2246
      %v2248 = vpop.f32.mrb[0].mxu0
      %2249 = vmatprep.mubr.bf16.mxu0 0
      %2250 = vmatmul.mubr.bf16.gmra.mrb[0].mxu0 %v398
      %v2251 = vpop.f32.mrb[0].mxu0
      %v2252 = vadd.f32 0.0, %v2251
      %v2253 = vpop.f32.mrb[0].mxu0
      %v2254 = vpop.f32.mrb[0].mxu0
      %v2255 = vadd.f32 0.0, %v2254
      %v2256 = vpop.f32.mrb[0].mxu0
      %2257 = vmatprep.mubr.bf16.mxu0 0
      %2258 = vmatmul.mubr.bf16.gmra.mrb[0].mxu0 %v399
      %v2259 = vpop.f32.mrb[0].mxu0
      %v2260 = vadd.f32 0.0, %v2259
      %v2261 = vpop.f32.mrb[0].mxu0
      %v2262 = vpop.f32.mrb[0].mxu0
      %v2263 = vadd.f32 0.0, %v2262
      %v2264 = vpop.f32.mrb[0].mxu0
      %2265 = vmatprep.mubr.bf16.mxu0 0
      %2266 = vmatmul.mubr.bf16.gmra.mrb[0].mxu0 %v400
      %v2267 = vpop.f32.mrb[0].mxu0
      %v2268 = vadd.f32 0.0, %v2267
      %v2269 = vpop.f32.mrb[0].mxu0
      %v2270 = vpop.f32.mrb[0].mxu0
      %v2271 = vadd.f32 0.0, %v2270
      %v2272 = vpop.f32.mrb[0].mxu0
      %2273 = vmatprep.mubr.bf16.mxu0 0
      %2274 = vmatmul.mubr.bf16.gmra.mrb[0].mxu0 %v401
      %v2275 = vpop.f32.mrb[0].mxu0
      %v2276 = vadd.f32 0.0, %v2275
      %v2277 = vpop.f32.mrb[0].mxu0
      %v2278 = vpop.f32.mrb[0].mxu0
      %v2279 = vadd.f32 0.0, %v2278
      %v2280 = vpop.f32.mrb[0].mxu0
      %2281 = vmatprep.mubr.bf16.mxu0 0
      %2282 = vmatmul.mubr.bf16.gmra.mrb[0].mxu0 %v402
      %v2283 = vpop.f32.mrb[0].mxu0
      %v2284 = vadd.f32 0.0, %v2283
      %v2285 = vpop.f32.mrb[0].mxu0
      %v2286 = vpop.f32.mrb[0].mxu0
      %v2287 = vadd.f32 0.0, %v2286
      %v2288 = vpop.f32.mrb[0].mxu0
      %2289 = vmatprep.mubr.bf16.mxu0 0
      %2290 = vmatmul.mubr.bf16.gmra.mrb[0].mxu0 %v403
      %v2291 = vpop.f32.mrb[0].mxu0
      %v2292 = vadd.f32 0.0, %v2291
      %v2293 = vpop.f32.mrb[0].mxu0
      %v2294 = vpop.f32.mrb[0].mxu0
      %v2295 = vadd.f32 0.0, %v2294
      %v2296 = vpop.f32.mrb[0].mxu0
      %2297 = vmatprep.mubr.bf16.mxu0 0
      %2298 = vmatmul.mubr.bf16.gmra.mrb[0].mxu0 %v404
      %v2299 = vpop.f32.mrb[0].mxu0
      %v2300 = vadd.f32 0.0, %v2299
      %v2301 = vpop.f32.mrb[0].mxu0
      %v2302 = vpop.f32.mrb[0].mxu0
      %v2303 = vadd.f32 0.0, %v2302
      %v2304 = vpop.f32.mrb[0].mxu0
      %2305 = vmatprep.mubr.bf16.mxu0 0
      %2306 = vmatmul.mubr.bf16.gmra.mrb[0].mxu0 %v405
      %v2307 = vpop.f32.mrb[0].mxu0
      %v2308 = vadd.f32 0.0, %v2307
      %v2309 = vpop.f32.mrb[0].mxu0
      %v2310 = vpop.f32.mrb[0].mxu0
      %v2311 = vadd.f32 0.0, %v2310
      %v2312 = vpop.f32.mrb[0].mxu0
      %2313 = vmatprep.mubr.bf16.mxu0 0
      %2314 = vmatmul.mubr.bf16.gmra.mrb[0].mxu0 %v406
      %v2315 = vpop.f32.mrb[0].mxu0
      %v2316 = vadd.f32 0.0, %v2315
      %v2317 = vpop.f32.mrb[0].mxu0
      %v2318 = vpop.f32.mrb[0].mxu0
      %v2319 = vadd.f32 0.0, %v2318
      %v2320 = vpop.f32.mrb[0].mxu0
      %2321 = vmatprep.mubr.bf16.mxu0 0
      %2322 = vmatmul.mubr.bf16.gmra.mrb[0].mxu0 %v407
      %v2323 = vpop.f32.mrb[0].mxu0
      %v2324 = vadd.f32 0.0, %v2323
      %v2325 = vpop.f32.mrb[0].mxu0
      %v2326 = vpop.f32.mrb[0].mxu0
      %v2327 = vadd.f32 0.0, %v2326
      %v2328 = vpop.f32.mrb[0].mxu0
      %2329 = vmatprep.mubr.bf16.mxu0 0
      %2330 = vmatmul.mubr.bf16.gmra.mrb[0].mxu0 %v408
      %v2331 = vpop.f32.mrb[0].mxu0
      %v2332 = vadd.f32 0.0, %v2331
      %v2333 = vpop.f32.mrb[0].mxu0
      %v2334 = vpop.f32.mrb[0].mxu0
      %v2335 = vadd.f32 0.0, %v2334
      %v2336 = vpop.f32.mrb[0].mxu0
      %2337 = vmatprep.mubr.bf16.mxu0 0
      %2338 = vmatmul.mubr.bf16.gmra.mrb[0].mxu0 %v409
      %v2339 = vpop.f32.mrb[0].mxu0
      %v2340 = vadd.f32 0.0, %v2339
      %v2341 = vpop.f32.mrb[0].mxu0
      %v2342 = vpop.f32.mrb[0].mxu0
      %v2343 = vadd.f32 0.0, %v2342
      %v2344 = vpop.f32.mrb[0].mxu0
      %2345 = vmatprep.mubr.bf16.mxu0 0
      %2346 = vmatmul.mubr.bf16.gmra.mrb[0].mxu0 %v410
      %v2347 = vpop.f32.mrb[0].mxu0
      %v2348 = vadd.f32 0.0, %v2347
      %v2349 = vpop.f32.mrb[0].mxu0
      %v2350 = vpop.f32.mrb[0].mxu0
      %v2351 = vadd.f32 0.0, %v2350
      %v2352 = vpop.f32.mrb[0].mxu0
      %2353 = vmatprep.mubr.bf16.mxu0 0
      %2354 = vmatmul.mubr.bf16.gmra.mrb[0].mxu0 %v411
      %v2355 = vpop.f32.mrb[0].mxu0
      %v2356 = vadd.f32 0.0, %v2355
      %v2357 = vpop.f32.mrb[0].mxu0
      %v2358 = vpop.f32.mrb[0].mxu0
      %v2359 = vadd.f32 0.0, %v2358
      %v2360 = vpop.f32.mrb[0].mxu0
      %2361 = vdwg.mxu0
      %v2362 = vld [vmem:[%s246] sm:$0xff]
      %v2363 = vld [vmem:[%s246 + $0x8] sm:$0x7f]
      %v2364 = vld [vmem:[%s246 + $0x10] sm:$0xff]
      %v2365 = vld [vmem:[%s246 + $0x18] sm:$0x7f]
      %v2366 = vld [vmem:[%s246 + $0x20] sm:$0xff]
      %v2367 = vld [vmem:[%s246 + $0x28] sm:$0x7f]
      %v2368 = vld [vmem:[%s246 + $0x30] sm:$0xff]
      %v2369 = vld [vmem:[%s246 + $0x38] sm:$0x7f]
      %v2370 = vld [vmem:[%s246 + $0x40] sm:$0xff]
      %v2371 = vld [vmem:[%s246 + $0x48] sm:$0x7f]
      %v2372 = vld [vmem:[%s246 + $0x50] sm:$0xff]
      %v2373 = vld [vmem:[%s246 + $0x58] sm:$0x7f]
      %v2374 = vld [vmem:[%s246 + $0x60] sm:$0xff]
      %v2375 = vld [vmem:[%s246 + $0x68] sm:$0x7f]
      %v2376 = vld [vmem:[%s246 + $0x70] sm:$0xff]
      %v2377 = vld [vmem:[%s246 + $0x78] sm:$0x7f]
      %v2378 = vld [vmem:[%s246 + $0x80] sm:$0xff]
      %v2379 = vld [vmem:[%s246 + $0x88] sm:$0x7f]
      %v2380 = vld [vmem:[%s246 + $0x90] sm:$0xff]
      %v2381 = vld [vmem:[%s246 + $0x98] sm:$0x7f]
      %v2382 = vld [vmem:[%s246 + $0xa0] sm:$0xff]
      %v2383 = vld [vmem:[%s246 + $0xa8] sm:$0x7f]
      %v2384 = vld [vmem:[%s246 + $0xb0] sm:$0xff]
      %v2385 = vld [vmem:[%s246 + $0xb8] sm:$0x7f]
      %v2386 = vld [vmem:[%s246 + $0xc0] sm:$0xff]
      %v2387 = vld [vmem:[%s246 + $0xc8] sm:$0x7f]
      %v2388 = vld [vmem:[%s246 + $0xd0] sm:$0xff]
      %v2389 = vld [vmem:[%s246 + $0xd8] sm:$0x7f]
      %v2390 = vld [vmem:[%s246 + $0xe0] sm:$0xff]
      %v2391 = vld [vmem:[%s246 + $0xe8] sm:$0x7f]
      %v2392 = vld [vmem:[%s246 + $0xf0] sm:$0xff]
      %v2393 = vld [vmem:[%s246 + $0xf8] sm:$0x7f]
      %v2426 = vrot.slane %v2236, 1
      %v2427 = vrot.slane %v2239, 1
      %v2428 = vsel %vm1356, %v2426, %v2427
      %v2429 = vrot.slane %v2244, 1
      %v2430 = vrot.slane %v2247, 1
      %v2431 = vsel %vm1356, %v2429, %v2430
      %v2432 = vrot.slane %v2252, 1
      %v2433 = vrot.slane %v2255, 1
      %v2434 = vsel %vm1356, %v2432, %v2433
      %v2435 = vrot.slane %v2260, 1
      %v2436 = vrot.slane %v2263, 1
      %v2437 = vsel %vm1356, %v2435, %v2436
      %v2438 = vrot.slane %v2268, 1
      %v2439 = vrot.slane %v2271, 1
      %v2440 = vsel %vm1356, %v2438, %v2439
      %v2441 = vrot.slane %v2276, 1
      %v2442 = vrot.slane %v2279, 1
      %v2443 = vsel %vm1356, %v2441, %v2442
      %v2444 = vrot.slane %v2284, 1
      %v2445 = vrot.slane %v2287, 1
      %v2446 = vsel %vm1356, %v2444, %v2445
      %v2447 = vrot.slane %v2292, 1
      %v2448 = vrot.slane %v2295, 1
      %v2449 = vsel %vm1356, %v2447, %v2448
      %v2450 = vrot.slane %v2300, 1
      %v2451 = vrot.slane %v2303, 1
      %v2452 = vsel %vm1356, %v2450, %v2451
      %v2453 = vrot.slane %v2308, 1
      %v2454 = vrot.slane %v2311, 1
      %v2455 = vsel %vm1356, %v2453, %v2454
      %v2456 = vrot.slane %v2316, 1
      %v2457 = vrot.slane %v2319, 1
      %v2458 = vsel %vm1356, %v2456, %v2457
      %v2459 = vrot.slane %v2324, 1
      %v2460 = vrot.slane %v2327, 1
      %v2461 = vsel %vm1356, %v2459, %v2460
      %v2462 = vrot.slane %v2332, 1
      %v2463 = vrot.slane %v2335, 1
      %v2464 = vsel %vm1356, %v2462, %v2463
      %v2465 = vrot.slane %v2340, 1
      %v2466 = vrot.slane %v2343, 1
      %v2467 = vsel %vm1356, %v2465, %v2466
      %v2468 = vrot.slane %v2348, 1
      %v2469 = vrot.slane %v2351, 1
      %v2470 = vsel %vm1356, %v2468, %v2469
      %v2471 = vrot.slane %v2356, 1
      %v2472 = vrot.slane %v2359, 1
      %v2473 = vsel %vm1356, %v2471, %v2472
      %v2506 = vadd.f32 %v2362, %v2428
      %v2507 = vadd.f32 %v2363, %v2427
      %v2508 = vadd.f32 %v2364, %v2431
      %v2509 = vadd.f32 %v2365, %v2430
      %v2510 = vadd.f32 %v2366, %v2434
      %v2511 = vadd.f32 %v2367, %v2433
      %v2512 = vadd.f32 %v2368, %v2437
      %v2513 = vadd.f32 %v2369, %v2436
      %v2514 = vadd.f32 %v2370, %v2440
      %v2515 = vadd.f32 %v2371, %v2439
      %v2516 = vadd.f32 %v2372, %v2443
      %v2517 = vadd.f32 %v2373, %v2442
      %v2518 = vadd.f32 %v2374, %v2446
      %v2519 = vadd.f32 %v2375, %v2445
      %v2520 = vadd.f32 %v2376, %v2449
      %v2521 = vadd.f32 %v2377, %v2448
      %v2522 = vadd.f32 %v2378, %v2452
      %v2523 = vadd.f32 %v2379, %v2451
      %v2524 = vadd.f32 %v2380, %v2455
      %v2525 = vadd.f32 %v2381, %v2454
      %v2526 = vadd.f32 %v2382, %v2458
      %v2527 = vadd.f32 %v2383, %v2457
      %v2528 = vadd.f32 %v2384, %v2461
      %v2529 = vadd.f32 %v2385, %v2460
      %v2530 = vadd.f32 %v2386, %v2464
      %v2531 = vadd.f32 %v2387, %v2463
      %v2532 = vadd.f32 %v2388, %v2467
      %v2533 = vadd.f32 %v2389, %v2466
      %v2534 = vadd.f32 %v2390, %v2470
      %v2535 = vadd.f32 %v2391, %v2469
      %v2536 = vadd.f32 %v2392, %v2473
      %v2537 = vadd.f32 %v2393, %v2472
      %2538 = vst [vmem:[%s246] sm:$0xff] %v2506
      %2539 = vst [vmem:[%s246 + $0x8] sm:$0x7f] %v2507
      %2540 = vst [vmem:[%s246 + $0x10] sm:$0xff] %v2508
      %2541 = vst [vmem:[%s246 + $0x18] sm:$0x7f] %v2509
      %2542 = vst [vmem:[%s246 + $0x20] sm:$0xff] %v2510
      %2543 = vst [vmem:[%s246 + $0x28] sm:$0x7f] %v2511
      %2544 = vst [vmem:[%s246 + $0x30] sm:$0xff] %v2512
      %2545 = vst [vmem:[%s246 + $0x38] sm:$0x7f] %v2513
      %2546 = vst [vmem:[%s246 + $0x40] sm:$0xff] %v2514
      %2547 = vst [vmem:[%s246 + $0x48] sm:$0x7f] %v2515
      %2548 = vst [vmem:[%s246 + $0x50] sm:$0xff] %v2516
      %2549 = vst [vmem:[%s246 + $0x58] sm:$0x7f] %v2517
      %2550 = vst [vmem:[%s246 + $0x60] sm:$0xff] %v2518
      %2551 = vst [vmem:[%s246 + $0x68] sm:$0x7f] %v2519
      %2552 = vst [vmem:[%s246 + $0x70] sm:$0xff] %v2520
      %2553 = vst [vmem:[%s246 + $0x78] sm:$0x7f] %v2521
      %2554 = vst [vmem:[%s246 + $0x80] sm:$0xff] %v2522
      %2555 = vst [vmem:[%s246 + $0x88] sm:$0x7f] %v2523
      %2556 = vst [vmem:[%s246 + $0x90] sm:$0xff] %v2524
      %2557 = vst [vmem:[%s246 + $0x98] sm:$0x7f] %v2525
      %2558 = vst [vmem:[%s246 + $0xa0] sm:$0xff] %v2526
      %2559 = vst [vmem:[%s246 + $0xa8] sm:$0x7f] %v2527
      %2560 = vst [vmem:[%s246 + $0xb0] sm:$0xff] %v2528
      %2561 = vst [vmem:[%s246 + $0xb8] sm:$0x7f] %v2529
      %2562 = vst [vmem:[%s246 + $0xc0] sm:$0xff] %v2530
      %2563 = vst [vmem:[%s246 + $0xc8] sm:$0x7f] %v2531
      %2564 = vst [vmem:[%s246 + $0xd0] sm:$0xff] %v2532
      %2565 = vst [vmem:[%s246 + $0xd8] sm:$0x7f] %v2533
      %2566 = vst [vmem:[%s246 + $0xe0] sm:$0xff] %v2534
      %2567 = vst [vmem:[%s246 + $0xe8] sm:$0x7f] %v2535
      %2568 = vst [vmem:[%s246 + $0xf0] sm:$0xff] %v2536
      %2569 = vst [vmem:[%s246 + $0xf8] sm:$0x7f] %v2537
      %s2570 = scalar_lea.vmem %s3, 384
      %v2571 = vld [vmem:[%s2570] sm:$0xf]
      %v2572 = vld [vmem:[%s2570 + $0x4] sm:$0xf]
      %v2573 = vld [vmem:[%s2570 + $0x8] sm:$0xf]
      %v2574 = vld [vmem:[%s2570 + $0xc] sm:$0xf]
      %v2575 = vld [vmem:[%s2570 + $0x10] sm:$0xf]
      %v2576 = vld [vmem:[%s2570 + $0x14] sm:$0xf]
      %v2577 = vld [vmem:[%s2570 + $0x18] sm:$0xf]
      %v2578 = vld [vmem:[%s2570 + $0x1c] sm:$0xf]
      %v2579 = vld [vmem:[%s2570 + $0x20] sm:$0xf]
      %v2580 = vld [vmem:[%s2570 + $0x24] sm:$0xf]
      %v2581 = vld [vmem:[%s2570 + $0x28] sm:$0xf]
      %v2582 = vld [vmem:[%s2570 + $0x2c] sm:$0xf]
      %v2583 = vld [vmem:[%s2570 + $0x30] sm:$0xf]
      %v2584 = vld [vmem:[%s2570 + $0x34] sm:$0xf]
      %v2585 = vld [vmem:[%s2570 + $0x38] sm:$0xf]
      %v2586 = vld [vmem:[%s2570 + $0x3c] sm:$0xf]
      %v2603 = vunpack.c.l.b16 %v2571
      %v2604 = vunpack.c.l.b16 %v2572
      %v2605 = vunpack.c.l.b16 %v2573
      %v2606 = vunpack.c.l.b16 %v2574
      %v2607 = vunpack.c.l.b16 %v2575
      %v2608 = vunpack.c.l.b16 %v2576
      %v2609 = vunpack.c.l.b16 %v2577
      %v2610 = vunpack.c.l.b16 %v2578
      %v2611 = vunpack.c.l.b16 %v2579
      %v2612 = vunpack.c.l.b16 %v2580
      %v2613 = vunpack.c.l.b16 %v2581
      %v2614 = vunpack.c.l.b16 %v2582
      %v2615 = vunpack.c.l.b16 %v2583
      %v2616 = vunpack.c.l.b16 %v2584
      %v2617 = vunpack.c.l.b16 %v2585
      %v2618 = vunpack.c.l.b16 %v2586
      %v2619 = vpack.c.b16 %v2604, %v2603
      %v2620 = vpack.c.b16 %v2606, %v2605
      %v2621 = vpack.c.b16 %v2608, %v2607
      %v2622 = vpack.c.b16 %v2610, %v2609
      %v2623 = vpack.c.b16 %v2612, %v2611
      %v2624 = vpack.c.b16 %v2614, %v2613
      %v2625 = vpack.c.b16 %v2616, %v2615
      %v2626 = vpack.c.b16 %v2618, %v2617
      %2635 = vmatprep.subr.bf16.mxu0 0
      %2636 = vmatpush1.bf16.msra.mxu0 %v2619
      %2637 = vmatprep.subr.bf16.mxu0 0
      %2638 = vmatpush1.bf16.msra.mxu0 %v2620
      %2639 = vmatprep.subr.bf16.mxu0 0
      %2640 = vmatpush1.bf16.msra.mxu0 %v2621
      %2641 = vmatprep.subr.bf16.mxu0 0
      %2642 = vmatpush1.bf16.msra.mxu0 %v2622
      %2643 = vmatprep.subr.bf16.mxu0 0
      %2644 = vmatpush1.bf16.msra.mxu0 %v2623
      %2645 = vmatprep.subr.bf16.mxu0 0
      %2646 = vmatpush1.bf16.msra.mxu0 %v2624
      %2647 = vmatprep.subr.bf16.mxu0 0
      %2648 = vmatpush1.bf16.msra.mxu0 %v2625
      %2649 = vmatprep.subr.bf16.mxu0 0
      %2650 = vmatpush1.bf16.msra.mxu0 %v2626
      %2651 = vmatprep.subr.bf16.mxu0 0
      %2652 = vmatpush1.bf16.msra.mxu0 0
      %2653 = vmatprep.subr.bf16.mxu0 0
      %2654 = vmatpush1.bf16.msra.mxu0 0
      %2655 = vmatprep.subr.bf16.mxu0 0
      %2656 = vmatpush1.bf16.msra.mxu0 0
      %2657 = vmatprep.subr.bf16.mxu0 0
      %2658 = vmatpush1.bf16.msra.mxu0 0
      %2659 = vmatprep.subr.bf16.mxu0 0
      %2660 = vmatpush1.bf16.msra.mxu0 0
      %2661 = vmatprep.subr.bf16.mxu0 0
      %2662 = vmatpush1.bf16.msra.mxu0 0
      %2663 = vmatprep.subr.bf16.mxu0 0
      %2664 = vmatpush1.bf16.msra.mxu0 0
      %2665 = vmatprep.subr.bf16.mxu0 0
      %2666 = vmatpush1.bf16.msra.mxu0 0
      %2667 = vmatprep.mubr.bf16.mxu0 0
      %2668 = vmatmul.mubr.bf16.gmra.mrb[0].mxu0 %v396
      %v2669 = vpop.f32.mrb[0].mxu0
      %v2670 = vpop.f32.mrb[0].mxu0
      %v2671 = vpop.f32.mrb[0].mxu0
      %v2672 = vpop.f32.mrb[0].mxu0
      %2673 = vmatprep.mubr.bf16.mxu0 0
      %2674 = vmatmul.mubr.bf16.gmra.mrb[0].mxu0 %v397
      %v2675 = vpop.f32.mrb[0].mxu0
      %v2676 = vadd.f32 0.0, %v2675
      %v2677 = vpop.f32.mrb[0].mxu0
      %v2678 = vpop.f32.mrb[0].mxu0
      %v2679 = vadd.f32 0.0, %v2678
      %v2680 = vpop.f32.mrb[0].mxu0
      %2681 = vmatprep.mubr.bf16.mxu0 0
      %2682 = vmatmul.mubr.bf16.gmra.mrb[0].mxu0 %v398
      %v2683 = vpop.f32.mrb[0].mxu0
      %v2684 = vadd.f32 0.0, %v2683
      %v2685 = vpop.f32.mrb[0].mxu0
      %v2686 = vpop.f32.mrb[0].mxu0
      %v2687 = vadd.f32 0.0, %v2686
      %v2688 = vpop.f32.mrb[0].mxu0
      %2689 = vmatprep.mubr.bf16.mxu0 0
      %2690 = vmatmul.mubr.bf16.gmra.mrb[0].mxu0 %v399
      %v2691 = vpop.f32.mrb[0].mxu0
      %v2692 = vadd.f32 0.0, %v2691
      %v2693 = vpop.f32.mrb[0].mxu0
      %v2694 = vpop.f32.mrb[0].mxu0
      %v2695 = vadd.f32 0.0, %v2694
      %v2696 = vpop.f32.mrb[0].mxu0
      %2697 = vmatprep.mubr.bf16.mxu0 0
      %2698 = vmatmul.mubr.bf16.gmra.mrb[0].mxu0 %v400
      %v2699 = vpop.f32.mrb[0].mxu0
      %v2700 = vadd.f32 0.0, %v2699
      %v2701 = vpop.f32.mrb[0].mxu0
      %v2702 = vpop.f32.mrb[0].mxu0
      %v2703 = vadd.f32 0.0, %v2702
      %v2704 = vpop.f32.mrb[0].mxu0
      %2705 = vmatprep.mubr.bf16.mxu0 0
      %2706 = vmatmul.mubr.bf16.gmra.mrb[0].mxu0 %v401
      %v2707 = vpop.f32.mrb[0].mxu0
      %v2708 = vadd.f32 0.0, %v2707
      %v2709 = vpop.f32.mrb[0].mxu0
      %v2710 = vpop.f32.mrb[0].mxu0
      %v2711 = vadd.f32 0.0, %v2710
      %v2712 = vpop.f32.mrb[0].mxu0
      %2713 = vmatprep.mubr.bf16.mxu0 0
      %2714 = vmatmul.mubr.bf16.gmra.mrb[0].mxu0 %v402
      %v2715 = vpop.f32.mrb[0].mxu0
      %v2716 = vadd.f32 0.0, %v2715
      %v2717 = vpop.f32.mrb[0].mxu0
      %v2718 = vpop.f32.mrb[0].mxu0
      %v2719 = vadd.f32 0.0, %v2718
      %v2720 = vpop.f32.mrb[0].mxu0
      %2721 = vmatprep.mubr.bf16.mxu0 0
      %2722 = vmatmul.mubr.bf16.gmra.mrb[0].mxu0 %v403
      %v2723 = vpop.f32.mrb[0].mxu0
      %v2724 = vadd.f32 0.0, %v2723
      %v2725 = vpop.f32.mrb[0].mxu0
      %v2726 = vpop.f32.mrb[0].mxu0
      %v2727 = vadd.f32 0.0, %v2726
      %v2728 = vpop.f32.mrb[0].mxu0
      %2729 = vmatprep.mubr.bf16.mxu0 0
      %2730 = vmatmul.mubr.bf16.gmra.mrb[0].mxu0 %v404
      %v2731 = vpop.f32.mrb[0].mxu0
      %v2732 = vadd.f32 0.0, %v2731
      %v2733 = vpop.f32.mrb[0].mxu0
      %v2734 = vpop.f32.mrb[0].mxu0
      %v2735 = vadd.f32 0.0, %v2734
      %v2736 = vpop.f32.mrb[0].mxu0
      %2737 = vmatprep.mubr.bf16.mxu0 0
      %2738 = vmatmul.mubr.bf16.gmra.mrb[0].mxu0 %v405
      %v2739 = vpop.f32.mrb[0].mxu0
      %v2740 = vadd.f32 0.0, %v2739
      %v2741 = vpop.f32.mrb[0].mxu0
      %v2742 = vpop.f32.mrb[0].mxu0
      %v2743 = vadd.f32 0.0, %v2742
      %v2744 = vpop.f32.mrb[0].mxu0
      %2745 = vmatprep.mubr.bf16.mxu0 0
      %2746 = vmatmul.mubr.bf16.gmra.mrb[0].mxu0 %v406
      %v2747 = vpop.f32.mrb[0].mxu0
      %v2748 = vadd.f32 0.0, %v2747
      %v2749 = vpop.f32.mrb[0].mxu0
      %v2750 = vpop.f32.mrb[0].mxu0
      %v2751 = vadd.f32 0.0, %v2750
      %v2752 = vpop.f32.mrb[0].mxu0
      %2753 = vmatprep.mubr.bf16.mxu0 0
      %2754 = vmatmul.mubr.bf16.gmra.mrb[0].mxu0 %v407
      %v2755 = vpop.f32.mrb[0].mxu0
      %v2756 = vadd.f32 0.0, %v2755
      %v2757 = vpop.f32.mrb[0].mxu0
      %v2758 = vpop.f32.mrb[0].mxu0
      %v2759 = vadd.f32 0.0, %v2758
      %v2760 = vpop.f32.mrb[0].mxu0
      %2761 = vmatprep.mubr.bf16.mxu0 0
      %2762 = vmatmul.mubr.bf16.gmra.mrb[0].mxu0 %v408
      %v2763 = vpop.f32.mrb[0].mxu0
      %v2764 = vadd.f32 0.0, %v2763
      %v2765 = vpop.f32.mrb[0].mxu0
      %v2766 = vpop.f32.mrb[0].mxu0
      %v2767 = vadd.f32 0.0, %v2766
      %v2768 = vpop.f32.mrb[0].mxu0
      %2769 = vmatprep.mubr.bf16.mxu0 0
      %2770 = vmatmul.mubr.bf16.gmra.mrb[0].mxu0 %v409
      %v2771 = vpop.f32.mrb[0].mxu0
      %v2772 = vadd.f32 0.0, %v2771
      %v2773 = vpop.f32.mrb[0].mxu0
      %v2774 = vpop.f32.mrb[0].mxu0
      %v2775 = vadd.f32 0.0, %v2774
      %v2776 = vpop.f32.mrb[0].mxu0
      %2777 = vmatprep.mubr.bf16.mxu0 0
      %2778 = vmatmul.mubr.bf16.gmra.mrb[0].mxu0 %v410
      %v2779 = vpop.f32.mrb[0].mxu0
      %v2780 = vadd.f32 0.0, %v2779
      %v2781 = vpop.f32.mrb[0].mxu0
      %v2782 = vpop.f32.mrb[0].mxu0
      %v2783 = vadd.f32 0.0, %v2782
      %v2784 = vpop.f32.mrb[0].mxu0
      %2785 = vmatprep.mubr.bf16.mxu0 0
      %2786 = vmatmul.mubr.bf16.gmra.mrb[0].mxu0 %v411
      %v2787 = vpop.f32.mrb[0].mxu0
      %v2788 = vadd.f32 0.0, %v2787
      %v2789 = vpop.f32.mrb[0].mxu0
      %v2790 = vpop.f32.mrb[0].mxu0
      %v2791 = vadd.f32 0.0, %v2790
      %v2792 = vpop.f32.mrb[0].mxu0
      %2793 = vdwg.mxu0
      %v2794 = vld [vmem:[%s246 + $0x1] sm:$0xff]
      %v2795 = vld [vmem:[%s246 + $0x9] sm:$0x7f]
      %v2796 = vld [vmem:[%s246 + $0x11] sm:$0xff]
      %v2797 = vld [vmem:[%s246 + $0x19] sm:$0x7f]
      %v2798 = vld [vmem:[%s246 + $0x21] sm:$0xff]
      %v2799 = vld [vmem:[%s246 + $0x29] sm:$0x7f]
      %v2800 = vld [vmem:[%s246 + $0x31] sm:$0xff]
      %v2801 = vld [vmem:[%s246 + $0x39] sm:$0x7f]
      %v2802 = vld [vmem:[%s246 + $0x41] sm:$0xff]
      %v2803 = vld [vmem:[%s246 + $0x49] sm:$0x7f]
      %v2804 = vld [vmem:[%s246 + $0x51] sm:$0xff]
      %v2805 = vld [vmem:[%s246 + $0x59] sm:$0x7f]
      %v2806 = vld [vmem:[%s246 + $0x61] sm:$0xff]
      %v2807 = vld [vmem:[%s246 + $0x69] sm:$0x7f]
      %v2808 = vld [vmem:[%s246 + $0x71] sm:$0xff]
      %v2809 = vld [vmem:[%s246 + $0x79] sm:$0x7f]
      %v2810 = vld [vmem:[%s246 + $0x81] sm:$0xff]
      %v2811 = vld [vmem:[%s246 + $0x89] sm:$0x7f]
      %v2812 = vld [vmem:[%s246 + $0x91] sm:$0xff]
      %v2813 = vld [vmem:[%s246 + $0x99] sm:$0x7f]
      %v2814 = vld [vmem:[%s246 + $0xa1] sm:$0xff]
      %v2815 = vld [vmem:[%s246 + $0xa9] sm:$0x7f]
      %v2816 = vld [vmem:[%s246 + $0xb1] sm:$0xff]
      %v2817 = vld [vmem:[%s246 + $0xb9] sm:$0x7f]
      %v2818 = vld [vmem:[%s246 + $0xc1] sm:$0xff]
      %v2819 = vld [vmem:[%s246 + $0xc9] sm:$0x7f]
      %v2820 = vld [vmem:[%s246 + $0xd1] sm:$0xff]
      %v2821 = vld [vmem:[%s246 + $0xd9] sm:$0x7f]
      %v2822 = vld [vmem:[%s246 + $0xe1] sm:$0xff]
      %v2823 = vld [vmem:[%s246 + $0xe9] sm:$0x7f]
      %v2824 = vadd.f32 %v2794, %v2676
      %v2825 = vadd.f32 %v2795, %v2679
      %v2826 = vadd.f32 %v2796, %v2684
      %v2827 = vadd.f32 %v2797, %v2687
      %v2828 = vadd.f32 %v2798, %v2692
      %v2829 = vadd.f32 %v2799, %v2695
      %v2830 = vadd.f32 %v2800, %v2700
      %v2831 = vadd.f32 %v2801, %v2703
      %v2832 = vadd.f32 %v2802, %v2708
      %v2833 = vadd.f32 %v2803, %v2711
      %v2834 = vadd.f32 %v2804, %v2716
      %v2835 = vadd.f32 %v2805, %v2719
      %v2836 = vadd.f32 %v2806, %v2724
      %v2837 = vadd.f32 %v2807, %v2727
      %v2838 = vadd.f32 %v2808, %v2732
      %v2839 = vadd.f32 %v2809, %v2735
      %v2840 = vadd.f32 %v2810, %v2740
      %v2841 = vadd.f32 %v2811, %v2743
      %v2842 = vadd.f32 %v2812, %v2748
      %v2843 = vadd.f32 %v2813, %v2751
      %v2844 = vadd.f32 %v2814, %v2756
      %v2845 = vadd.f32 %v2815, %v2759
      %v2846 = vadd.f32 %v2816, %v2764
      %v2847 = vadd.f32 %v2817, %v2767
      %v2848 = vadd.f32 %v2818, %v2772
      %v2849 = vadd.f32 %v2819, %v2775
      %v2850 = vadd.f32 %v2820, %v2780
      %v2851 = vadd.f32 %v2821, %v2783
      %v2852 = vadd.f32 %v2822, %v2788
      %v2853 = vadd.f32 %v2823, %v2791
      %2854 = vst [vmem:[%s246 + $0x1] sm:$0xff] %v2824
      %2855 = vst [vmem:[%s246 + $0x9] sm:$0x7f] %v2825
      %2856 = vst [vmem:[%s246 + $0x11] sm:$0xff] %v2826
      %2857 = vst [vmem:[%s246 + $0x19] sm:$0x7f] %v2827
      %2858 = vst [vmem:[%s246 + $0x21] sm:$0xff] %v2828
      %2859 = vst [vmem:[%s246 + $0x29] sm:$0x7f] %v2829
      %2860 = vst [vmem:[%s246 + $0x31] sm:$0xff] %v2830
      %2861 = vst [vmem:[%s246 + $0x39] sm:$0x7f] %v2831
      %2862 = vst [vmem:[%s246 + $0x41] sm:$0xff] %v2832
      %2863 = vst [vmem:[%s246 + $0x49] sm:$0x7f] %v2833
      %2864 = vst [vmem:[%s246 + $0x51] sm:$0xff] %v2834
      %2865 = vst [vmem:[%s246 + $0x59] sm:$0x7f] %v2835
      %2866 = vst [vmem:[%s246 + $0x61] sm:$0xff] %v2836
      %2867 = vst [vmem:[%s246 + $0x69] sm:$0x7f] %v2837
      %2868 = vst [vmem:[%s246 + $0x71] sm:$0xff] %v2838
      %2869 = vst [vmem:[%s246 + $0x79] sm:$0x7f] %v2839
      %2870 = vst [vmem:[%s246 + $0x81] sm:$0xff] %v2840
      %2871 = vst [vmem:[%s246 + $0x89] sm:$0x7f] %v2841
      %2872 = vst [vmem:[%s246 + $0x91] sm:$0xff] %v2842
      %2873 = vst [vmem:[%s246 + $0x99] sm:$0x7f] %v2843
      %2874 = vst [vmem:[%s246 + $0xa1] sm:$0xff] %v2844
      %2875 = vst [vmem:[%s246 + $0xa9] sm:$0x7f] %v2845
      %2876 = vst [vmem:[%s246 + $0xb1] sm:$0xff] %v2846
      %2877 = vst [vmem:[%s246 + $0xb9] sm:$0x7f] %v2847
      %2878 = vst [vmem:[%s246 + $0xc1] sm:$0xff] %v2848
      %2879 = vst [vmem:[%s246 + $0xc9] sm:$0x7f] %v2849
      %2880 = vst [vmem:[%s246 + $0xd1] sm:$0xff] %v2850
      %2881 = vst [vmem:[%s246 + $0xd9] sm:$0x7f] %v2851
      %2882 = vst [vmem:[%s246 + $0xe1] sm:$0xff] %v2852
      %2883 = vst [vmem:[%s246 + $0xe9] sm:$0x7f] %v2853
      %s2884 = scalar_lea.vmem %s3, 448
      %v2885 = vld [vmem:[%s2884] sm:$0xf]
      %v2886 = vld [vmem:[%s2884 + $0x4] sm:$0xf]
      %v2887 = vld [vmem:[%s2884 + $0x8] sm:$0xf]
      %v2888 = vld [vmem:[%s2884 + $0xc] sm:$0xf]
      %v2889 = vld [vmem:[%s2884 + $0x10] sm:$0xf]
      %v2890 = vld [vmem:[%s2884 + $0x14] sm:$0xf]
      %v2891 = vld [vmem:[%s2884 + $0x18] sm:$0xf]
      %v2892 = vld [vmem:[%s2884 + $0x1c] sm:$0xf]
      %v2893 = vld [vmem:[%s2884 + $0x20] sm:$0xf]
      %v2894 = vld [vmem:[%s2884 + $0x24] sm:$0xf]
      %v2895 = vld [vmem:[%s2884 + $0x28] sm:$0xf]
      %v2896 = vld [vmem:[%s2884 + $0x2c] sm:$0xf]
      %v2897 = vld [vmem:[%s2884 + $0x30] sm:$0xf]
      %v2898 = vld [vmem:[%s2884 + $0x34] sm:$0xf]
      %v2899 = vld [vmem:[%s2884 + $0x38] sm:$0xf]
      %v2900 = vld [vmem:[%s2884 + $0x3c] sm:$0xf]
      %v2917 = vunpack.c.l.b16 %v2885
      %v2918 = vunpack.c.l.b16 %v2886
      %v2919 = vunpack.c.l.b16 %v2887
      %v2920 = vunpack.c.l.b16 %v2888
      %v2921 = vunpack.c.l.b16 %v2889
      %v2922 = vunpack.c.l.b16 %v2890
      %v2923 = vunpack.c.l.b16 %v2891
      %v2924 = vunpack.c.l.b16 %v2892
      %v2925 = vunpack.c.l.b16 %v2893
      %v2926 = vunpack.c.l.b16 %v2894
      %v2927 = vunpack.c.l.b16 %v2895
      %v2928 = vunpack.c.l.b16 %v2896
      %v2929 = vunpack.c.l.b16 %v2897
      %v2930 = vunpack.c.l.b16 %v2898
      %v2931 = vunpack.c.l.b16 %v2899
      %v2932 = vunpack.c.l.b16 %v2900
      %v2933 = vpack.c.b16 %v2918, %v2917
      %v2934 = vpack.c.b16 %v2920, %v2919
      %v2935 = vpack.c.b16 %v2922, %v2921
      %v2936 = vpack.c.b16 %v2924, %v2923
      %v2937 = vpack.c.b16 %v2926, %v2925
      %v2938 = vpack.c.b16 %v2928, %v2927
      %v2939 = vpack.c.b16 %v2930, %v2929
      %v2940 = vpack.c.b16 %v2932, %v2931
      %2949 = vmatprep.subr.bf16.mxu0 0
      %2950 = vmatpush1.bf16.msra.mxu0 %v2933
      %2951 = vmatprep.subr.bf16.mxu0 0
      %2952 = vmatpush1.bf16.msra.mxu0 %v2934
      %2953 = vmatprep.subr.bf16.mxu0 0
      %2954 = vmatpush1.bf16.msra.mxu0 %v2935
      %2955 = vmatprep.subr.bf16.mxu0 0
      %2956 = vmatpush1.bf16.msra.mxu0 %v2936
      %2957 = vmatprep.subr.bf16.mxu0 0
      %2958 = vmatpush1.bf16.msra.mxu0 %v2937
      %2959 = vmatprep.subr.bf16.mxu0 0
      %2960 = vmatpush1.bf16.msra.mxu0 %v2938
      %2961 = vmatprep.subr.bf16.mxu0 0
      %2962 = vmatpush1.bf16.msra.mxu0 %v2939
      %2963 = vmatprep.subr.bf16.mxu0 0
      %2964 = vmatpush1.bf16.msra.mxu0 %v2940
      %2965 = vmatprep.subr.bf16.mxu0 0
      %2966 = vmatpush1.bf16.msra.mxu0 0
      %2967 = vmatprep.subr.bf16.mxu0 0
      %2968 = vmatpush1.bf16.msra.mxu0 0
      %2969 = vmatprep.subr.bf16.mxu0 0
      %2970 = vmatpush1.bf16.msra.mxu0 0
      %2971 = vmatprep.subr.bf16.mxu0 0
      %2972 = vmatpush1.bf16.msra.mxu0 0
      %2973 = vmatprep.subr.bf16.mxu0 0
      %2974 = vmatpush1.bf16.msra.mxu0 0
      %2975 = vmatprep.subr.bf16.mxu0 0
      %2976 = vmatpush1.bf16.msra.mxu0 0
      %2977 = vmatprep.subr.bf16.mxu0 0
      %2978 = vmatpush1.bf16.msra.mxu0 0
      %2979 = vmatprep.subr.bf16.mxu0 0
      %2980 = vmatpush1.bf16.msra.mxu0 0
      %2981 = vmatprep.mubr.bf16.mxu0 0
      %2982 = vmatmul.mubr.bf16.gmra.mrb[0].mxu0 %v396
      %v2983 = vpop.f32.mrb[0].mxu0
      %v2984 = vpop.f32.mrb[0].mxu0
      %v2985 = vpop.f32.mrb[0].mxu0
      %v2986 = vpop.f32.mrb[0].mxu0
      %2987 = vmatprep.mubr.bf16.mxu0 0
      %2988 = vmatmul.mubr.bf16.gmra.mrb[0].mxu0 %v397
      %v2989 = vpop.f32.mrb[0].mxu0
      %v2990 = vadd.f32 0.0, %v2989
      %v2991 = vpop.f32.mrb[0].mxu0
      %v2992 = vpop.f32.mrb[0].mxu0
      %v2993 = vadd.f32 0.0, %v2992
      %v2994 = vpop.f32.mrb[0].mxu0
      %2995 = vmatprep.mubr.bf16.mxu0 0
      %2996 = vmatmul.mubr.bf16.gmra.mrb[0].mxu0 %v398
      %v2997 = vpop.f32.mrb[0].mxu0
      %v2998 = vadd.f32 0.0, %v2997
      %v2999 = vpop.f32.mrb[0].mxu0
      %v3000 = vpop.f32.mrb[0].mxu0
      %v3001 = vadd.f32 0.0, %v3000
      %v3002 = vpop.f32.mrb[0].mxu0
      %3003 = vmatprep.mubr.bf16.mxu0 0
      %3004 = vmatmul.mubr.bf16.gmra.mrb[0].mxu0 %v399
      %v3005 = vpop.f32.mrb[0].mxu0
      %v3006 = vadd.f32 0.0, %v3005
      %v3007 = vpop.f32.mrb[0].mxu0
      %v3008 = vpop.f32.mrb[0].mxu0
      %v3009 = vadd.f32 0.0, %v3008
      %v3010 = vpop.f32.mrb[0].mxu0
      %3011 = vmatprep.mubr.bf16.mxu0 0
      %3012 = vmatmul.mubr.bf16.gmra.mrb[0].mxu0 %v400
      %v3013 = vpop.f32.mrb[0].mxu0
      %v3014 = vadd.f32 0.0, %v3013
      %v3015 = vpop.f32.mrb[0].mxu0
      %v3016 = vpop.f32.mrb[0].mxu0
      %v3017 = vadd.f32 0.0, %v3016
      %v3018 = vpop.f32.mrb[0].mxu0
      %3019 = vmatprep.mubr.bf16.mxu0 0
      %3020 = vmatmul.mubr.bf16.gmra.mrb[0].mxu0 %v401
      %v3021 = vpop.f32.mrb[0].mxu0
      %v3022 = vadd.f32 0.0, %v3021
      %v3023 = vpop.f32.mrb[0].mxu0
      %v3024 = vpop.f32.mrb[0].mxu0
      %v3025 = vadd.f32 0.0, %v3024
      %v3026 = vpop.f32.mrb[0].mxu0
      %3027 = vmatprep.mubr.bf16.mxu0 0
      %3028 = vmatmul.mubr.bf16.gmra.mrb[0].mxu0 %v402
      %v3029 = vpop.f32.mrb[0].mxu0
      %v3030 = vadd.f32 0.0, %v3029
      %v3031 = vpop.f32.mrb[0].mxu0
      %v3032 = vpop.f32.mrb[0].mxu0
      %v3033 = vadd.f32 0.0, %v3032
      %v3034 = vpop.f32.mrb[0].mxu0
      %3035 = vmatprep.mubr.bf16.mxu0 0
      %3036 = vmatmul.mubr.bf16.gmra.mrb[0].mxu0 %v403
      %v3037 = vpop.f32.mrb[0].mxu0
      %v3038 = vadd.f32 0.0, %v3037
      %v3039 = vpop.f32.mrb[0].mxu0
      %v3040 = vpop.f32.mrb[0].mxu0
      %v3041 = vadd.f32 0.0, %v3040
      %v3042 = vpop.f32.mrb[0].mxu0
      %3043 = vmatprep.mubr.bf16.mxu0 0
      %3044 = vmatmul.mubr.bf16.gmra.mrb[0].mxu0 %v404
      %v3045 = vpop.f32.mrb[0].mxu0
      %v3046 = vadd.f32 0.0, %v3045
      %v3047 = vpop.f32.mrb[0].mxu0
      %v3048 = vpop.f32.mrb[0].mxu0
      %v3049 = vadd.f32 0.0, %v3048
      %v3050 = vpop.f32.mrb[0].mxu0
      %3051 = vmatprep.mubr.bf16.mxu0 0
      %3052 = vmatmul.mubr.bf16.gmra.mrb[0].mxu0 %v405
      %v3053 = vpop.f32.mrb[0].mxu0
      %v3054 = vadd.f32 0.0, %v3053
      %v3055 = vpop.f32.mrb[0].mxu0
      %v3056 = vpop.f32.mrb[0].mxu0
      %v3057 = vadd.f32 0.0, %v3056
      %v3058 = vpop.f32.mrb[0].mxu0
      %3059 = vmatprep.mubr.bf16.mxu0 0
      %3060 = vmatmul.mubr.bf16.gmra.mrb[0].mxu0 %v406
      %v3061 = vpop.f32.mrb[0].mxu0
      %v3062 = vadd.f32 0.0, %v3061
      %v3063 = vpop.f32.mrb[0].mxu0
      %v3064 = vpop.f32.mrb[0].mxu0
      %v3065 = vadd.f32 0.0, %v3064
      %v3066 = vpop.f32.mrb[0].mxu0
      %3067 = vmatprep.mubr.bf16.mxu0 0
      %3068 = vmatmul.mubr.bf16.gmra.mrb[0].mxu0 %v407
      %v3069 = vpop.f32.mrb[0].mxu0
      %v3070 = vadd.f32 0.0, %v3069
      %v3071 = vpop.f32.mrb[0].mxu0
      %v3072 = vpop.f32.mrb[0].mxu0
      %v3073 = vadd.f32 0.0, %v3072
      %v3074 = vpop.f32.mrb[0].mxu0
      %3075 = vmatprep.mubr.bf16.mxu0 0
      %3076 = vmatmul.mubr.bf16.gmra.mrb[0].mxu0 %v408
      %v3077 = vpop.f32.mrb[0].mxu0
      %v3078 = vadd.f32 0.0, %v3077
      %v3079 = vpop.f32.mrb[0].mxu0
      %v3080 = vpop.f32.mrb[0].mxu0
      %v3081 = vadd.f32 0.0, %v3080
      %v3082 = vpop.f32.mrb[0].mxu0
      %3083 = vmatprep.mubr.bf16.mxu0 0
      %3084 = vmatmul.mubr.bf16.gmra.mrb[0].mxu0 %v409
      %v3085 = vpop.f32.mrb[0].mxu0
      %v3086 = vadd.f32 0.0, %v3085
      %v3087 = vpop.f32.mrb[0].mxu0
      %v3088 = vpop.f32.mrb[0].mxu0
      %v3089 = vadd.f32 0.0, %v3088
      %v3090 = vpop.f32.mrb[0].mxu0
      %3091 = vmatprep.mubr.bf16.mxu0 0
      %3092 = vmatmul.mubr.bf16.gmra.mrb[0].mxu0 %v410
      %v3093 = vpop.f32.mrb[0].mxu0
      %v3094 = vadd.f32 0.0, %v3093
      %v3095 = vpop.f32.mrb[0].mxu0
      %v3096 = vpop.f32.mrb[0].mxu0
      %v3097 = vadd.f32 0.0, %v3096
      %v3098 = vpop.f32.mrb[0].mxu0
      %3099 = vmatprep.mubr.bf16.mxu0 0
      %3100 = vmatmul.mubr.bf16.gmra.mrb[0].mxu0 %v411
      %v3101 = vpop.f32.mrb[0].mxu0
      %v3102 = vadd.f32 0.0, %v3101
      %v3103 = vpop.f32.mrb[0].mxu0
      %v3104 = vpop.f32.mrb[0].mxu0
      %v3105 = vadd.f32 0.0, %v3104
      %v3106 = vpop.f32.mrb[0].mxu0
      %3107 = vdwg.mxu0
      %v3108 = vld [vmem:[%s246] sm:$0xff]
      %v3109 = vld [vmem:[%s246 + $0x8] sm:$0xff]
      %v3110 = vld [vmem:[%s246 + $0x10] sm:$0xff]
      %v3111 = vld [vmem:[%s246 + $0x18] sm:$0xff]
      %v3112 = vld [vmem:[%s246 + $0x20] sm:$0xff]
      %v3113 = vld [vmem:[%s246 + $0x28] sm:$0xff]
      %v3114 = vld [vmem:[%s246 + $0x30] sm:$0xff]
      %v3115 = vld [vmem:[%s246 + $0x38] sm:$0xff]
      %v3116 = vld [vmem:[%s246 + $0x40] sm:$0xff]
      %v3117 = vld [vmem:[%s246 + $0x48] sm:$0xff]
      %v3118 = vld [vmem:[%s246 + $0x50] sm:$0xff]
      %v3119 = vld [vmem:[%s246 + $0x58] sm:$0xff]
      %v3120 = vld [vmem:[%s246 + $0x60] sm:$0xff]
      %v3121 = vld [vmem:[%s246 + $0x68] sm:$0xff]
      %v3122 = vld [vmem:[%s246 + $0x70] sm:$0xff]
      %v3123 = vld [vmem:[%s246 + $0x78] sm:$0xff]
      %v3124 = vld [vmem:[%s246 + $0x80] sm:$0xff]
      %v3125 = vld [vmem:[%s246 + $0x88] sm:$0xff]
      %v3126 = vld [vmem:[%s246 + $0x90] sm:$0xff]
      %v3127 = vld [vmem:[%s246 + $0x98] sm:$0xff]
      %v3128 = vld [vmem:[%s246 + $0xa0] sm:$0xff]
      %v3129 = vld [vmem:[%s246 + $0xa8] sm:$0xff]
      %v3130 = vld [vmem:[%s246 + $0xb0] sm:$0xff]
      %v3131 = vld [vmem:[%s246 + $0xb8] sm:$0xff]
      %v3132 = vld [vmem:[%s246 + $0xc0] sm:$0xff]
      %v3133 = vld [vmem:[%s246 + $0xc8] sm:$0xff]
      %v3134 = vld [vmem:[%s246 + $0xd0] sm:$0xff]
      %v3135 = vld [vmem:[%s246 + $0xd8] sm:$0xff]
      %v3136 = vld [vmem:[%s246 + $0xe0] sm:$0xff]
      %v3137 = vld [vmem:[%s246 + $0xe8] sm:$0xff]
      %v3138 = vadd.f32 %v3108, %v2990
      %v3139 = vadd.f32 %v3109, %v2993
      %v3140 = vadd.f32 %v3110, %v2998
      %v3141 = vadd.f32 %v3111, %v3001
      %v3142 = vadd.f32 %v3112, %v3006
      %v3143 = vadd.f32 %v3113, %v3009
      %v3144 = vadd.f32 %v3114, %v3014
      %v3145 = vadd.f32 %v3115, %v3017
      %v3146 = vadd.f32 %v3116, %v3022
      %v3147 = vadd.f32 %v3117, %v3025
      %v3148 = vadd.f32 %v3118, %v3030
      %v3149 = vadd.f32 %v3119, %v3033
      %v3150 = vadd.f32 %v3120, %v3038
      %v3151 = vadd.f32 %v3121, %v3041
      %v3152 = vadd.f32 %v3122, %v3046
      %v3153 = vadd.f32 %v3123, %v3049
      %v3154 = vadd.f32 %v3124, %v3054
      %v3155 = vadd.f32 %v3125, %v3057
      %v3156 = vadd.f32 %v3126, %v3062
      %v3157 = vadd.f32 %v3127, %v3065
      %v3158 = vadd.f32 %v3128, %v3070
      %v3159 = vadd.f32 %v3129, %v3073
      %v3160 = vadd.f32 %v3130, %v3078
      %v3161 = vadd.f32 %v3131, %v3081
      %v3162 = vadd.f32 %v3132, %v3086
      %v3163 = vadd.f32 %v3133, %v3089
      %v3164 = vadd.f32 %v3134, %v3094
      %v3165 = vadd.f32 %v3135, %v3097
      %v3166 = vadd.f32 %v3136, %v3102
      %v3167 = vadd.f32 %v3137, %v3105
      %3168 = vst [vmem:[%s246] sm:$0xff] %v3138
      %3169 = vst [vmem:[%s246 + $0x8] sm:$0xff] %v3139
      %3170 = vst [vmem:[%s246 + $0x10] sm:$0xff] %v3140
      %3171 = vst [vmem:[%s246 + $0x18] sm:$0xff] %v3141
      %3172 = vst [vmem:[%s246 + $0x20] sm:$0xff] %v3142
      %3173 = vst [vmem:[%s246 + $0x28] sm:$0xff] %v3143
      %3174 = vst [vmem:[%s246 + $0x30] sm:$0xff] %v3144
      %3175 = vst [vmem:[%s246 + $0x38] sm:$0xff] %v3145
      %3176 = vst [vmem:[%s246 + $0x40] sm:$0xff] %v3146
      %3177 = vst [vmem:[%s246 + $0x48] sm:$0xff] %v3147
      %3178 = vst [vmem:[%s246 + $0x50] sm:$0xff] %v3148
      %3179 = vst [vmem:[%s246 + $0x58] sm:$0xff] %v3149
      %3180 = vst [vmem:[%s246 + $0x60] sm:$0xff] %v3150
      %3181 = vst [vmem:[%s246 + $0x68] sm:$0xff] %v3151
      %3182 = vst [vmem:[%s246 + $0x70] sm:$0xff] %v3152
      %3183 = vst [vmem:[%s246 + $0x78] sm:$0xff] %v3153
      %3184 = vst [vmem:[%s246 + $0x80] sm:$0xff] %v3154
      %3185 = vst [vmem:[%s246 + $0x88] sm:$0xff] %v3155
      %3186 = vst [vmem:[%s246 + $0x90] sm:$0xff] %v3156
      %3187 = vst [vmem:[%s246 + $0x98] sm:$0xff] %v3157
      %3188 = vst [vmem:[%s246 + $0xa0] sm:$0xff] %v3158
      %3189 = vst [vmem:[%s246 + $0xa8] sm:$0xff] %v3159
      %3190 = vst [vmem:[%s246 + $0xb0] sm:$0xff] %v3160
      %3191 = vst [vmem:[%s246 + $0xb8] sm:$0xff] %v3161
      %3192 = vst [vmem:[%s246 + $0xc0] sm:$0xff] %v3162
      %3193 = vst [vmem:[%s246 + $0xc8] sm:$0xff] %v3163
      %3194 = vst [vmem:[%s246 + $0xd0] sm:$0xff] %v3164
      %3195 = vst [vmem:[%s246 + $0xd8] sm:$0xff] %v3165
      %3196 = vst [vmem:[%s246 + $0xe0] sm:$0xff] %v3166
      %3197 = vst [vmem:[%s246 + $0xe8] sm:$0xff] %v3167
      %s3198 = scalar_lea.vmem %s3, 512
      %v3199 = vld [vmem:[%s3198] sm:$0xf]
      %v3200 = vld [vmem:[%s3198 + $0x4] sm:$0xf]
      %v3201 = vld [vmem:[%s3198 + $0x8] sm:$0xf]
      %v3202 = vld [vmem:[%s3198 + $0xc] sm:$0xf]
      %v3203 = vld [vmem:[%s3198 + $0x10] sm:$0xf]
      %v3204 = vld [vmem:[%s3198 + $0x14] sm:$0xf]
      %v3205 = vld [vmem:[%s3198 + $0x18] sm:$0xf]
      %v3206 = vld [vmem:[%s3198 + $0x1c] sm:$0xf]
      %v3207 = vld [vmem:[%s3198 + $0x20] sm:$0xf]
      %v3208 = vld [vmem:[%s3198 + $0x24] sm:$0xf]
      %v3209 = vld [vmem:[%s3198 + $0x28] sm:$0xf]
      %v3210 = vld [vmem:[%s3198 + $0x2c] sm:$0xf]
      %v3211 = vld [vmem:[%s3198 + $0x30] sm:$0xf]
      %v3212 = vld [vmem:[%s3198 + $0x34] sm:$0xf]
      %v3213 = vld [vmem:[%s3198 + $0x38] sm:$0xf]
      %v3214 = vld [vmem:[%s3198 + $0x3c] sm:$0xf]
      %v3231 = vunpack.c.l.b16 %v3199
      %v3232 = vunpack.c.l.b16 %v3200
      %v3233 = vunpack.c.l.b16 %v3201
      %v3234 = vunpack.c.l.b16 %v3202
      %v3235 = vunpack.c.l.b16 %v3203
      %v3236 = vunpack.c.l.b16 %v3204
      %v3237 = vunpack.c.l.b16 %v3205
      %v3238 = vunpack.c.l.b16 %v3206
      %v3239 = vunpack.c.l.b16 %v3207
      %v3240 = vunpack.c.l.b16 %v3208
      %v3241 = vunpack.c.l.b16 %v3209
      %v3242 = vunpack.c.l.b16 %v3210
      %v3243 = vunpack.c.l.b16 %v3211
      %v3244 = vunpack.c.l.b16 %v3212
      %v3245 = vunpack.c.l.b16 %v3213
      %v3246 = vunpack.c.l.b16 %v3214
      %v3247 = vpack.c.b16 %v3232, %v3231
      %v3248 = vpack.c.b16 %v3234, %v3233
      %v3249 = vpack.c.b16 %v3236, %v3235
      %v3250 = vpack.c.b16 %v3238, %v3237
      %v3251 = vpack.c.b16 %v3240, %v3239
      %v3252 = vpack.c.b16 %v3242, %v3241
      %v3253 = vpack.c.b16 %v3244, %v3243
      %v3254 = vpack.c.b16 %v3246, %v3245
      %3263 = vmatprep.subr.bf16.mxu0 0
      %3264 = vmatpush1.bf16.msra.mxu0 %v3247
      %3265 = vmatprep.subr.bf16.mxu0 0
      %3266 = vmatpush1.bf16.msra.mxu0 %v3248
      %3267 = vmatprep.subr.bf16.mxu0 0
      %3268 = vmatpush1.bf16.msra.mxu0 %v3249
      %3269 = vmatprep.subr.bf16.mxu0 0
      %3270 = vmatpush1.bf16.msra.mxu0 %v3250
      %3271 = vmatprep.subr.bf16.mxu0 0
      %3272 = vmatpush1.bf16.msra.mxu0 %v3251
      %3273 = vmatprep.subr.bf16.mxu0 0
      %3274 = vmatpush1.bf16.msra.mxu0 %v3252
      %3275 = vmatprep.subr.bf16.mxu0 0
      %3276 = vmatpush1.bf16.msra.mxu0 %v3253
      %3277 = vmatprep.subr.bf16.mxu0 0
      %3278 = vmatpush1.bf16.msra.mxu0 %v3254
      %3279 = vmatprep.subr.bf16.mxu0 0
      %3280 = vmatpush1.bf16.msra.mxu0 0
      %3281 = vmatprep.subr.bf16.mxu0 0
      %3282 = vmatpush1.bf16.msra.mxu0 0
      %3283 = vmatprep.subr.bf16.mxu0 0
      %3284 = vmatpush1.bf16.msra.mxu0 0
      %3285 = vmatprep.subr.bf16.mxu0 0
      %3286 = vmatpush1.bf16.msra.mxu0 0
      %3287 = vmatprep.subr.bf16.mxu0 0
      %3288 = vmatpush1.bf16.msra.mxu0 0
      %3289 = vmatprep.subr.bf16.mxu0 0
      %3290 = vmatpush1.bf16.msra.mxu0 0
      %3291 = vmatprep.subr.bf16.mxu0 0
      %3292 = vmatpush1.bf16.msra.mxu0 0
      %3293 = vmatprep.subr.bf16.mxu0 0
      %3294 = vmatpush1.bf16.msra.mxu0 0
      %3295 = vmatprep.mubr.bf16.mxu0 0
      %3296 = vmatmul.mubr.bf16.gmra.mrb[0].mxu0 %v396
      %v3297 = vpop.f32.mrb[0].mxu0
      %v3298 = vpop.f32.mrb[0].mxu0
      %v3299 = vpop.f32.mrb[0].mxu0
      %v3300 = vpop.f32.mrb[0].mxu0
      %3301 = vmatprep.mubr.bf16.mxu0 0
      %3302 = vmatmul.mubr.bf16.gmra.mrb[0].mxu0 %v397
      %v3303 = vpop.f32.mrb[0].mxu0
      %v3304 = vadd.f32 0.0, %v3303
      %v3305 = vpop.f32.mrb[0].mxu0
      %v3306 = vpop.f32.mrb[0].mxu0
      %v3307 = vadd.f32 0.0, %v3306
      %v3308 = vpop.f32.mrb[0].mxu0
      %3309 = vmatprep.mubr.bf16.mxu0 0
      %3310 = vmatmul.mubr.bf16.gmra.mrb[0].mxu0 %v398
      %v3311 = vpop.f32.mrb[0].mxu0
      %v3312 = vadd.f32 0.0, %v3311
      %v3313 = vpop.f32.mrb[0].mxu0
      %v3314 = vpop.f32.mrb[0].mxu0
      %v3315 = vadd.f32 0.0, %v3314
      %v3316 = vpop.f32.mrb[0].mxu0
      %3317 = vmatprep.mubr.bf16.mxu0 0
      %3318 = vmatmul.mubr.bf16.gmra.mrb[0].mxu0 %v399
      %v3319 = vpop.f32.mrb[0].mxu0
      %v3320 = vadd.f32 0.0, %v3319
      %v3321 = vpop.f32.mrb[0].mxu0
      %v3322 = vpop.f32.mrb[0].mxu0
      %v3323 = vadd.f32 0.0, %v3322
      %v3324 = vpop.f32.mrb[0].mxu0
      %3325 = vmatprep.mubr.bf16.mxu0 0
      %3326 = vmatmul.mubr.bf16.gmra.mrb[0].mxu0 %v400
      %v3327 = vpop.f32.mrb[0].mxu0
      %v3328 = vadd.f32 0.0, %v3327
      %v3329 = vpop.f32.mrb[0].mxu0
      %v3330 = vpop.f32.mrb[0].mxu0
      %v3331 = vadd.f32 0.0, %v3330
      %v3332 = vpop.f32.mrb[0].mxu0
      %3333 = vmatprep.mubr.bf16.mxu0 0
      %3334 = vmatmul.mubr.bf16.gmra.mrb[0].mxu0 %v401
      %v3335 = vpop.f32.mrb[0].mxu0
      %v3336 = vadd.f32 0.0, %v3335
      %v3337 = vpop.f32.mrb[0].mxu0
      %v3338 = vpop.f32.mrb[0].mxu0
      %v3339 = vadd.f32 0.0, %v3338
      %v3340 = vpop.f32.mrb[0].mxu0
      %3341 = vmatprep.mubr.bf16.mxu0 0
      %3342 = vmatmul.mubr.bf16.gmra.mrb[0].mxu0 %v402
      %v3343 = vpop.f32.mrb[0].mxu0
      %v3344 = vadd.f32 0.0, %v3343
      %v3345 = vpop.f32.mrb[0].mxu0
      %v3346 = vpop.f32.mrb[0].mxu0
      %v3347 = vadd.f32 0.0, %v3346
      %v3348 = vpop.f32.mrb[0].mxu0
      %3349 = vmatprep.mubr.bf16.mxu0 0
      %3350 = vmatmul.mubr.bf16.gmra.mrb[0].mxu0 %v403
      %v3351 = vpop.f32.mrb[0].mxu0
      %v3352 = vadd.f32 0.0, %v3351
      %v3353 = vpop.f32.mrb[0].mxu0
      %v3354 = vpop.f32.mrb[0].mxu0
      %v3355 = vadd.f32 0.0, %v3354
      %v3356 = vpop.f32.mrb[0].mxu0
      %3357 = vmatprep.mubr.bf16.mxu0 0
      %3358 = vmatmul.mubr.bf16.gmra.mrb[0].mxu0 %v404
      %v3359 = vpop.f32.mrb[0].mxu0
      %v3360 = vadd.f32 0.0, %v3359
      %v3361 = vpop.f32.mrb[0].mxu0
      %v3362 = vpop.f32.mrb[0].mxu0
      %v3363 = vadd.f32 0.0, %v3362
      %v3364 = vpop.f32.mrb[0].mxu0
      %3365 = vmatprep.mubr.bf16.mxu0 0
      %3366 = vmatmul.mubr.bf16.gmra.mrb[0].mxu0 %v405
      %v3367 = vpop.f32.mrb[0].mxu0
      %v3368 = vadd.f32 0.0, %v3367
      %v3369 = vpop.f32.mrb[0].mxu0
      %v3370 = vpop.f32.mrb[0].mxu0
      %v3371 = vadd.f32 0.0, %v3370
      %v3372 = vpop.f32.mrb[0].mxu0
      %3373 = vmatprep.mubr.bf16.mxu0 0
      %3374 = vmatmul.mubr.bf16.gmra.mrb[0].mxu0 %v406
      %v3375 = vpop.f32.mrb[0].mxu0
      %v3376 = vadd.f32 0.0, %v3375
      %v3377 = vpop.f32.mrb[0].mxu0
      %v3378 = vpop.f32.mrb[0].mxu0
      %v3379 = vadd.f32 0.0, %v3378
      %v3380 = vpop.f32.mrb[0].mxu0
      %3381 = vmatprep.mubr.bf16.mxu0 0
      %3382 = vmatmul.mubr.bf16.gmra.mrb[0].mxu0 %v407
      %v3383 = vpop.f32.mrb[0].mxu0
      %v3384 = vadd.f32 0.0, %v3383
      %v3385 = vpop.f32.mrb[0].mxu0
      %v3386 = vpop.f32.mrb[0].mxu0
      %v3387 = vadd.f32 0.0, %v3386
      %v3388 = vpop.f32.mrb[0].mxu0
      %3389 = vmatprep.mubr.bf16.mxu0 0
      %3390 = vmatmul.mubr.bf16.gmra.mrb[0].mxu0 %v408
      %v3391 = vpop.f32.mrb[0].mxu0
      %v3392 = vadd.f32 0.0, %v3391
      %v3393 = vpop.f32.mrb[0].mxu0
      %v3394 = vpop.f32.mrb[0].mxu0
      %v3395 = vadd.f32 0.0, %v3394
      %v3396 = vpop.f32.mrb[0].mxu0
      %3397 = vmatprep.mubr.bf16.mxu0 0
      %3398 = vmatmul.mubr.bf16.gmra.mrb[0].mxu0 %v409
      %v3399 = vpop.f32.mrb[0].mxu0
      %v3400 = vadd.f32 0.0, %v3399
      %v3401 = vpop.f32.mrb[0].mxu0
      %v3402 = vpop.f32.mrb[0].mxu0
      %v3403 = vadd.f32 0.0, %v3402
      %v3404 = vpop.f32.mrb[0].mxu0
      %3405 = vmatprep.mubr.bf16.mxu0 0
      %3406 = vmatmul.mubr.bf16.gmra.mrb[0].mxu0 %v410
      %v3407 = vpop.f32.mrb[0].mxu0
      %v3408 = vadd.f32 0.0, %v3407
      %v3409 = vpop.f32.mrb[0].mxu0
      %v3410 = vpop.f32.mrb[0].mxu0
      %v3411 = vadd.f32 0.0, %v3410
      %v3412 = vpop.f32.mrb[0].mxu0
      %3413 = vmatprep.mubr.bf16.mxu0 0
      %3414 = vmatmul.mubr.bf16.gmra.mrb[0].mxu0 %v411
      %v3415 = vpop.f32.mrb[0].mxu0
      %v3416 = vadd.f32 0.0, %v3415
      %v3417 = vpop.f32.mrb[0].mxu0
      %v3418 = vpop.f32.mrb[0].mxu0
      %v3419 = vadd.f32 0.0, %v3418
      %v3420 = vpop.f32.mrb[0].mxu0
      %3421 = vdwg.mxu0
      %v3422 = vld [vmem:[%s246] sm:$0xff]
      %v3423 = vld [vmem:[%s246 + $0x8] sm:$0x7f]
      %v3424 = vld [vmem:[%s246 + $0x10] sm:$0xff]
      %v3425 = vld [vmem:[%s246 + $0x18] sm:$0x7f]
      %v3426 = vld [vmem:[%s246 + $0x20] sm:$0xff]
      %v3427 = vld [vmem:[%s246 + $0x28] sm:$0x7f]
      %v3428 = vld [vmem:[%s246 + $0x30] sm:$0xff]
      %v3429 = vld [vmem:[%s246 + $0x38] sm:$0x7f]
      %v3430 = vld [vmem:[%s246 + $0x40] sm:$0xff]
      %v3431 = vld [vmem:[%s246 + $0x48] sm:$0x7f]
      %v3432 = vld [vmem:[%s246 + $0x50] sm:$0xff]
      %v3433 = vld [vmem:[%s246 + $0x58] sm:$0x7f]
      %v3434 = vld [vmem:[%s246 + $0x60] sm:$0xff]
      %v3435 = vld [vmem:[%s246 + $0x68] sm:$0x7f]
      %v3436 = vld [vmem:[%s246 + $0x70] sm:$0xff]
      %v3437 = vld [vmem:[%s246 + $0x78] sm:$0x7f]
      %v3438 = vld [vmem:[%s246 + $0x80] sm:$0xff]
      %v3439 = vld [vmem:[%s246 + $0x88] sm:$0x7f]
      %v3440 = vld [vmem:[%s246 + $0x90] sm:$0xff]
      %v3441 = vld [vmem:[%s246 + $0x98] sm:$0x7f]
      %v3442 = vld [vmem:[%s246 + $0xa0] sm:$0xff]
      %v3443 = vld [vmem:[%s246 + $0xa8] sm:$0x7f]
      %v3444 = vld [vmem:[%s246 + $0xb0] sm:$0xff]
      %v3445 = vld [vmem:[%s246 + $0xb8] sm:$0x7f]
      %v3446 = vld [vmem:[%s246 + $0xc0] sm:$0xff]
      %v3447 = vld [vmem:[%s246 + $0xc8] sm:$0x7f]
      %v3448 = vld [vmem:[%s246 + $0xd0] sm:$0xff]
      %v3449 = vld [vmem:[%s246 + $0xd8] sm:$0x7f]
      %v3450 = vld [vmem:[%s246 + $0xe0] sm:$0xff]
      %v3451 = vld [vmem:[%s246 + $0xe8] sm:$0x7f]
      %v3482 = vrot.slane %v3304, 1
      %v3483 = vrot.slane %v3307, 1
      %v3484 = vsel %vm1356, %v3482, %v3483
      %v3485 = vrot.slane %v3312, 1
      %v3486 = vrot.slane %v3315, 1
      %v3487 = vsel %vm1356, %v3485, %v3486
      %v3488 = vrot.slane %v3320, 1
      %v3489 = vrot.slane %v3323, 1
      %v3490 = vsel %vm1356, %v3488, %v3489
      %v3491 = vrot.slane %v3328, 1
      %v3492 = vrot.slane %v3331, 1
      %v3493 = vsel %vm1356, %v3491, %v3492
      %v3494 = vrot.slane %v3336, 1
      %v3495 = vrot.slane %v3339, 1
      %v3496 = vsel %vm1356, %v3494, %v3495
      %v3497 = vrot.slane %v3344, 1
      %v3498 = vrot.slane %v3347, 1
      %v3499 = vsel %vm1356, %v3497, %v3498
      %v3500 = vrot.slane %v3352, 1
      %v3501 = vrot.slane %v3355, 1
      %v3502 = vsel %vm1356, %v3500, %v3501
      %v3503 = vrot.slane %v3360, 1
      %v3504 = vrot.slane %v3363, 1
      %v3505 = vsel %vm1356, %v3503, %v3504
      %v3506 = vrot.slane %v3368, 1
      %v3507 = vrot.slane %v3371, 1
      %v3508 = vsel %vm1356, %v3506, %v3507
      %v3509 = vrot.slane %v3376, 1
      %v3510 = vrot.slane %v3379, 1
      %v3511 = vsel %vm1356, %v3509, %v3510
      %v3512 = vrot.slane %v3384, 1
      %v3513 = vrot.slane %v3387, 1
      %v3514 = vsel %vm1356, %v3512, %v3513
      %v3515 = vrot.slane %v3392, 1
      %v3516 = vrot.slane %v3395, 1
      %v3517 = vsel %vm1356, %v3515, %v3516
      %v3518 = vrot.slane %v3400, 1
      %v3519 = vrot.slane %v3403, 1
      %v3520 = vsel %vm1356, %v3518, %v3519
      %v3521 = vrot.slane %v3408, 1
      %v3522 = vrot.slane %v3411, 1
      %v3523 = vsel %vm1356, %v3521, %v3522
      %v3524 = vrot.slane %v3416, 1
      %v3525 = vrot.slane %v3419, 1
      %v3526 = vsel %vm1356, %v3524, %v3525
      %v3557 = vadd.f32 %v3422, %v3484
      %v3558 = vadd.f32 %v3423, %v3483
      %v3559 = vadd.f32 %v3424, %v3487
      %v3560 = vadd.f32 %v3425, %v3486
      %v3561 = vadd.f32 %v3426, %v3490
      %v3562 = vadd.f32 %v3427, %v3489
      %v3563 = vadd.f32 %v3428, %v3493
      %v3564 = vadd.f32 %v3429, %v3492
      %v3565 = vadd.f32 %v3430, %v3496
      %v3566 = vadd.f32 %v3431, %v3495
      %v3567 = vadd.f32 %v3432, %v3499
      %v3568 = vadd.f32 %v3433, %v3498
      %v3569 = vadd.f32 %v3434, %v3502
      %v3570 = vadd.f32 %v3435, %v3501
      %v3571 = vadd.f32 %v3436, %v3505
      %v3572 = vadd.f32 %v3437, %v3504
      %v3573 = vadd.f32 %v3438, %v3508
      %v3574 = vadd.f32 %v3439, %v3507
      %v3575 = vadd.f32 %v3440, %v3511
      %v3576 = vadd.f32 %v3441, %v3510
      %v3577 = vadd.f32 %v3442, %v3514
      %v3578 = vadd.f32 %v3443, %v3513
      %v3579 = vadd.f32 %v3444, %v3517
      %v3580 = vadd.f32 %v3445, %v3516
      %v3581 = vadd.f32 %v3446, %v3520
      %v3582 = vadd.f32 %v3447, %v3519
      %v3583 = vadd.f32 %v3448, %v3523
      %v3584 = vadd.f32 %v3449, %v3522
      %v3585 = vadd.f32 %v3450, %v3526
      %v3586 = vadd.f32 %v3451, %v3525
      %3587 = vst [vmem:[%s246] sm:$0xff] %v3557
      %3588 = vst [vmem:[%s246 + $0x8] sm:$0x7f] %v3558
      %3589 = vst [vmem:[%s246 + $0x10] sm:$0xff] %v3559
      %3590 = vst [vmem:[%s246 + $0x18] sm:$0x7f] %v3560
      %3591 = vst [vmem:[%s246 + $0x20] sm:$0xff] %v3561
      %3592 = vst [vmem:[%s246 + $0x28] sm:$0x7f] %v3562
      %3593 = vst [vmem:[%s246 + $0x30] sm:$0xff] %v3563
      %3594 = vst [vmem:[%s246 + $0x38] sm:$0x7f] %v3564
      %3595 = vst [vmem:[%s246 + $0x40] sm:$0xff] %v3565
      %3596 = vst [vmem:[%s246 + $0x48] sm:$0x7f] %v3566
      %3597 = vst [vmem:[%s246 + $0x50] sm:$0xff] %v3567
      %3598 = vst [vmem:[%s246 + $0x58] sm:$0x7f] %v3568
      %3599 = vst [vmem:[%s246 + $0x60] sm:$0xff] %v3569
      %3600 = vst [vmem:[%s246 + $0x68] sm:$0x7f] %v3570
      %3601 = vst [vmem:[%s246 + $0x70] sm:$0xff] %v3571
      %3602 = vst [vmem:[%s246 + $0x78] sm:$0x7f] %v3572
      %3603 = vst [vmem:[%s246 + $0x80] sm:$0xff] %v3573
      %3604 = vst [vmem:[%s246 + $0x88] sm:$0x7f] %v3574
      %3605 = vst [vmem:[%s246 + $0x90] sm:$0xff] %v3575
      %3606 = vst [vmem:[%s246 + $0x98] sm:$0x7f] %v3576
      %3607 = vst [vmem:[%s246 + $0xa0] sm:$0xff] %v3577
      %3608 = vst [vmem:[%s246 + $0xa8] sm:$0x7f] %v3578
      %3609 = vst [vmem:[%s246 + $0xb0] sm:$0xff] %v3579
      %3610 = vst [vmem:[%s246 + $0xb8] sm:$0x7f] %v3580
      %3611 = vst [vmem:[%s246 + $0xc0] sm:$0xff] %v3581
      %3612 = vst [vmem:[%s246 + $0xc8] sm:$0x7f] %v3582
      %3613 = vst [vmem:[%s246 + $0xd0] sm:$0xff] %v3583
      %3614 = vst [vmem:[%s246 + $0xd8] sm:$0x7f] %v3584
      %3615 = vst [vmem:[%s246 + $0xe0] sm:$0xff] %v3585
      %3616 = vst [vmem:[%s246 + $0xe8] sm:$0x7f] %v3586
      %v3617 = vld [vmem:[%s246] sm:$0xff]
      %v3618 = vld [vmem:[%s246 + $0x8] sm:$0xff]
      %v3619 = vld [vmem:[%s246 + $0x10] sm:$0xff]
      %v3620 = vld [vmem:[%s246 + $0x18] sm:$0xff]
      %v3621 = vld [vmem:[%s246 + $0x20] sm:$0xff]
      %v3622 = vld [vmem:[%s246 + $0x28] sm:$0xff]
      %v3623 = vld [vmem:[%s246 + $0x30] sm:$0xff]
      %v3624 = vld [vmem:[%s246 + $0x38] sm:$0xff]
      %v3625 = vld [vmem:[%s246 + $0x40] sm:$0xff]
      %v3626 = vld [vmem:[%s246 + $0x48] sm:$0xff]
      %v3627 = vld [vmem:[%s246 + $0x50] sm:$0xff]
      %v3628 = vld [vmem:[%s246 + $0x58] sm:$0xff]
      %v3629 = vld [vmem:[%s246 + $0x60] sm:$0xff]
      %v3630 = vld [vmem:[%s246 + $0x68] sm:$0xff]
      %v3631 = vld [vmem:[%s246 + $0x70] sm:$0xff]
      %v3632 = vld [vmem:[%s246 + $0x78] sm:$0xff]
      %v3633 = vld [vmem:[%s246 + $0x80] sm:$0xff]
      %v3634 = vld [vmem:[%s246 + $0x88] sm:$0xff]
      %v3635 = vld [vmem:[%s246 + $0x90] sm:$0xff]
      %v3636 = vld [vmem:[%s246 + $0x98] sm:$0xff]
      %v3637 = vld [vmem:[%s246 + $0xa0] sm:$0xff]
      %v3638 = vld [vmem:[%s246 + $0xa8] sm:$0xff]
      %v3639 = vld [vmem:[%s246 + $0xb0] sm:$0xff]
      %v3640 = vld [vmem:[%s246 + $0xb8] sm:$0xff]
      %v3641 = vld [vmem:[%s246 + $0xc0] sm:$0xff]
      %v3642 = vld [vmem:[%s246 + $0xc8] sm:$0xff]
      %v3643 = vld [vmem:[%s246 + $0xd0] sm:$0xff]
      %v3644 = vld [vmem:[%s246 + $0xd8] sm:$0xff]
      %v3645 = vld [vmem:[%s246 + $0xe0] sm:$0xff]
      %v3646 = vld [vmem:[%s246 + $0xe8] sm:$0xff]
      %v3647 = vld [vmem:[%s246 + $0xf0] sm:$0xff]
      %v3648 = vld [vmem:[%s246 + $0xf8] sm:$0xff]
      %v3649 = vld [vmem:[%s5] sm:$0x1]
      %v3650 = vadd.f32 %v3617, %v3618
      %v3651 = vadd.f32 %v3650, %v3619
      %v3652 = vadd.f32 %v3651, %v3620
      %v3653 = vadd.f32 %v3652, %v3621
      %v3654 = vadd.f32 %v3653, %v3622
      %v3655 = vadd.f32 %v3654, %v3623
      %v3656 = vadd.f32 %v3655, %v3624
      %v3657 = vadd.f32 %v3656, %v3625
      %v3658 = vadd.f32 %v3657, %v3626
      %v3659 = vadd.f32 %v3658, %v3627
      %v3660 = vadd.f32 %v3659, %v3628
      %v3661 = vadd.f32 %v3660, %v3629
      %v3662 = vadd.f32 %v3661, %v3630
      %v3663 = vadd.f32 %v3662, %v3631
      %v3664 = vadd.f32 %v3663, %v3632
      %v3665 = vadd.f32 %v3664, %v3633
      %v3666 = vadd.f32 %v3665, %v3634
      %v3667 = vadd.f32 %v3666, %v3635
      %v3668 = vadd.f32 %v3667, %v3636
      %v3669 = vadd.f32 %v3668, %v3637
      %v3670 = vadd.f32 %v3669, %v3638
      %v3671 = vadd.f32 %v3670, %v3639
      %v3672 = vadd.f32 %v3671, %v3640
      %v3673 = vadd.f32 %v3672, %v3641
      %v3674 = vadd.f32 %v3673, %v3642
      %v3675 = vadd.f32 %v3674, %v3643
      %v3676 = vadd.f32 %v3675, %v3644
      %v3677 = vadd.f32 %v3676, %v3645
      %v3678 = vadd.f32 %v3677, %v3646
      %v3679 = vadd.f32 %v3678, %v3647
      %v3680 = vadd.f32 %v3679, %v3648
      %v3681 = vrot.slane %v3680, 4
      %v3682 = vadd.f32 %v3680, %v3681
      %v3683 = vrot.slane %v3682, 2
      %v3684 = vadd.f32 %v3682, %v3683
      %v3685 = vrot.slane %v3684, 1
      %v3686 = vadd.f32 %v3684, %v3685
      %v3687 = vadd.f32 %v3649, %v3686
      %3688 = vst [vmem:[%s5] sm:$0x1] %v3687
      %v3689 = vld [vmem:[%s6] sm:$0x1]
      %v3690 = vmul.f32 %v3617, %v3617
      %v3691 = vmul.f32 %v3618, %v3618
      %v3692 = vmul.f32 %v3619, %v3619
      %v3693 = vmul.f32 %v3620, %v3620
      %v3694 = vmul.f32 %v3621, %v3621
      %v3695 = vmul.f32 %v3622, %v3622
      %v3696 = vmul.f32 %v3623, %v3623
      %v3697 = vmul.f32 %v3624, %v3624
      %v3698 = vmul.f32 %v3625, %v3625
      %v3699 = vmul.f32 %v3626, %v3626
      %v3700 = vmul.f32 %v3627, %v3627
      %v3701 = vmul.f32 %v3628, %v3628
      %v3702 = vmul.f32 %v3629, %v3629
      %v3703 = vmul.f32 %v3630, %v3630
      %v3704 = vmul.f32 %v3631, %v3631
      %v3705 = vmul.f32 %v3632, %v3632
      %v3706 = vmul.f32 %v3633, %v3633
      %v3707 = vmul.f32 %v3634, %v3634
      %v3708 = vmul.f32 %v3635, %v3635
      %v3709 = vmul.f32 %v3636, %v3636
      %v3710 = vmul.f32 %v3637, %v3637
      %v3711 = vmul.f32 %v3638, %v3638
      %v3712 = vmul.f32 %v3639, %v3639
      %v3713 = vmul.f32 %v3640, %v3640
      %v3714 = vmul.f32 %v3641, %v3641
      %v3715 = vmul.f32 %v3642, %v3642
      %v3716 = vmul.f32 %v3643, %v3643
      %v3717 = vmul.f32 %v3644, %v3644
      %v3718 = vmul.f32 %v3645, %v3645
      %v3719 = vmul.f32 %v3646, %v3646
      %v3720 = vmul.f32 %v3647, %v3647
      %v3721 = vmul.f32 %v3648, %v3648
      %v3722 = vadd.f32 %v3690, %v3691
      %v3723 = vadd.f32 %v3722, %v3692
      %v3724 = vadd.f32 %v3723, %v3693
      %v3725 = vadd.f32 %v3724, %v3694
      %v3726 = vadd.f32 %v3725, %v3695
      %v3727 = vadd.f32 %v3726, %v3696
      %v3728 = vadd.f32 %v3727, %v3697
      %v3729 = vadd.f32 %v3728, %v3698
      %v3730 = vadd.f32 %v3729, %v3699
      %v3731 = vadd.f32 %v3730, %v3700
      %v3732 = vadd.f32 %v3731, %v3701
      %v3733 = vadd.f32 %v3732, %v3702
      %v3734 = vadd.f32 %v3733, %v3703
      %v3735 = vadd.f32 %v3734, %v3704
      %v3736 = vadd.f32 %v3735, %v3705
      %v3737 = vadd.f32 %v3736, %v3706
      %v3738 = vadd.f32 %v3737, %v3707
      %v3739 = vadd.f32 %v3738, %v3708
      %v3740 = vadd.f32 %v3739, %v3709
      %v3741 = vadd.f32 %v3740, %v3710
      %v3742 = vadd.f32 %v3741, %v3711
      %v3743 = vadd.f32 %v3742, %v3712
      %v3744 = vadd.f32 %v3743, %v3713
      %v3745 = vadd.f32 %v3744, %v3714
      %v3746 = vadd.f32 %v3745, %v3715
      %v3747 = vadd.f32 %v3746, %v3716
      %v3748 = vadd.f32 %v3747, %v3717
      %v3749 = vadd.f32 %v3748, %v3718
      %v3750 = vadd.f32 %v3749, %v3719
      %v3751 = vadd.f32 %v3750, %v3720
      %v3752 = vadd.f32 %v3751, %v3721
      %v3753 = vrot.slane %v3752, 4
      %v3754 = vadd.f32 %v3752, %v3753
      %v3755 = vrot.slane %v3754, 2
      %v3756 = vadd.f32 %v3754, %v3755
      %v3757 = vrot.slane %v3756, 1
      %v3758 = vadd.f32 %v3756, %v3757
      %v3759 = vadd.f32 %v3689, %v3758
      %3760 = vst [vmem:[%s6] sm:$0x1] %v3759
      %p3761 = scmp.lt.s32.totalorder %s18, 1
      %s3762 = scalar_select %p3761, %s18, 1
      %s3763 = smul.addr %s3762, 32
      %s3764 = smul.addr %s3763, 8
      %s3765 = scalar_lea.vmem %s4, %s3764
      // Predicated region
      $region41: #{bottleneck_forward.5} parent=35 // pred_check
        %p3766 = pneg %p125
      $region42: #{bottleneck_forward.5} parent=35 // pred_check_branch
        %3768 = sbr.rel (%p3766) target = $region44
      $region43: #{bottleneck_forward.5} parent=35 // pred_region
        _
      $region44: #{bottleneck_forward.5} parent=35 // pred_fallthru
        _
      // Predicated region
      $region45: #{bottleneck_forward.5} parent=35 // pred_check
        %p3769 = pneg %p146
      $region46: #{bottleneck_forward.5} parent=35 // pred_check_branch
        %3771 = sbr.rel (%p3769) target = $region48
      $region47: #{bottleneck_forward.5} parent=35 // pred_region
        _
      $region48: #{bottleneck_forward.5} parent=35 // pred_fallthru
        _
      // Predicated region
      $region49: #{bottleneck_forward.5} parent=35 // pred_check
        %p3772 = pneg %p167
      $region50: #{bottleneck_forward.5} parent=35 // pred_check_branch
        %3774 = sbr.rel (%p3772) target = $region52
      $region51: #{bottleneck_forward.5} parent=35 // pred_region
        _
      $region52: #{bottleneck_forward.5} parent=35 // pred_fallthru
        _
      // Predicated region
      $region53: #{bottleneck_forward.5} parent=35 // pred_check
        %p3775 = pneg %p146
      $region54: #{bottleneck_forward.5} parent=35 // pred_check_branch
        %3777 = sbr.rel (%p3775) target = $region56
      $region55: #{bottleneck_forward.5} parent=35 // pred_region
        _
      $region56: #{bottleneck_forward.5} parent=35 // pred_fallthru
        _
      // Predicated region
      $region57: #{bottleneck_forward.5} parent=35 // pred_check
        %p3778 = pneg %p167
      $region58: #{bottleneck_forward.5} parent=35 // pred_check_branch
        %3780 = sbr.rel (%p3778) target = $region60
      $region59: #{bottleneck_forward.5} parent=35 // pred_region
        _
      $region60: #{bottleneck_forward.5} parent=35 // pred_fallthru
        _
    $region36: #{bottleneck_forward.5} parent=5 // pred_fallthru
      _
    %p3781 = scmp.le.s32.totalorder 2, %s13
    // Predicated region
    $region61: #{bottleneck_forward.5} parent=5 // pred_check
      %p3782 = pneg %p3781
    $region62: #{bottleneck_forward.5} parent=5 // pred_check_branch
      %3784 = sbr.rel (%p3782) target = $region64
    $region63: #{bottleneck_forward.5} parent=5 // pred_region
      %s3785 = ssub.s32 %s13, 2
      // Predicated region
      $region65: #{bottleneck_forward.5} parent=63 // pred_check
        %p3786 = pneg %p131
      $region66: #{bottleneck_forward.5} parent=63 // pred_check_branch
        %3788 = sbr.rel (%p3786) target = $region68
      $region67: #{bottleneck_forward.5} parent=63 // pred_region
        %p3789 = scmp.lt.s32.totalorder %s19, 1
        %s3790 = scalar_select %p3789, %s19, 1
        %s3791 = smul.addr %s3790, 32
        %s3792 = smul.addr %s3791, 8
        %s3793 = scalar_lea.vmem %s4, %s3792
      $region68: #{bottleneck_forward.5} parent=63 // pred_fallthru
        _
    $region64: #{bottleneck_forward.5} parent=5 // pred_fallthru
      _
  $region6: #{bottleneck_forward.5} parent=0 // loop_footer
    %s17 = sadd.s32 1, %s13
  $region7: #{bottleneck_forward.5} parent=0 // loop_footer_branch
    %12 = sbr.rel target = $region3
  $region8: #{bottleneck_forward.5} parent=0 // loop_exit
    _

</llo_original>
